<compile_context>
chip_gen: v6e
topology: v6e:2x2x1
jax: 0.10.0
libtpu: 0.0.40
codegen_flags: <defaults>
</compile_context>

<pallas_src>
import numpy as np
import jax
import jax.numpy as jnp
from jax import lax
from jax.experimental import pallas as pl
from jax.experimental.pallas import tpu as pltpu

VOCAB = 64
EMB_DIM = 128        # lane-aligned embedding dim
HIDDEN = 32
SEQ = 8
BATCH = 2


def _sigmoid_eup(z):
    # sigmoid(z) = 0.5 * (tanh(z/2) + 1): single EUP pass, no VALU divide,
    # numerically stable for large |z|.
    return 0.5 * (jnp.tanh(0.5 * z) + 1.0)


# ----------------------------------------------------------------------------
# Fused Embedding + bidirectional single-layer LSTM with packed-sequence
# (length-mask) semantics, all resident in VMEM for one grid step.
# ----------------------------------------------------------------------------
def encoder_kernel(ids_ref, len_ref, emb_ref, wih_ref, whh_f_ref, whh_b_ref,
                   b_ref, out_ref, hn_ref, cn_ref):
    """Refs:
      ids_ref : (seq*batch, 1) int32   token ids, seq-major flatten of (seq, batch)
      len_ref : (batch, 1)     int32   per-sequence lengths
      emb_ref : (vocab, emb)   f32     embedding table
      wih_ref : (emb, 8H)      f32     [W_ih_fwd | W_ih_bwd]
      whh_*   : (H, 4H)        f32     recurrent weights (fwd / bwd)
      b_ref   : (1, 8H)        f32     [b_fwd | b_bwd] (b_ih + b_hh folded)
      out_ref : (seq, batch, 2H) f32   per-step [h_fwd | h_bwd], padded steps = 0
      hn_ref  : (1, batch, 2H)  f32    final hidden, fwd/bwd already concatenated
      cn_ref  : (1, batch, 2H)  f32    final cell,   fwd/bwd already concatenated
    """
    seq, batch, _ = out_ref.shape
    H = whh_f_ref.shape[0]
    vocab = emb_ref.shape[0]
    n_tok = seq * batch
    f32 = jnp.float32
    hp = lax.Precision.HIGHEST   # keep full f32 accuracy on the MXU

    # ---- Embedding: one-hot @ table on the MXU (OOB id -> zero row). --------
    ids = ids_ref[...]                                               # (n_tok, 1)
    one_hot = (lax.broadcasted_iota(jnp.int32, (n_tok, vocab), 1) == ids).astype(f32)
    x = jnp.dot(one_hot, emb_ref[...], preferred_element_type=f32,
                precision=hp)                                        # (n_tok, emb)

    # ---- Hoisted input projection for BOTH directions, biases folded in. ----
    # One MXU-friendly (n_tok, emb) @ (emb, 8H) pass; removes x@W_ih and +b from
    # the serial recurrence entirely.
    gates_in = jnp.dot(x, wih_ref[...], preferred_element_type=f32,
                       precision=hp) + b_ref[...]                    # (n_tok, 8H)

    whh_f = whh_f_ref[...]
    whh_b = whh_b_ref[...]
    lens = len_ref[...]                                              # (batch, 1)

    def half_step(g_in, h, c, whh):
        g = g_in + jnp.dot(h, whh, preferred_element_type=f32, precision=hp)
        sg = _sigmoid_eup(g)            # full-width (batch, 4H) activation
        th = jnp.tanh(g)                # full-width (batch, 4H) activation
        # PyTorch gate order: i, f, g, o
        c_new = sg[:, H:2 * H] * c + sg[:, 0:H] * th[:, 2 * H:3 * H]
        h_new = sg[:, 3 * H:4 * H] * jnp.tanh(c_new)
        return h_new, c_new

    zeros = jnp.zeros((batch, H), f32)
    h_f, c_f, h_b, c_b = zeros, zeros, zeros, zeros

    # Fully static unrolled time loop; forward (t) and backward (seq-1-t) chains
    # are interleaved so the two independent recurrences overlap on MXU/EUP/VPU.
    for s in range(seq):
        t_f, t_b = s, seq - 1 - s

        hf_new, cf_new = half_step(
            gates_in[t_f * batch:(t_f + 1) * batch, 0:4 * H], h_f, c_f, whh_f)
        hb_new, cb_new = half_step(
            gates_in[t_b * batch:(t_b + 1) * batch, 4 * H:8 * H], h_b, c_b, whh_b)

        m_f = t_f < lens                                             # (batch, 1) bool
        m_b = t_b < lens

        # pack/unpack semantics: padded steps write 0, states freeze past length.
        out_ref[t_f, :, 0:H] = jnp.where(m_f, hf_new, 0.0).astype(out_ref.dtype)
        out_ref[t_b, :, H:2 * H] = jnp.where(m_b, hb_new, 0.0).astype(out_ref.dtype)

        h_f = jnp.where(m_f, hf_new, h_f)
        c_f = jnp.where(m_f, cf_new, c_f)
        h_b = jnp.where(m_b, hb_new, h_b)
        c_b = jnp.where(m_b, cb_new, c_b)

    # hidden = (cat([h[0::2], h[1::2]], 2), cat([c[0::2], c[1::2]], 2)) for a
    # single-layer bi-LSTM reduces to concatenating the two directions.
    hn_ref[0, :, 0:H] = h_f.astype(hn_ref.dtype)
    hn_ref[0, :, H:2 * H] = h_b.astype(hn_ref.dtype)
    cn_ref[0, :, 0:H] = c_f.astype(cn_ref.dtype)
    cn_ref[0, :, H:2 * H] = c_b.astype(cn_ref.dtype)


def _full_spec(shape):
    n = len(shape)
    return pl.BlockSpec(shape, lambda *_, n=n: (0,) * n)


# ----------------------------------------------------------------------------
# Full EncoderRNN.forward
# ----------------------------------------------------------------------------
def encoder_rnn_forward(input_seqs, input_lengths, emb_matrix, p):
    """input_seqs: int ids [seq, batch] (batch_first=False, as in the module)."""
    seq, batch = input_seqs.shape
    vocab, emb_dim = emb_matrix.shape
    H = p["whh_f"].shape[0]
    n_tok = seq * batch

    ids2d = input_seqs.reshape(n_tok, 1).astype(jnp.int32)
    lens2d = input_lengths.reshape(batch, 1).astype(jnp.int32)
    wih_cat = jnp.concatenate([p["wih_f"], p["wih_b"]], axis=1)      # (emb, 8H)
    b_cat = jnp.concatenate([p["b_f"], p["b_b"]], axis=1)            # (1, 8H)

    out_shapes = (
        jax.ShapeDtypeStruct((seq, batch, 2 * H), jnp.float32),      # outputs
        jax.ShapeDtypeStruct((1, batch, 2 * H), jnp.float32),        # h_n (concat)
        jax.ShapeDtypeStruct((1, batch, 2 * H), jnp.float32),        # c_n (concat)
    )

    flops = (2 * n_tok * vocab * emb_dim                 # one-hot @ table
             + 2 * n_tok * emb_dim * 8 * H               # hoisted input projection
             + seq * 2 * (2 * batch * H * 4 * H))        # recurrence h @ W_hh
    transcendentals = seq * 2 * batch * 9 * H            # sigmoid/tanh per step/dir
    bytes_accessed = 4 * (n_tok + batch + vocab * emb_dim + emb_dim * 8 * H
                          + 2 * H * 4 * H + 8 * H
                          + seq * batch * 2 * H + 2 * batch * 2 * H)

    outputs, h_n, c_n = pl.pallas_call(
        encoder_kernel,
        out_shape=out_shapes,
        grid=(1,),                                       # recurrent -> single step
        in_specs=[
            _full_spec((n_tok, 1)),
            _full_spec((batch, 1)),
            _full_spec((vocab, emb_dim)),
            _full_spec((emb_dim, 8 * H)),
            _full_spec((H, 4 * H)),
            _full_spec((H, 4 * H)),
            _full_spec((1, 8 * H)),
        ],
        out_specs=(
            _full_spec((seq, batch, 2 * H)),
            _full_spec((1, batch, 2 * H)),
            _full_spec((1, batch, 2 * H)),
        ),
        compiler_params=pltpu.CompilerParams(
            dimension_semantics=("arbitrary",)),
        cost_estimate=pl.CostEstimate(
            flops=flops,
            transcendentals=transcendentals,
            bytes_accessed=bytes_accessed),
    )(ids2d, lens2d, emb_matrix, wih_cat, p["whh_f"], p["whh_b"], b_cat)

    return outputs, (h_n, c_n)


# ----------------------------------------------------------------------------
# Pure numpy reference (f32) reproducing pack->biLSTM->unpack semantics.
# ----------------------------------------------------------------------------
def _np_sigmoid(x):
    return 1.0 / (1.0 + np.exp(-x))


def ref_encoder_rnn(input_seqs, input_lengths, emb_matrix, p):
    ids = np.asarray(input_seqs)
    lens = np.asarray(input_lengths)
    emb = np.asarray(emb_matrix)
    seq, batch = ids.shape
    H = np.asarray(p["whh_f"]).shape[0]
    x = emb[ids]                                              # (seq, batch, E)

    def run(wih, whh, b, reverse):
        wih = np.asarray(wih); whh = np.asarray(whh); b = np.asarray(b)
        h = np.zeros((batch, H), np.float32)
        c = np.zeros((batch, H), np.float32)
        outs = np.zeros((seq, batch, H), np.float32)
        order = range(seq - 1, -1, -1) if reverse else range(seq)
        for t in order:
            gates = x[t] @ wih + h @ whh + b
            i = _np_sigmoid(gates[:, 0 * H:1 * H]); f = _np_sigmoid(gates[:, 1 * H:2 * H])
            g = np.tanh(gates[:, 2 * H:3 * H]); o = _np_sigmoid(gates[:, 3 * H:4 * H])
            c_new = f * c + i * g
            h_new = o * np.tanh(c_new)
            m = (t < lens)[:, None].astype(np.float32)
            h = m * h_new + (1.0 - m) * h
            c = m * c_new + (1.0 - m) * c
            outs[t] = m * h_new
        return outs, h, c

    of, hf, cf = run(p["wih_f"], p["whh_f"], p["b_f"], False)
    ob, hb, cb = run(p["wih_b"], p["whh_b"], p["b_b"], True)
    outputs = np.concatenate([of, ob], axis=-1)
    h_n = np.stack([hf, hb], 0); c_n = np.stack([cf, cb], 0)
    return outputs, (np.concatenate([h_n[0::2], h_n[1::2]], axis=2),
                     np.concatenate([c_n[0::2], c_n[1::2]], axis=2))


if __name__ == "__main__":
    key = jax.random.PRNGKey(0)
    ks = jax.random.split(key, 8)

    emb_matrix = jax.random.normal(ks[0], (VOCAB, EMB_DIM), dtype=jnp.float32)
    input_seqs = jax.random.randint(ks[1], (SEQ, BATCH), 0, VOCAB, dtype=jnp.int32)
    input_lengths = jnp.array([SEQ, 5], dtype=jnp.int32)      # variable lengths

    s = 0.1
    params = {
        "wih_f": jax.random.normal(ks[2], (EMB_DIM, 4 * HIDDEN), jnp.float32) * s,
        "whh_f": jax.random.normal(ks[3], (HIDDEN, 4 * HIDDEN), jnp.float32) * s,
        "b_f":   jax.random.normal(ks[4], (1, 4 * HIDDEN), jnp.float32) * s,
        "wih_b": jax.random.normal(ks[5], (EMB_DIM, 4 * HIDDEN), jnp.float32) * s,
        "whh_b": jax.random.normal(ks[6], (HIDDEN, 4 * HIDDEN), jnp.float32) * s,
        "b_b":   jax.random.normal(ks[7], (1, 4 * HIDDEN), jnp.float32) * s,
    }

    encoder = jax.jit(encoder_rnn_forward)
    outputs, (h, c) = encoder(input_seqs, input_lengths, emb_matrix, params)
    outputs, h, c = jax.block_until_ready((outputs, h, c))

    assert outputs.shape == (SEQ, BATCH, 2 * HIDDEN)
    assert h.shape == (1, BATCH, 2 * HIDDEN) and c.shape == (1, BATCH, 2 * HIDDEN)

    ref_out, (ref_h, ref_c) = ref_encoder_rnn(input_seqs, input_lengths, emb_matrix, params)
    # f32 MXU (precision=HIGHEST) + EUP transcendental rounding only -> tight check.
    np.testing.assert_allclose(np.asarray(outputs), ref_out, rtol=1e-4, atol=1e-5)
    np.testing.assert_allclose(np.asarray(h), ref_h, rtol=1e-4, atol=1e-5)
    np.testing.assert_allclose(np.asarray(c), ref_c, rtol=1e-4, atol=1e-5)

    print("KERNEL_OK")
</pallas_src>

<mosaic_0001>
module attributes {stable_mosaic.version = 11 : i64} {
  func.func @encoder_kernel(%arg0: i32, %arg1: memref<16x1xi32, #tpu.memory_space<vmem>>, %arg2: memref<2x1xi32, #tpu.memory_space<vmem>>, %arg3: memref<64x128xf32, #tpu.memory_space<vmem>>, %arg4: memref<128x256xf32, #tpu.memory_space<vmem>>, %arg5: memref<32x128xf32, #tpu.memory_space<vmem>>, %arg6: memref<32x128xf32, #tpu.memory_space<vmem>>, %arg7: memref<1x256xf32, #tpu.memory_space<vmem>>, %arg8: memref<8x2x64xf32, #tpu.memory_space<vmem>>, %arg9: memref<1x2x64xf32, #tpu.memory_space<vmem>>, %arg10: memref<1x2x64xf32, #tpu.memory_space<vmem>>) attributes {dimension_semantics = [#tpu.dimension_semantics<arbitrary>], iteration_bounds = array<i64: 1>, scalar_prefetch = 0 : i64, scratch_operands = 0 : i64, tpu.core_type = #tpu.core_type<tc>, window_params = [{pipeline_mode = #tpu.pipeline_mode<synchronous>, transform_indices = @transform_0, window_bounds = array<i64: 16, 1>}, {pipeline_mode = #tpu.pipeline_mode<synchronous>, transform_indices = @transform_1, window_bounds = array<i64: 2, 1>}, {pipeline_mode = #tpu.pipeline_mode<synchronous>, transform_indices = @transform_2, window_bounds = array<i64: 64, 128>}, {pipeline_mode = #tpu.pipeline_mode<synchronous>, transform_indices = @transform_3, window_bounds = array<i64: 128, 256>}, {pipeline_mode = #tpu.pipeline_mode<synchronous>, transform_indices = @transform_4, window_bounds = array<i64: 32, 128>}, {pipeline_mode = #tpu.pipeline_mode<synchronous>, transform_indices = @transform_5, window_bounds = array<i64: 32, 128>}, {pipeline_mode = #tpu.pipeline_mode<synchronous>, transform_indices = @transform_6, window_bounds = array<i64: 1, 256>}, {pipeline_mode = #tpu.pipeline_mode<synchronous>, transform_indices = @transform_7, window_bounds = array<i64: 8, 2, 64>}, {pipeline_mode = #tpu.pipeline_mode<synchronous>, transform_indices = @transform_8, window_bounds = array<i64: 1, 2, 64>}, {pipeline_mode = #tpu.pipeline_mode<synchronous>, transform_indices = @transform_9, window_bounds = array<i64: 1, 2, 64>}]} {
    %c0 = arith.constant 0 : index
    %c0_0 = arith.constant 0 : index
    %0 = vector.load %arg1[%c0, %c0_0] : memref<16x1xi32, #tpu.memory_space<vmem>>, vector<16x1xi32>
    %1 = tpu.iota {dimensions = array<i32: 1>} : vector<16x64xi32>
    %2 = vector.broadcast %0 : vector<16x1xi32> to vector<16x64xi32>
    %3 = arith.cmpi eq, %1, %2 : vector<16x64xi32>
    %4 = arith.extui %3 : vector<16x64xi1> to vector<16x64xi32>
    %5 = arith.sitofp %4 : vector<16x64xi32> to vector<16x64xf32>
    %c0_1 = arith.constant 0 : index
    %c0_2 = arith.constant 0 : index
    %6 = vector.load %arg3[%c0_1, %c0_2] : memref<64x128xf32, #tpu.memory_space<vmem>>, vector<64x128xf32>
    %cst = arith.constant dense<0.000000e+00> : vector<16x128xf32>
    %7 = tpu.matmul %5, %6, %cst {dimension_numbers = #tpu.dot_dimension_numbers<[1], [0], [0], [1], [0, 0, 1, 1], [], []>, precision = #tpu.contract_precision<fp32>} : vector<16x64xf32>, vector<64x128xf32>, vector<16x128xf32> -> vector<16x128xf32>
    %c0_3 = arith.constant 0 : index
    %c0_4 = arith.constant 0 : index
    %8 = vector.load %arg4[%c0_3, %c0_4] : memref<128x256xf32, #tpu.memory_space<vmem>>, vector<128x256xf32>
    %cst_5 = arith.constant dense<0.000000e+00> : vector<16x256xf32>
    %9 = tpu.matmul %7, %8, %cst_5 {dimension_numbers = #tpu.dot_dimension_numbers<[1], [0], [0], [1], [0, 0, 1, 1], [], []>, precision = #tpu.contract_precision<fp32>} : vector<16x128xf32>, vector<128x256xf32>, vector<16x256xf32> -> vector<16x256xf32>
    %c0_6 = arith.constant 0 : index
    %c0_7 = arith.constant 0 : index
    %10 = vector.load %arg7[%c0_6, %c0_7] : memref<1x256xf32, #tpu.memory_space<vmem>>, vector<1x256xf32>
    %11 = vector.broadcast %10 : vector<1x256xf32> to vector<16x256xf32>
    %12 = arith.addf %9, %11 : vector<16x256xf32>
    %c0_8 = arith.constant 0 : index
    %c0_9 = arith.constant 0 : index
    %13 = vector.load %arg5[%c0_8, %c0_9] : memref<32x128xf32, #tpu.memory_space<vmem>>, vector<32x128xf32>
    %c0_10 = arith.constant 0 : index
    %c0_11 = arith.constant 0 : index
    %14 = vector.load %arg6[%c0_10, %c0_11] : memref<32x128xf32, #tpu.memory_space<vmem>>, vector<32x128xf32>
    %c0_12 = arith.constant 0 : index
    %c0_13 = arith.constant 0 : index
    %15 = vector.load %arg2[%c0_12, %c0_13] : memref<2x1xi32, #tpu.memory_space<vmem>>, vector<2x1xi32>
    %cst_14 = arith.constant 0.000000e+00 : f32
    %16 = vector.broadcast %cst_14 : f32 to vector<2x32xf32>
    %17 = vector.extract_strided_slice %12 {offsets = [0, 0], sizes = [2, 128], strides = [1, 1]} : vector<16x256xf32> to vector<2x128xf32>
    %cst_15 = arith.constant dense<0.000000e+00> : vector<2x128xf32>
    %18 = tpu.matmul %16, %13, %cst_15 {dimension_numbers = #tpu.dot_dimension_numbers<[1], [0], [0], [1], [0, 0, 1, 1], [], []>, precision = #tpu.contract_precision<fp32>} : vector<2x32xf32>, vector<32x128xf32>, vector<2x128xf32> -> vector<2x128xf32>
    %19 = arith.addf %17, %18 : vector<2x128xf32>
    %cst_16 = arith.constant 5.000000e-01 : f32
    %20 = vector.broadcast %cst_16 : f32 to vector<2x128xf32>
    %21 = arith.mulf %20, %19 : vector<2x128xf32>
    %22 = math.tanh %21 : vector<2x128xf32>
    %cst_17 = arith.constant 1.000000e+00 : f32
    %23 = vector.broadcast %cst_17 : f32 to vector<2x128xf32>
    %24 = arith.addf %22, %23 : vector<2x128xf32>
    %cst_18 = arith.constant 5.000000e-01 : f32
    %25 = vector.broadcast %cst_18 : f32 to vector<2x128xf32>
    %26 = arith.mulf %25, %24 : vector<2x128xf32>
    %27 = math.tanh %19 : vector<2x128xf32>
    %28 = vector.extract_strided_slice %26 {offsets = [0, 32], sizes = [2, 32], strides = [1, 1]} : vector<2x128xf32> to vector<2x32xf32>
    %29 = arith.mulf %28, %16 : vector<2x32xf32>
    %30 = vector.extract_strided_slice %26 {offsets = [0, 0], sizes = [2, 32], strides = [1, 1]} : vector<2x128xf32> to vector<2x32xf32>
    %31 = vector.extract_strided_slice %27 {offsets = [0, 64], sizes = [2, 32], strides = [1, 1]} : vector<2x128xf32> to vector<2x32xf32>
    %32 = arith.mulf %30, %31 : vector<2x32xf32>
    %33 = arith.addf %29, %32 : vector<2x32xf32>
    %34 = vector.extract_strided_slice %26 {offsets = [0, 96], sizes = [2, 32], strides = [1, 1]} : vector<2x128xf32> to vector<2x32xf32>
    %35 = math.tanh %33 : vector<2x32xf32>
    %36 = arith.mulf %34, %35 : vector<2x32xf32>
    %37 = vector.extract_strided_slice %12 {offsets = [14, 128], sizes = [2, 128], strides = [1, 1]} : vector<16x256xf32> to vector<2x128xf32>
    %cst_19 = arith.constant dense<0.000000e+00> : vector<2x128xf32>
    %38 = tpu.matmul %16, %14, %cst_19 {dimension_numbers = #tpu.dot_dimension_numbers<[1], [0], [0], [1], [0, 0, 1, 1], [], []>, precision = #tpu.contract_precision<fp32>} : vector<2x32xf32>, vector<32x128xf32>, vector<2x128xf32> -> vector<2x128xf32>
    %39 = arith.addf %37, %38 : vector<2x128xf32>
    %cst_20 = arith.constant 5.000000e-01 : f32
    %40 = vector.broadcast %cst_20 : f32 to vector<2x128xf32>
    %41 = arith.mulf %40, %39 : vector<2x128xf32>
    %42 = math.tanh %41 : vector<2x128xf32>
    %cst_21 = arith.constant 1.000000e+00 : f32
    %43 = vector.broadcast %cst_21 : f32 to vector<2x128xf32>
    %44 = arith.addf %42, %43 : vector<2x128xf32>
    %cst_22 = arith.constant 5.000000e-01 : f32
    %45 = vector.broadcast %cst_22 : f32 to vector<2x128xf32>
    %46 = arith.mulf %45, %44 : vector<2x128xf32>
    %47 = math.tanh %39 : vector<2x128xf32>
    %48 = vector.extract_strided_slice %46 {offsets = [0, 32], sizes = [2, 32], strides = [1, 1]} : vector<2x128xf32> to vector<2x32xf32>
    %49 = arith.mulf %48, %16 : vector<2x32xf32>
    %50 = vector.extract_strided_slice %46 {offsets = [0, 0], sizes = [2, 32], strides = [1, 1]} : vector<2x128xf32> to vector<2x32xf32>
    %51 = vector.extract_strided_slice %47 {offsets = [0, 64], sizes = [2, 32], strides = [1, 1]} : vector<2x128xf32> to vector<2x32xf32>
    %52 = arith.mulf %50, %51 : vector<2x32xf32>
    %53 = arith.addf %49, %52 : vector<2x32xf32>
    %54 = vector.extract_strided_slice %46 {offsets = [0, 96], sizes = [2, 32], strides = [1, 1]} : vector<2x128xf32> to vector<2x32xf32>
    %55 = math.tanh %53 : vector<2x32xf32>
    %56 = arith.mulf %54, %55 : vector<2x32xf32>
    %c0_i32 = arith.constant 0 : i32
    %57 = vector.broadcast %c0_i32 : i32 to vector<2x1xi32>
    %58 = arith.cmpi sgt, %15, %57 : vector<2x1xi32>
    %c7_i32 = arith.constant 7 : i32
    %59 = vector.broadcast %c7_i32 : i32 to vector<2x1xi32>
    %60 = arith.cmpi sgt, %15, %59 : vector<2x1xi32>
    %cst_23 = arith.constant 0.000000e+00 : f32
    %61 = vector.shape_cast %58 : vector<2x1xi1> to vector<2x1xi1>
    %62 = vector.broadcast %61 : vector<2x1xi1> to vector<2x32xi1>
    %63 = vector.broadcast %cst_23 : f32 to vector<2x32xf32>
    %64 = arith.select %62, %36, %63 : vector<2x32xi1>, vector<2x32xf32>
    %c0_24 = arith.constant 0 : index
    %c0_25 = arith.constant 0 : index
    %c0_26 = arith.constant 0 : index
    %65 = vector.load %arg8[%c0_24, %c0_25, %c0_26] : memref<8x2x64xf32, #tpu.memory_space<vmem>>, vector<1x2x32xf32>
    %66 = vector.shape_cast %65 : vector<1x2x32xf32> to vector<2x32xf32>
    %67 = vector.shape_cast %64 : vector<2x32xf32> to vector<1x2x32xf32>
    tpu.vector_store %arg8[%c0_24, %c0_25, %c0_26], %67 {strides = array<i32>} : memref<8x2x64xf32, #tpu.memory_space<vmem>>, vector<1x2x32xf32>,
    %cst_27 = arith.constant 0.000000e+00 : f32
    %68 = vector.shape_cast %60 : vector<2x1xi1> to vector<2x1xi1>
    %69 = vector.broadcast %68 : vector<2x1xi1> to vector<2x32xi1>
    %70 = vector.broadcast %cst_27 : f32 to vector<2x32xf32>
    %71 = arith.select %69, %56, %70 : vector<2x32xi1>, vector<2x32xf32>
    %c7 = arith.constant 7 : index
    %c0_28 = arith.constant 0 : index
    %c32 = arith.constant 32 : index
    %72 = vector.load %arg8[%c7, %c0_28, %c32] : memref<8x2x64xf32, #tpu.memory_space<vmem>>, vector<1x2x32xf32>
    %73 = vector.shape_cast %72 : vector<1x2x32xf32> to vector<2x32xf32>
    %74 = vector.shape_cast %71 : vector<2x32xf32> to vector<1x2x32xf32>
    tpu.vector_store %arg8[%c7, %c0_28, %c32], %74 {strides = array<i32>} : memref<8x2x64xf32, #tpu.memory_space<vmem>>, vector<1x2x32xf32>,
    %75 = vector.shape_cast %58 : vector<2x1xi1> to vector<2x1xi1>
    %76 = vector.broadcast %75 : vector<2x1xi1> to vector<2x32xi1>
    %77 = arith.select %76, %36, %16 : vector<2x32xi1>, vector<2x32xf32>
    %78 = vector.shape_cast %58 : vector<2x1xi1> to vector<2x1xi1>
    %79 = vector.broadcast %78 : vector<2x1xi1> to vector<2x32xi1>
    %80 = arith.select %79, %33, %16 : vector<2x32xi1>, vector<2x32xf32>
    %81 = vector.shape_cast %60 : vector<2x1xi1> to vector<2x1xi1>
    %82 = vector.broadcast %81 : vector<2x1xi1> to vector<2x32xi1>
    %83 = arith.select %82, %56, %16 : vector<2x32xi1>, vector<2x32xf32>
    %84 = vector.shape_cast %60 : vector<2x1xi1> to vector<2x1xi1>
    %85 = vector.broadcast %84 : vector<2x1xi1> to vector<2x32xi1>
    %86 = arith.select %85, %53, %16 : vector<2x32xi1>, vector<2x32xf32>
    %87 = vector.extract_strided_slice %12 {offsets = [2, 0], sizes = [2, 128], strides = [1, 1]} : vector<16x256xf32> to vector<2x128xf32>
    %cst_29 = arith.constant dense<0.000000e+00> : vector<2x128xf32>
    %88 = tpu.matmul %77, %13, %cst_29 {dimension_numbers = #tpu.dot_dimension_numbers<[1], [0], [0], [1], [0, 0, 1, 1], [], []>, precision = #tpu.contract_precision<fp32>} : vector<2x32xf32>, vector<32x128xf32>, vector<2x128xf32> -> vector<2x128xf32>
    %89 = arith.addf %87, %88 : vector<2x128xf32>
    %cst_30 = arith.constant 5.000000e-01 : f32
    %90 = vector.broadcast %cst_30 : f32 to vector<2x128xf32>
    %91 = arith.mulf %90, %89 : vector<2x128xf32>
    %92 = math.tanh %91 : vector<2x128xf32>
    %cst_31 = arith.constant 1.000000e+00 : f32
    %93 = vector.broadcast %cst_31 : f32 to vector<2x128xf32>
    %94 = arith.addf %92, %93 : vector<2x128xf32>
    %cst_32 = arith.constant 5.000000e-01 : f32
    %95 = vector.broadcast %cst_32 : f32 to vector<2x128xf32>
    %96 = arith.mulf %95, %94 : vector<2x128xf32>
    %97 = math.tanh %89 : vector<2x128xf32>
    %98 = vector.extract_strided_slice %96 {offsets = [0, 32], sizes = [2, 32], strides = [1, 1]} : vector<2x128xf32> to vector<2x32xf32>
    %99 = arith.mulf %98, %80 : vector<2x32xf32>
    %100 = vector.extract_strided_slice %96 {offsets = [0, 0], sizes = [2, 32], strides = [1, 1]} : vector<2x128xf32> to vector<2x32xf32>
    %101 = vector.extract_strided_slice %97 {offsets = [0, 64], sizes = [2, 32], strides = [1, 1]} : vector<2x128xf32> to vector<2x32xf32>
    %102 = arith.mulf %100, %101 : vector<2x32xf32>
    %103 = arith.addf %99, %102 : vector<2x32xf32>
    %104 = vector.extract_strided_slice %96 {offsets = [0, 96], sizes = [2, 32], strides = [1, 1]} : vector<2x128xf32> to vector<2x32xf32>
    %105 = math.tanh %103 : vector<2x32xf32>
    %106 = arith.mulf %104, %105 : vector<2x32xf32>
    %107 = vector.extract_strided_slice %12 {offsets = [12, 128], sizes = [2, 128], strides = [1, 1]} : vector<16x256xf32> to vector<2x128xf32>
    %cst_33 = arith.constant dense<0.000000e+00> : vector<2x128xf32>
    %108 = tpu.matmul %83, %14, %cst_33 {dimension_numbers = #tpu.dot_dimension_numbers<[1], [0], [0], [1], [0, 0, 1, 1], [], []>, precision = #tpu.contract_precision<fp32>} : vector<2x32xf32>, vector<32x128xf32>, vector<2x128xf32> -> vector<2x128xf32>
    %109 = arith.addf %107, %108 : vector<2x128xf32>
    %cst_34 = arith.constant 5.000000e-01 : f32
    %110 = vector.broadcast %cst_34 : f32 to vector<2x128xf32>
    %111 = arith.mulf %110, %109 : vector<2x128xf32>
    %112 = math.tanh %111 : vector<2x128xf32>
    %cst_35 = arith.constant 1.000000e+00 : f32
    %113 = vector.broadcast %cst_35 : f32 to vector<2x128xf32>
    %114 = arith.addf %112, %113 : vector<2x128xf32>
    %cst_36 = arith.constant 5.000000e-01 : f32
    %115 = vector.broadcast %cst_36 : f32 to vector<2x128xf32>
    %116 = arith.mulf %115, %114 : vector<2x128xf32>
    %117 = math.tanh %109 : vector<2x128xf32>
    %118 = vector.extract_strided_slice %116 {offsets = [0, 32], sizes = [2, 32], strides = [1, 1]} : vector<2x128xf32> to vector<2x32xf32>
    %119 = arith.mulf %118, %86 : vector<2x32xf32>
    %120 = vector.extract_strided_slice %116 {offsets = [0, 0], sizes = [2, 32], strides = [1, 1]} : vector<2x128xf32> to vector<2x32xf32>
    %121 = vector.extract_strided_slice %117 {offsets = [0, 64], sizes = [2, 32], strides = [1, 1]} : vector<2x128xf32> to vector<2x32xf32>
    %122 = arith.mulf %120, %121 : vector<2x32xf32>
    %123 = arith.addf %119, %122 : vector<2x32xf32>
    %124 = vector.extract_strided_slice %116 {offsets = [0, 96], sizes = [2, 32], strides = [1, 1]} : vector<2x128xf32> to vector<2x32xf32>
    %125 = math.tanh %123 : vector<2x32xf32>
    %126 = arith.mulf %124, %125 : vector<2x32xf32>
    %c1_i32 = arith.constant 1 : i32
    %127 = vector.broadcast %c1_i32 : i32 to vector<2x1xi32>
    %128 = arith.cmpi sgt, %15, %127 : vector<2x1xi32>
    %c6_i32 = arith.constant 6 : i32
    %129 = vector.broadcast %c6_i32 : i32 to vector<2x1xi32>
    %130 = arith.cmpi sgt, %15, %129 : vector<2x1xi32>
    %cst_37 = arith.constant 0.000000e+00 : f32
    %131 = vector.shape_cast %128 : vector<2x1xi1> to vector<2x1xi1>
    %132 = vector.broadcast %131 : vector<2x1xi1> to vector<2x32xi1>
    %133 = vector.broadcast %cst_37 : f32 to vector<2x32xf32>
    %134 = arith.select %132, %106, %133 : vector<2x32xi1>, vector<2x32xf32>
    %c1 = arith.constant 1 : index
    %c0_38 = arith.constant 0 : index
    %c0_39 = arith.constant 0 : index
    %135 = vector.load %arg8[%c1, %c0_38, %c0_39] : memref<8x2x64xf32, #tpu.memory_space<vmem>>, vector<1x2x32xf32>
    %136 = vector.shape_cast %135 : vector<1x2x32xf32> to vector<2x32xf32>
    %137 = vector.shape_cast %134 : vector<2x32xf32> to vector<1x2x32xf32>
    tpu.vector_store %arg8[%c1, %c0_38, %c0_39], %137 {strides = array<i32>} : memref<8x2x64xf32, #tpu.memory_space<vmem>>, vector<1x2x32xf32>,
    %cst_40 = arith.constant 0.000000e+00 : f32
    %138 = vector.shape_cast %130 : vector<2x1xi1> to vector<2x1xi1>
    %139 = vector.broadcast %138 : vector<2x1xi1> to vector<2x32xi1>
    %140 = vector.broadcast %cst_40 : f32 to vector<2x32xf32>
    %141 = arith.select %139, %126, %140 : vector<2x32xi1>, vector<2x32xf32>
    %c6 = arith.constant 6 : index
    %c0_41 = arith.constant 0 : index
    %c32_42 = arith.constant 32 : index
    %142 = vector.load %arg8[%c6, %c0_41, %c32_42] : memref<8x2x64xf32, #tpu.memory_space<vmem>>, vector<1x2x32xf32>
    %143 = vector.shape_cast %142 : vector<1x2x32xf32> to vector<2x32xf32>
    %144 = vector.shape_cast %141 : vector<2x32xf32> to vector<1x2x32xf32>
    tpu.vector_store %arg8[%c6, %c0_41, %c32_42], %144 {strides = array<i32>} : memref<8x2x64xf32, #tpu.memory_space<vmem>>, vector<1x2x32xf32>,
    %145 = vector.shape_cast %128 : vector<2x1xi1> to vector<2x1xi1>
    %146 = vector.broadcast %145 : vector<2x1xi1> to vector<2x32xi1>
    %147 = arith.select %146, %106, %77 : vector<2x32xi1>, vector<2x32xf32>
    %148 = vector.shape_cast %128 : vector<2x1xi1> to vector<2x1xi1>
    %149 = vector.broadcast %148 : vector<2x1xi1> to vector<2x32xi1>
    %150 = arith.select %149, %103, %80 : vector<2x32xi1>, vector<2x32xf32>
    %151 = vector.shape_cast %130 : vector<2x1xi1> to vector<2x1xi1>
    %152 = vector.broadcast %151 : vector<2x1xi1> to vector<2x32xi1>
    %153 = arith.select %152, %126, %83 : vector<2x32xi1>, vector<2x32xf32>
    %154 = vector.shape_cast %130 : vector<2x1xi1> to vector<2x1xi1>
    %155 = vector.broadcast %154 : vector<2x1xi1> to vector<2x32xi1>
    %156 = arith.select %155, %123, %86 : vector<2x32xi1>, vector<2x32xf32>
    %157 = vector.extract_strided_slice %12 {offsets = [4, 0], sizes = [2, 128], strides = [1, 1]} : vector<16x256xf32> to vector<2x128xf32>
    %cst_43 = arith.constant dense<0.000000e+00> : vector<2x128xf32>
    %158 = tpu.matmul %147, %13, %cst_43 {dimension_numbers = #tpu.dot_dimension_numbers<[1], [0], [0], [1], [0, 0, 1, 1], [], []>, precision = #tpu.contract_precision<fp32>} : vector<2x32xf32>, vector<32x128xf32>, vector<2x128xf32> -> vector<2x128xf32>
    %159 = arith.addf %157, %158 : vector<2x128xf32>
    %cst_44 = arith.constant 5.000000e-01 : f32
    %160 = vector.broadcast %cst_44 : f32 to vector<2x128xf32>
    %161 = arith.mulf %160, %159 : vector<2x128xf32>
    %162 = math.tanh %161 : vector<2x128xf32>
    %cst_45 = arith.constant 1.000000e+00 : f32
    %163 = vector.broadcast %cst_45 : f32 to vector<2x128xf32>
    %164 = arith.addf %162, %163 : vector<2x128xf32>
    %cst_46 = arith.constant 5.000000e-01 : f32
    %165 = vector.broadcast %cst_46 : f32 to vector<2x128xf32>
    %166 = arith.mulf %165, %164 : vector<2x128xf32>
    %167 = math.tanh %159 : vector<2x128xf32>
    %168 = vector.extract_strided_slice %166 {offsets = [0, 32], sizes = [2, 32], strides = [1, 1]} : vector<2x128xf32> to vector<2x32xf32>
    %169 = arith.mulf %168, %150 : vector<2x32xf32>
    %170 = vector.extract_strided_slice %166 {offsets = [0, 0], sizes = [2, 32], strides = [1, 1]} : vector<2x128xf32> to vector<2x32xf32>
    %171 = vector.extract_strided_slice %167 {offsets = [0, 64], sizes = [2, 32], strides = [1, 1]} : vector<2x128xf32> to vector<2x32xf32>
    %172 = arith.mulf %170, %171 : vector<2x32xf32>
    %173 = arith.addf %169, %172 : vector<2x32xf32>
    %174 = vector.extract_strided_slice %166 {offsets = [0, 96], sizes = [2, 32], strides = [1, 1]} : vector<2x128xf32> to vector<2x32xf32>
    %175 = math.tanh %173 : vector<2x32xf32>
    %176 = arith.mulf %174, %175 : vector<2x32xf32>
    %177 = vector.extract_strided_slice %12 {offsets = [10, 128], sizes = [2, 128], strides = [1, 1]} : vector<16x256xf32> to vector<2x128xf32>
    %cst_47 = arith.constant dense<0.000000e+00> : vector<2x128xf32>
    %178 = tpu.matmul %153, %14, %cst_47 {dimension_numbers = #tpu.dot_dimension_numbers<[1], [0], [0], [1], [0, 0, 1, 1], [], []>, precision = #tpu.contract_precision<fp32>} : vector<2x32xf32>, vector<32x128xf32>, vector<2x128xf32> -> vector<2x128xf32>
    %179 = arith.addf %177, %178 : vector<2x128xf32>
    %cst_48 = arith.constant 5.000000e-01 : f32
    %180 = vector.broadcast %cst_48 : f32 to vector<2x128xf32>
    %181 = arith.mulf %180, %179 : vector<2x128xf32>
    %182 = math.tanh %181 : vector<2x128xf32>
    %cst_49 = arith.constant 1.000000e+00 : f32
    %183 = vector.broadcast %cst_49 : f32 to vector<2x128xf32>
    %184 = arith.addf %182, %183 : vector<2x128xf32>
    %cst_50 = arith.constant 5.000000e-01 : f32
    %185 = vector.broadcast %cst_50 : f32 to vector<2x128xf32>
    %186 = arith.mulf %185, %184 : vector<2x128xf32>
    %187 = math.tanh %179 : vector<2x128xf32>
    %188 = vector.extract_strided_slice %186 {offsets = [0, 32], sizes = [2, 32], strides = [1, 1]} : vector<2x128xf32> to vector<2x32xf32>
    %189 = arith.mulf %188, %156 : vector<2x32xf32>
    %190 = vector.extract_strided_slice %186 {offsets = [0, 0], sizes = [2, 32], strides = [1, 1]} : vector<2x128xf32> to vector<2x32xf32>
    %191 = vector.extract_strided_slice %187 {offsets = [0, 64], sizes = [2, 32], strides = [1, 1]} : vector<2x128xf32> to vector<2x32xf32>
    %192 = arith.mulf %190, %191 : vector<2x32xf32>
    %193 = arith.addf %189, %192 : vector<2x32xf32>
    %194 = vector.extract_strided_slice %186 {offsets = [0, 96], sizes = [2, 32], strides = [1, 1]} : vector<2x128xf32> to vector<2x32xf32>
    %195 = math.tanh %193 : vector<2x32xf32>
    %196 = arith.mulf %194, %195 : vector<2x32xf32>
    %c2_i32 = arith.constant 2 : i32
    %197 = vector.broadcast %c2_i32 : i32 to vector<2x1xi32>
    %198 = arith.cmpi sgt, %15, %197 : vector<2x1xi32>
    %c5_i32 = arith.constant 5 : i32
    %199 = vector.broadcast %c5_i32 : i32 to vector<2x1xi32>
    %200 = arith.cmpi sgt, %15, %199 : vector<2x1xi32>
    %cst_51 = arith.constant 0.000000e+00 : f32
    %201 = vector.shape_cast %198 : vector<2x1xi1> to vector<2x1xi1>
    %202 = vector.broadcast %201 : vector<2x1xi1> to vector<2x32xi1>
    %203 = vector.broadcast %cst_51 : f32 to vector<2x32xf32>
    %204 = arith.select %202, %176, %203 : vector<2x32xi1>, vector<2x32xf32>
    %c2 = arith.constant 2 : index
    %c0_52 = arith.constant 0 : index
    %c0_53 = arith.constant 0 : index
    %205 = vector.load %arg8[%c2, %c0_52, %c0_53] : memref<8x2x64xf32, #tpu.memory_space<vmem>>, vector<1x2x32xf32>
    %206 = vector.shape_cast %205 : vector<1x2x32xf32> to vector<2x32xf32>
    %207 = vector.shape_cast %204 : vector<2x32xf32> to vector<1x2x32xf32>
    tpu.vector_store %arg8[%c2, %c0_52, %c0_53], %207 {strides = array<i32>} : memref<8x2x64xf32, #tpu.memory_space<vmem>>, vector<1x2x32xf32>,
    %cst_54 = arith.constant 0.000000e+00 : f32
    %208 = vector.shape_cast %200 : vector<2x1xi1> to vector<2x1xi1>
    %209 = vector.broadcast %208 : vector<2x1xi1> to vector<2x32xi1>
    %210 = vector.broadcast %cst_54 : f32 to vector<2x32xf32>
    %211 = arith.select %209, %196, %210 : vector<2x32xi1>, vector<2x32xf32>
    %c5 = arith.constant 5 : index
    %c0_55 = arith.constant 0 : index
    %c32_56 = arith.constant 32 : index
    %212 = vector.load %arg8[%c5, %c0_55, %c32_56] : memref<8x2x64xf32, #tpu.memory_space<vmem>>, vector<1x2x32xf32>
    %213 = vector.shape_cast %212 : vector<1x2x32xf32> to vector<2x32xf32>
    %214 = vector.shape_cast %211 : vector<2x32xf32> to vector<1x2x32xf32>
    tpu.vector_store %arg8[%c5, %c0_55, %c32_56], %214 {strides = array<i32>} : memref<8x2x64xf32, #tpu.memory_space<vmem>>, vector<1x2x32xf32>,
    %215 = vector.shape_cast %198 : vector<2x1xi1> to vector<2x1xi1>
    %216 = vector.broadcast %215 : vector<2x1xi1> to vector<2x32xi1>
    %217 = arith.select %216, %176, %147 : vector<2x32xi1>, vector<2x32xf32>
    %218 = vector.shape_cast %198 : vector<2x1xi1> to vector<2x1xi1>
    %219 = vector.broadcast %218 : vector<2x1xi1> to vector<2x32xi1>
    %220 = arith.select %219, %173, %150 : vector<2x32xi1>, vector<2x32xf32>
    %221 = vector.shape_cast %200 : vector<2x1xi1> to vector<2x1xi1>
    %222 = vector.broadcast %221 : vector<2x1xi1> to vector<2x32xi1>
    %223 = arith.select %222, %196, %153 : vector<2x32xi1>, vector<2x32xf32>
    %224 = vector.shape_cast %200 : vector<2x1xi1> to vector<2x1xi1>
    %225 = vector.broadcast %224 : vector<2x1xi1> to vector<2x32xi1>
    %226 = arith.select %225, %193, %156 : vector<2x32xi1>, vector<2x32xf32>
    %227 = vector.extract_strided_slice %12 {offsets = [6, 0], sizes = [2, 128], strides = [1, 1]} : vector<16x256xf32> to vector<2x128xf32>
    %cst_57 = arith.constant dense<0.000000e+00> : vector<2x128xf32>
    %228 = tpu.matmul %217, %13, %cst_57 {dimension_numbers = #tpu.dot_dimension_numbers<[1], [0], [0], [1], [0, 0, 1, 1], [], []>, precision = #tpu.contract_precision<fp32>} : vector<2x32xf32>, vector<32x128xf32>, vector<2x128xf32> -> vector<2x128xf32>
    %229 = arith.addf %227, %228 : vector<2x128xf32>
    %cst_58 = arith.constant 5.000000e-01 : f32
    %230 = vector.broadcast %cst_58 : f32 to vector<2x128xf32>
    %231 = arith.mulf %230, %229 : vector<2x128xf32>
    %232 = math.tanh %231 : vector<2x128xf32>
    %cst_59 = arith.constant 1.000000e+00 : f32
    %233 = vector.broadcast %cst_59 : f32 to vector<2x128xf32>
    %234 = arith.addf %232, %233 : vector<2x128xf32>
    %cst_60 = arith.constant 5.000000e-01 : f32
    %235 = vector.broadcast %cst_60 : f32 to vector<2x128xf32>
    %236 = arith.mulf %235, %234 : vector<2x128xf32>
    %237 = math.tanh %229 : vector<2x128xf32>
    %238 = vector.extract_strided_slice %236 {offsets = [0, 32], sizes = [2, 32], strides = [1, 1]} : vector<2x128xf32> to vector<2x32xf32>
    %239 = arith.mulf %238, %220 : vector<2x32xf32>
    %240 = vector.extract_strided_slice %236 {offsets = [0, 0], sizes = [2, 32], strides = [1, 1]} : vector<2x128xf32> to vector<2x32xf32>
    %241 = vector.extract_strided_slice %237 {offsets = [0, 64], sizes = [2, 32], strides = [1, 1]} : vector<2x128xf32> to vector<2x32xf32>
    %242 = arith.mulf %240, %241 : vector<2x32xf32>
    %243 = arith.addf %239, %242 : vector<2x32xf32>
    %244 = vector.extract_strided_slice %236 {offsets = [0, 96], sizes = [2, 32], strides = [1, 1]} : vector<2x128xf32> to vector<2x32xf32>
    %245 = math.tanh %243 : vector<2x32xf32>
    %246 = arith.mulf %244, %245 : vector<2x32xf32>
    %247 = vector.extract_strided_slice %12 {offsets = [8, 128], sizes = [2, 128], strides = [1, 1]} : vector<16x256xf32> to vector<2x128xf32>
    %cst_61 = arith.constant dense<0.000000e+00> : vector<2x128xf32>
    %248 = tpu.matmul %223, %14, %cst_61 {dimension_numbers = #tpu.dot_dimension_numbers<[1], [0], [0], [1], [0, 0, 1, 1], [], []>, precision = #tpu.contract_precision<fp32>} : vector<2x32xf32>, vector<32x128xf32>, vector<2x128xf32> -> vector<2x128xf32>
    %249 = arith.addf %247, %248 : vector<2x128xf32>
    %cst_62 = arith.constant 5.000000e-01 : f32
    %250 = vector.broadcast %cst_62 : f32 to vector<2x128xf32>
    %251 = arith.mulf %250, %249 : vector<2x128xf32>
    %252 = math.tanh %251 : vector<2x128xf32>
    %cst_63 = arith.constant 1.000000e+00 : f32
    %253 = vector.broadcast %cst_63 : f32 to vector<2x128xf32>
    %254 = arith.addf %252, %253 : vector<2x128xf32>
    %cst_64 = arith.constant 5.000000e-01 : f32
    %255 = vector.broadcast %cst_64 : f32 to vector<2x128xf32>
    %256 = arith.mulf %255, %254 : vector<2x128xf32>
    %257 = math.tanh %249 : vector<2x128xf32>
    %258 = vector.extract_strided_slice %256 {offsets = [0, 32], sizes = [2, 32], strides = [1, 1]} : vector<2x128xf32> to vector<2x32xf32>
    %259 = arith.mulf %258, %226 : vector<2x32xf32>
    %260 = vector.extract_strided_slice %256 {offsets = [0, 0], sizes = [2, 32], strides = [1, 1]} : vector<2x128xf32> to vector<2x32xf32>
    %261 = vector.extract_strided_slice %257 {offsets = [0, 64], sizes = [2, 32], strides = [1, 1]} : vector<2x128xf32> to vector<2x32xf32>
    %262 = arith.mulf %260, %261 : vector<2x32xf32>
    %263 = arith.addf %259, %262 : vector<2x32xf32>
    %264 = vector.extract_strided_slice %256 {offsets = [0, 96], sizes = [2, 32], strides = [1, 1]} : vector<2x128xf32> to vector<2x32xf32>
    %265 = math.tanh %263 : vector<2x32xf32>
    %266 = arith.mulf %264, %265 : vector<2x32xf32>
    %c3_i32 = arith.constant 3 : i32
    %267 = vector.broadcast %c3_i32 : i32 to vector<2x1xi32>
    %268 = arith.cmpi sgt, %15, %267 : vector<2x1xi32>
    %c4_i32 = arith.constant 4 : i32
    %269 = vector.broadcast %c4_i32 : i32 to vector<2x1xi32>
    %270 = arith.cmpi sgt, %15, %269 : vector<2x1xi32>
    %cst_65 = arith.constant 0.000000e+00 : f32
    %271 = vector.shape_cast %268 : vector<2x1xi1> to vector<2x1xi1>
    %272 = vector.broadcast %271 : vector<2x1xi1> to vector<2x32xi1>
    %273 = vector.broadcast %cst_65 : f32 to vector<2x32xf32>
    %274 = arith.select %272, %246, %273 : vector<2x32xi1>, vector<2x32xf32>
    %c3 = arith.constant 3 : index
    %c0_66 = arith.constant 0 : index
    %c0_67 = arith.constant 0 : index
    %275 = vector.load %arg8[%c3, %c0_66, %c0_67] : memref<8x2x64xf32, #tpu.memory_space<vmem>>, vector<1x2x32xf32>
    %276 = vector.shape_cast %275 : vector<1x2x32xf32> to vector<2x32xf32>
    %277 = vector.shape_cast %274 : vector<2x32xf32> to vector<1x2x32xf32>
    tpu.vector_store %arg8[%c3, %c0_66, %c0_67], %277 {strides = array<i32>} : memref<8x2x64xf32, #tpu.memory_space<vmem>>, vector<1x2x32xf32>,
    %cst_68 = arith.constant 0.000000e+00 : f32
    %278 = vector.shape_cast %270 : vector<2x1xi1> to vector<2x1xi1>
    %279 = vector.broadcast %278 : vector<2x1xi1> to vector<2x32xi1>
    %280 = vector.broadcast %cst_68 : f32 to vector<2x32xf32>
    %281 = arith.select %279, %266, %280 : vector<2x32xi1>, vector<2x32xf32>
    %c4 = arith.constant 4 : index
    %c0_69 = arith.constant 0 : index
    %c32_70 = arith.constant 32 : index
    %282 = vector.load %arg8[%c4, %c0_69, %c32_70] : memref<8x2x64xf32, #tpu.memory_space<vmem>>, vector<1x2x32xf32>
    %283 = vector.shape_cast %282 : vector<1x2x32xf32> to vector<2x32xf32>
    %284 = vector.shape_cast %281 : vector<2x32xf32> to vector<1x2x32xf32>
    tpu.vector_store %arg8[%c4, %c0_69, %c32_70], %284 {strides = array<i32>} : memref<8x2x64xf32, #tpu.memory_space<vmem>>, vector<1x2x32xf32>,
    %285 = vector.shape_cast %268 : vector<2x1xi1> to vector<2x1xi1>
    %286 = vector.broadcast %285 : vector<2x1xi1> to vector<2x32xi1>
    %287 = arith.select %286, %246, %217 : vector<2x32xi1>, vector<2x32xf32>
    %288 = vector.shape_cast %268 : vector<2x1xi1> to vector<2x1xi1>
    %289 = vector.broadcast %288 : vector<2x1xi1> to vector<2x32xi1>
    %290 = arith.select %289, %243, %220 : vector<2x32xi1>, vector<2x32xf32>
    %291 = vector.shape_cast %270 : vector<2x1xi1> to vector<2x1xi1>
    %292 = vector.broadcast %291 : vector<2x1xi1> to vector<2x32xi1>
    %293 = arith.select %292, %266, %223 : vector<2x32xi1>, vector<2x32xf32>
    %294 = vector.shape_cast %270 : vector<2x1xi1> to vector<2x1xi1>
    %295 = vector.broadcast %294 : vector<2x1xi1> to vector<2x32xi1>
    %296 = arith.select %295, %263, %226 : vector<2x32xi1>, vector<2x32xf32>
    %297 = vector.extract_strided_slice %12 {offsets = [8, 0], sizes = [2, 128], strides = [1, 1]} : vector<16x256xf32> to vector<2x128xf32>
    %cst_71 = arith.constant dense<0.000000e+00> : vector<2x128xf32>
    %298 = tpu.matmul %287, %13, %cst_71 {dimension_numbers = #tpu.dot_dimension_numbers<[1], [0], [0], [1], [0, 0, 1, 1], [], []>, precision = #tpu.contract_precision<fp32>} : vector<2x32xf32>, vector<32x128xf32>, vector<2x128xf32> -> vector<2x128xf32>
    %299 = arith.addf %297, %298 : vector<2x128xf32>
    %cst_72 = arith.constant 5.000000e-01 : f32
    %300 = vector.broadcast %cst_72 : f32 to vector<2x128xf32>
    %301 = arith.mulf %300, %299 : vector<2x128xf32>
    %302 = math.tanh %301 : vector<2x128xf32>
    %cst_73 = arith.constant 1.000000e+00 : f32
    %303 = vector.broadcast %cst_73 : f32 to vector<2x128xf32>
    %304 = arith.addf %302, %303 : vector<2x128xf32>
    %cst_74 = arith.constant 5.000000e-01 : f32
    %305 = vector.broadcast %cst_74 : f32 to vector<2x128xf32>
    %306 = arith.mulf %305, %304 : vector<2x128xf32>
    %307 = math.tanh %299 : vector<2x128xf32>
    %308 = vector.extract_strided_slice %306 {offsets = [0, 32], sizes = [2, 32], strides = [1, 1]} : vector<2x128xf32> to vector<2x32xf32>
    %309 = arith.mulf %308, %290 : vector<2x32xf32>
    %310 = vector.extract_strided_slice %306 {offsets = [0, 0], sizes = [2, 32], strides = [1, 1]} : vector<2x128xf32> to vector<2x32xf32>
    %311 = vector.extract_strided_slice %307 {offsets = [0, 64], sizes = [2, 32], strides = [1, 1]} : vector<2x128xf32> to vector<2x32xf32>
    %312 = arith.mulf %310, %311 : vector<2x32xf32>
    %313 = arith.addf %309, %312 : vector<2x32xf32>
    %314 = vector.extract_strided_slice %306 {offsets = [0, 96], sizes = [2, 32], strides = [1, 1]} : vector<2x128xf32> to vector<2x32xf32>
    %315 = math.tanh %313 : vector<2x32xf32>
    %316 = arith.mulf %314, %315 : vector<2x32xf32>
    %317 = vector.extract_strided_slice %12 {offsets = [6, 128], sizes = [2, 128], strides = [1, 1]} : vector<16x256xf32> to vector<2x128xf32>
    %cst_75 = arith.constant dense<0.000000e+00> : vector<2x128xf32>
    %318 = tpu.matmul %293, %14, %cst_75 {dimension_numbers = #tpu.dot_dimension_numbers<[1], [0], [0], [1], [0, 0, 1, 1], [], []>, precision = #tpu.contract_precision<fp32>} : vector<2x32xf32>, vector<32x128xf32>, vector<2x128xf32> -> vector<2x128xf32>
    %319 = arith.addf %317, %318 : vector<2x128xf32>
    %cst_76 = arith.constant 5.000000e-01 : f32
    %320 = vector.broadcast %cst_76 : f32 to vector<2x128xf32>
    %321 = arith.mulf %320, %319 : vector<2x128xf32>
    %322 = math.tanh %321 : vector<2x128xf32>
    %cst_77 = arith.constant 1.000000e+00 : f32
    %323 = vector.broadcast %cst_77 : f32 to vector<2x128xf32>
    %324 = arith.addf %322, %323 : vector<2x128xf32>
    %cst_78 = arith.constant 5.000000e-01 : f32
    %325 = vector.broadcast %cst_78 : f32 to vector<2x128xf32>
    %326 = arith.mulf %325, %324 : vector<2x128xf32>
    %327 = math.tanh %319 : vector<2x128xf32>
    %328 = vector.extract_strided_slice %326 {offsets = [0, 32], sizes = [2, 32], strides = [1, 1]} : vector<2x128xf32> to vector<2x32xf32>
    %329 = arith.mulf %328, %296 : vector<2x32xf32>
    %330 = vector.extract_strided_slice %326 {offsets = [0, 0], sizes = [2, 32], strides = [1, 1]} : vector<2x128xf32> to vector<2x32xf32>
    %331 = vector.extract_strided_slice %327 {offsets = [0, 64], sizes = [2, 32], strides = [1, 1]} : vector<2x128xf32> to vector<2x32xf32>
    %332 = arith.mulf %330, %331 : vector<2x32xf32>
    %333 = arith.addf %329, %332 : vector<2x32xf32>
    %334 = vector.extract_strided_slice %326 {offsets = [0, 96], sizes = [2, 32], strides = [1, 1]} : vector<2x128xf32> to vector<2x32xf32>
    %335 = math.tanh %333 : vector<2x32xf32>
    %336 = arith.mulf %334, %335 : vector<2x32xf32>
    %c4_i32_79 = arith.constant 4 : i32
    %337 = vector.broadcast %c4_i32_79 : i32 to vector<2x1xi32>
    %338 = arith.cmpi sgt, %15, %337 : vector<2x1xi32>
    %c3_i32_80 = arith.constant 3 : i32
    %339 = vector.broadcast %c3_i32_80 : i32 to vector<2x1xi32>
    %340 = arith.cmpi sgt, %15, %339 : vector<2x1xi32>
    %cst_81 = arith.constant 0.000000e+00 : f32
    %341 = vector.shape_cast %338 : vector<2x1xi1> to vector<2x1xi1>
    %342 = vector.broadcast %341 : vector<2x1xi1> to vector<2x32xi1>
    %343 = vector.broadcast %cst_81 : f32 to vector<2x32xf32>
    %344 = arith.select %342, %316, %343 : vector<2x32xi1>, vector<2x32xf32>
    %c4_82 = arith.constant 4 : index
    %c0_83 = arith.constant 0 : index
    %c0_84 = arith.constant 0 : index
    %345 = vector.load %arg8[%c4_82, %c0_83, %c0_84] : memref<8x2x64xf32, #tpu.memory_space<vmem>>, vector<1x2x32xf32>
    %346 = vector.shape_cast %345 : vector<1x2x32xf32> to vector<2x32xf32>
    %347 = vector.shape_cast %344 : vector<2x32xf32> to vector<1x2x32xf32>
    tpu.vector_store %arg8[%c4_82, %c0_83, %c0_84], %347 {strides = array<i32>} : memref<8x2x64xf32, #tpu.memory_space<vmem>>, vector<1x2x32xf32>,
    %cst_85 = arith.constant 0.000000e+00 : f32
    %348 = vector.shape_cast %340 : vector<2x1xi1> to vector<2x1xi1>
    %349 = vector.broadcast %348 : vector<2x1xi1> to vector<2x32xi1>
    %350 = vector.broadcast %cst_85 : f32 to vector<2x32xf32>
    %351 = arith.select %349, %336, %350 : vector<2x32xi1>, vector<2x32xf32>
    %c3_86 = arith.constant 3 : index
    %c0_87 = arith.constant 0 : index
    %c32_88 = arith.constant 32 : index
    %352 = vector.load %arg8[%c3_86, %c0_87, %c32_88] : memref<8x2x64xf32, #tpu.memory_space<vmem>>, vector<1x2x32xf32>
    %353 = vector.shape_cast %352 : vector<1x2x32xf32> to vector<2x32xf32>
    %354 = vector.shape_cast %351 : vector<2x32xf32> to vector<1x2x32xf32>
    tpu.vector_store %arg8[%c3_86, %c0_87, %c32_88], %354 {strides = array<i32>} : memref<8x2x64xf32, #tpu.memory_space<vmem>>, vector<1x2x32xf32>,
    %355 = vector.shape_cast %338 : vector<2x1xi1> to vector<2x1xi1>
    %356 = vector.broadcast %355 : vector<2x1xi1> to vector<2x32xi1>
    %357 = arith.select %356, %316, %287 : vector<2x32xi1>, vector<2x32xf32>
    %358 = vector.shape_cast %338 : vector<2x1xi1> to vector<2x1xi1>
    %359 = vector.broadcast %358 : vector<2x1xi1> to vector<2x32xi1>
    %360 = arith.select %359, %313, %290 : vector<2x32xi1>, vector<2x32xf32>
    %361 = vector.shape_cast %340 : vector<2x1xi1> to vector<2x1xi1>
    %362 = vector.broadcast %361 : vector<2x1xi1> to vector<2x32xi1>
    %363 = arith.select %362, %336, %293 : vector<2x32xi1>, vector<2x32xf32>
    %364 = vector.shape_cast %340 : vector<2x1xi1> to vector<2x1xi1>
    %365 = vector.broadcast %364 : vector<2x1xi1> to vector<2x32xi1>
    %366 = arith.select %365, %333, %296 : vector<2x32xi1>, vector<2x32xf32>
    %367 = vector.extract_strided_slice %12 {offsets = [10, 0], sizes = [2, 128], strides = [1, 1]} : vector<16x256xf32> to vector<2x128xf32>
    %cst_89 = arith.constant dense<0.000000e+00> : vector<2x128xf32>
    %368 = tpu.matmul %357, %13, %cst_89 {dimension_numbers = #tpu.dot_dimension_numbers<[1], [0], [0], [1], [0, 0, 1, 1], [], []>, precision = #tpu.contract_precision<fp32>} : vector<2x32xf32>, vector<32x128xf32>, vector<2x128xf32> -> vector<2x128xf32>
    %369 = arith.addf %367, %368 : vector<2x128xf32>
    %cst_90 = arith.constant 5.000000e-01 : f32
    %370 = vector.broadcast %cst_90 : f32 to vector<2x128xf32>
    %371 = arith.mulf %370, %369 : vector<2x128xf32>
    %372 = math.tanh %371 : vector<2x128xf32>
    %cst_91 = arith.constant 1.000000e+00 : f32
    %373 = vector.broadcast %cst_91 : f32 to vector<2x128xf32>
    %374 = arith.addf %372, %373 : vector<2x128xf32>
    %cst_92 = arith.constant 5.000000e-01 : f32
    %375 = vector.broadcast %cst_92 : f32 to vector<2x128xf32>
    %376 = arith.mulf %375, %374 : vector<2x128xf32>
    %377 = math.tanh %369 : vector<2x128xf32>
    %378 = vector.extract_strided_slice %376 {offsets = [0, 32], sizes = [2, 32], strides = [1, 1]} : vector<2x128xf32> to vector<2x32xf32>
    %379 = arith.mulf %378, %360 : vector<2x32xf32>
    %380 = vector.extract_strided_slice %376 {offsets = [0, 0], sizes = [2, 32], strides = [1, 1]} : vector<2x128xf32> to vector<2x32xf32>
    %381 = vector.extract_strided_slice %377 {offsets = [0, 64], sizes = [2, 32], strides = [1, 1]} : vector<2x128xf32> to vector<2x32xf32>
    %382 = arith.mulf %380, %381 : vector<2x32xf32>
    %383 = arith.addf %379, %382 : vector<2x32xf32>
    %384 = vector.extract_strided_slice %376 {offsets = [0, 96], sizes = [2, 32], strides = [1, 1]} : vector<2x128xf32> to vector<2x32xf32>
    %385 = math.tanh %383 : vector<2x32xf32>
    %386 = arith.mulf %384, %385 : vector<2x32xf32>
    %387 = vector.extract_strided_slice %12 {offsets = [4, 128], sizes = [2, 128], strides = [1, 1]} : vector<16x256xf32> to vector<2x128xf32>
    %cst_93 = arith.constant dense<0.000000e+00> : vector<2x128xf32>
    %388 = tpu.matmul %363, %14, %cst_93 {dimension_numbers = #tpu.dot_dimension_numbers<[1], [0], [0], [1], [0, 0, 1, 1], [], []>, precision = #tpu.contract_precision<fp32>} : vector<2x32xf32>, vector<32x128xf32>, vector<2x128xf32> -> vector<2x128xf32>
    %389 = arith.addf %387, %388 : vector<2x128xf32>
    %cst_94 = arith.constant 5.000000e-01 : f32
    %390 = vector.broadcast %cst_94 : f32 to vector<2x128xf32>
    %391 = arith.mulf %390, %389 : vector<2x128xf32>
    %392 = math.tanh %391 : vector<2x128xf32>
    %cst_95 = arith.constant 1.000000e+00 : f32
    %393 = vector.broadcast %cst_95 : f32 to vector<2x128xf32>
    %394 = arith.addf %392, %393 : vector<2x128xf32>
    %cst_96 = arith.constant 5.000000e-01 : f32
    %395 = vector.broadcast %cst_96 : f32 to vector<2x128xf32>
    %396 = arith.mulf %395, %394 : vector<2x128xf32>
    %397 = math.tanh %389 : vector<2x128xf32>
    %398 = vector.extract_strided_slice %396 {offsets = [0, 32], sizes = [2, 32], strides = [1, 1]} : vector<2x128xf32> to vector<2x32xf32>
    %399 = arith.mulf %398, %366 : vector<2x32xf32>
    %400 = vector.extract_strided_slice %396 {offsets = [0, 0], sizes = [2, 32], strides = [1, 1]} : vector<2x128xf32> to vector<2x32xf32>
    %401 = vector.extract_strided_slice %397 {offsets = [0, 64], sizes = [2, 32], strides = [1, 1]} : vector<2x128xf32> to vector<2x32xf32>
    %402 = arith.mulf %400, %401 : vector<2x32xf32>
    %403 = arith.addf %399, %402 : vector<2x32xf32>
    %404 = vector.extract_strided_slice %396 {offsets = [0, 96], sizes = [2, 32], strides = [1, 1]} : vector<2x128xf32> to vector<2x32xf32>
    %405 = math.tanh %403 : vector<2x32xf32>
    %406 = arith.mulf %404, %405 : vector<2x32xf32>
    %c5_i32_97 = arith.constant 5 : i32
    %407 = vector.broadcast %c5_i32_97 : i32 to vector<2x1xi32>
    %408 = arith.cmpi sgt, %15, %407 : vector<2x1xi32>
    %c2_i32_98 = arith.constant 2 : i32
    %409 = vector.broadcast %c2_i32_98 : i32 to vector<2x1xi32>
    %410 = arith.cmpi sgt, %15, %409 : vector<2x1xi32>
    %cst_99 = arith.constant 0.000000e+00 : f32
    %411 = vector.shape_cast %408 : vector<2x1xi1> to vector<2x1xi1>
    %412 = vector.broadcast %411 : vector<2x1xi1> to vector<2x32xi1>
    %413 = vector.broadcast %cst_99 : f32 to vector<2x32xf32>
    %414 = arith.select %412, %386, %413 : vector<2x32xi1>, vector<2x32xf32>
    %c5_100 = arith.constant 5 : index
    %c0_101 = arith.constant 0 : index
    %c0_102 = arith.constant 0 : index
    %415 = vector.load %arg8[%c5_100, %c0_101, %c0_102] : memref<8x2x64xf32, #tpu.memory_space<vmem>>, vector<1x2x32xf32>
    %416 = vector.shape_cast %415 : vector<1x2x32xf32> to vector<2x32xf32>
    %417 = vector.shape_cast %414 : vector<2x32xf32> to vector<1x2x32xf32>
    tpu.vector_store %arg8[%c5_100, %c0_101, %c0_102], %417 {strides = array<i32>} : memref<8x2x64xf32, #tpu.memory_space<vmem>>, vector<1x2x32xf32>,
    %cst_103 = arith.constant 0.000000e+00 : f32
    %418 = vector.shape_cast %410 : vector<2x1xi1> to vector<2x1xi1>
    %419 = vector.broadcast %418 : vector<2x1xi1> to vector<2x32xi1>
    %420 = vector.broadcast %cst_103 : f32 to vector<2x32xf32>
    %421 = arith.select %419, %406, %420 : vector<2x32xi1>, vector<2x32xf32>
    %c2_104 = arith.constant 2 : index
    %c0_105 = arith.constant 0 : index
    %c32_106 = arith.constant 32 : index
    %422 = vector.load %arg8[%c2_104, %c0_105, %c32_106] : memref<8x2x64xf32, #tpu.memory_space<vmem>>, vector<1x2x32xf32>
    %423 = vector.shape_cast %422 : vector<1x2x32xf32> to vector<2x32xf32>
    %424 = vector.shape_cast %421 : vector<2x32xf32> to vector<1x2x32xf32>
    tpu.vector_store %arg8[%c2_104, %c0_105, %c32_106], %424 {strides = array<i32>} : memref<8x2x64xf32, #tpu.memory_space<vmem>>, vector<1x2x32xf32>,
    %425 = vector.shape_cast %408 : vector<2x1xi1> to vector<2x1xi1>
    %426 = vector.broadcast %425 : vector<2x1xi1> to vector<2x32xi1>
    %427 = arith.select %426, %386, %357 : vector<2x32xi1>, vector<2x32xf32>
    %428 = vector.shape_cast %408 : vector<2x1xi1> to vector<2x1xi1>
    %429 = vector.broadcast %428 : vector<2x1xi1> to vector<2x32xi1>
    %430 = arith.select %429, %383, %360 : vector<2x32xi1>, vector<2x32xf32>
    %431 = vector.shape_cast %410 : vector<2x1xi1> to vector<2x1xi1>
    %432 = vector.broadcast %431 : vector<2x1xi1> to vector<2x32xi1>
    %433 = arith.select %432, %406, %363 : vector<2x32xi1>, vector<2x32xf32>
    %434 = vector.shape_cast %410 : vector<2x1xi1> to vector<2x1xi1>
    %435 = vector.broadcast %434 : vector<2x1xi1> to vector<2x32xi1>
    %436 = arith.select %435, %403, %366 : vector<2x32xi1>, vector<2x32xf32>
    %437 = vector.extract_strided_slice %12 {offsets = [12, 0], sizes = [2, 128], strides = [1, 1]} : vector<16x256xf32> to vector<2x128xf32>
    %cst_107 = arith.constant dense<0.000000e+00> : vector<2x128xf32>
    %438 = tpu.matmul %427, %13, %cst_107 {dimension_numbers = #tpu.dot_dimension_numbers<[1], [0], [0], [1], [0, 0, 1, 1], [], []>, precision = #tpu.contract_precision<fp32>} : vector<2x32xf32>, vector<32x128xf32>, vector<2x128xf32> -> vector<2x128xf32>
    %439 = arith.addf %437, %438 : vector<2x128xf32>
    %cst_108 = arith.constant 5.000000e-01 : f32
    %440 = vector.broadcast %cst_108 : f32 to vector<2x128xf32>
    %441 = arith.mulf %440, %439 : vector<2x128xf32>
    %442 = math.tanh %441 : vector<2x128xf32>
    %cst_109 = arith.constant 1.000000e+00 : f32
    %443 = vector.broadcast %cst_109 : f32 to vector<2x128xf32>
    %444 = arith.addf %442, %443 : vector<2x128xf32>
    %cst_110 = arith.constant 5.000000e-01 : f32
    %445 = vector.broadcast %cst_110 : f32 to vector<2x128xf32>
    %446 = arith.mulf %445, %444 : vector<2x128xf32>
    %447 = math.tanh %439 : vector<2x128xf32>
    %448 = vector.extract_strided_slice %446 {offsets = [0, 32], sizes = [2, 32], strides = [1, 1]} : vector<2x128xf32> to vector<2x32xf32>
    %449 = arith.mulf %448, %430 : vector<2x32xf32>
    %450 = vector.extract_strided_slice %446 {offsets = [0, 0], sizes = [2, 32], strides = [1, 1]} : vector<2x128xf32> to vector<2x32xf32>
    %451 = vector.extract_strided_slice %447 {offsets = [0, 64], sizes = [2, 32], strides = [1, 1]} : vector<2x128xf32> to vector<2x32xf32>
    %452 = arith.mulf %450, %451 : vector<2x32xf32>
    %453 = arith.addf %449, %452 : vector<2x32xf32>
    %454 = vector.extract_strided_slice %446 {offsets = [0, 96], sizes = [2, 32], strides = [1, 1]} : vector<2x128xf32> to vector<2x32xf32>
    %455 = math.tanh %453 : vector<2x32xf32>
    %456 = arith.mulf %454, %455 : vector<2x32xf32>
    %457 = vector.extract_strided_slice %12 {offsets = [2, 128], sizes = [2, 128], strides = [1, 1]} : vector<16x256xf32> to vector<2x128xf32>
    %cst_111 = arith.constant dense<0.000000e+00> : vector<2x128xf32>
    %458 = tpu.matmul %433, %14, %cst_111 {dimension_numbers = #tpu.dot_dimension_numbers<[1], [0], [0], [1], [0, 0, 1, 1], [], []>, precision = #tpu.contract_precision<fp32>} : vector<2x32xf32>, vector<32x128xf32>, vector<2x128xf32> -> vector<2x128xf32>
    %459 = arith.addf %457, %458 : vector<2x128xf32>
    %cst_112 = arith.constant 5.000000e-01 : f32
    %460 = vector.broadcast %cst_112 : f32 to vector<2x128xf32>
    %461 = arith.mulf %460, %459 : vector<2x128xf32>
    %462 = math.tanh %461 : vector<2x128xf32>
    %cst_113 = arith.constant 1.000000e+00 : f32
    %463 = vector.broadcast %cst_113 : f32 to vector<2x128xf32>
    %464 = arith.addf %462, %463 : vector<2x128xf32>
    %cst_114 = arith.constant 5.000000e-01 : f32
    %465 = vector.broadcast %cst_114 : f32 to vector<2x128xf32>
    %466 = arith.mulf %465, %464 : vector<2x128xf32>
    %467 = math.tanh %459 : vector<2x128xf32>
    %468 = vector.extract_strided_slice %466 {offsets = [0, 32], sizes = [2, 32], strides = [1, 1]} : vector<2x128xf32> to vector<2x32xf32>
    %469 = arith.mulf %468, %436 : vector<2x32xf32>
    %470 = vector.extract_strided_slice %466 {offsets = [0, 0], sizes = [2, 32], strides = [1, 1]} : vector<2x128xf32> to vector<2x32xf32>
    %471 = vector.extract_strided_slice %467 {offsets = [0, 64], sizes = [2, 32], strides = [1, 1]} : vector<2x128xf32> to vector<2x32xf32>
    %472 = arith.mulf %470, %471 : vector<2x32xf32>
    %473 = arith.addf %469, %472 : vector<2x32xf32>
    %474 = vector.extract_strided_slice %466 {offsets = [0, 96], sizes = [2, 32], strides = [1, 1]} : vector<2x128xf32> to vector<2x32xf32>
    %475 = math.tanh %473 : vector<2x32xf32>
    %476 = arith.mulf %474, %475 : vector<2x32xf32>
    %c6_i32_115 = arith.constant 6 : i32
    %477 = vector.broadcast %c6_i32_115 : i32 to vector<2x1xi32>
    %478 = arith.cmpi sgt, %15, %477 : vector<2x1xi32>
    %c1_i32_116 = arith.constant 1 : i32
    %479 = vector.broadcast %c1_i32_116 : i32 to vector<2x1xi32>
    %480 = arith.cmpi sgt, %15, %479 : vector<2x1xi32>
    %cst_117 = arith.constant 0.000000e+00 : f32
    %481 = vector.shape_cast %478 : vector<2x1xi1> to vector<2x1xi1>
    %482 = vector.broadcast %481 : vector<2x1xi1> to vector<2x32xi1>
    %483 = vector.broadcast %cst_117 : f32 to vector<2x32xf32>
    %484 = arith.select %482, %456, %483 : vector<2x32xi1>, vector<2x32xf32>
    %c6_118 = arith.constant 6 : index
    %c0_119 = arith.constant 0 : index
    %c0_120 = arith.constant 0 : index
    %485 = vector.load %arg8[%c6_118, %c0_119, %c0_120] : memref<8x2x64xf32, #tpu.memory_space<vmem>>, vector<1x2x32xf32>
    %486 = vector.shape_cast %485 : vector<1x2x32xf32> to vector<2x32xf32>
    %487 = vector.shape_cast %484 : vector<2x32xf32> to vector<1x2x32xf32>
    tpu.vector_store %arg8[%c6_118, %c0_119, %c0_120], %487 {strides = array<i32>} : memref<8x2x64xf32, #tpu.memory_space<vmem>>, vector<1x2x32xf32>,
    %cst_121 = arith.constant 0.000000e+00 : f32
    %488 = vector.shape_cast %480 : vector<2x1xi1> to vector<2x1xi1>
    %489 = vector.broadcast %488 : vector<2x1xi1> to vector<2x32xi1>
    %490 = vector.broadcast %cst_121 : f32 to vector<2x32xf32>
    %491 = arith.select %489, %476, %490 : vector<2x32xi1>, vector<2x32xf32>
    %c1_122 = arith.constant 1 : index
    %c0_123 = arith.constant 0 : index
    %c32_124 = arith.constant 32 : index
    %492 = vector.load %arg8[%c1_122, %c0_123, %c32_124] : memref<8x2x64xf32, #tpu.memory_space<vmem>>, vector<1x2x32xf32>
    %493 = vector.shape_cast %492 : vector<1x2x32xf32> to vector<2x32xf32>
    %494 = vector.shape_cast %491 : vector<2x32xf32> to vector<1x2x32xf32>
    tpu.vector_store %arg8[%c1_122, %c0_123, %c32_124], %494 {strides = array<i32>} : memref<8x2x64xf32, #tpu.memory_space<vmem>>, vector<1x2x32xf32>,
    %495 = vector.shape_cast %478 : vector<2x1xi1> to vector<2x1xi1>
    %496 = vector.broadcast %495 : vector<2x1xi1> to vector<2x32xi1>
    %497 = arith.select %496, %456, %427 : vector<2x32xi1>, vector<2x32xf32>
    %498 = vector.shape_cast %478 : vector<2x1xi1> to vector<2x1xi1>
    %499 = vector.broadcast %498 : vector<2x1xi1> to vector<2x32xi1>
    %500 = arith.select %499, %453, %430 : vector<2x32xi1>, vector<2x32xf32>
    %501 = vector.shape_cast %480 : vector<2x1xi1> to vector<2x1xi1>
    %502 = vector.broadcast %501 : vector<2x1xi1> to vector<2x32xi1>
    %503 = arith.select %502, %476, %433 : vector<2x32xi1>, vector<2x32xf32>
    %504 = vector.shape_cast %480 : vector<2x1xi1> to vector<2x1xi1>
    %505 = vector.broadcast %504 : vector<2x1xi1> to vector<2x32xi1>
    %506 = arith.select %505, %473, %436 : vector<2x32xi1>, vector<2x32xf32>
    %507 = vector.extract_strided_slice %12 {offsets = [14, 0], sizes = [2, 128], strides = [1, 1]} : vector<16x256xf32> to vector<2x128xf32>
    %cst_125 = arith.constant dense<0.000000e+00> : vector<2x128xf32>
    %508 = tpu.matmul %497, %13, %cst_125 {dimension_numbers = #tpu.dot_dimension_numbers<[1], [0], [0], [1], [0, 0, 1, 1], [], []>, precision = #tpu.contract_precision<fp32>} : vector<2x32xf32>, vector<32x128xf32>, vector<2x128xf32> -> vector<2x128xf32>
    %509 = arith.addf %507, %508 : vector<2x128xf32>
    %cst_126 = arith.constant 5.000000e-01 : f32
    %510 = vector.broadcast %cst_126 : f32 to vector<2x128xf32>
    %511 = arith.mulf %510, %509 : vector<2x128xf32>
    %512 = math.tanh %511 : vector<2x128xf32>
    %cst_127 = arith.constant 1.000000e+00 : f32
    %513 = vector.broadcast %cst_127 : f32 to vector<2x128xf32>
    %514 = arith.addf %512, %513 : vector<2x128xf32>
    %cst_128 = arith.constant 5.000000e-01 : f32
    %515 = vector.broadcast %cst_128 : f32 to vector<2x128xf32>
    %516 = arith.mulf %515, %514 : vector<2x128xf32>
    %517 = math.tanh %509 : vector<2x128xf32>
    %518 = vector.extract_strided_slice %516 {offsets = [0, 32], sizes = [2, 32], strides = [1, 1]} : vector<2x128xf32> to vector<2x32xf32>
    %519 = arith.mulf %518, %500 : vector<2x32xf32>
    %520 = vector.extract_strided_slice %516 {offsets = [0, 0], sizes = [2, 32], strides = [1, 1]} : vector<2x128xf32> to vector<2x32xf32>
    %521 = vector.extract_strided_slice %517 {offsets = [0, 64], sizes = [2, 32], strides = [1, 1]} : vector<2x128xf32> to vector<2x32xf32>
    %522 = arith.mulf %520, %521 : vector<2x32xf32>
    %523 = arith.addf %519, %522 : vector<2x32xf32>
    %524 = vector.extract_strided_slice %516 {offsets = [0, 96], sizes = [2, 32], strides = [1, 1]} : vector<2x128xf32> to vector<2x32xf32>
    %525 = math.tanh %523 : vector<2x32xf32>
    %526 = arith.mulf %524, %525 : vector<2x32xf32>
    %527 = vector.extract_strided_slice %12 {offsets = [0, 128], sizes = [2, 128], strides = [1, 1]} : vector<16x256xf32> to vector<2x128xf32>
    %cst_129 = arith.constant dense<0.000000e+00> : vector<2x128xf32>
    %528 = tpu.matmul %503, %14, %cst_129 {dimension_numbers = #tpu.dot_dimension_numbers<[1], [0], [0], [1], [0, 0, 1, 1], [], []>, precision = #tpu.contract_precision<fp32>} : vector<2x32xf32>, vector<32x128xf32>, vector<2x128xf32> -> vector<2x128xf32>
    %529 = arith.addf %527, %528 : vector<2x128xf32>
    %cst_130 = arith.constant 5.000000e-01 : f32
    %530 = vector.broadcast %cst_130 : f32 to vector<2x128xf32>
    %531 = arith.mulf %530, %529 : vector<2x128xf32>
    %532 = math.tanh %531 : vector<2x128xf32>
    %cst_131 = arith.constant 1.000000e+00 : f32
    %533 = vector.broadcast %cst_131 : f32 to vector<2x128xf32>
    %534 = arith.addf %532, %533 : vector<2x128xf32>
    %cst_132 = arith.constant 5.000000e-01 : f32
    %535 = vector.broadcast %cst_132 : f32 to vector<2x128xf32>
    %536 = arith.mulf %535, %534 : vector<2x128xf32>
    %537 = math.tanh %529 : vector<2x128xf32>
    %538 = vector.extract_strided_slice %536 {offsets = [0, 32], sizes = [2, 32], strides = [1, 1]} : vector<2x128xf32> to vector<2x32xf32>
    %539 = arith.mulf %538, %506 : vector<2x32xf32>
    %540 = vector.extract_strided_slice %536 {offsets = [0, 0], sizes = [2, 32], strides = [1, 1]} : vector<2x128xf32> to vector<2x32xf32>
    %541 = vector.extract_strided_slice %537 {offsets = [0, 64], sizes = [2, 32], strides = [1, 1]} : vector<2x128xf32> to vector<2x32xf32>
    %542 = arith.mulf %540, %541 : vector<2x32xf32>
    %543 = arith.addf %539, %542 : vector<2x32xf32>
    %544 = vector.extract_strided_slice %536 {offsets = [0, 96], sizes = [2, 32], strides = [1, 1]} : vector<2x128xf32> to vector<2x32xf32>
    %545 = math.tanh %543 : vector<2x32xf32>
    %546 = arith.mulf %544, %545 : vector<2x32xf32>
    %c7_i32_133 = arith.constant 7 : i32
    %547 = vector.broadcast %c7_i32_133 : i32 to vector<2x1xi32>
    %548 = arith.cmpi sgt, %15, %547 : vector<2x1xi32>
    %c0_i32_134 = arith.constant 0 : i32
    %549 = vector.broadcast %c0_i32_134 : i32 to vector<2x1xi32>
    %550 = arith.cmpi sgt, %15, %549 : vector<2x1xi32>
    %cst_135 = arith.constant 0.000000e+00 : f32
    %551 = vector.shape_cast %548 : vector<2x1xi1> to vector<2x1xi1>
    %552 = vector.broadcast %551 : vector<2x1xi1> to vector<2x32xi1>
    %553 = vector.broadcast %cst_135 : f32 to vector<2x32xf32>
    %554 = arith.select %552, %526, %553 : vector<2x32xi1>, vector<2x32xf32>
    %c7_136 = arith.constant 7 : index
    %c0_137 = arith.constant 0 : index
    %c0_138 = arith.constant 0 : index
    %555 = vector.load %arg8[%c7_136, %c0_137, %c0_138] : memref<8x2x64xf32, #tpu.memory_space<vmem>>, vector<1x2x32xf32>
    %556 = vector.shape_cast %555 : vector<1x2x32xf32> to vector<2x32xf32>
    %557 = vector.shape_cast %554 : vector<2x32xf32> to vector<1x2x32xf32>
    tpu.vector_store %arg8[%c7_136, %c0_137, %c0_138], %557 {strides = array<i32>} : memref<8x2x64xf32, #tpu.memory_space<vmem>>, vector<1x2x32xf32>,
    %cst_139 = arith.constant 0.000000e+00 : f32
    %558 = vector.shape_cast %550 : vector<2x1xi1> to vector<2x1xi1>
    %559 = vector.broadcast %558 : vector<2x1xi1> to vector<2x32xi1>
    %560 = vector.broadcast %cst_139 : f32 to vector<2x32xf32>
    %561 = arith.select %559, %546, %560 : vector<2x32xi1>, vector<2x32xf32>
    %c0_140 = arith.constant 0 : index
    %c0_141 = arith.constant 0 : index
    %c32_142 = arith.constant 32 : index
    %562 = vector.load %arg8[%c0_140, %c0_141, %c32_142] : memref<8x2x64xf32, #tpu.memory_space<vmem>>, vector<1x2x32xf32>
    %563 = vector.shape_cast %562 : vector<1x2x32xf32> to vector<2x32xf32>
    %564 = vector.shape_cast %561 : vector<2x32xf32> to vector<1x2x32xf32>
    tpu.vector_store %arg8[%c0_140, %c0_141, %c32_142], %564 {strides = array<i32>} : memref<8x2x64xf32, #tpu.memory_space<vmem>>, vector<1x2x32xf32>,
    %565 = vector.shape_cast %548 : vector<2x1xi1> to vector<2x1xi1>
    %566 = vector.broadcast %565 : vector<2x1xi1> to vector<2x32xi1>
    %567 = arith.select %566, %526, %497 : vector<2x32xi1>, vector<2x32xf32>
    %568 = vector.shape_cast %548 : vector<2x1xi1> to vector<2x1xi1>
    %569 = vector.broadcast %568 : vector<2x1xi1> to vector<2x32xi1>
    %570 = arith.select %569, %523, %500 : vector<2x32xi1>, vector<2x32xf32>
    %571 = vector.shape_cast %550 : vector<2x1xi1> to vector<2x1xi1>
    %572 = vector.broadcast %571 : vector<2x1xi1> to vector<2x32xi1>
    %573 = arith.select %572, %546, %503 : vector<2x32xi1>, vector<2x32xf32>
    %574 = vector.shape_cast %550 : vector<2x1xi1> to vector<2x1xi1>
    %575 = vector.broadcast %574 : vector<2x1xi1> to vector<2x32xi1>
    %576 = arith.select %575, %543, %506 : vector<2x32xi1>, vector<2x32xf32>
    %c0_143 = arith.constant 0 : index
    %c0_144 = arith.constant 0 : index
    %c0_145 = arith.constant 0 : index
    %577 = vector.load %arg9[%c0_143, %c0_144, %c0_145] : memref<1x2x64xf32, #tpu.memory_space<vmem>>, vector<1x2x32xf32>
    %578 = vector.shape_cast %577 : vector<1x2x32xf32> to vector<2x32xf32>
    %579 = vector.shape_cast %567 : vector<2x32xf32> to vector<1x2x32xf32>
    tpu.vector_store %arg9[%c0_143, %c0_144, %c0_145], %579 {strides = array<i32>} : memref<1x2x64xf32, #tpu.memory_space<vmem>>, vector<1x2x32xf32>,
    %c0_146 = arith.constant 0 : index
    %c0_147 = arith.constant 0 : index
    %c32_148 = arith.constant 32 : index
    %580 = vector.load %arg9[%c0_146, %c0_147, %c32_148] : memref<1x2x64xf32, #tpu.memory_space<vmem>>, vector<1x2x32xf32>
    %581 = vector.shape_cast %580 : vector<1x2x32xf32> to vector<2x32xf32>
    %582 = vector.shape_cast %573 : vector<2x32xf32> to vector<1x2x32xf32>
    tpu.vector_store %arg9[%c0_146, %c0_147, %c32_148], %582 {strides = array<i32>} : memref<1x2x64xf32, #tpu.memory_space<vmem>>, vector<1x2x32xf32>,
    %c0_149 = arith.constant 0 : index
    %c0_150 = arith.constant 0 : index
    %c0_151 = arith.constant 0 : index
    %583 = vector.load %arg10[%c0_149, %c0_150, %c0_151] : memref<1x2x64xf32, #tpu.memory_space<vmem>>, vector<1x2x32xf32>
    %584 = vector.shape_cast %583 : vector<1x2x32xf32> to vector<2x32xf32>
    %585 = vector.shape_cast %570 : vector<2x32xf32> to vector<1x2x32xf32>
    tpu.vector_store %arg10[%c0_149, %c0_150, %c0_151], %585 {strides = array<i32>} : memref<1x2x64xf32, #tpu.memory_space<vmem>>, vector<1x2x32xf32>,
    %c0_152 = arith.constant 0 : index
    %c0_153 = arith.constant 0 : index
    %c32_154 = arith.constant 32 : index
    %586 = vector.load %arg10[%c0_152, %c0_153, %c32_154] : memref<1x2x64xf32, #tpu.memory_space<vmem>>, vector<1x2x32xf32>
    %587 = vector.shape_cast %586 : vector<1x2x32xf32> to vector<2x32xf32>
    %588 = vector.shape_cast %576 : vector<2x32xf32> to vector<1x2x32xf32>
    tpu.vector_store %arg10[%c0_152, %c0_153, %c32_154], %588 {strides = array<i32>} : memref<1x2x64xf32, #tpu.memory_space<vmem>>, vector<1x2x32xf32>,
    return
  }
  func.func @transform_0(%arg0: i32) -> (i32, i32) {
    %c0_i32 = arith.constant 0 : i32
    %c0_i32_0 = arith.constant 0 : i32
    %c0_i32_1 = arith.constant 0 : i32
    return %c0_i32, %c0_i32_0 : i32, i32
  }
  func.func @transform_1(%arg0: i32) -> (i32, i32) {
    %c0_i32 = arith.constant 0 : i32
    %c0_i32_0 = arith.constant 0 : i32
    %c0_i32_1 = arith.constant 0 : i32
    return %c0_i32, %c0_i32_0 : i32, i32
  }
  func.func @transform_2(%arg0: i32) -> (i32, i32) {
    %c0_i32 = arith.constant 0 : i32
    %c0_i32_0 = arith.constant 0 : i32
    %c0_i32_1 = arith.constant 0 : i32
    return %c0_i32, %c0_i32_0 : i32, i32
  }
  func.func @transform_3(%arg0: i32) -> (i32, i32) {
    %c0_i32 = arith.constant 0 : i32
    %c0_i32_0 = arith.constant 0 : i32
    %c0_i32_1 = arith.constant 0 : i32
    return %c0_i32, %c0_i32_0 : i32, i32
  }
  func.func @transform_4(%arg0: i32) -> (i32, i32) {
    %c0_i32 = arith.constant 0 : i32
    %c0_i32_0 = arith.constant 0 : i32
    %c0_i32_1 = arith.constant 0 : i32
    return %c0_i32, %c0_i32_0 : i32, i32
  }
  func.func @transform_5(%arg0: i32) -> (i32, i32) {
    %c0_i32 = arith.constant 0 : i32
    %c0_i32_0 = arith.constant 0 : i32
    %c0_i32_1 = arith.constant 0 : i32
    return %c0_i32, %c0_i32_0 : i32, i32
  }
  func.func @transform_6(%arg0: i32) -> (i32, i32) {
    %c0_i32 = arith.constant 0 : i32
    %c0_i32_0 = arith.constant 0 : i32
    %c0_i32_1 = arith.constant 0 : i32
    return %c0_i32, %c0_i32_0 : i32, i32
  }
  func.func @transform_7(%arg0: i32) -> (i32, i32, i32) {
    %c0_i32 = arith.constant 0 : i32
    %c0_i32_0 = arith.constant 0 : i32
    %c0_i32_1 = arith.constant 0 : i32
    %c0_i32_2 = arith.constant 0 : i32
    return %c0_i32, %c0_i32_0, %c0_i32_1 : i32, i32, i32
  }
  func.func @transform_8(%arg0: i32) -> (i32, i32, i32) {
    %c0_i32 = arith.constant 0 : i32
    %c0_i32_0 = arith.constant 0 : i32
    %c0_i32_1 = arith.constant 0 : i32
    %c0_i32_2 = arith.constant 0 : i32
    return %c0_i32, %c0_i32_0, %c0_i32_1 : i32, i32, i32
  }
  func.func @transform_9(%arg0: i32) -> (i32, i32, i32) {
    %c0_i32 = arith.constant 0 : i32
    %c0_i32_0 = arith.constant 0 : i32
    %c0_i32_1 = arith.constant 0 : i32
    %c0_i32_2 = arith.constant 0 : i32
    return %c0_i32, %c0_i32_0, %c0_i32_1 : i32, i32, i32
  }
}

</mosaic_0001>

<llo_original>
// kernel: encoder_rnn_forward.1
$region0: #{encoder_rnn_forward.1}
  #allocation0 [shape = 'u32[]', space=smem, size = 0x4, offset = 0x4, fixed_abs, tag = 'smem constant byte address 0x4 - core index']
  #allocation1 [shape = 'u32[144,128]{1,0:T(1,128)}', space=vmem, size = 0x12000, scoped, tag = 'internal scratch']
  %s0 = inlined_call_operand.vmem [shape: s32[16,1], index: 0, kind: input, shape index: {}]
  %s1 = inlined_call_operand.vmem [shape: s32[2,1], index: 1, kind: input, shape index: {}]
  %s2 = inlined_call_operand.vmem [shape: f32[64,128], index: 2, kind: input, shape index: {}]
  %s3 = inlined_call_operand.vmem [shape: f32[128,256], index: 3, kind: input, shape index: {}]
  %s4 = inlined_call_operand.vmem [shape: f32[32,128], index: 4, kind: input, shape index: {}]
  %s5 = inlined_call_operand.vmem [shape: f32[32,128], index: 5, kind: input, shape index: {}]
  %s6 = inlined_call_operand.vmem [shape: f32[1,256], index: 6, kind: input, shape index: {}]
  %s7 = inlined_call_operand.hbm [shape: f32[8,2,64], index: 7, kind: output, shape index: {0}]
  %s8 = inlined_call_operand.hbm [shape: f32[1,2,64], index: 8, kind: output, shape index: {1}]
  %s9 = inlined_call_operand.hbm [shape: f32[1,2,64], index: 9, kind: output, shape index: {2}]
  %10 = xla_tuple %s7, %s8, %s9
  %s11 = sld [smem:[#allocation0]]
  $region54: #{encoder_rnn_forward.1} parent=0
    _
  %s13 = ssub.s32 1, %s11
  %s14 = scalar_select 0, %s13, %s11
  $region1: #{encoder_rnn_forward.1} parent=0
    #allocation2 [shape = 'u8[8192]{0}', space=vmem, size = 0x2000, scoped, tag = 'output window, operand 0, single buffered']
    #allocation3 [shape = 's32[1]{0}', space=sflag, size = 0x4, scoped, tag = 'scoped memory for encoder_rnn_forward.1']
    #allocation4 [shape = 'u8[1024]{0}', space=vmem, size = 0x400, scoped, tag = 'output window, operand 1, single buffered']
    #allocation5 [shape = 's32[1]{0}', space=sflag, size = 0x4, scoped, tag = 'scoped memory for encoder_rnn_forward.1']
    #allocation6 [shape = 'u8[1024]{0}', space=vmem, size = 0x400, scoped, tag = 'output window, operand 2, single buffered']
    %15 = vsyncpa [#allocation3], 0
    %16 = vsyncpa [#allocation5], 0
    // Predicated region
    $region2: #{encoder_rnn_forward.1} parent=1 // pred_check
      _
    $region3: #{encoder_rnn_forward.1} parent=1 // pred_check_branch
      %18 = sbr.rel (0) target = $region5
    $region4: #{encoder_rnn_forward.1} parent=1 // pred_region
      _
    $region5: #{encoder_rnn_forward.1} parent=1 // pred_fallthru
      _
    // Predicated region
    $region6: #{encoder_rnn_forward.1} parent=1 // pred_check
      _
    $region7: #{encoder_rnn_forward.1} parent=1 // pred_check_branch
      %20 = sbr.rel (0) target = $region9
    $region8: #{encoder_rnn_forward.1} parent=1 // pred_region
      _
    $region9: #{encoder_rnn_forward.1} parent=1 // pred_fallthru
      _
    // Predicated region
    $region10: #{encoder_rnn_forward.1} parent=1 // pred_check
      _
    $region11: #{encoder_rnn_forward.1} parent=1 // pred_check_branch
      %22 = sbr.rel (0) target = $region13
    $region12: #{encoder_rnn_forward.1} parent=1 // pred_region
      _
    $region13: #{encoder_rnn_forward.1} parent=1 // pred_fallthru
      _
    // Predicated region
    $region14: #{encoder_rnn_forward.1} parent=1 // pred_check
      _
    $region15: #{encoder_rnn_forward.1} parent=1 // pred_check_branch
      %24 = sbr.rel (0) target = $region17
    $region16: #{encoder_rnn_forward.1} parent=1 // pred_region
      _
    $region17: #{encoder_rnn_forward.1} parent=1 // pred_fallthru
      _
    // Predicated region
    $region18: #{encoder_rnn_forward.1} parent=1 // pred_check
      _
    $region19: #{encoder_rnn_forward.1} parent=1 // pred_check_branch
      %26 = sbr.rel (0) target = $region21
    $region20: #{encoder_rnn_forward.1} parent=1 // pred_region
      _
    $region21: #{encoder_rnn_forward.1} parent=1 // pred_fallthru
      _
    // Predicated region
    $region22: #{encoder_rnn_forward.1} parent=1 // pred_check
      _
    $region23: #{encoder_rnn_forward.1} parent=1 // pred_check_branch
      %28 = sbr.rel (0) target = $region25
    $region24: #{encoder_rnn_forward.1} parent=1 // pred_region
      _
    $region25: #{encoder_rnn_forward.1} parent=1 // pred_fallthru
      _
    // Predicated region
    $region26: #{encoder_rnn_forward.1} parent=1 // pred_check
      _
    $region27: #{encoder_rnn_forward.1} parent=1 // pred_check_branch
      %30 = sbr.rel (0) target = $region29
    $region28: #{encoder_rnn_forward.1} parent=1 // pred_region
      _
    $region29: #{encoder_rnn_forward.1} parent=1 // pred_fallthru
      _
    %v31 = vld [vmem:[%s0] sm:$0xff]
    %v32 = vld [vmem:[%s0 + $0x8] sm:$0xff]
    %v33 = vlaneseq
    %v34 = vand.u32 %v33, 127
    %35 = vset.pattern.permute.xlu0 0
    %36 = vperm.xlu0 %35, %v31
    %v37 = vpop.permute.xlu0 %36
    %38 = vset.pattern.permute.xlu0 0
    %39 = vperm.xlu0 %38, %v32
    %v40 = vpop.permute.xlu0 %39
    %vm41 = vcmp.eq.s32.totalorder %v34, %v37
    %vm42 = vcmp.eq.s32.totalorder %v34, %v40
    %v43 = vsel %vm41, 1, 0
    %v44 = vsel %vm42, 1, 0
    %v45 = vcvt.s32.f32 %v43
    %v46 = vcvt.s32.f32 %v44
    %v47 = vld [vmem:[%s2] sm:$0xff]
    %v48 = vld [vmem:[%s2 + $0x8] sm:$0xff]
    %v49 = vld [vmem:[%s2 + $0x10] sm:$0xff]
    %v50 = vld [vmem:[%s2 + $0x18] sm:$0xff]
    %v51 = vld [vmem:[%s2 + $0x20] sm:$0xff]
    %v52 = vld [vmem:[%s2 + $0x28] sm:$0xff]
    %v53 = vld [vmem:[%s2 + $0x30] sm:$0xff]
    %v54 = vld [vmem:[%s2 + $0x38] sm:$0xff]
    %vm55 = vcmask 523264
    %v57 = vsel %vm55, %v45, 0
    %v60 = vsel %vm55, %v46, 0
    %62 = vmatprep.subr.mxu0 0.0
    %63 = vmatpush1.msra.mxu0 0.0
    %64 = vmatprep.subr.mxu0 0.0
    %65 = vmatpush1.msra.mxu0 0.0
    %66 = vmatprep.subr.mxu0 0.0
    %67 = vmatpush1.msra.mxu0 0.0
    %68 = vmatprep.subr.mxu0 0.0
    %69 = vmatpush1.msra.mxu0 0.0
    %70 = vmatprep.subr.mxu0 0.0
    %71 = vmatpush1.msra.mxu0 0.0
    %72 = vmatprep.subr.mxu0 0.0
    %73 = vmatpush1.msra.mxu0 0.0
    %74 = vmatprep.subr.mxu0 0.0
    %75 = vmatpush1.msra.mxu0 0.0
    %76 = vmatprep.subr.mxu0 0.0
    %77 = vmatpush1.msra.mxu0 0.0
    %78 = vmatprep.subr.mxu0 0.0
    %v79 = vand.u32 %v54, 4294901760
    %80 = vmatpush1.msra.mxu0 %v79
    %81 = vmatprep.subr.mxu0 0.0
    %v82 = vand.u32 %v53, 4294901760
    %83 = vmatpush1.msra.mxu0 %v82
    %84 = vmatprep.subr.mxu0 0.0
    %v85 = vand.u32 %v52, 4294901760
    %86 = vmatpush1.msra.mxu0 %v85
    %87 = vmatprep.subr.mxu0 0.0
    %v88 = vand.u32 %v51, 4294901760
    %89 = vmatpush1.msra.mxu0 %v88
    %90 = vmatprep.subr.mxu0 0.0
    %v91 = vand.u32 %v50, 4294901760
    %92 = vmatpush1.msra.mxu0 %v91
    %93 = vmatprep.subr.mxu0 0.0
    %v94 = vand.u32 %v49, 4294901760
    %95 = vmatpush1.msra.mxu0 %v94
    %96 = vmatprep.subr.mxu0 0.0
    %v97 = vand.u32 %v48, 4294901760
    %98 = vmatpush1.msra.mxu0 %v97
    %99 = vmatprep.subr.mxu0 0.0
    %v100 = vand.u32 %v47, 4294901760
    %101 = vmatpush1.msra.mxu0 %v100
    %102 = vmatprep.subr.mxu0 0.0
    %103 = vmatpush2.msra.mxu0 0.0
    %104 = vmatprep.subr.mxu0 0.0
    %105 = vmatpush2.msra.mxu0 0.0
    %106 = vmatprep.subr.mxu0 0.0
    %107 = vmatpush2.msra.mxu0 0.0
    %108 = vmatprep.subr.mxu0 0.0
    %109 = vmatpush2.msra.mxu0 0.0
    %110 = vmatprep.subr.mxu0 0.0
    %111 = vmatpush2.msra.mxu0 0.0
    %112 = vmatprep.subr.mxu0 0.0
    %113 = vmatpush2.msra.mxu0 0.0
    %114 = vmatprep.subr.mxu0 0.0
    %115 = vmatpush2.msra.mxu0 0.0
    %116 = vmatprep.subr.mxu0 0.0
    %117 = vmatpush2.msra.mxu0 0.0
    %118 = vmatprep.subr.mxu0 0.0
    %119 = vmatpush2.msra.mxu0 0.0
    %120 = vmatprep.subr.mxu0 0.0
    %121 = vmatpush2.msra.mxu0 0.0
    %122 = vmatprep.subr.mxu0 0.0
    %123 = vmatpush2.msra.mxu0 0.0
    %124 = vmatprep.subr.mxu0 0.0
    %125 = vmatpush2.msra.mxu0 0.0
    %126 = vmatprep.subr.mxu0 0.0
    %127 = vmatpush2.msra.mxu0 0.0
    %128 = vmatprep.subr.mxu0 0.0
    %129 = vmatpush2.msra.mxu0 0.0
    %130 = vmatprep.subr.mxu0 0.0
    %131 = vmatpush2.msra.mxu0 0.0
    %132 = vmatprep.subr.mxu0 0.0
    %133 = vmatpush2.msra.mxu0 0.0
    %134 = vmatprep.mubr.f32.mxu0 0.0
    %v135 = vand.u32 %v57, 4294901760
    %v136 = vsub.f32 %v57, %v135
    %v137 = vand.u32 %v136, 4294901760
    %v138 = vsub.f32 %v136, %v137
    %v139 = vand.u32 %v138, 4294901760
    %140 = vmatmul.mubr.f32.gmra.mxu0 %v139
    %v141 = vpop.f32.mrf.mxu0
    %v142 = vadd.f32 0.0, %v141
    %v143 = vpop.f32.mrf.mxu0
    %144 = vmatprep.mubr.f32.mxu0 0.0
    %v145 = vand.u32 %v60, 4294901760
    %v146 = vsub.f32 %v60, %v145
    %v147 = vand.u32 %v146, 4294901760
    %v148 = vsub.f32 %v146, %v147
    %v149 = vand.u32 %v148, 4294901760
    %150 = vmatmul.mubr.f32.gmra.mxu0 %v149
    %v151 = vpop.f32.mrf.mxu0
    %v152 = vadd.f32 0.0, %v151
    %v153 = vpop.f32.mrf.mxu0
    %154 = vdwg.mxu0
    %155 = vmatprep.subr.mxu0 0.0
    %156 = vmatpush1.msra.mxu0 0.0
    %157 = vmatprep.subr.mxu0 0.0
    %158 = vmatpush1.msra.mxu0 0.0
    %159 = vmatprep.subr.mxu0 0.0
    %160 = vmatpush1.msra.mxu0 0.0
    %161 = vmatprep.subr.mxu0 0.0
    %162 = vmatpush1.msra.mxu0 0.0
    %163 = vmatprep.subr.mxu0 0.0
    %164 = vmatpush1.msra.mxu0 0.0
    %165 = vmatprep.subr.mxu0 0.0
    %166 = vmatpush1.msra.mxu0 0.0
    %167 = vmatprep.subr.mxu0 0.0
    %168 = vmatpush1.msra.mxu0 0.0
    %169 = vmatprep.subr.mxu0 0.0
    %170 = vmatpush1.msra.mxu0 0.0
    %171 = vmatprep.subr.mxu0 0.0
    %v172 = vand.u32 %v54, 4294901760
    %v173 = vsub.f32 %v54, %v172
    %v174 = vand.u32 %v173, 4294901760
    %v175 = vsub.f32 %v173, %v174
    %v176 = vand.u32 %v175, 4294901760
    %177 = vmatpush1.msra.mxu0 %v176
    %178 = vmatprep.subr.mxu0 0.0
    %v179 = vand.u32 %v53, 4294901760
    %v180 = vsub.f32 %v53, %v179
    %v181 = vand.u32 %v180, 4294901760
    %v182 = vsub.f32 %v180, %v181
    %v183 = vand.u32 %v182, 4294901760
    %184 = vmatpush1.msra.mxu0 %v183
    %185 = vmatprep.subr.mxu0 0.0
    %v186 = vand.u32 %v52, 4294901760
    %v187 = vsub.f32 %v52, %v186
    %v188 = vand.u32 %v187, 4294901760
    %v189 = vsub.f32 %v187, %v188
    %v190 = vand.u32 %v189, 4294901760
    %191 = vmatpush1.msra.mxu0 %v190
    %192 = vmatprep.subr.mxu0 0.0
    %v193 = vand.u32 %v51, 4294901760
    %v194 = vsub.f32 %v51, %v193
    %v195 = vand.u32 %v194, 4294901760
    %v196 = vsub.f32 %v194, %v195
    %v197 = vand.u32 %v196, 4294901760
    %198 = vmatpush1.msra.mxu0 %v197
    %199 = vmatprep.subr.mxu0 0.0
    %v200 = vand.u32 %v50, 4294901760
    %v201 = vsub.f32 %v50, %v200
    %v202 = vand.u32 %v201, 4294901760
    %v203 = vsub.f32 %v201, %v202
    %v204 = vand.u32 %v203, 4294901760
    %205 = vmatpush1.msra.mxu0 %v204
    %206 = vmatprep.subr.mxu0 0.0
    %v207 = vand.u32 %v49, 4294901760
    %v208 = vsub.f32 %v49, %v207
    %v209 = vand.u32 %v208, 4294901760
    %v210 = vsub.f32 %v208, %v209
    %v211 = vand.u32 %v210, 4294901760
    %212 = vmatpush1.msra.mxu0 %v211
    %213 = vmatprep.subr.mxu0 0.0
    %v214 = vand.u32 %v48, 4294901760
    %v215 = vsub.f32 %v48, %v214
    %v216 = vand.u32 %v215, 4294901760
    %v217 = vsub.f32 %v215, %v216
    %v218 = vand.u32 %v217, 4294901760
    %219 = vmatpush1.msra.mxu0 %v218
    %220 = vmatprep.subr.mxu0 0.0
    %v221 = vand.u32 %v47, 4294901760
    %v222 = vsub.f32 %v47, %v221
    %v223 = vand.u32 %v222, 4294901760
    %v224 = vsub.f32 %v222, %v223
    %v225 = vand.u32 %v224, 4294901760
    %226 = vmatpush1.msra.mxu0 %v225
    %227 = vmatprep.subr.mxu0 0.0
    %228 = vmatpush2.msra.mxu0 0.0
    %229 = vmatprep.subr.mxu0 0.0
    %230 = vmatpush2.msra.mxu0 0.0
    %231 = vmatprep.subr.mxu0 0.0
    %232 = vmatpush2.msra.mxu0 0.0
    %233 = vmatprep.subr.mxu0 0.0
    %234 = vmatpush2.msra.mxu0 0.0
    %235 = vmatprep.subr.mxu0 0.0
    %236 = vmatpush2.msra.mxu0 0.0
    %237 = vmatprep.subr.mxu0 0.0
    %238 = vmatpush2.msra.mxu0 0.0
    %239 = vmatprep.subr.mxu0 0.0
    %240 = vmatpush2.msra.mxu0 0.0
    %241 = vmatprep.subr.mxu0 0.0
    %242 = vmatpush2.msra.mxu0 0.0
    %243 = vmatprep.subr.mxu0 0.0
    %244 = vmatpush2.msra.mxu0 0.0
    %245 = vmatprep.subr.mxu0 0.0
    %246 = vmatpush2.msra.mxu0 0.0
    %247 = vmatprep.subr.mxu0 0.0
    %248 = vmatpush2.msra.mxu0 0.0
    %249 = vmatprep.subr.mxu0 0.0
    %250 = vmatpush2.msra.mxu0 0.0
    %251 = vmatprep.subr.mxu0 0.0
    %252 = vmatpush2.msra.mxu0 0.0
    %253 = vmatprep.subr.mxu0 0.0
    %254 = vmatpush2.msra.mxu0 0.0
    %255 = vmatprep.subr.mxu0 0.0
    %256 = vmatpush2.msra.mxu0 0.0
    %257 = vmatprep.subr.mxu0 0.0
    %258 = vmatpush2.msra.mxu0 0.0
    %259 = vmatprep.mubr.f32.mxu0 0.0
    %v260 = vand.u32 %v57, 4294901760
    %261 = vmatmul.mubr.f32.gmra.mxu0 %v260
    %v262 = vpop.f32.mrf.mxu0
    %v263 = vadd.f32 %v142, %v262
    %v264 = vpop.f32.mrf.mxu0
    %265 = vmatprep.mubr.f32.mxu0 0.0
    %v266 = vand.u32 %v60, 4294901760
    %267 = vmatmul.mubr.f32.gmra.mxu0 %v266
    %v268 = vpop.f32.mrf.mxu0
    %v269 = vadd.f32 %v152, %v268
    %v270 = vpop.f32.mrf.mxu0
    %271 = vdwg.mxu0
    %272 = vmatprep.subr.mxu0 0.0
    %273 = vmatpush1.msra.mxu0 0.0
    %274 = vmatprep.subr.mxu0 0.0
    %275 = vmatpush1.msra.mxu0 0.0
    %276 = vmatprep.subr.mxu0 0.0
    %277 = vmatpush1.msra.mxu0 0.0
    %278 = vmatprep.subr.mxu0 0.0
    %279 = vmatpush1.msra.mxu0 0.0
    %280 = vmatprep.subr.mxu0 0.0
    %281 = vmatpush1.msra.mxu0 0.0
    %282 = vmatprep.subr.mxu0 0.0
    %283 = vmatpush1.msra.mxu0 0.0
    %284 = vmatprep.subr.mxu0 0.0
    %285 = vmatpush1.msra.mxu0 0.0
    %286 = vmatprep.subr.mxu0 0.0
    %287 = vmatpush1.msra.mxu0 0.0
    %288 = vmatprep.subr.mxu0 0.0
    %v289 = vand.u32 %v54, 4294901760
    %v290 = vsub.f32 %v54, %v289
    %291 = vmatpush1.msra.mxu0 %v290
    %292 = vmatprep.subr.mxu0 0.0
    %v293 = vand.u32 %v53, 4294901760
    %v294 = vsub.f32 %v53, %v293
    %295 = vmatpush1.msra.mxu0 %v294
    %296 = vmatprep.subr.mxu0 0.0
    %v297 = vand.u32 %v52, 4294901760
    %v298 = vsub.f32 %v52, %v297
    %299 = vmatpush1.msra.mxu0 %v298
    %300 = vmatprep.subr.mxu0 0.0
    %v301 = vand.u32 %v51, 4294901760
    %v302 = vsub.f32 %v51, %v301
    %303 = vmatpush1.msra.mxu0 %v302
    %304 = vmatprep.subr.mxu0 0.0
    %v305 = vand.u32 %v50, 4294901760
    %v306 = vsub.f32 %v50, %v305
    %307 = vmatpush1.msra.mxu0 %v306
    %308 = vmatprep.subr.mxu0 0.0
    %v309 = vand.u32 %v49, 4294901760
    %v310 = vsub.f32 %v49, %v309
    %311 = vmatpush1.msra.mxu0 %v310
    %312 = vmatprep.subr.mxu0 0.0
    %v313 = vand.u32 %v48, 4294901760
    %v314 = vsub.f32 %v48, %v313
    %315 = vmatpush1.msra.mxu0 %v314
    %316 = vmatprep.subr.mxu0 0.0
    %v317 = vand.u32 %v47, 4294901760
    %v318 = vsub.f32 %v47, %v317
    %319 = vmatpush1.msra.mxu0 %v318
    %320 = vmatprep.subr.mxu0 0.0
    %321 = vmatpush2.msra.mxu0 0.0
    %322 = vmatprep.subr.mxu0 0.0
    %323 = vmatpush2.msra.mxu0 0.0
    %324 = vmatprep.subr.mxu0 0.0
    %325 = vmatpush2.msra.mxu0 0.0
    %326 = vmatprep.subr.mxu0 0.0
    %327 = vmatpush2.msra.mxu0 0.0
    %328 = vmatprep.subr.mxu0 0.0
    %329 = vmatpush2.msra.mxu0 0.0
    %330 = vmatprep.subr.mxu0 0.0
    %331 = vmatpush2.msra.mxu0 0.0
    %332 = vmatprep.subr.mxu0 0.0
    %333 = vmatpush2.msra.mxu0 0.0
    %334 = vmatprep.subr.mxu0 0.0
    %335 = vmatpush2.msra.mxu0 0.0
    %336 = vmatprep.subr.mxu0 0.0
    %337 = vmatpush2.msra.mxu0 0.0
    %338 = vmatprep.subr.mxu0 0.0
    %339 = vmatpush2.msra.mxu0 0.0
    %340 = vmatprep.subr.mxu0 0.0
    %341 = vmatpush2.msra.mxu0 0.0
    %342 = vmatprep.subr.mxu0 0.0
    %343 = vmatpush2.msra.mxu0 0.0
    %344 = vmatprep.subr.mxu0 0.0
    %345 = vmatpush2.msra.mxu0 0.0
    %346 = vmatprep.subr.mxu0 0.0
    %347 = vmatpush2.msra.mxu0 0.0
    %348 = vmatprep.subr.mxu0 0.0
    %349 = vmatpush2.msra.mxu0 0.0
    %350 = vmatprep.subr.mxu0 0.0
    %351 = vmatpush2.msra.mxu0 0.0
    %352 = vmatprep.mubr.f32.mxu0 0.0
    %v353 = vand.u32 %v57, 4294901760
    %v354 = vsub.f32 %v57, %v353
    %355 = vmatmul.mubr.f32.gmra.mxu0 %v354
    %v356 = vpop.f32.mrf.mxu0
    %v357 = vadd.f32 %v263, %v356
    %v358 = vpop.f32.mrf.mxu0
    %359 = vmatprep.mubr.f32.mxu0 0.0
    %v360 = vand.u32 %v60, 4294901760
    %v361 = vsub.f32 %v60, %v360
    %362 = vmatmul.mubr.f32.gmra.mxu0 %v361
    %v363 = vpop.f32.mrf.mxu0
    %v364 = vadd.f32 %v269, %v363
    %v365 = vpop.f32.mrf.mxu0
    %366 = vdwg.mxu0
    %367 = vmatprep.subr.mxu0 0.0
    %368 = vmatpush1.msra.mxu0 0.0
    %369 = vmatprep.subr.mxu0 0.0
    %370 = vmatpush1.msra.mxu0 0.0
    %371 = vmatprep.subr.mxu0 0.0
    %372 = vmatpush1.msra.mxu0 0.0
    %373 = vmatprep.subr.mxu0 0.0
    %374 = vmatpush1.msra.mxu0 0.0
    %375 = vmatprep.subr.mxu0 0.0
    %376 = vmatpush1.msra.mxu0 0.0
    %377 = vmatprep.subr.mxu0 0.0
    %378 = vmatpush1.msra.mxu0 0.0
    %379 = vmatprep.subr.mxu0 0.0
    %380 = vmatpush1.msra.mxu0 0.0
    %381 = vmatprep.subr.mxu0 0.0
    %382 = vmatpush1.msra.mxu0 0.0
    %383 = vmatprep.subr.mxu0 0.0
    %v384 = vand.u32 %v54, 4294901760
    %385 = vmatpush1.msra.mxu0 %v384
    %386 = vmatprep.subr.mxu0 0.0
    %v387 = vand.u32 %v53, 4294901760
    %388 = vmatpush1.msra.mxu0 %v387
    %389 = vmatprep.subr.mxu0 0.0
    %v390 = vand.u32 %v52, 4294901760
    %391 = vmatpush1.msra.mxu0 %v390
    %392 = vmatprep.subr.mxu0 0.0
    %v393 = vand.u32 %v51, 4294901760
    %394 = vmatpush1.msra.mxu0 %v393
    %395 = vmatprep.subr.mxu0 0.0
    %v396 = vand.u32 %v50, 4294901760
    %397 = vmatpush1.msra.mxu0 %v396
    %398 = vmatprep.subr.mxu0 0.0
    %v399 = vand.u32 %v49, 4294901760
    %400 = vmatpush1.msra.mxu0 %v399
    %401 = vmatprep.subr.mxu0 0.0
    %v402 = vand.u32 %v48, 4294901760
    %403 = vmatpush1.msra.mxu0 %v402
    %404 = vmatprep.subr.mxu0 0.0
    %v405 = vand.u32 %v47, 4294901760
    %406 = vmatpush1.msra.mxu0 %v405
    %407 = vmatprep.subr.mxu0 0.0
    %408 = vmatpush2.msra.mxu0 0.0
    %409 = vmatprep.subr.mxu0 0.0
    %410 = vmatpush2.msra.mxu0 0.0
    %411 = vmatprep.subr.mxu0 0.0
    %412 = vmatpush2.msra.mxu0 0.0
    %413 = vmatprep.subr.mxu0 0.0
    %414 = vmatpush2.msra.mxu0 0.0
    %415 = vmatprep.subr.mxu0 0.0
    %416 = vmatpush2.msra.mxu0 0.0
    %417 = vmatprep.subr.mxu0 0.0
    %418 = vmatpush2.msra.mxu0 0.0
    %419 = vmatprep.subr.mxu0 0.0
    %420 = vmatpush2.msra.mxu0 0.0
    %421 = vmatprep.subr.mxu0 0.0
    %422 = vmatpush2.msra.mxu0 0.0
    %423 = vmatprep.subr.mxu0 0.0
    %424 = vmatpush2.msra.mxu0 0.0
    %425 = vmatprep.subr.mxu0 0.0
    %426 = vmatpush2.msra.mxu0 0.0
    %427 = vmatprep.subr.mxu0 0.0
    %428 = vmatpush2.msra.mxu0 0.0
    %429 = vmatprep.subr.mxu0 0.0
    %430 = vmatpush2.msra.mxu0 0.0
    %431 = vmatprep.subr.mxu0 0.0
    %432 = vmatpush2.msra.mxu0 0.0
    %433 = vmatprep.subr.mxu0 0.0
    %434 = vmatpush2.msra.mxu0 0.0
    %435 = vmatprep.subr.mxu0 0.0
    %436 = vmatpush2.msra.mxu0 0.0
    %437 = vmatprep.subr.mxu0 0.0
    %438 = vmatpush2.msra.mxu0 0.0
    %439 = vmatprep.mubr.f32.mxu0 0.0
    %v440 = vand.u32 %v57, 4294901760
    %v441 = vsub.f32 %v57, %v440
    %v442 = vand.u32 %v441, 4294901760
    %443 = vmatmul.mubr.f32.gmra.mxu0 %v442
    %v444 = vpop.f32.mrf.mxu0
    %v445 = vadd.f32 %v357, %v444
    %v446 = vpop.f32.mrf.mxu0
    %447 = vmatprep.mubr.f32.mxu0 0.0
    %v448 = vand.u32 %v60, 4294901760
    %v449 = vsub.f32 %v60, %v448
    %v450 = vand.u32 %v449, 4294901760
    %451 = vmatmul.mubr.f32.gmra.mxu0 %v450
    %v452 = vpop.f32.mrf.mxu0
    %v453 = vadd.f32 %v364, %v452
    %v454 = vpop.f32.mrf.mxu0
    %455 = vdwg.mxu0
    %456 = vmatprep.subr.mxu0 0.0
    %457 = vmatpush1.msra.mxu0 0.0
    %458 = vmatprep.subr.mxu0 0.0
    %459 = vmatpush1.msra.mxu0 0.0
    %460 = vmatprep.subr.mxu0 0.0
    %461 = vmatpush1.msra.mxu0 0.0
    %462 = vmatprep.subr.mxu0 0.0
    %463 = vmatpush1.msra.mxu0 0.0
    %464 = vmatprep.subr.mxu0 0.0
    %465 = vmatpush1.msra.mxu0 0.0
    %466 = vmatprep.subr.mxu0 0.0
    %467 = vmatpush1.msra.mxu0 0.0
    %468 = vmatprep.subr.mxu0 0.0
    %469 = vmatpush1.msra.mxu0 0.0
    %470 = vmatprep.subr.mxu0 0.0
    %471 = vmatpush1.msra.mxu0 0.0
    %472 = vmatprep.subr.mxu0 0.0
    %v473 = vand.u32 %v54, 4294901760
    %v474 = vsub.f32 %v54, %v473
    %v475 = vand.u32 %v474, 4294901760
    %476 = vmatpush1.msra.mxu0 %v475
    %477 = vmatprep.subr.mxu0 0.0
    %v478 = vand.u32 %v53, 4294901760
    %v479 = vsub.f32 %v53, %v478
    %v480 = vand.u32 %v479, 4294901760
    %481 = vmatpush1.msra.mxu0 %v480
    %482 = vmatprep.subr.mxu0 0.0
    %v483 = vand.u32 %v52, 4294901760
    %v484 = vsub.f32 %v52, %v483
    %v485 = vand.u32 %v484, 4294901760
    %486 = vmatpush1.msra.mxu0 %v485
    %487 = vmatprep.subr.mxu0 0.0
    %v488 = vand.u32 %v51, 4294901760
    %v489 = vsub.f32 %v51, %v488
    %v490 = vand.u32 %v489, 4294901760
    %491 = vmatpush1.msra.mxu0 %v490
    %492 = vmatprep.subr.mxu0 0.0
    %v493 = vand.u32 %v50, 4294901760
    %v494 = vsub.f32 %v50, %v493
    %v495 = vand.u32 %v494, 4294901760
    %496 = vmatpush1.msra.mxu0 %v495
    %497 = vmatprep.subr.mxu0 0.0
    %v498 = vand.u32 %v49, 4294901760
    %v499 = vsub.f32 %v49, %v498
    %v500 = vand.u32 %v499, 4294901760
    %501 = vmatpush1.msra.mxu0 %v500
    %502 = vmatprep.subr.mxu0 0.0
    %v503 = vand.u32 %v48, 4294901760
    %v504 = vsub.f32 %v48, %v503
    %v505 = vand.u32 %v504, 4294901760
    %506 = vmatpush1.msra.mxu0 %v505
    %507 = vmatprep.subr.mxu0 0.0
    %v508 = vand.u32 %v47, 4294901760
    %v509 = vsub.f32 %v47, %v508
    %v510 = vand.u32 %v509, 4294901760
    %511 = vmatpush1.msra.mxu0 %v510
    %512 = vmatprep.subr.mxu0 0.0
    %513 = vmatpush2.msra.mxu0 0.0
    %514 = vmatprep.subr.mxu0 0.0
    %515 = vmatpush2.msra.mxu0 0.0
    %516 = vmatprep.subr.mxu0 0.0
    %517 = vmatpush2.msra.mxu0 0.0
    %518 = vmatprep.subr.mxu0 0.0
    %519 = vmatpush2.msra.mxu0 0.0
    %520 = vmatprep.subr.mxu0 0.0
    %521 = vmatpush2.msra.mxu0 0.0
    %522 = vmatprep.subr.mxu0 0.0
    %523 = vmatpush2.msra.mxu0 0.0
    %524 = vmatprep.subr.mxu0 0.0
    %525 = vmatpush2.msra.mxu0 0.0
    %526 = vmatprep.subr.mxu0 0.0
    %527 = vmatpush2.msra.mxu0 0.0
    %528 = vmatprep.subr.mxu0 0.0
    %529 = vmatpush2.msra.mxu0 0.0
    %530 = vmatprep.subr.mxu0 0.0
    %531 = vmatpush2.msra.mxu0 0.0
    %532 = vmatprep.subr.mxu0 0.0
    %533 = vmatpush2.msra.mxu0 0.0
    %534 = vmatprep.subr.mxu0 0.0
    %535 = vmatpush2.msra.mxu0 0.0
    %536 = vmatprep.subr.mxu0 0.0
    %537 = vmatpush2.msra.mxu0 0.0
    %538 = vmatprep.subr.mxu0 0.0
    %539 = vmatpush2.msra.mxu0 0.0
    %540 = vmatprep.subr.mxu0 0.0
    %541 = vmatpush2.msra.mxu0 0.0
    %542 = vmatprep.subr.mxu0 0.0
    %543 = vmatpush2.msra.mxu0 0.0
    %544 = vmatprep.mubr.f32.mxu0 0.0
    %v545 = vand.u32 %v57, 4294901760
    %546 = vmatmul.mubr.f32.gmra.mxu0 %v545
    %v547 = vpop.f32.mrf.mxu0
    %v548 = vadd.f32 %v445, %v547
    %v549 = vpop.f32.mrf.mxu0
    %550 = vmatprep.mubr.f32.mxu0 0.0
    %v551 = vand.u32 %v60, 4294901760
    %552 = vmatmul.mubr.f32.gmra.mxu0 %v551
    %v553 = vpop.f32.mrf.mxu0
    %v554 = vadd.f32 %v453, %v553
    %v555 = vpop.f32.mrf.mxu0
    %556 = vdwg.mxu0
    %557 = vmatprep.subr.mxu0 0.0
    %558 = vmatpush1.msra.mxu0 0.0
    %559 = vmatprep.subr.mxu0 0.0
    %560 = vmatpush1.msra.mxu0 0.0
    %561 = vmatprep.subr.mxu0 0.0
    %562 = vmatpush1.msra.mxu0 0.0
    %563 = vmatprep.subr.mxu0 0.0
    %564 = vmatpush1.msra.mxu0 0.0
    %565 = vmatprep.subr.mxu0 0.0
    %566 = vmatpush1.msra.mxu0 0.0
    %567 = vmatprep.subr.mxu0 0.0
    %568 = vmatpush1.msra.mxu0 0.0
    %569 = vmatprep.subr.mxu0 0.0
    %570 = vmatpush1.msra.mxu0 0.0
    %571 = vmatprep.subr.mxu0 0.0
    %572 = vmatpush1.msra.mxu0 0.0
    %573 = vmatprep.subr.mxu0 0.0
    %v574 = vand.u32 %v54, 4294901760
    %575 = vmatpush1.msra.mxu0 %v574
    %576 = vmatprep.subr.mxu0 0.0
    %v577 = vand.u32 %v53, 4294901760
    %578 = vmatpush1.msra.mxu0 %v577
    %579 = vmatprep.subr.mxu0 0.0
    %v580 = vand.u32 %v52, 4294901760
    %581 = vmatpush1.msra.mxu0 %v580
    %582 = vmatprep.subr.mxu0 0.0
    %v583 = vand.u32 %v51, 4294901760
    %584 = vmatpush1.msra.mxu0 %v583
    %585 = vmatprep.subr.mxu0 0.0
    %v586 = vand.u32 %v50, 4294901760
    %587 = vmatpush1.msra.mxu0 %v586
    %588 = vmatprep.subr.mxu0 0.0
    %v589 = vand.u32 %v49, 4294901760
    %590 = vmatpush1.msra.mxu0 %v589
    %591 = vmatprep.subr.mxu0 0.0
    %v592 = vand.u32 %v48, 4294901760
    %593 = vmatpush1.msra.mxu0 %v592
    %594 = vmatprep.subr.mxu0 0.0
    %v595 = vand.u32 %v47, 4294901760
    %596 = vmatpush1.msra.mxu0 %v595
    %597 = vmatprep.subr.mxu0 0.0
    %598 = vmatpush2.msra.mxu0 0.0
    %599 = vmatprep.subr.mxu0 0.0
    %600 = vmatpush2.msra.mxu0 0.0
    %601 = vmatprep.subr.mxu0 0.0
    %602 = vmatpush2.msra.mxu0 0.0
    %603 = vmatprep.subr.mxu0 0.0
    %604 = vmatpush2.msra.mxu0 0.0
    %605 = vmatprep.subr.mxu0 0.0
    %606 = vmatpush2.msra.mxu0 0.0
    %607 = vmatprep.subr.mxu0 0.0
    %608 = vmatpush2.msra.mxu0 0.0
    %609 = vmatprep.subr.mxu0 0.0
    %610 = vmatpush2.msra.mxu0 0.0
    %611 = vmatprep.subr.mxu0 0.0
    %612 = vmatpush2.msra.mxu0 0.0
    %613 = vmatprep.subr.mxu0 0.0
    %614 = vmatpush2.msra.mxu0 0.0
    %615 = vmatprep.subr.mxu0 0.0
    %616 = vmatpush2.msra.mxu0 0.0
    %617 = vmatprep.subr.mxu0 0.0
    %618 = vmatpush2.msra.mxu0 0.0
    %619 = vmatprep.subr.mxu0 0.0
    %620 = vmatpush2.msra.mxu0 0.0
    %621 = vmatprep.subr.mxu0 0.0
    %622 = vmatpush2.msra.mxu0 0.0
    %623 = vmatprep.subr.mxu0 0.0
    %624 = vmatpush2.msra.mxu0 0.0
    %625 = vmatprep.subr.mxu0 0.0
    %626 = vmatpush2.msra.mxu0 0.0
    %627 = vmatprep.subr.mxu0 0.0
    %628 = vmatpush2.msra.mxu0 0.0
    %629 = vmatprep.mubr.f32.mxu0 0.0
    %v630 = vand.u32 %v57, 4294901760
    %631 = vmatmul.mubr.f32.gmra.mxu0 %v630
    %v632 = vpop.f32.mrf.mxu0
    %v633 = vadd.f32 %v548, %v632
    %v634 = vpop.f32.mrf.mxu0
    %635 = vmatprep.mubr.f32.mxu0 0.0
    %v636 = vand.u32 %v60, 4294901760
    %637 = vmatmul.mubr.f32.gmra.mxu0 %v636
    %v638 = vpop.f32.mrf.mxu0
    %v639 = vadd.f32 %v554, %v638
    %v640 = vpop.f32.mrf.mxu0
    %641 = vdwg.mxu0
    %v642 = vld [vmem:[%s3] sm:$0xff]
    %v643 = vld [vmem:[%s3 + $0x8] sm:$0xff]
    %v644 = vld [vmem:[%s3 + $0x10] sm:$0xff]
    %v645 = vld [vmem:[%s3 + $0x18] sm:$0xff]
    %v646 = vld [vmem:[%s3 + $0x20] sm:$0xff]
    %v647 = vld [vmem:[%s3 + $0x28] sm:$0xff]
    %v648 = vld [vmem:[%s3 + $0x30] sm:$0xff]
    %v649 = vld [vmem:[%s3 + $0x38] sm:$0xff]
    %v650 = vld [vmem:[%s3 + $0x40] sm:$0xff]
    %v651 = vld [vmem:[%s3 + $0x48] sm:$0xff]
    %v652 = vld [vmem:[%s3 + $0x50] sm:$0xff]
    %v653 = vld [vmem:[%s3 + $0x58] sm:$0xff]
    %v654 = vld [vmem:[%s3 + $0x60] sm:$0xff]
    %v655 = vld [vmem:[%s3 + $0x68] sm:$0xff]
    %v656 = vld [vmem:[%s3 + $0x70] sm:$0xff]
    %v657 = vld [vmem:[%s3 + $0x78] sm:$0xff]
    %v658 = vld [vmem:[%s3 + $0x80] sm:$0xff]
    %v659 = vld [vmem:[%s3 + $0x88] sm:$0xff]
    %v660 = vld [vmem:[%s3 + $0x90] sm:$0xff]
    %v661 = vld [vmem:[%s3 + $0x98] sm:$0xff]
    %v662 = vld [vmem:[%s3 + $0xa0] sm:$0xff]
    %v663 = vld [vmem:[%s3 + $0xa8] sm:$0xff]
    %v664 = vld [vmem:[%s3 + $0xb0] sm:$0xff]
    %v665 = vld [vmem:[%s3 + $0xb8] sm:$0xff]
    %v666 = vld [vmem:[%s3 + $0xc0] sm:$0xff]
    %v667 = vld [vmem:[%s3 + $0xc8] sm:$0xff]
    %v668 = vld [vmem:[%s3 + $0xd0] sm:$0xff]
    %v669 = vld [vmem:[%s3 + $0xd8] sm:$0xff]
    %v670 = vld [vmem:[%s3 + $0xe0] sm:$0xff]
    %v671 = vld [vmem:[%s3 + $0xe8] sm:$0xff]
    %v672 = vld [vmem:[%s3 + $0xf0] sm:$0xff]
    %v673 = vld [vmem:[%s3 + $0xf8] sm:$0xff]
    %v674 = vld [vmem:[%s6] sm:$0x3]
    %v676 = vlaneseq
    %v677 = vshrl.u32 %v676, 7
    %v678 = vsub.s32 0, %v677
    %v679 = vrot.slane %v674, %v678
    %v680 = vlaneseq
    %v681 = vshrl.u32 %v680, 7
    %v682 = vsub.s32 1, %v681
    %v683 = vrot.slane %v674, %v682
    %v686 = vand.u32 %v673, 4294901760
    %687 = vmatprep.subr.mxu0 %v686
    %v688 = vand.u32 %v672, 4294901760
    %689 = vmatpush1.msra.mxu0 %v688
    %v690 = vand.u32 %v671, 4294901760
    %691 = vmatprep.subr.mxu0 %v690
    %v692 = vand.u32 %v670, 4294901760
    %693 = vmatpush1.msra.mxu0 %v692
    %v694 = vand.u32 %v669, 4294901760
    %695 = vmatprep.subr.mxu0 %v694
    %v696 = vand.u32 %v668, 4294901760
    %697 = vmatpush1.msra.mxu0 %v696
    %v698 = vand.u32 %v667, 4294901760
    %699 = vmatprep.subr.mxu0 %v698
    %v700 = vand.u32 %v666, 4294901760
    %701 = vmatpush1.msra.mxu0 %v700
    %v702 = vand.u32 %v665, 4294901760
    %703 = vmatprep.subr.mxu0 %v702
    %v704 = vand.u32 %v664, 4294901760
    %705 = vmatpush1.msra.mxu0 %v704
    %v706 = vand.u32 %v663, 4294901760
    %707 = vmatprep.subr.mxu0 %v706
    %v708 = vand.u32 %v662, 4294901760
    %709 = vmatpush1.msra.mxu0 %v708
    %v710 = vand.u32 %v661, 4294901760
    %711 = vmatprep.subr.mxu0 %v710
    %v712 = vand.u32 %v660, 4294901760
    %713 = vmatpush1.msra.mxu0 %v712
    %v714 = vand.u32 %v659, 4294901760
    %715 = vmatprep.subr.mxu0 %v714
    %v716 = vand.u32 %v658, 4294901760
    %717 = vmatpush1.msra.mxu0 %v716
    %v718 = vand.u32 %v657, 4294901760
    %719 = vmatprep.subr.mxu0 %v718
    %v720 = vand.u32 %v656, 4294901760
    %721 = vmatpush1.msra.mxu0 %v720
    %v722 = vand.u32 %v655, 4294901760
    %723 = vmatprep.subr.mxu0 %v722
    %v724 = vand.u32 %v654, 4294901760
    %725 = vmatpush1.msra.mxu0 %v724
    %v726 = vand.u32 %v653, 4294901760
    %727 = vmatprep.subr.mxu0 %v726
    %v728 = vand.u32 %v652, 4294901760
    %729 = vmatpush1.msra.mxu0 %v728
    %v730 = vand.u32 %v651, 4294901760
    %731 = vmatprep.subr.mxu0 %v730
    %v732 = vand.u32 %v650, 4294901760
    %733 = vmatpush1.msra.mxu0 %v732
    %v734 = vand.u32 %v649, 4294901760
    %735 = vmatprep.subr.mxu0 %v734
    %v736 = vand.u32 %v648, 4294901760
    %737 = vmatpush1.msra.mxu0 %v736
    %v738 = vand.u32 %v647, 4294901760
    %739 = vmatprep.subr.mxu0 %v738
    %v740 = vand.u32 %v646, 4294901760
    %741 = vmatpush1.msra.mxu0 %v740
    %v742 = vand.u32 %v645, 4294901760
    %743 = vmatprep.subr.mxu0 %v742
    %v744 = vand.u32 %v644, 4294901760
    %745 = vmatpush1.msra.mxu0 %v744
    %v746 = vand.u32 %v643, 4294901760
    %747 = vmatprep.subr.mxu0 %v746
    %v748 = vand.u32 %v642, 4294901760
    %749 = vmatpush1.msra.mxu0 %v748
    %750 = vmatprep.subr.mxu0 0.0
    %751 = vmatpush2.msra.mxu0 0.0
    %752 = vmatprep.subr.mxu0 0.0
    %753 = vmatpush2.msra.mxu0 0.0
    %754 = vmatprep.subr.mxu0 0.0
    %755 = vmatpush2.msra.mxu0 0.0
    %756 = vmatprep.subr.mxu0 0.0
    %757 = vmatpush2.msra.mxu0 0.0
    %758 = vmatprep.subr.mxu0 0.0
    %759 = vmatpush2.msra.mxu0 0.0
    %760 = vmatprep.subr.mxu0 0.0
    %761 = vmatpush2.msra.mxu0 0.0
    %762 = vmatprep.subr.mxu0 0.0
    %763 = vmatpush2.msra.mxu0 0.0
    %764 = vmatprep.subr.mxu0 0.0
    %765 = vmatpush2.msra.mxu0 0.0
    %766 = vmatprep.subr.mxu0 0.0
    %767 = vmatpush2.msra.mxu0 0.0
    %768 = vmatprep.subr.mxu0 0.0
    %769 = vmatpush2.msra.mxu0 0.0
    %770 = vmatprep.subr.mxu0 0.0
    %771 = vmatpush2.msra.mxu0 0.0
    %772 = vmatprep.subr.mxu0 0.0
    %773 = vmatpush2.msra.mxu0 0.0
    %774 = vmatprep.subr.mxu0 0.0
    %775 = vmatpush2.msra.mxu0 0.0
    %776 = vmatprep.subr.mxu0 0.0
    %777 = vmatpush2.msra.mxu0 0.0
    %778 = vmatprep.subr.mxu0 0.0
    %779 = vmatpush2.msra.mxu0 0.0
    %780 = vmatprep.subr.mxu0 0.0
    %781 = vmatpush2.msra.mxu0 0.0
    %782 = vmatprep.mubr.f32.mxu0 0.0
    %v783 = vand.u32 %v633, 4294901760
    %v784 = vsub.f32 %v633, %v783
    %v785 = vand.u32 %v784, 4294901760
    %v786 = vsub.f32 %v784, %v785
    %v787 = vand.u32 %v786, 4294901760
    %788 = vmatmul.mubr.f32.gmra.mxu0 %v787
    %v789 = vpop.f32.mrf.mxu0
    %v790 = vadd.f32 %v679, %v789
    %v791 = vpop.f32.mrf.mxu0
    %v792 = vadd.f32 %v683, %v791
    %793 = vmatprep.mubr.f32.mxu0 0.0
    %v794 = vand.u32 %v639, 4294901760
    %v795 = vsub.f32 %v639, %v794
    %v796 = vand.u32 %v795, 4294901760
    %v797 = vsub.f32 %v795, %v796
    %v798 = vand.u32 %v797, 4294901760
    %799 = vmatmul.mubr.f32.gmra.mxu0 %v798
    %v800 = vpop.f32.mrf.mxu0
    %v801 = vadd.f32 %v679, %v800
    %v802 = vpop.f32.mrf.mxu0
    %v803 = vadd.f32 %v683, %v802
    %804 = vdwg.mxu0
    %v805 = vand.u32 %v673, 4294901760
    %v806 = vsub.f32 %v673, %v805
    %v807 = vand.u32 %v806, 4294901760
    %v808 = vsub.f32 %v806, %v807
    %v809 = vand.u32 %v808, 4294901760
    %810 = vmatprep.subr.mxu0 %v809
    %v811 = vand.u32 %v672, 4294901760
    %v812 = vsub.f32 %v672, %v811
    %v813 = vand.u32 %v812, 4294901760
    %v814 = vsub.f32 %v812, %v813
    %v815 = vand.u32 %v814, 4294901760
    %816 = vmatpush1.msra.mxu0 %v815
    %v817 = vand.u32 %v671, 4294901760
    %v818 = vsub.f32 %v671, %v817
    %v819 = vand.u32 %v818, 4294901760
    %v820 = vsub.f32 %v818, %v819
    %v821 = vand.u32 %v820, 4294901760
    %822 = vmatprep.subr.mxu0 %v821
    %v823 = vand.u32 %v670, 4294901760
    %v824 = vsub.f32 %v670, %v823
    %v825 = vand.u32 %v824, 4294901760
    %v826 = vsub.f32 %v824, %v825
    %v827 = vand.u32 %v826, 4294901760
    %828 = vmatpush1.msra.mxu0 %v827
    %v829 = vand.u32 %v669, 4294901760
    %v830 = vsub.f32 %v669, %v829
    %v831 = vand.u32 %v830, 4294901760
    %v832 = vsub.f32 %v830, %v831
    %v833 = vand.u32 %v832, 4294901760
    %834 = vmatprep.subr.mxu0 %v833
    %v835 = vand.u32 %v668, 4294901760
    %v836 = vsub.f32 %v668, %v835
    %v837 = vand.u32 %v836, 4294901760
    %v838 = vsub.f32 %v836, %v837
    %v839 = vand.u32 %v838, 4294901760
    %840 = vmatpush1.msra.mxu0 %v839
    %v841 = vand.u32 %v667, 4294901760
    %v842 = vsub.f32 %v667, %v841
    %v843 = vand.u32 %v842, 4294901760
    %v844 = vsub.f32 %v842, %v843
    %v845 = vand.u32 %v844, 4294901760
    %846 = vmatprep.subr.mxu0 %v845
    %v847 = vand.u32 %v666, 4294901760
    %v848 = vsub.f32 %v666, %v847
    %v849 = vand.u32 %v848, 4294901760
    %v850 = vsub.f32 %v848, %v849
    %v851 = vand.u32 %v850, 4294901760
    %852 = vmatpush1.msra.mxu0 %v851
    %v853 = vand.u32 %v665, 4294901760
    %v854 = vsub.f32 %v665, %v853
    %v855 = vand.u32 %v854, 4294901760
    %v856 = vsub.f32 %v854, %v855
    %v857 = vand.u32 %v856, 4294901760
    %858 = vmatprep.subr.mxu0 %v857
    %v859 = vand.u32 %v664, 4294901760
    %v860 = vsub.f32 %v664, %v859
    %v861 = vand.u32 %v860, 4294901760
    %v862 = vsub.f32 %v860, %v861
    %v863 = vand.u32 %v862, 4294901760
    %864 = vmatpush1.msra.mxu0 %v863
    %v865 = vand.u32 %v663, 4294901760
    %v866 = vsub.f32 %v663, %v865
    %v867 = vand.u32 %v866, 4294901760
    %v868 = vsub.f32 %v866, %v867
    %v869 = vand.u32 %v868, 4294901760
    %870 = vmatprep.subr.mxu0 %v869
    %v871 = vand.u32 %v662, 4294901760
    %v872 = vsub.f32 %v662, %v871
    %v873 = vand.u32 %v872, 4294901760
    %v874 = vsub.f32 %v872, %v873
    %v875 = vand.u32 %v874, 4294901760
    %876 = vmatpush1.msra.mxu0 %v875
    %v877 = vand.u32 %v661, 4294901760
    %v878 = vsub.f32 %v661, %v877
    %v879 = vand.u32 %v878, 4294901760
    %v880 = vsub.f32 %v878, %v879
    %v881 = vand.u32 %v880, 4294901760
    %882 = vmatprep.subr.mxu0 %v881
    %v883 = vand.u32 %v660, 4294901760
    %v884 = vsub.f32 %v660, %v883
    %v885 = vand.u32 %v884, 4294901760
    %v886 = vsub.f32 %v884, %v885
    %v887 = vand.u32 %v886, 4294901760
    %888 = vmatpush1.msra.mxu0 %v887
    %v889 = vand.u32 %v659, 4294901760
    %v890 = vsub.f32 %v659, %v889
    %v891 = vand.u32 %v890, 4294901760
    %v892 = vsub.f32 %v890, %v891
    %v893 = vand.u32 %v892, 4294901760
    %894 = vmatprep.subr.mxu0 %v893
    %v895 = vand.u32 %v658, 4294901760
    %v896 = vsub.f32 %v658, %v895
    %v897 = vand.u32 %v896, 4294901760
    %v898 = vsub.f32 %v896, %v897
    %v899 = vand.u32 %v898, 4294901760
    %900 = vmatpush1.msra.mxu0 %v899
    %v901 = vand.u32 %v657, 4294901760
    %v902 = vsub.f32 %v657, %v901
    %v903 = vand.u32 %v902, 4294901760
    %v904 = vsub.f32 %v902, %v903
    %v905 = vand.u32 %v904, 4294901760
    %906 = vmatprep.subr.mxu0 %v905
    %v907 = vand.u32 %v656, 4294901760
    %v908 = vsub.f32 %v656, %v907
    %v909 = vand.u32 %v908, 4294901760
    %v910 = vsub.f32 %v908, %v909
    %v911 = vand.u32 %v910, 4294901760
    %912 = vmatpush1.msra.mxu0 %v911
    %v913 = vand.u32 %v655, 4294901760
    %v914 = vsub.f32 %v655, %v913
    %v915 = vand.u32 %v914, 4294901760
    %v916 = vsub.f32 %v914, %v915
    %v917 = vand.u32 %v916, 4294901760
    %918 = vmatprep.subr.mxu0 %v917
    %v919 = vand.u32 %v654, 4294901760
    %v920 = vsub.f32 %v654, %v919
    %v921 = vand.u32 %v920, 4294901760
    %v922 = vsub.f32 %v920, %v921
    %v923 = vand.u32 %v922, 4294901760
    %924 = vmatpush1.msra.mxu0 %v923
    %v925 = vand.u32 %v653, 4294901760
    %v926 = vsub.f32 %v653, %v925
    %v927 = vand.u32 %v926, 4294901760
    %v928 = vsub.f32 %v926, %v927
    %v929 = vand.u32 %v928, 4294901760
    %930 = vmatprep.subr.mxu0 %v929
    %v931 = vand.u32 %v652, 4294901760
    %v932 = vsub.f32 %v652, %v931
    %v933 = vand.u32 %v932, 4294901760
    %v934 = vsub.f32 %v932, %v933
    %v935 = vand.u32 %v934, 4294901760
    %936 = vmatpush1.msra.mxu0 %v935
    %v937 = vand.u32 %v651, 4294901760
    %v938 = vsub.f32 %v651, %v937
    %v939 = vand.u32 %v938, 4294901760
    %v940 = vsub.f32 %v938, %v939
    %v941 = vand.u32 %v940, 4294901760
    %942 = vmatprep.subr.mxu0 %v941
    %v943 = vand.u32 %v650, 4294901760
    %v944 = vsub.f32 %v650, %v943
    %v945 = vand.u32 %v944, 4294901760
    %v946 = vsub.f32 %v944, %v945
    %v947 = vand.u32 %v946, 4294901760
    %948 = vmatpush1.msra.mxu0 %v947
    %v949 = vand.u32 %v649, 4294901760
    %v950 = vsub.f32 %v649, %v949
    %v951 = vand.u32 %v950, 4294901760
    %v952 = vsub.f32 %v950, %v951
    %v953 = vand.u32 %v952, 4294901760
    %954 = vmatprep.subr.mxu0 %v953
    %v955 = vand.u32 %v648, 4294901760
    %v956 = vsub.f32 %v648, %v955
    %v957 = vand.u32 %v956, 4294901760
    %v958 = vsub.f32 %v956, %v957
    %v959 = vand.u32 %v958, 4294901760
    %960 = vmatpush1.msra.mxu0 %v959
    %v961 = vand.u32 %v647, 4294901760
    %v962 = vsub.f32 %v647, %v961
    %v963 = vand.u32 %v962, 4294901760
    %v964 = vsub.f32 %v962, %v963
    %v965 = vand.u32 %v964, 4294901760
    %966 = vmatprep.subr.mxu0 %v965
    %v967 = vand.u32 %v646, 4294901760
    %v968 = vsub.f32 %v646, %v967
    %v969 = vand.u32 %v968, 4294901760
    %v970 = vsub.f32 %v968, %v969
    %v971 = vand.u32 %v970, 4294901760
    %972 = vmatpush1.msra.mxu0 %v971
    %v973 = vand.u32 %v645, 4294901760
    %v974 = vsub.f32 %v645, %v973
    %v975 = vand.u32 %v974, 4294901760
    %v976 = vsub.f32 %v974, %v975
    %v977 = vand.u32 %v976, 4294901760
    %978 = vmatprep.subr.mxu0 %v977
    %v979 = vand.u32 %v644, 4294901760
    %v980 = vsub.f32 %v644, %v979
    %v981 = vand.u32 %v980, 4294901760
    %v982 = vsub.f32 %v980, %v981
    %v983 = vand.u32 %v982, 4294901760
    %984 = vmatpush1.msra.mxu0 %v983
    %v985 = vand.u32 %v643, 4294901760
    %v986 = vsub.f32 %v643, %v985
    %v987 = vand.u32 %v986, 4294901760
    %v988 = vsub.f32 %v986, %v987
    %v989 = vand.u32 %v988, 4294901760
    %990 = vmatprep.subr.mxu0 %v989
    %v991 = vand.u32 %v642, 4294901760
    %v992 = vsub.f32 %v642, %v991
    %v993 = vand.u32 %v992, 4294901760
    %v994 = vsub.f32 %v992, %v993
    %v995 = vand.u32 %v994, 4294901760
    %996 = vmatpush1.msra.mxu0 %v995
    %997 = vmatprep.subr.mxu0 0.0
    %998 = vmatpush2.msra.mxu0 0.0
    %999 = vmatprep.subr.mxu0 0.0
    %1000 = vmatpush2.msra.mxu0 0.0
    %1001 = vmatprep.subr.mxu0 0.0
    %1002 = vmatpush2.msra.mxu0 0.0
    %1003 = vmatprep.subr.mxu0 0.0
    %1004 = vmatpush2.msra.mxu0 0.0
    %1005 = vmatprep.subr.mxu0 0.0
    %1006 = vmatpush2.msra.mxu0 0.0
    %1007 = vmatprep.subr.mxu0 0.0
    %1008 = vmatpush2.msra.mxu0 0.0
    %1009 = vmatprep.subr.mxu0 0.0
    %1010 = vmatpush2.msra.mxu0 0.0
    %1011 = vmatprep.subr.mxu0 0.0
    %1012 = vmatpush2.msra.mxu0 0.0
    %1013 = vmatprep.subr.mxu0 0.0
    %1014 = vmatpush2.msra.mxu0 0.0
    %1015 = vmatprep.subr.mxu0 0.0
    %1016 = vmatpush2.msra.mxu0 0.0
    %1017 = vmatprep.subr.mxu0 0.0
    %1018 = vmatpush2.msra.mxu0 0.0
    %1019 = vmatprep.subr.mxu0 0.0
    %1020 = vmatpush2.msra.mxu0 0.0
    %1021 = vmatprep.subr.mxu0 0.0
    %1022 = vmatpush2.msra.mxu0 0.0
    %1023 = vmatprep.subr.mxu0 0.0
    %1024 = vmatpush2.msra.mxu0 0.0
    %1025 = vmatprep.subr.mxu0 0.0
    %1026 = vmatpush2.msra.mxu0 0.0
    %1027 = vmatprep.subr.mxu0 0.0
    %1028 = vmatpush2.msra.mxu0 0.0
    %1029 = vmatprep.mubr.f32.mxu0 0.0
    %v1030 = vand.u32 %v633, 4294901760
    %1031 = vmatmul.mubr.f32.gmra.mxu0 %v1030
    %v1032 = vpop.f32.mrf.mxu0
    %v1033 = vadd.f32 %v790, %v1032
    %v1034 = vpop.f32.mrf.mxu0
    %v1035 = vadd.f32 %v792, %v1034
    %1036 = vmatprep.mubr.f32.mxu0 0.0
    %v1037 = vand.u32 %v639, 4294901760
    %1038 = vmatmul.mubr.f32.gmra.mxu0 %v1037
    %v1039 = vpop.f32.mrf.mxu0
    %v1040 = vadd.f32 %v801, %v1039
    %v1041 = vpop.f32.mrf.mxu0
    %v1042 = vadd.f32 %v803, %v1041
    %1043 = vdwg.mxu0
    %v1044 = vand.u32 %v673, 4294901760
    %v1045 = vsub.f32 %v673, %v1044
    %1046 = vmatprep.subr.mxu0 %v1045
    %v1047 = vand.u32 %v672, 4294901760
    %v1048 = vsub.f32 %v672, %v1047
    %1049 = vmatpush1.msra.mxu0 %v1048
    %v1050 = vand.u32 %v671, 4294901760
    %v1051 = vsub.f32 %v671, %v1050
    %1052 = vmatprep.subr.mxu0 %v1051
    %v1053 = vand.u32 %v670, 4294901760
    %v1054 = vsub.f32 %v670, %v1053
    %1055 = vmatpush1.msra.mxu0 %v1054
    %v1056 = vand.u32 %v669, 4294901760
    %v1057 = vsub.f32 %v669, %v1056
    %1058 = vmatprep.subr.mxu0 %v1057
    %v1059 = vand.u32 %v668, 4294901760
    %v1060 = vsub.f32 %v668, %v1059
    %1061 = vmatpush1.msra.mxu0 %v1060
    %v1062 = vand.u32 %v667, 4294901760
    %v1063 = vsub.f32 %v667, %v1062
    %1064 = vmatprep.subr.mxu0 %v1063
    %v1065 = vand.u32 %v666, 4294901760
    %v1066 = vsub.f32 %v666, %v1065
    %1067 = vmatpush1.msra.mxu0 %v1066
    %v1068 = vand.u32 %v665, 4294901760
    %v1069 = vsub.f32 %v665, %v1068
    %1070 = vmatprep.subr.mxu0 %v1069
    %v1071 = vand.u32 %v664, 4294901760
    %v1072 = vsub.f32 %v664, %v1071
    %1073 = vmatpush1.msra.mxu0 %v1072
    %v1074 = vand.u32 %v663, 4294901760
    %v1075 = vsub.f32 %v663, %v1074
    %1076 = vmatprep.subr.mxu0 %v1075
    %v1077 = vand.u32 %v662, 4294901760
    %v1078 = vsub.f32 %v662, %v1077
    %1079 = vmatpush1.msra.mxu0 %v1078
    %v1080 = vand.u32 %v661, 4294901760
    %v1081 = vsub.f32 %v661, %v1080
    %1082 = vmatprep.subr.mxu0 %v1081
    %v1083 = vand.u32 %v660, 4294901760
    %v1084 = vsub.f32 %v660, %v1083
    %1085 = vmatpush1.msra.mxu0 %v1084
    %v1086 = vand.u32 %v659, 4294901760
    %v1087 = vsub.f32 %v659, %v1086
    %1088 = vmatprep.subr.mxu0 %v1087
    %v1089 = vand.u32 %v658, 4294901760
    %v1090 = vsub.f32 %v658, %v1089
    %1091 = vmatpush1.msra.mxu0 %v1090
    %v1092 = vand.u32 %v657, 4294901760
    %v1093 = vsub.f32 %v657, %v1092
    %1094 = vmatprep.subr.mxu0 %v1093
    %v1095 = vand.u32 %v656, 4294901760
    %v1096 = vsub.f32 %v656, %v1095
    %1097 = vmatpush1.msra.mxu0 %v1096
    %v1098 = vand.u32 %v655, 4294901760
    %v1099 = vsub.f32 %v655, %v1098
    %1100 = vmatprep.subr.mxu0 %v1099
    %v1101 = vand.u32 %v654, 4294901760
    %v1102 = vsub.f32 %v654, %v1101
    %1103 = vmatpush1.msra.mxu0 %v1102
    %v1104 = vand.u32 %v653, 4294901760
    %v1105 = vsub.f32 %v653, %v1104
    %1106 = vmatprep.subr.mxu0 %v1105
    %v1107 = vand.u32 %v652, 4294901760
    %v1108 = vsub.f32 %v652, %v1107
    %1109 = vmatpush1.msra.mxu0 %v1108
    %v1110 = vand.u32 %v651, 4294901760
    %v1111 = vsub.f32 %v651, %v1110
    %1112 = vmatprep.subr.mxu0 %v1111
    %v1113 = vand.u32 %v650, 4294901760
    %v1114 = vsub.f32 %v650, %v1113
    %1115 = vmatpush1.msra.mxu0 %v1114
    %v1116 = vand.u32 %v649, 4294901760
    %v1117 = vsub.f32 %v649, %v1116
    %1118 = vmatprep.subr.mxu0 %v1117
    %v1119 = vand.u32 %v648, 4294901760
    %v1120 = vsub.f32 %v648, %v1119
    %1121 = vmatpush1.msra.mxu0 %v1120
    %v1122 = vand.u32 %v647, 4294901760
    %v1123 = vsub.f32 %v647, %v1122
    %1124 = vmatprep.subr.mxu0 %v1123
    %v1125 = vand.u32 %v646, 4294901760
    %v1126 = vsub.f32 %v646, %v1125
    %1127 = vmatpush1.msra.mxu0 %v1126
    %v1128 = vand.u32 %v645, 4294901760
    %v1129 = vsub.f32 %v645, %v1128
    %1130 = vmatprep.subr.mxu0 %v1129
    %v1131 = vand.u32 %v644, 4294901760
    %v1132 = vsub.f32 %v644, %v1131
    %1133 = vmatpush1.msra.mxu0 %v1132
    %v1134 = vand.u32 %v643, 4294901760
    %v1135 = vsub.f32 %v643, %v1134
    %1136 = vmatprep.subr.mxu0 %v1135
    %v1137 = vand.u32 %v642, 4294901760
    %v1138 = vsub.f32 %v642, %v1137
    %1139 = vmatpush1.msra.mxu0 %v1138
    %1140 = vmatprep.subr.mxu0 0.0
    %1141 = vmatpush2.msra.mxu0 0.0
    %1142 = vmatprep.subr.mxu0 0.0
    %1143 = vmatpush2.msra.mxu0 0.0
    %1144 = vmatprep.subr.mxu0 0.0
    %1145 = vmatpush2.msra.mxu0 0.0
    %1146 = vmatprep.subr.mxu0 0.0
    %1147 = vmatpush2.msra.mxu0 0.0
    %1148 = vmatprep.subr.mxu0 0.0
    %1149 = vmatpush2.msra.mxu0 0.0
    %1150 = vmatprep.subr.mxu0 0.0
    %1151 = vmatpush2.msra.mxu0 0.0
    %1152 = vmatprep.subr.mxu0 0.0
    %1153 = vmatpush2.msra.mxu0 0.0
    %1154 = vmatprep.subr.mxu0 0.0
    %1155 = vmatpush2.msra.mxu0 0.0
    %1156 = vmatprep.subr.mxu0 0.0
    %1157 = vmatpush2.msra.mxu0 0.0
    %1158 = vmatprep.subr.mxu0 0.0
    %1159 = vmatpush2.msra.mxu0 0.0
    %1160 = vmatprep.subr.mxu0 0.0
    %1161 = vmatpush2.msra.mxu0 0.0
    %1162 = vmatprep.subr.mxu0 0.0
    %1163 = vmatpush2.msra.mxu0 0.0
    %1164 = vmatprep.subr.mxu0 0.0
    %1165 = vmatpush2.msra.mxu0 0.0
    %1166 = vmatprep.subr.mxu0 0.0
    %1167 = vmatpush2.msra.mxu0 0.0
    %1168 = vmatprep.subr.mxu0 0.0
    %1169 = vmatpush2.msra.mxu0 0.0
    %1170 = vmatprep.subr.mxu0 0.0
    %1171 = vmatpush2.msra.mxu0 0.0
    %1172 = vmatprep.mubr.f32.mxu0 0.0
    %v1173 = vand.u32 %v633, 4294901760
    %v1174 = vsub.f32 %v633, %v1173
    %1175 = vmatmul.mubr.f32.gmra.mxu0 %v1174
    %v1176 = vpop.f32.mrf.mxu0
    %v1177 = vadd.f32 %v1033, %v1176
    %v1178 = vpop.f32.mrf.mxu0
    %v1179 = vadd.f32 %v1035, %v1178
    %1180 = vmatprep.mubr.f32.mxu0 0.0
    %v1181 = vand.u32 %v639, 4294901760
    %v1182 = vsub.f32 %v639, %v1181
    %1183 = vmatmul.mubr.f32.gmra.mxu0 %v1182
    %v1184 = vpop.f32.mrf.mxu0
    %v1185 = vadd.f32 %v1040, %v1184
    %v1186 = vpop.f32.mrf.mxu0
    %v1187 = vadd.f32 %v1042, %v1186
    %1188 = vdwg.mxu0
    %v1189 = vand.u32 %v673, 4294901760
    %1190 = vmatprep.subr.mxu0 %v1189
    %v1191 = vand.u32 %v672, 4294901760
    %1192 = vmatpush1.msra.mxu0 %v1191
    %v1193 = vand.u32 %v671, 4294901760
    %1194 = vmatprep.subr.mxu0 %v1193
    %v1195 = vand.u32 %v670, 4294901760
    %1196 = vmatpush1.msra.mxu0 %v1195
    %v1197 = vand.u32 %v669, 4294901760
    %1198 = vmatprep.subr.mxu0 %v1197
    %v1199 = vand.u32 %v668, 4294901760
    %1200 = vmatpush1.msra.mxu0 %v1199
    %v1201 = vand.u32 %v667, 4294901760
    %1202 = vmatprep.subr.mxu0 %v1201
    %v1203 = vand.u32 %v666, 4294901760
    %1204 = vmatpush1.msra.mxu0 %v1203
    %v1205 = vand.u32 %v665, 4294901760
    %1206 = vmatprep.subr.mxu0 %v1205
    %v1207 = vand.u32 %v664, 4294901760
    %1208 = vmatpush1.msra.mxu0 %v1207
    %v1209 = vand.u32 %v663, 4294901760
    %1210 = vmatprep.subr.mxu0 %v1209
    %v1211 = vand.u32 %v662, 4294901760
    %1212 = vmatpush1.msra.mxu0 %v1211
    %v1213 = vand.u32 %v661, 4294901760
    %1214 = vmatprep.subr.mxu0 %v1213
    %v1215 = vand.u32 %v660, 4294901760
    %1216 = vmatpush1.msra.mxu0 %v1215
    %v1217 = vand.u32 %v659, 4294901760
    %1218 = vmatprep.subr.mxu0 %v1217
    %v1219 = vand.u32 %v658, 4294901760
    %1220 = vmatpush1.msra.mxu0 %v1219
    %v1221 = vand.u32 %v657, 4294901760
    %1222 = vmatprep.subr.mxu0 %v1221
    %v1223 = vand.u32 %v656, 4294901760
    %1224 = vmatpush1.msra.mxu0 %v1223
    %v1225 = vand.u32 %v655, 4294901760
    %1226 = vmatprep.subr.mxu0 %v1225
    %v1227 = vand.u32 %v654, 4294901760
    %1228 = vmatpush1.msra.mxu0 %v1227
    %v1229 = vand.u32 %v653, 4294901760
    %1230 = vmatprep.subr.mxu0 %v1229
    %v1231 = vand.u32 %v652, 4294901760
    %1232 = vmatpush1.msra.mxu0 %v1231
    %v1233 = vand.u32 %v651, 4294901760
    %1234 = vmatprep.subr.mxu0 %v1233
    %v1235 = vand.u32 %v650, 4294901760
    %1236 = vmatpush1.msra.mxu0 %v1235
    %v1237 = vand.u32 %v649, 4294901760
    %1238 = vmatprep.subr.mxu0 %v1237
    %v1239 = vand.u32 %v648, 4294901760
    %1240 = vmatpush1.msra.mxu0 %v1239
    %v1241 = vand.u32 %v647, 4294901760
    %1242 = vmatprep.subr.mxu0 %v1241
    %v1243 = vand.u32 %v646, 4294901760
    %1244 = vmatpush1.msra.mxu0 %v1243
    %v1245 = vand.u32 %v645, 4294901760
    %1246 = vmatprep.subr.mxu0 %v1245
    %v1247 = vand.u32 %v644, 4294901760
    %1248 = vmatpush1.msra.mxu0 %v1247
    %v1249 = vand.u32 %v643, 4294901760
    %1250 = vmatprep.subr.mxu0 %v1249
    %v1251 = vand.u32 %v642, 4294901760
    %1252 = vmatpush1.msra.mxu0 %v1251
    %1253 = vmatprep.subr.mxu0 0.0
    %1254 = vmatpush2.msra.mxu0 0.0
    %1255 = vmatprep.subr.mxu0 0.0
    %1256 = vmatpush2.msra.mxu0 0.0
    %1257 = vmatprep.subr.mxu0 0.0
    %1258 = vmatpush2.msra.mxu0 0.0
    %1259 = vmatprep.subr.mxu0 0.0
    %1260 = vmatpush2.msra.mxu0 0.0
    %1261 = vmatprep.subr.mxu0 0.0
    %1262 = vmatpush2.msra.mxu0 0.0
    %1263 = vmatprep.subr.mxu0 0.0
    %1264 = vmatpush2.msra.mxu0 0.0
    %1265 = vmatprep.subr.mxu0 0.0
    %1266 = vmatpush2.msra.mxu0 0.0
    %1267 = vmatprep.subr.mxu0 0.0
    %1268 = vmatpush2.msra.mxu0 0.0
    %1269 = vmatprep.subr.mxu0 0.0
    %1270 = vmatpush2.msra.mxu0 0.0
    %1271 = vmatprep.subr.mxu0 0.0
    %1272 = vmatpush2.msra.mxu0 0.0
    %1273 = vmatprep.subr.mxu0 0.0
    %1274 = vmatpush2.msra.mxu0 0.0
    %1275 = vmatprep.subr.mxu0 0.0
    %1276 = vmatpush2.msra.mxu0 0.0
    %1277 = vmatprep.subr.mxu0 0.0
    %1278 = vmatpush2.msra.mxu0 0.0
    %1279 = vmatprep.subr.mxu0 0.0
    %1280 = vmatpush2.msra.mxu0 0.0
    %1281 = vmatprep.subr.mxu0 0.0
    %1282 = vmatpush2.msra.mxu0 0.0
    %1283 = vmatprep.subr.mxu0 0.0
    %1284 = vmatpush2.msra.mxu0 0.0
    %1285 = vmatprep.mubr.f32.mxu0 0.0
    %v1286 = vand.u32 %v633, 4294901760
    %v1287 = vsub.f32 %v633, %v1286
    %v1288 = vand.u32 %v1287, 4294901760
    %1289 = vmatmul.mubr.f32.gmra.mxu0 %v1288
    %v1290 = vpop.f32.mrf.mxu0
    %v1291 = vadd.f32 %v1177, %v1290
    %v1292 = vpop.f32.mrf.mxu0
    %v1293 = vadd.f32 %v1179, %v1292
    %1294 = vmatprep.mubr.f32.mxu0 0.0
    %v1295 = vand.u32 %v639, 4294901760
    %v1296 = vsub.f32 %v639, %v1295
    %v1297 = vand.u32 %v1296, 4294901760
    %1298 = vmatmul.mubr.f32.gmra.mxu0 %v1297
    %v1299 = vpop.f32.mrf.mxu0
    %v1300 = vadd.f32 %v1185, %v1299
    %v1301 = vpop.f32.mrf.mxu0
    %v1302 = vadd.f32 %v1187, %v1301
    %1303 = vdwg.mxu0
    %v1304 = vand.u32 %v673, 4294901760
    %v1305 = vsub.f32 %v673, %v1304
    %v1306 = vand.u32 %v1305, 4294901760
    %1307 = vmatprep.subr.mxu0 %v1306
    %v1308 = vand.u32 %v672, 4294901760
    %v1309 = vsub.f32 %v672, %v1308
    %v1310 = vand.u32 %v1309, 4294901760
    %1311 = vmatpush1.msra.mxu0 %v1310
    %v1312 = vand.u32 %v671, 4294901760
    %v1313 = vsub.f32 %v671, %v1312
    %v1314 = vand.u32 %v1313, 4294901760
    %1315 = vmatprep.subr.mxu0 %v1314
    %v1316 = vand.u32 %v670, 4294901760
    %v1317 = vsub.f32 %v670, %v1316
    %v1318 = vand.u32 %v1317, 4294901760
    %1319 = vmatpush1.msra.mxu0 %v1318
    %v1320 = vand.u32 %v669, 4294901760
    %v1321 = vsub.f32 %v669, %v1320
    %v1322 = vand.u32 %v1321, 4294901760
    %1323 = vmatprep.subr.mxu0 %v1322
    %v1324 = vand.u32 %v668, 4294901760
    %v1325 = vsub.f32 %v668, %v1324
    %v1326 = vand.u32 %v1325, 4294901760
    %1327 = vmatpush1.msra.mxu0 %v1326
    %v1328 = vand.u32 %v667, 4294901760
    %v1329 = vsub.f32 %v667, %v1328
    %v1330 = vand.u32 %v1329, 4294901760
    %1331 = vmatprep.subr.mxu0 %v1330
    %v1332 = vand.u32 %v666, 4294901760
    %v1333 = vsub.f32 %v666, %v1332
    %v1334 = vand.u32 %v1333, 4294901760
    %1335 = vmatpush1.msra.mxu0 %v1334
    %v1336 = vand.u32 %v665, 4294901760
    %v1337 = vsub.f32 %v665, %v1336
    %v1338 = vand.u32 %v1337, 4294901760
    %1339 = vmatprep.subr.mxu0 %v1338
    %v1340 = vand.u32 %v664, 4294901760
    %v1341 = vsub.f32 %v664, %v1340
    %v1342 = vand.u32 %v1341, 4294901760
    %1343 = vmatpush1.msra.mxu0 %v1342
    %v1344 = vand.u32 %v663, 4294901760
    %v1345 = vsub.f32 %v663, %v1344
    %v1346 = vand.u32 %v1345, 4294901760
    %1347 = vmatprep.subr.mxu0 %v1346
    %v1348 = vand.u32 %v662, 4294901760
    %v1349 = vsub.f32 %v662, %v1348
    %v1350 = vand.u32 %v1349, 4294901760
    %1351 = vmatpush1.msra.mxu0 %v1350
    %v1352 = vand.u32 %v661, 4294901760
    %v1353 = vsub.f32 %v661, %v1352
    %v1354 = vand.u32 %v1353, 4294901760
    %1355 = vmatprep.subr.mxu0 %v1354
    %v1356 = vand.u32 %v660, 4294901760
    %v1357 = vsub.f32 %v660, %v1356
    %v1358 = vand.u32 %v1357, 4294901760
    %1359 = vmatpush1.msra.mxu0 %v1358
    %v1360 = vand.u32 %v659, 4294901760
    %v1361 = vsub.f32 %v659, %v1360
    %v1362 = vand.u32 %v1361, 4294901760
    %1363 = vmatprep.subr.mxu0 %v1362
    %v1364 = vand.u32 %v658, 4294901760
    %v1365 = vsub.f32 %v658, %v1364
    %v1366 = vand.u32 %v1365, 4294901760
    %1367 = vmatpush1.msra.mxu0 %v1366
    %v1368 = vand.u32 %v657, 4294901760
    %v1369 = vsub.f32 %v657, %v1368
    %v1370 = vand.u32 %v1369, 4294901760
    %1371 = vmatprep.subr.mxu0 %v1370
    %v1372 = vand.u32 %v656, 4294901760
    %v1373 = vsub.f32 %v656, %v1372
    %v1374 = vand.u32 %v1373, 4294901760
    %1375 = vmatpush1.msra.mxu0 %v1374
    %v1376 = vand.u32 %v655, 4294901760
    %v1377 = vsub.f32 %v655, %v1376
    %v1378 = vand.u32 %v1377, 4294901760
    %1379 = vmatprep.subr.mxu0 %v1378
    %v1380 = vand.u32 %v654, 4294901760
    %v1381 = vsub.f32 %v654, %v1380
    %v1382 = vand.u32 %v1381, 4294901760
    %1383 = vmatpush1.msra.mxu0 %v1382
    %v1384 = vand.u32 %v653, 4294901760
    %v1385 = vsub.f32 %v653, %v1384
    %v1386 = vand.u32 %v1385, 4294901760
    %1387 = vmatprep.subr.mxu0 %v1386
    %v1388 = vand.u32 %v652, 4294901760
    %v1389 = vsub.f32 %v652, %v1388
    %v1390 = vand.u32 %v1389, 4294901760
    %1391 = vmatpush1.msra.mxu0 %v1390
    %v1392 = vand.u32 %v651, 4294901760
    %v1393 = vsub.f32 %v651, %v1392
    %v1394 = vand.u32 %v1393, 4294901760
    %1395 = vmatprep.subr.mxu0 %v1394
    %v1396 = vand.u32 %v650, 4294901760
    %v1397 = vsub.f32 %v650, %v1396
    %v1398 = vand.u32 %v1397, 4294901760
    %1399 = vmatpush1.msra.mxu0 %v1398
    %v1400 = vand.u32 %v649, 4294901760
    %v1401 = vsub.f32 %v649, %v1400
    %v1402 = vand.u32 %v1401, 4294901760
    %1403 = vmatprep.subr.mxu0 %v1402
    %v1404 = vand.u32 %v648, 4294901760
    %v1405 = vsub.f32 %v648, %v1404
    %v1406 = vand.u32 %v1405, 4294901760
    %1407 = vmatpush1.msra.mxu0 %v1406
    %v1408 = vand.u32 %v647, 4294901760
    %v1409 = vsub.f32 %v647, %v1408
    %v1410 = vand.u32 %v1409, 4294901760
    %1411 = vmatprep.subr.mxu0 %v1410
    %v1412 = vand.u32 %v646, 4294901760
    %v1413 = vsub.f32 %v646, %v1412
    %v1414 = vand.u32 %v1413, 4294901760
    %1415 = vmatpush1.msra.mxu0 %v1414
    %v1416 = vand.u32 %v645, 4294901760
    %v1417 = vsub.f32 %v645, %v1416
    %v1418 = vand.u32 %v1417, 4294901760
    %1419 = vmatprep.subr.mxu0 %v1418
    %v1420 = vand.u32 %v644, 4294901760
    %v1421 = vsub.f32 %v644, %v1420
    %v1422 = vand.u32 %v1421, 4294901760
    %1423 = vmatpush1.msra.mxu0 %v1422
    %v1424 = vand.u32 %v643, 4294901760
    %v1425 = vsub.f32 %v643, %v1424
    %v1426 = vand.u32 %v1425, 4294901760
    %1427 = vmatprep.subr.mxu0 %v1426
    %v1428 = vand.u32 %v642, 4294901760
    %v1429 = vsub.f32 %v642, %v1428
    %v1430 = vand.u32 %v1429, 4294901760
    %1431 = vmatpush1.msra.mxu0 %v1430
    %1432 = vmatprep.subr.mxu0 0.0
    %1433 = vmatpush2.msra.mxu0 0.0
    %1434 = vmatprep.subr.mxu0 0.0
    %1435 = vmatpush2.msra.mxu0 0.0
    %1436 = vmatprep.subr.mxu0 0.0
    %1437 = vmatpush2.msra.mxu0 0.0
    %1438 = vmatprep.subr.mxu0 0.0
    %1439 = vmatpush2.msra.mxu0 0.0
    %1440 = vmatprep.subr.mxu0 0.0
    %1441 = vmatpush2.msra.mxu0 0.0
    %1442 = vmatprep.subr.mxu0 0.0
    %1443 = vmatpush2.msra.mxu0 0.0
    %1444 = vmatprep.subr.mxu0 0.0
    %1445 = vmatpush2.msra.mxu0 0.0
    %1446 = vmatprep.subr.mxu0 0.0
    %1447 = vmatpush2.msra.mxu0 0.0
    %1448 = vmatprep.subr.mxu0 0.0
    %1449 = vmatpush2.msra.mxu0 0.0
    %1450 = vmatprep.subr.mxu0 0.0
    %1451 = vmatpush2.msra.mxu0 0.0
    %1452 = vmatprep.subr.mxu0 0.0
    %1453 = vmatpush2.msra.mxu0 0.0
    %1454 = vmatprep.subr.mxu0 0.0
    %1455 = vmatpush2.msra.mxu0 0.0
    %1456 = vmatprep.subr.mxu0 0.0
    %1457 = vmatpush2.msra.mxu0 0.0
    %1458 = vmatprep.subr.mxu0 0.0
    %1459 = vmatpush2.msra.mxu0 0.0
    %1460 = vmatprep.subr.mxu0 0.0
    %1461 = vmatpush2.msra.mxu0 0.0
    %1462 = vmatprep.subr.mxu0 0.0
    %1463 = vmatpush2.msra.mxu0 0.0
    %1464 = vmatprep.mubr.f32.mxu0 0.0
    %v1465 = vand.u32 %v633, 4294901760
    %1466 = vmatmul.mubr.f32.gmra.mxu0 %v1465
    %v1467 = vpop.f32.mrf.mxu0
    %v1468 = vadd.f32 %v1291, %v1467
    %v1469 = vpop.f32.mrf.mxu0
    %v1470 = vadd.f32 %v1293, %v1469
    %1471 = vmatprep.mubr.f32.mxu0 0.0
    %v1472 = vand.u32 %v639, 4294901760
    %1473 = vmatmul.mubr.f32.gmra.mxu0 %v1472
    %v1474 = vpop.f32.mrf.mxu0
    %v1475 = vadd.f32 %v1300, %v1474
    %v1476 = vpop.f32.mrf.mxu0
    %v1477 = vadd.f32 %v1302, %v1476
    %1478 = vdwg.mxu0
    %v1479 = vand.u32 %v673, 4294901760
    %1480 = vmatprep.subr.mxu0 %v1479
    %v1481 = vand.u32 %v672, 4294901760
    %1482 = vmatpush1.msra.mxu0 %v1481
    %v1483 = vand.u32 %v671, 4294901760
    %1484 = vmatprep.subr.mxu0 %v1483
    %v1485 = vand.u32 %v670, 4294901760
    %1486 = vmatpush1.msra.mxu0 %v1485
    %v1487 = vand.u32 %v669, 4294901760
    %1488 = vmatprep.subr.mxu0 %v1487
    %v1489 = vand.u32 %v668, 4294901760
    %1490 = vmatpush1.msra.mxu0 %v1489
    %v1491 = vand.u32 %v667, 4294901760
    %1492 = vmatprep.subr.mxu0 %v1491
    %v1493 = vand.u32 %v666, 4294901760
    %1494 = vmatpush1.msra.mxu0 %v1493
    %v1495 = vand.u32 %v665, 4294901760
    %1496 = vmatprep.subr.mxu0 %v1495
    %v1497 = vand.u32 %v664, 4294901760
    %1498 = vmatpush1.msra.mxu0 %v1497
    %v1499 = vand.u32 %v663, 4294901760
    %1500 = vmatprep.subr.mxu0 %v1499
    %v1501 = vand.u32 %v662, 4294901760
    %1502 = vmatpush1.msra.mxu0 %v1501
    %v1503 = vand.u32 %v661, 4294901760
    %1504 = vmatprep.subr.mxu0 %v1503
    %v1505 = vand.u32 %v660, 4294901760
    %1506 = vmatpush1.msra.mxu0 %v1505
    %v1507 = vand.u32 %v659, 4294901760
    %1508 = vmatprep.subr.mxu0 %v1507
    %v1509 = vand.u32 %v658, 4294901760
    %1510 = vmatpush1.msra.mxu0 %v1509
    %v1511 = vand.u32 %v657, 4294901760
    %1512 = vmatprep.subr.mxu0 %v1511
    %v1513 = vand.u32 %v656, 4294901760
    %1514 = vmatpush1.msra.mxu0 %v1513
    %v1515 = vand.u32 %v655, 4294901760
    %1516 = vmatprep.subr.mxu0 %v1515
    %v1517 = vand.u32 %v654, 4294901760
    %1518 = vmatpush1.msra.mxu0 %v1517
    %v1519 = vand.u32 %v653, 4294901760
    %1520 = vmatprep.subr.mxu0 %v1519
    %v1521 = vand.u32 %v652, 4294901760
    %1522 = vmatpush1.msra.mxu0 %v1521
    %v1523 = vand.u32 %v651, 4294901760
    %1524 = vmatprep.subr.mxu0 %v1523
    %v1525 = vand.u32 %v650, 4294901760
    %1526 = vmatpush1.msra.mxu0 %v1525
    %v1527 = vand.u32 %v649, 4294901760
    %1528 = vmatprep.subr.mxu0 %v1527
    %v1529 = vand.u32 %v648, 4294901760
    %1530 = vmatpush1.msra.mxu0 %v1529
    %v1531 = vand.u32 %v647, 4294901760
    %1532 = vmatprep.subr.mxu0 %v1531
    %v1533 = vand.u32 %v646, 4294901760
    %1534 = vmatpush1.msra.mxu0 %v1533
    %v1535 = vand.u32 %v645, 4294901760
    %1536 = vmatprep.subr.mxu0 %v1535
    %v1537 = vand.u32 %v644, 4294901760
    %1538 = vmatpush1.msra.mxu0 %v1537
    %v1539 = vand.u32 %v643, 4294901760
    %1540 = vmatprep.subr.mxu0 %v1539
    %v1541 = vand.u32 %v642, 4294901760
    %1542 = vmatpush1.msra.mxu0 %v1541
    %1543 = vmatprep.subr.mxu0 0.0
    %1544 = vmatpush2.msra.mxu0 0.0
    %1545 = vmatprep.subr.mxu0 0.0
    %1546 = vmatpush2.msra.mxu0 0.0
    %1547 = vmatprep.subr.mxu0 0.0
    %1548 = vmatpush2.msra.mxu0 0.0
    %1549 = vmatprep.subr.mxu0 0.0
    %1550 = vmatpush2.msra.mxu0 0.0
    %1551 = vmatprep.subr.mxu0 0.0
    %1552 = vmatpush2.msra.mxu0 0.0
    %1553 = vmatprep.subr.mxu0 0.0
    %1554 = vmatpush2.msra.mxu0 0.0
    %1555 = vmatprep.subr.mxu0 0.0
    %1556 = vmatpush2.msra.mxu0 0.0
    %1557 = vmatprep.subr.mxu0 0.0
    %1558 = vmatpush2.msra.mxu0 0.0
    %1559 = vmatprep.subr.mxu0 0.0
    %1560 = vmatpush2.msra.mxu0 0.0
    %1561 = vmatprep.subr.mxu0 0.0
    %1562 = vmatpush2.msra.mxu0 0.0
    %1563 = vmatprep.subr.mxu0 0.0
    %1564 = vmatpush2.msra.mxu0 0.0
    %1565 = vmatprep.subr.mxu0 0.0
    %1566 = vmatpush2.msra.mxu0 0.0
    %1567 = vmatprep.subr.mxu0 0.0
    %1568 = vmatpush2.msra.mxu0 0.0
    %1569 = vmatprep.subr.mxu0 0.0
    %1570 = vmatpush2.msra.mxu0 0.0
    %1571 = vmatprep.subr.mxu0 0.0
    %1572 = vmatpush2.msra.mxu0 0.0
    %1573 = vmatprep.subr.mxu0 0.0
    %1574 = vmatpush2.msra.mxu0 0.0
    %1575 = vmatprep.mubr.f32.mxu0 0.0
    %v1576 = vand.u32 %v633, 4294901760
    %1577 = vmatmul.mubr.f32.gmra.mxu0 %v1576
    %v1578 = vpop.f32.mrf.mxu0
    %v1579 = vadd.f32 %v1468, %v1578
    %v1580 = vpop.f32.mrf.mxu0
    %v1581 = vadd.f32 %v1470, %v1580
    %1582 = vmatprep.mubr.f32.mxu0 0.0
    %v1583 = vand.u32 %v639, 4294901760
    %1584 = vmatmul.mubr.f32.gmra.mxu0 %v1583
    %v1585 = vpop.f32.mrf.mxu0
    %v1586 = vadd.f32 %v1475, %v1585
    %v1587 = vpop.f32.mrf.mxu0
    %v1588 = vadd.f32 %v1477, %v1587
    %1589 = vdwg.mxu0
    %v1590 = vld [vmem:[%s4] sm:$0xff]
    %v1591 = vld [vmem:[%s4 + $0x8] sm:$0xff]
    %v1592 = vld [vmem:[%s4 + $0x10] sm:$0xff]
    %v1593 = vld [vmem:[%s4 + $0x18] sm:$0xff]
    %v1594 = vld [vmem:[%s5] sm:$0xff]
    %v1595 = vld [vmem:[%s5 + $0x8] sm:$0xff]
    %v1596 = vld [vmem:[%s5 + $0x10] sm:$0xff]
    %v1597 = vld [vmem:[%s5 + $0x18] sm:$0xff]
    %v1598 = vld [vmem:[%s1] sm:$0x3]
    %vm1599 = vcmask 261120
    %v1601 = vsel %vm1599, 0.0, 0
    %1603 = vmatprep.subr.mxu0 0.0
    %1604 = vmatpush1.msra.mxu0 0.0
    %1605 = vmatprep.subr.mxu0 0.0
    %1606 = vmatpush1.msra.mxu0 0.0
    %1607 = vmatprep.subr.mxu0 0.0
    %1608 = vmatpush1.msra.mxu0 0.0
    %1609 = vmatprep.subr.mxu0 0.0
    %1610 = vmatpush1.msra.mxu0 0.0
    %1611 = vmatprep.subr.mxu0 0.0
    %1612 = vmatpush1.msra.mxu0 0.0
    %1613 = vmatprep.subr.mxu0 0.0
    %1614 = vmatpush1.msra.mxu0 0.0
    %1615 = vmatprep.subr.mxu0 0.0
    %1616 = vmatpush1.msra.mxu0 0.0
    %1617 = vmatprep.subr.mxu0 0.0
    %1618 = vmatpush1.msra.mxu0 0.0
    %1619 = vmatprep.subr.mxu0 0.0
    %1620 = vmatpush1.msra.mxu0 0.0
    %1621 = vmatprep.subr.mxu0 0.0
    %1622 = vmatpush1.msra.mxu0 0.0
    %1623 = vmatprep.subr.mxu0 0.0
    %1624 = vmatpush1.msra.mxu0 0.0
    %1625 = vmatprep.subr.mxu0 0.0
    %1626 = vmatpush1.msra.mxu0 0.0
    %1627 = vmatprep.subr.mxu0 0.0
    %v1628 = vand.u32 %v1593, 4294901760
    %1629 = vmatpush1.msra.mxu0 %v1628
    %1630 = vmatprep.subr.mxu0 0.0
    %v1631 = vand.u32 %v1592, 4294901760
    %1632 = vmatpush1.msra.mxu0 %v1631
    %1633 = vmatprep.subr.mxu0 0.0
    %v1634 = vand.u32 %v1591, 4294901760
    %1635 = vmatpush1.msra.mxu0 %v1634
    %1636 = vmatprep.subr.mxu0 0.0
    %v1637 = vand.u32 %v1590, 4294901760
    %1638 = vmatpush1.msra.mxu0 %v1637
    %1639 = vmatprep.subr.mxu0 0.0
    %1640 = vmatpush2.msra.mxu0 0.0
    %1641 = vmatprep.subr.mxu0 0.0
    %1642 = vmatpush2.msra.mxu0 0.0
    %1643 = vmatprep.subr.mxu0 0.0
    %1644 = vmatpush2.msra.mxu0 0.0
    %1645 = vmatprep.subr.mxu0 0.0
    %1646 = vmatpush2.msra.mxu0 0.0
    %1647 = vmatprep.subr.mxu0 0.0
    %1648 = vmatpush2.msra.mxu0 0.0
    %1649 = vmatprep.subr.mxu0 0.0
    %1650 = vmatpush2.msra.mxu0 0.0
    %1651 = vmatprep.subr.mxu0 0.0
    %1652 = vmatpush2.msra.mxu0 0.0
    %1653 = vmatprep.subr.mxu0 0.0
    %1654 = vmatpush2.msra.mxu0 0.0
    %1655 = vmatprep.subr.mxu0 0.0
    %1656 = vmatpush2.msra.mxu0 0.0
    %1657 = vmatprep.subr.mxu0 0.0
    %1658 = vmatpush2.msra.mxu0 0.0
    %1659 = vmatprep.subr.mxu0 0.0
    %1660 = vmatpush2.msra.mxu0 0.0
    %1661 = vmatprep.subr.mxu0 0.0
    %1662 = vmatpush2.msra.mxu0 0.0
    %1663 = vmatprep.subr.mxu0 0.0
    %1664 = vmatpush2.msra.mxu0 0.0
    %1665 = vmatprep.subr.mxu0 0.0
    %1666 = vmatpush2.msra.mxu0 0.0
    %1667 = vmatprep.subr.mxu0 0.0
    %1668 = vmatpush2.msra.mxu0 0.0
    %1669 = vmatprep.subr.mxu0 0.0
    %1670 = vmatpush2.msra.mxu0 0.0
    %1671 = vmatprep.mubr.f32.mxu0 0.0
    %v1672 = vand.u32 %v1601, 4294901760
    %v1673 = vsub.f32 %v1601, %v1672
    %v1674 = vand.u32 %v1673, 4294901760
    %v1675 = vsub.f32 %v1673, %v1674
    %v1676 = vand.u32 %v1675, 4294901760
    %1677 = vmatmul.mubr.f32.gmra.mxu0 %v1676
    %v1678 = vpop.f32.mrf.mxu0
    %v1679 = vadd.f32 0.0, %v1678
    %v1680 = vpop.f32.mrf.mxu0
    %1681 = vdwg.mxu0
    %1682 = vmatprep.subr.mxu0 0.0
    %1683 = vmatpush1.msra.mxu0 0.0
    %1684 = vmatprep.subr.mxu0 0.0
    %1685 = vmatpush1.msra.mxu0 0.0
    %1686 = vmatprep.subr.mxu0 0.0
    %1687 = vmatpush1.msra.mxu0 0.0
    %1688 = vmatprep.subr.mxu0 0.0
    %1689 = vmatpush1.msra.mxu0 0.0
    %1690 = vmatprep.subr.mxu0 0.0
    %1691 = vmatpush1.msra.mxu0 0.0
    %1692 = vmatprep.subr.mxu0 0.0
    %1693 = vmatpush1.msra.mxu0 0.0
    %1694 = vmatprep.subr.mxu0 0.0
    %1695 = vmatpush1.msra.mxu0 0.0
    %1696 = vmatprep.subr.mxu0 0.0
    %1697 = vmatpush1.msra.mxu0 0.0
    %1698 = vmatprep.subr.mxu0 0.0
    %1699 = vmatpush1.msra.mxu0 0.0
    %1700 = vmatprep.subr.mxu0 0.0
    %1701 = vmatpush1.msra.mxu0 0.0
    %1702 = vmatprep.subr.mxu0 0.0
    %1703 = vmatpush1.msra.mxu0 0.0
    %1704 = vmatprep.subr.mxu0 0.0
    %1705 = vmatpush1.msra.mxu0 0.0
    %1706 = vmatprep.subr.mxu0 0.0
    %v1707 = vand.u32 %v1593, 4294901760
    %v1708 = vsub.f32 %v1593, %v1707
    %v1709 = vand.u32 %v1708, 4294901760
    %v1710 = vsub.f32 %v1708, %v1709
    %v1711 = vand.u32 %v1710, 4294901760
    %1712 = vmatpush1.msra.mxu0 %v1711
    %1713 = vmatprep.subr.mxu0 0.0
    %v1714 = vand.u32 %v1592, 4294901760
    %v1715 = vsub.f32 %v1592, %v1714
    %v1716 = vand.u32 %v1715, 4294901760
    %v1717 = vsub.f32 %v1715, %v1716
    %v1718 = vand.u32 %v1717, 4294901760
    %1719 = vmatpush1.msra.mxu0 %v1718
    %1720 = vmatprep.subr.mxu0 0.0
    %v1721 = vand.u32 %v1591, 4294901760
    %v1722 = vsub.f32 %v1591, %v1721
    %v1723 = vand.u32 %v1722, 4294901760
    %v1724 = vsub.f32 %v1722, %v1723
    %v1725 = vand.u32 %v1724, 4294901760
    %1726 = vmatpush1.msra.mxu0 %v1725
    %1727 = vmatprep.subr.mxu0 0.0
    %v1728 = vand.u32 %v1590, 4294901760
    %v1729 = vsub.f32 %v1590, %v1728
    %v1730 = vand.u32 %v1729, 4294901760
    %v1731 = vsub.f32 %v1729, %v1730
    %v1732 = vand.u32 %v1731, 4294901760
    %1733 = vmatpush1.msra.mxu0 %v1732
    %1734 = vmatprep.subr.mxu0 0.0
    %1735 = vmatpush2.msra.mxu0 0.0
    %1736 = vmatprep.subr.mxu0 0.0
    %1737 = vmatpush2.msra.mxu0 0.0
    %1738 = vmatprep.subr.mxu0 0.0
    %1739 = vmatpush2.msra.mxu0 0.0
    %1740 = vmatprep.subr.mxu0 0.0
    %1741 = vmatpush2.msra.mxu0 0.0
    %1742 = vmatprep.subr.mxu0 0.0
    %1743 = vmatpush2.msra.mxu0 0.0
    %1744 = vmatprep.subr.mxu0 0.0
    %1745 = vmatpush2.msra.mxu0 0.0
    %1746 = vmatprep.subr.mxu0 0.0
    %1747 = vmatpush2.msra.mxu0 0.0
    %1748 = vmatprep.subr.mxu0 0.0
    %1749 = vmatpush2.msra.mxu0 0.0
    %1750 = vmatprep.subr.mxu0 0.0
    %1751 = vmatpush2.msra.mxu0 0.0
    %1752 = vmatprep.subr.mxu0 0.0
    %1753 = vmatpush2.msra.mxu0 0.0
    %1754 = vmatprep.subr.mxu0 0.0
    %1755 = vmatpush2.msra.mxu0 0.0
    %1756 = vmatprep.subr.mxu0 0.0
    %1757 = vmatpush2.msra.mxu0 0.0
    %1758 = vmatprep.subr.mxu0 0.0
    %1759 = vmatpush2.msra.mxu0 0.0
    %1760 = vmatprep.subr.mxu0 0.0
    %1761 = vmatpush2.msra.mxu0 0.0
    %1762 = vmatprep.subr.mxu0 0.0
    %1763 = vmatpush2.msra.mxu0 0.0
    %1764 = vmatprep.subr.mxu0 0.0
    %1765 = vmatpush2.msra.mxu0 0.0
    %1766 = vmatprep.mubr.f32.mxu0 0.0
    %v1767 = vand.u32 %v1601, 4294901760
    %1768 = vmatmul.mubr.f32.gmra.mxu0 %v1767
    %v1769 = vpop.f32.mrf.mxu0
    %v1770 = vadd.f32 %v1679, %v1769
    %v1771 = vpop.f32.mrf.mxu0
    %1772 = vdwg.mxu0
    %1773 = vmatprep.subr.mxu0 0.0
    %1774 = vmatpush1.msra.mxu0 0.0
    %1775 = vmatprep.subr.mxu0 0.0
    %1776 = vmatpush1.msra.mxu0 0.0
    %1777 = vmatprep.subr.mxu0 0.0
    %1778 = vmatpush1.msra.mxu0 0.0
    %1779 = vmatprep.subr.mxu0 0.0
    %1780 = vmatpush1.msra.mxu0 0.0
    %1781 = vmatprep.subr.mxu0 0.0
    %1782 = vmatpush1.msra.mxu0 0.0
    %1783 = vmatprep.subr.mxu0 0.0
    %1784 = vmatpush1.msra.mxu0 0.0
    %1785 = vmatprep.subr.mxu0 0.0
    %1786 = vmatpush1.msra.mxu0 0.0
    %1787 = vmatprep.subr.mxu0 0.0
    %1788 = vmatpush1.msra.mxu0 0.0
    %1789 = vmatprep.subr.mxu0 0.0
    %1790 = vmatpush1.msra.mxu0 0.0
    %1791 = vmatprep.subr.mxu0 0.0
    %1792 = vmatpush1.msra.mxu0 0.0
    %1793 = vmatprep.subr.mxu0 0.0
    %1794 = vmatpush1.msra.mxu0 0.0
    %1795 = vmatprep.subr.mxu0 0.0
    %1796 = vmatpush1.msra.mxu0 0.0
    %1797 = vmatprep.subr.mxu0 0.0
    %v1798 = vand.u32 %v1593, 4294901760
    %v1799 = vsub.f32 %v1593, %v1798
    %1800 = vmatpush1.msra.mxu0 %v1799
    %1801 = vmatprep.subr.mxu0 0.0
    %v1802 = vand.u32 %v1592, 4294901760
    %v1803 = vsub.f32 %v1592, %v1802
    %1804 = vmatpush1.msra.mxu0 %v1803
    %1805 = vmatprep.subr.mxu0 0.0
    %v1806 = vand.u32 %v1591, 4294901760
    %v1807 = vsub.f32 %v1591, %v1806
    %1808 = vmatpush1.msra.mxu0 %v1807
    %1809 = vmatprep.subr.mxu0 0.0
    %v1810 = vand.u32 %v1590, 4294901760
    %v1811 = vsub.f32 %v1590, %v1810
    %1812 = vmatpush1.msra.mxu0 %v1811
    %1813 = vmatprep.subr.mxu0 0.0
    %1814 = vmatpush2.msra.mxu0 0.0
    %1815 = vmatprep.subr.mxu0 0.0
    %1816 = vmatpush2.msra.mxu0 0.0
    %1817 = vmatprep.subr.mxu0 0.0
    %1818 = vmatpush2.msra.mxu0 0.0
    %1819 = vmatprep.subr.mxu0 0.0
    %1820 = vmatpush2.msra.mxu0 0.0
    %1821 = vmatprep.subr.mxu0 0.0
    %1822 = vmatpush2.msra.mxu0 0.0
    %1823 = vmatprep.subr.mxu0 0.0
    %1824 = vmatpush2.msra.mxu0 0.0
    %1825 = vmatprep.subr.mxu0 0.0
    %1826 = vmatpush2.msra.mxu0 0.0
    %1827 = vmatprep.subr.mxu0 0.0
    %1828 = vmatpush2.msra.mxu0 0.0
    %1829 = vmatprep.subr.mxu0 0.0
    %1830 = vmatpush2.msra.mxu0 0.0
    %1831 = vmatprep.subr.mxu0 0.0
    %1832 = vmatpush2.msra.mxu0 0.0
    %1833 = vmatprep.subr.mxu0 0.0
    %1834 = vmatpush2.msra.mxu0 0.0
    %1835 = vmatprep.subr.mxu0 0.0
    %1836 = vmatpush2.msra.mxu0 0.0
    %1837 = vmatprep.subr.mxu0 0.0
    %1838 = vmatpush2.msra.mxu0 0.0
    %1839 = vmatprep.subr.mxu0 0.0
    %1840 = vmatpush2.msra.mxu0 0.0
    %1841 = vmatprep.subr.mxu0 0.0
    %1842 = vmatpush2.msra.mxu0 0.0
    %1843 = vmatprep.subr.mxu0 0.0
    %1844 = vmatpush2.msra.mxu0 0.0
    %1845 = vmatprep.mubr.f32.mxu0 0.0
    %v1846 = vand.u32 %v1601, 4294901760
    %v1847 = vsub.f32 %v1601, %v1846
    %1848 = vmatmul.mubr.f32.gmra.mxu0 %v1847
    %v1849 = vpop.f32.mrf.mxu0
    %v1850 = vadd.f32 %v1770, %v1849
    %v1851 = vpop.f32.mrf.mxu0
    %1852 = vdwg.mxu0
    %1853 = vmatprep.subr.mxu0 0.0
    %1854 = vmatpush1.msra.mxu0 0.0
    %1855 = vmatprep.subr.mxu0 0.0
    %1856 = vmatpush1.msra.mxu0 0.0
    %1857 = vmatprep.subr.mxu0 0.0
    %1858 = vmatpush1.msra.mxu0 0.0
    %1859 = vmatprep.subr.mxu0 0.0
    %1860 = vmatpush1.msra.mxu0 0.0
    %1861 = vmatprep.subr.mxu0 0.0
    %1862 = vmatpush1.msra.mxu0 0.0
    %1863 = vmatprep.subr.mxu0 0.0
    %1864 = vmatpush1.msra.mxu0 0.0
    %1865 = vmatprep.subr.mxu0 0.0
    %1866 = vmatpush1.msra.mxu0 0.0
    %1867 = vmatprep.subr.mxu0 0.0
    %1868 = vmatpush1.msra.mxu0 0.0
    %1869 = vmatprep.subr.mxu0 0.0
    %1870 = vmatpush1.msra.mxu0 0.0
    %1871 = vmatprep.subr.mxu0 0.0
    %1872 = vmatpush1.msra.mxu0 0.0
    %1873 = vmatprep.subr.mxu0 0.0
    %1874 = vmatpush1.msra.mxu0 0.0
    %1875 = vmatprep.subr.mxu0 0.0
    %1876 = vmatpush1.msra.mxu0 0.0
    %1877 = vmatprep.subr.mxu0 0.0
    %v1878 = vand.u32 %v1593, 4294901760
    %1879 = vmatpush1.msra.mxu0 %v1878
    %1880 = vmatprep.subr.mxu0 0.0
    %v1881 = vand.u32 %v1592, 4294901760
    %1882 = vmatpush1.msra.mxu0 %v1881
    %1883 = vmatprep.subr.mxu0 0.0
    %v1884 = vand.u32 %v1591, 4294901760
    %1885 = vmatpush1.msra.mxu0 %v1884
    %1886 = vmatprep.subr.mxu0 0.0
    %v1887 = vand.u32 %v1590, 4294901760
    %1888 = vmatpush1.msra.mxu0 %v1887
    %1889 = vmatprep.subr.mxu0 0.0
    %1890 = vmatpush2.msra.mxu0 0.0
    %1891 = vmatprep.subr.mxu0 0.0
    %1892 = vmatpush2.msra.mxu0 0.0
    %1893 = vmatprep.subr.mxu0 0.0
    %1894 = vmatpush2.msra.mxu0 0.0
    %1895 = vmatprep.subr.mxu0 0.0
    %1896 = vmatpush2.msra.mxu0 0.0
    %1897 = vmatprep.subr.mxu0 0.0
    %1898 = vmatpush2.msra.mxu0 0.0
    %1899 = vmatprep.subr.mxu0 0.0
    %1900 = vmatpush2.msra.mxu0 0.0
    %1901 = vmatprep.subr.mxu0 0.0
    %1902 = vmatpush2.msra.mxu0 0.0
    %1903 = vmatprep.subr.mxu0 0.0
    %1904 = vmatpush2.msra.mxu0 0.0
    %1905 = vmatprep.subr.mxu0 0.0
    %1906 = vmatpush2.msra.mxu0 0.0
    %1907 = vmatprep.subr.mxu0 0.0
    %1908 = vmatpush2.msra.mxu0 0.0
    %1909 = vmatprep.subr.mxu0 0.0
    %1910 = vmatpush2.msra.mxu0 0.0
    %1911 = vmatprep.subr.mxu0 0.0
    %1912 = vmatpush2.msra.mxu0 0.0
    %1913 = vmatprep.subr.mxu0 0.0
    %1914 = vmatpush2.msra.mxu0 0.0
    %1915 = vmatprep.subr.mxu0 0.0
    %1916 = vmatpush2.msra.mxu0 0.0
    %1917 = vmatprep.subr.mxu0 0.0
    %1918 = vmatpush2.msra.mxu0 0.0
    %1919 = vmatprep.subr.mxu0 0.0
    %1920 = vmatpush2.msra.mxu0 0.0
    %1921 = vmatprep.mubr.f32.mxu0 0.0
    %v1922 = vand.u32 %v1601, 4294901760
    %v1923 = vsub.f32 %v1601, %v1922
    %v1924 = vand.u32 %v1923, 4294901760
    %1925 = vmatmul.mubr.f32.gmra.mxu0 %v1924
    %v1926 = vpop.f32.mrf.mxu0
    %v1927 = vadd.f32 %v1850, %v1926
    %v1928 = vpop.f32.mrf.mxu0
    %1929 = vdwg.mxu0
    %1930 = vmatprep.subr.mxu0 0.0
    %1931 = vmatpush1.msra.mxu0 0.0
    %1932 = vmatprep.subr.mxu0 0.0
    %1933 = vmatpush1.msra.mxu0 0.0
    %1934 = vmatprep.subr.mxu0 0.0
    %1935 = vmatpush1.msra.mxu0 0.0
    %1936 = vmatprep.subr.mxu0 0.0
    %1937 = vmatpush1.msra.mxu0 0.0
    %1938 = vmatprep.subr.mxu0 0.0
    %1939 = vmatpush1.msra.mxu0 0.0
    %1940 = vmatprep.subr.mxu0 0.0
    %1941 = vmatpush1.msra.mxu0 0.0
    %1942 = vmatprep.subr.mxu0 0.0
    %1943 = vmatpush1.msra.mxu0 0.0
    %1944 = vmatprep.subr.mxu0 0.0
    %1945 = vmatpush1.msra.mxu0 0.0
    %1946 = vmatprep.subr.mxu0 0.0
    %1947 = vmatpush1.msra.mxu0 0.0
    %1948 = vmatprep.subr.mxu0 0.0
    %1949 = vmatpush1.msra.mxu0 0.0
    %1950 = vmatprep.subr.mxu0 0.0
    %1951 = vmatpush1.msra.mxu0 0.0
    %1952 = vmatprep.subr.mxu0 0.0
    %1953 = vmatpush1.msra.mxu0 0.0
    %1954 = vmatprep.subr.mxu0 0.0
    %v1955 = vand.u32 %v1593, 4294901760
    %v1956 = vsub.f32 %v1593, %v1955
    %v1957 = vand.u32 %v1956, 4294901760
    %1958 = vmatpush1.msra.mxu0 %v1957
    %1959 = vmatprep.subr.mxu0 0.0
    %v1960 = vand.u32 %v1592, 4294901760
    %v1961 = vsub.f32 %v1592, %v1960
    %v1962 = vand.u32 %v1961, 4294901760
    %1963 = vmatpush1.msra.mxu0 %v1962
    %1964 = vmatprep.subr.mxu0 0.0
    %v1965 = vand.u32 %v1591, 4294901760
    %v1966 = vsub.f32 %v1591, %v1965
    %v1967 = vand.u32 %v1966, 4294901760
    %1968 = vmatpush1.msra.mxu0 %v1967
    %1969 = vmatprep.subr.mxu0 0.0
    %v1970 = vand.u32 %v1590, 4294901760
    %v1971 = vsub.f32 %v1590, %v1970
    %v1972 = vand.u32 %v1971, 4294901760
    %1973 = vmatpush1.msra.mxu0 %v1972
    %1974 = vmatprep.subr.mxu0 0.0
    %1975 = vmatpush2.msra.mxu0 0.0
    %1976 = vmatprep.subr.mxu0 0.0
    %1977 = vmatpush2.msra.mxu0 0.0
    %1978 = vmatprep.subr.mxu0 0.0
    %1979 = vmatpush2.msra.mxu0 0.0
    %1980 = vmatprep.subr.mxu0 0.0
    %1981 = vmatpush2.msra.mxu0 0.0
    %1982 = vmatprep.subr.mxu0 0.0
    %1983 = vmatpush2.msra.mxu0 0.0
    %1984 = vmatprep.subr.mxu0 0.0
    %1985 = vmatpush2.msra.mxu0 0.0
    %1986 = vmatprep.subr.mxu0 0.0
    %1987 = vmatpush2.msra.mxu0 0.0
    %1988 = vmatprep.subr.mxu0 0.0
    %1989 = vmatpush2.msra.mxu0 0.0
    %1990 = vmatprep.subr.mxu0 0.0
    %1991 = vmatpush2.msra.mxu0 0.0
    %1992 = vmatprep.subr.mxu0 0.0
    %1993 = vmatpush2.msra.mxu0 0.0
    %1994 = vmatprep.subr.mxu0 0.0
    %1995 = vmatpush2.msra.mxu0 0.0
    %1996 = vmatprep.subr.mxu0 0.0
    %1997 = vmatpush2.msra.mxu0 0.0
    %1998 = vmatprep.subr.mxu0 0.0
    %1999 = vmatpush2.msra.mxu0 0.0
    %2000 = vmatprep.subr.mxu0 0.0
    %2001 = vmatpush2.msra.mxu0 0.0
    %2002 = vmatprep.subr.mxu0 0.0
    %2003 = vmatpush2.msra.mxu0 0.0
    %2004 = vmatprep.subr.mxu0 0.0
    %2005 = vmatpush2.msra.mxu0 0.0
    %2006 = vmatprep.mubr.f32.mxu0 0.0
    %v2007 = vand.u32 %v1601, 4294901760
    %2008 = vmatmul.mubr.f32.gmra.mxu0 %v2007
    %v2009 = vpop.f32.mrf.mxu0
    %v2010 = vadd.f32 %v1927, %v2009
    %v2011 = vpop.f32.mrf.mxu0
    %2012 = vdwg.mxu0
    %2013 = vmatprep.subr.mxu0 0.0
    %2014 = vmatpush1.msra.mxu0 0.0
    %2015 = vmatprep.subr.mxu0 0.0
    %2016 = vmatpush1.msra.mxu0 0.0
    %2017 = vmatprep.subr.mxu0 0.0
    %2018 = vmatpush1.msra.mxu0 0.0
    %2019 = vmatprep.subr.mxu0 0.0
    %2020 = vmatpush1.msra.mxu0 0.0
    %2021 = vmatprep.subr.mxu0 0.0
    %2022 = vmatpush1.msra.mxu0 0.0
    %2023 = vmatprep.subr.mxu0 0.0
    %2024 = vmatpush1.msra.mxu0 0.0
    %2025 = vmatprep.subr.mxu0 0.0
    %2026 = vmatpush1.msra.mxu0 0.0
    %2027 = vmatprep.subr.mxu0 0.0
    %2028 = vmatpush1.msra.mxu0 0.0
    %2029 = vmatprep.subr.mxu0 0.0
    %2030 = vmatpush1.msra.mxu0 0.0
    %2031 = vmatprep.subr.mxu0 0.0
    %2032 = vmatpush1.msra.mxu0 0.0
    %2033 = vmatprep.subr.mxu0 0.0
    %2034 = vmatpush1.msra.mxu0 0.0
    %2035 = vmatprep.subr.mxu0 0.0
    %2036 = vmatpush1.msra.mxu0 0.0
    %2037 = vmatprep.subr.mxu0 0.0
    %v2038 = vand.u32 %v1593, 4294901760
    %2039 = vmatpush1.msra.mxu0 %v2038
    %2040 = vmatprep.subr.mxu0 0.0
    %v2041 = vand.u32 %v1592, 4294901760
    %2042 = vmatpush1.msra.mxu0 %v2041
    %2043 = vmatprep.subr.mxu0 0.0
    %v2044 = vand.u32 %v1591, 4294901760
    %2045 = vmatpush1.msra.mxu0 %v2044
    %2046 = vmatprep.subr.mxu0 0.0
    %v2047 = vand.u32 %v1590, 4294901760
    %2048 = vmatpush1.msra.mxu0 %v2047
    %2049 = vmatprep.subr.mxu0 0.0
    %2050 = vmatpush2.msra.mxu0 0.0
    %2051 = vmatprep.subr.mxu0 0.0
    %2052 = vmatpush2.msra.mxu0 0.0
    %2053 = vmatprep.subr.mxu0 0.0
    %2054 = vmatpush2.msra.mxu0 0.0
    %2055 = vmatprep.subr.mxu0 0.0
    %2056 = vmatpush2.msra.mxu0 0.0
    %2057 = vmatprep.subr.mxu0 0.0
    %2058 = vmatpush2.msra.mxu0 0.0
    %2059 = vmatprep.subr.mxu0 0.0
    %2060 = vmatpush2.msra.mxu0 0.0
    %2061 = vmatprep.subr.mxu0 0.0
    %2062 = vmatpush2.msra.mxu0 0.0
    %2063 = vmatprep.subr.mxu0 0.0
    %2064 = vmatpush2.msra.mxu0 0.0
    %2065 = vmatprep.subr.mxu0 0.0
    %2066 = vmatpush2.msra.mxu0 0.0
    %2067 = vmatprep.subr.mxu0 0.0
    %2068 = vmatpush2.msra.mxu0 0.0
    %2069 = vmatprep.subr.mxu0 0.0
    %2070 = vmatpush2.msra.mxu0 0.0
    %2071 = vmatprep.subr.mxu0 0.0
    %2072 = vmatpush2.msra.mxu0 0.0
    %2073 = vmatprep.subr.mxu0 0.0
    %2074 = vmatpush2.msra.mxu0 0.0
    %2075 = vmatprep.subr.mxu0 0.0
    %2076 = vmatpush2.msra.mxu0 0.0
    %2077 = vmatprep.subr.mxu0 0.0
    %2078 = vmatpush2.msra.mxu0 0.0
    %2079 = vmatprep.subr.mxu0 0.0
    %2080 = vmatpush2.msra.mxu0 0.0
    %2081 = vmatprep.mubr.f32.mxu0 0.0
    %v2082 = vand.u32 %v1601, 4294901760
    %2083 = vmatmul.mubr.f32.gmra.mxu0 %v2082
    %v2084 = vpop.f32.mrf.mxu0
    %v2085 = vadd.f32 %v2010, %v2084
    %v2086 = vpop.f32.mrf.mxu0
    %2087 = vdwg.mxu0
    %v2088 = vadd.f32 %v1579, %v2085
    %v2089 = vmul.f32 %v2088, 0.5
    %v2090 = vtanh.pop %v2089
    %v2091 = vadd.f32 %v2090, 1.0
    %v2092 = vmul.f32 %v2091, 0.5
    %v2093 = vtanh.pop %v2088
    %v2094 = vmul.f32 %v2092, 0.0
    %2096 = vrot.lane.b32.xlu0 %v2093, 64
    %v2097 = vpop.permute.xlu0 %2096
    %v2099 = vmul.f32 %v2092, %v2097
    %2101 = vrot.lane.b32.xlu0 %v2099, 32
    %v2102 = vpop.permute.xlu0 %2101
    %v2104 = vadd.f32 %v2094, %v2102
    %v2105 = vtanh.pop %v2104
    %2107 = vrot.lane.b32.xlu0 %v2105, 64
    %v2108 = vpop.permute.xlu0 %2107
    %v2110 = vmul.f32 %v2092, %v2108
    %2111 = vmatprep.subr.mxu0 0.0
    %2112 = vmatpush1.msra.mxu0 0.0
    %2113 = vmatprep.subr.mxu0 0.0
    %2114 = vmatpush1.msra.mxu0 0.0
    %2115 = vmatprep.subr.mxu0 0.0
    %2116 = vmatpush1.msra.mxu0 0.0
    %2117 = vmatprep.subr.mxu0 0.0
    %2118 = vmatpush1.msra.mxu0 0.0
    %2119 = vmatprep.subr.mxu0 0.0
    %2120 = vmatpush1.msra.mxu0 0.0
    %2121 = vmatprep.subr.mxu0 0.0
    %2122 = vmatpush1.msra.mxu0 0.0
    %2123 = vmatprep.subr.mxu0 0.0
    %2124 = vmatpush1.msra.mxu0 0.0
    %2125 = vmatprep.subr.mxu0 0.0
    %2126 = vmatpush1.msra.mxu0 0.0
    %2127 = vmatprep.subr.mxu0 0.0
    %2128 = vmatpush1.msra.mxu0 0.0
    %2129 = vmatprep.subr.mxu0 0.0
    %2130 = vmatpush1.msra.mxu0 0.0
    %2131 = vmatprep.subr.mxu0 0.0
    %2132 = vmatpush1.msra.mxu0 0.0
    %2133 = vmatprep.subr.mxu0 0.0
    %2134 = vmatpush1.msra.mxu0 0.0
    %2135 = vmatprep.subr.mxu0 0.0
    %v2136 = vand.u32 %v1597, 4294901760
    %2137 = vmatpush1.msra.mxu0 %v2136
    %2138 = vmatprep.subr.mxu0 0.0
    %v2139 = vand.u32 %v1596, 4294901760
    %2140 = vmatpush1.msra.mxu0 %v2139
    %2141 = vmatprep.subr.mxu0 0.0
    %v2142 = vand.u32 %v1595, 4294901760
    %2143 = vmatpush1.msra.mxu0 %v2142
    %2144 = vmatprep.subr.mxu0 0.0
    %v2145 = vand.u32 %v1594, 4294901760
    %2146 = vmatpush1.msra.mxu0 %v2145
    %2147 = vmatprep.subr.mxu0 0.0
    %2148 = vmatpush2.msra.mxu0 0.0
    %2149 = vmatprep.subr.mxu0 0.0
    %2150 = vmatpush2.msra.mxu0 0.0
    %2151 = vmatprep.subr.mxu0 0.0
    %2152 = vmatpush2.msra.mxu0 0.0
    %2153 = vmatprep.subr.mxu0 0.0
    %2154 = vmatpush2.msra.mxu0 0.0
    %2155 = vmatprep.subr.mxu0 0.0
    %2156 = vmatpush2.msra.mxu0 0.0
    %2157 = vmatprep.subr.mxu0 0.0
    %2158 = vmatpush2.msra.mxu0 0.0
    %2159 = vmatprep.subr.mxu0 0.0
    %2160 = vmatpush2.msra.mxu0 0.0
    %2161 = vmatprep.subr.mxu0 0.0
    %2162 = vmatpush2.msra.mxu0 0.0
    %2163 = vmatprep.subr.mxu0 0.0
    %2164 = vmatpush2.msra.mxu0 0.0
    %2165 = vmatprep.subr.mxu0 0.0
    %2166 = vmatpush2.msra.mxu0 0.0
    %2167 = vmatprep.subr.mxu0 0.0
    %2168 = vmatpush2.msra.mxu0 0.0
    %2169 = vmatprep.subr.mxu0 0.0
    %2170 = vmatpush2.msra.mxu0 0.0
    %2171 = vmatprep.subr.mxu0 0.0
    %2172 = vmatpush2.msra.mxu0 0.0
    %2173 = vmatprep.subr.mxu0 0.0
    %2174 = vmatpush2.msra.mxu0 0.0
    %2175 = vmatprep.subr.mxu0 0.0
    %2176 = vmatpush2.msra.mxu0 0.0
    %2177 = vmatprep.subr.mxu0 0.0
    %2178 = vmatpush2.msra.mxu0 0.0
    %2179 = vmatprep.mubr.f32.mxu0 0.0
    %v2180 = vand.u32 %v1601, 4294901760
    %v2181 = vsub.f32 %v1601, %v2180
    %v2182 = vand.u32 %v2181, 4294901760
    %v2183 = vsub.f32 %v2181, %v2182
    %v2184 = vand.u32 %v2183, 4294901760
    %2185 = vmatmul.mubr.f32.gmra.mxu0 %v2184
    %v2186 = vpop.f32.mrf.mxu0
    %v2187 = vadd.f32 0.0, %v2186
    %v2188 = vpop.f32.mrf.mxu0
    %2189 = vdwg.mxu0
    %2190 = vmatprep.subr.mxu0 0.0
    %2191 = vmatpush1.msra.mxu0 0.0
    %2192 = vmatprep.subr.mxu0 0.0
    %2193 = vmatpush1.msra.mxu0 0.0
    %2194 = vmatprep.subr.mxu0 0.0
    %2195 = vmatpush1.msra.mxu0 0.0
    %2196 = vmatprep.subr.mxu0 0.0
    %2197 = vmatpush1.msra.mxu0 0.0
    %2198 = vmatprep.subr.mxu0 0.0
    %2199 = vmatpush1.msra.mxu0 0.0
    %2200 = vmatprep.subr.mxu0 0.0
    %2201 = vmatpush1.msra.mxu0 0.0
    %2202 = vmatprep.subr.mxu0 0.0
    %2203 = vmatpush1.msra.mxu0 0.0
    %2204 = vmatprep.subr.mxu0 0.0
    %2205 = vmatpush1.msra.mxu0 0.0
    %2206 = vmatprep.subr.mxu0 0.0
    %2207 = vmatpush1.msra.mxu0 0.0
    %2208 = vmatprep.subr.mxu0 0.0
    %2209 = vmatpush1.msra.mxu0 0.0
    %2210 = vmatprep.subr.mxu0 0.0
    %2211 = vmatpush1.msra.mxu0 0.0
    %2212 = vmatprep.subr.mxu0 0.0
    %2213 = vmatpush1.msra.mxu0 0.0
    %2214 = vmatprep.subr.mxu0 0.0
    %v2215 = vand.u32 %v1597, 4294901760
    %v2216 = vsub.f32 %v1597, %v2215
    %v2217 = vand.u32 %v2216, 4294901760
    %v2218 = vsub.f32 %v2216, %v2217
    %v2219 = vand.u32 %v2218, 4294901760
    %2220 = vmatpush1.msra.mxu0 %v2219
    %2221 = vmatprep.subr.mxu0 0.0
    %v2222 = vand.u32 %v1596, 4294901760
    %v2223 = vsub.f32 %v1596, %v2222
    %v2224 = vand.u32 %v2223, 4294901760
    %v2225 = vsub.f32 %v2223, %v2224
    %v2226 = vand.u32 %v2225, 4294901760
    %2227 = vmatpush1.msra.mxu0 %v2226
    %2228 = vmatprep.subr.mxu0 0.0
    %v2229 = vand.u32 %v1595, 4294901760
    %v2230 = vsub.f32 %v1595, %v2229
    %v2231 = vand.u32 %v2230, 4294901760
    %v2232 = vsub.f32 %v2230, %v2231
    %v2233 = vand.u32 %v2232, 4294901760
    %2234 = vmatpush1.msra.mxu0 %v2233
    %2235 = vmatprep.subr.mxu0 0.0
    %v2236 = vand.u32 %v1594, 4294901760
    %v2237 = vsub.f32 %v1594, %v2236
    %v2238 = vand.u32 %v2237, 4294901760
    %v2239 = vsub.f32 %v2237, %v2238
    %v2240 = vand.u32 %v2239, 4294901760
    %2241 = vmatpush1.msra.mxu0 %v2240
    %2242 = vmatprep.subr.mxu0 0.0
    %2243 = vmatpush2.msra.mxu0 0.0
    %2244 = vmatprep.subr.mxu0 0.0
    %2245 = vmatpush2.msra.mxu0 0.0
    %2246 = vmatprep.subr.mxu0 0.0
    %2247 = vmatpush2.msra.mxu0 0.0
    %2248 = vmatprep.subr.mxu0 0.0
    %2249 = vmatpush2.msra.mxu0 0.0
    %2250 = vmatprep.subr.mxu0 0.0
    %2251 = vmatpush2.msra.mxu0 0.0
    %2252 = vmatprep.subr.mxu0 0.0
    %2253 = vmatpush2.msra.mxu0 0.0
    %2254 = vmatprep.subr.mxu0 0.0
    %2255 = vmatpush2.msra.mxu0 0.0
    %2256 = vmatprep.subr.mxu0 0.0
    %2257 = vmatpush2.msra.mxu0 0.0
    %2258 = vmatprep.subr.mxu0 0.0
    %2259 = vmatpush2.msra.mxu0 0.0
    %2260 = vmatprep.subr.mxu0 0.0
    %2261 = vmatpush2.msra.mxu0 0.0
    %2262 = vmatprep.subr.mxu0 0.0
    %2263 = vmatpush2.msra.mxu0 0.0
    %2264 = vmatprep.subr.mxu0 0.0
    %2265 = vmatpush2.msra.mxu0 0.0
    %2266 = vmatprep.subr.mxu0 0.0
    %2267 = vmatpush2.msra.mxu0 0.0
    %2268 = vmatprep.subr.mxu0 0.0
    %2269 = vmatpush2.msra.mxu0 0.0
    %2270 = vmatprep.subr.mxu0 0.0
    %2271 = vmatpush2.msra.mxu0 0.0
    %2272 = vmatprep.subr.mxu0 0.0
    %2273 = vmatpush2.msra.mxu0 0.0
    %2274 = vmatprep.mubr.f32.mxu0 0.0
    %v2275 = vand.u32 %v1601, 4294901760
    %2276 = vmatmul.mubr.f32.gmra.mxu0 %v2275
    %v2277 = vpop.f32.mrf.mxu0
    %v2278 = vadd.f32 %v2187, %v2277
    %v2279 = vpop.f32.mrf.mxu0
    %2280 = vdwg.mxu0
    %2281 = vmatprep.subr.mxu0 0.0
    %2282 = vmatpush1.msra.mxu0 0.0
    %2283 = vmatprep.subr.mxu0 0.0
    %2284 = vmatpush1.msra.mxu0 0.0
    %2285 = vmatprep.subr.mxu0 0.0
    %2286 = vmatpush1.msra.mxu0 0.0
    %2287 = vmatprep.subr.mxu0 0.0
    %2288 = vmatpush1.msra.mxu0 0.0
    %2289 = vmatprep.subr.mxu0 0.0
    %2290 = vmatpush1.msra.mxu0 0.0
    %2291 = vmatprep.subr.mxu0 0.0
    %2292 = vmatpush1.msra.mxu0 0.0
    %2293 = vmatprep.subr.mxu0 0.0
    %2294 = vmatpush1.msra.mxu0 0.0
    %2295 = vmatprep.subr.mxu0 0.0
    %2296 = vmatpush1.msra.mxu0 0.0
    %2297 = vmatprep.subr.mxu0 0.0
    %2298 = vmatpush1.msra.mxu0 0.0
    %2299 = vmatprep.subr.mxu0 0.0
    %2300 = vmatpush1.msra.mxu0 0.0
    %2301 = vmatprep.subr.mxu0 0.0
    %2302 = vmatpush1.msra.mxu0 0.0
    %2303 = vmatprep.subr.mxu0 0.0
    %2304 = vmatpush1.msra.mxu0 0.0
    %2305 = vmatprep.subr.mxu0 0.0
    %v2306 = vand.u32 %v1597, 4294901760
    %v2307 = vsub.f32 %v1597, %v2306
    %2308 = vmatpush1.msra.mxu0 %v2307
    %2309 = vmatprep.subr.mxu0 0.0
    %v2310 = vand.u32 %v1596, 4294901760
    %v2311 = vsub.f32 %v1596, %v2310
    %2312 = vmatpush1.msra.mxu0 %v2311
    %2313 = vmatprep.subr.mxu0 0.0
    %v2314 = vand.u32 %v1595, 4294901760
    %v2315 = vsub.f32 %v1595, %v2314
    %2316 = vmatpush1.msra.mxu0 %v2315
    %2317 = vmatprep.subr.mxu0 0.0
    %v2318 = vand.u32 %v1594, 4294901760
    %v2319 = vsub.f32 %v1594, %v2318
    %2320 = vmatpush1.msra.mxu0 %v2319
    %2321 = vmatprep.subr.mxu0 0.0
    %2322 = vmatpush2.msra.mxu0 0.0
    %2323 = vmatprep.subr.mxu0 0.0
    %2324 = vmatpush2.msra.mxu0 0.0
    %2325 = vmatprep.subr.mxu0 0.0
    %2326 = vmatpush2.msra.mxu0 0.0
    %2327 = vmatprep.subr.mxu0 0.0
    %2328 = vmatpush2.msra.mxu0 0.0
    %2329 = vmatprep.subr.mxu0 0.0
    %2330 = vmatpush2.msra.mxu0 0.0
    %2331 = vmatprep.subr.mxu0 0.0
    %2332 = vmatpush2.msra.mxu0 0.0
    %2333 = vmatprep.subr.mxu0 0.0
    %2334 = vmatpush2.msra.mxu0 0.0
    %2335 = vmatprep.subr.mxu0 0.0
    %2336 = vmatpush2.msra.mxu0 0.0
    %2337 = vmatprep.subr.mxu0 0.0
    %2338 = vmatpush2.msra.mxu0 0.0
    %2339 = vmatprep.subr.mxu0 0.0
    %2340 = vmatpush2.msra.mxu0 0.0
    %2341 = vmatprep.subr.mxu0 0.0
    %2342 = vmatpush2.msra.mxu0 0.0
    %2343 = vmatprep.subr.mxu0 0.0
    %2344 = vmatpush2.msra.mxu0 0.0
    %2345 = vmatprep.subr.mxu0 0.0
    %2346 = vmatpush2.msra.mxu0 0.0
    %2347 = vmatprep.subr.mxu0 0.0
    %2348 = vmatpush2.msra.mxu0 0.0
    %2349 = vmatprep.subr.mxu0 0.0
    %2350 = vmatpush2.msra.mxu0 0.0
    %2351 = vmatprep.subr.mxu0 0.0
    %2352 = vmatpush2.msra.mxu0 0.0
    %2353 = vmatprep.mubr.f32.mxu0 0.0
    %v2354 = vand.u32 %v1601, 4294901760
    %v2355 = vsub.f32 %v1601, %v2354
    %2356 = vmatmul.mubr.f32.gmra.mxu0 %v2355
    %v2357 = vpop.f32.mrf.mxu0
    %v2358 = vadd.f32 %v2278, %v2357
    %v2359 = vpop.f32.mrf.mxu0
    %2360 = vdwg.mxu0
    %2361 = vmatprep.subr.mxu0 0.0
    %2362 = vmatpush1.msra.mxu0 0.0
    %2363 = vmatprep.subr.mxu0 0.0
    %2364 = vmatpush1.msra.mxu0 0.0
    %2365 = vmatprep.subr.mxu0 0.0
    %2366 = vmatpush1.msra.mxu0 0.0
    %2367 = vmatprep.subr.mxu0 0.0
    %2368 = vmatpush1.msra.mxu0 0.0
    %2369 = vmatprep.subr.mxu0 0.0
    %2370 = vmatpush1.msra.mxu0 0.0
    %2371 = vmatprep.subr.mxu0 0.0
    %2372 = vmatpush1.msra.mxu0 0.0
    %2373 = vmatprep.subr.mxu0 0.0
    %2374 = vmatpush1.msra.mxu0 0.0
    %2375 = vmatprep.subr.mxu0 0.0
    %2376 = vmatpush1.msra.mxu0 0.0
    %2377 = vmatprep.subr.mxu0 0.0
    %2378 = vmatpush1.msra.mxu0 0.0
    %2379 = vmatprep.subr.mxu0 0.0
    %2380 = vmatpush1.msra.mxu0 0.0
    %2381 = vmatprep.subr.mxu0 0.0
    %2382 = vmatpush1.msra.mxu0 0.0
    %2383 = vmatprep.subr.mxu0 0.0
    %2384 = vmatpush1.msra.mxu0 0.0
    %2385 = vmatprep.subr.mxu0 0.0
    %v2386 = vand.u32 %v1597, 4294901760
    %2387 = vmatpush1.msra.mxu0 %v2386
    %2388 = vmatprep.subr.mxu0 0.0
    %v2389 = vand.u32 %v1596, 4294901760
    %2390 = vmatpush1.msra.mxu0 %v2389
    %2391 = vmatprep.subr.mxu0 0.0
    %v2392 = vand.u32 %v1595, 4294901760
    %2393 = vmatpush1.msra.mxu0 %v2392
    %2394 = vmatprep.subr.mxu0 0.0
    %v2395 = vand.u32 %v1594, 4294901760
    %2396 = vmatpush1.msra.mxu0 %v2395
    %2397 = vmatprep.subr.mxu0 0.0
    %2398 = vmatpush2.msra.mxu0 0.0
    %2399 = vmatprep.subr.mxu0 0.0
    %2400 = vmatpush2.msra.mxu0 0.0
    %2401 = vmatprep.subr.mxu0 0.0
    %2402 = vmatpush2.msra.mxu0 0.0
    %2403 = vmatprep.subr.mxu0 0.0
    %2404 = vmatpush2.msra.mxu0 0.0
    %2405 = vmatprep.subr.mxu0 0.0
    %2406 = vmatpush2.msra.mxu0 0.0
    %2407 = vmatprep.subr.mxu0 0.0
    %2408 = vmatpush2.msra.mxu0 0.0
    %2409 = vmatprep.subr.mxu0 0.0
    %2410 = vmatpush2.msra.mxu0 0.0
    %2411 = vmatprep.subr.mxu0 0.0
    %2412 = vmatpush2.msra.mxu0 0.0
    %2413 = vmatprep.subr.mxu0 0.0
    %2414 = vmatpush2.msra.mxu0 0.0
    %2415 = vmatprep.subr.mxu0 0.0
    %2416 = vmatpush2.msra.mxu0 0.0
    %2417 = vmatprep.subr.mxu0 0.0
    %2418 = vmatpush2.msra.mxu0 0.0
    %2419 = vmatprep.subr.mxu0 0.0
    %2420 = vmatpush2.msra.mxu0 0.0
    %2421 = vmatprep.subr.mxu0 0.0
    %2422 = vmatpush2.msra.mxu0 0.0
    %2423 = vmatprep.subr.mxu0 0.0
    %2424 = vmatpush2.msra.mxu0 0.0
    %2425 = vmatprep.subr.mxu0 0.0
    %2426 = vmatpush2.msra.mxu0 0.0
    %2427 = vmatprep.subr.mxu0 0.0
    %2428 = vmatpush2.msra.mxu0 0.0
    %2429 = vmatprep.mubr.f32.mxu0 0.0
    %v2430 = vand.u32 %v1601, 4294901760
    %v2431 = vsub.f32 %v1601, %v2430
    %v2432 = vand.u32 %v2431, 4294901760
    %2433 = vmatmul.mubr.f32.gmra.mxu0 %v2432
    %v2434 = vpop.f32.mrf.mxu0
    %v2435 = vadd.f32 %v2358, %v2434
    %v2436 = vpop.f32.mrf.mxu0
    %2437 = vdwg.mxu0
    %2438 = vmatprep.subr.mxu0 0.0
    %2439 = vmatpush1.msra.mxu0 0.0
    %2440 = vmatprep.subr.mxu0 0.0
    %2441 = vmatpush1.msra.mxu0 0.0
    %2442 = vmatprep.subr.mxu0 0.0
    %2443 = vmatpush1.msra.mxu0 0.0
    %2444 = vmatprep.subr.mxu0 0.0
    %2445 = vmatpush1.msra.mxu0 0.0
    %2446 = vmatprep.subr.mxu0 0.0
    %2447 = vmatpush1.msra.mxu0 0.0
    %2448 = vmatprep.subr.mxu0 0.0
    %2449 = vmatpush1.msra.mxu0 0.0
    %2450 = vmatprep.subr.mxu0 0.0
    %2451 = vmatpush1.msra.mxu0 0.0
    %2452 = vmatprep.subr.mxu0 0.0
    %2453 = vmatpush1.msra.mxu0 0.0
    %2454 = vmatprep.subr.mxu0 0.0
    %2455 = vmatpush1.msra.mxu0 0.0
    %2456 = vmatprep.subr.mxu0 0.0
    %2457 = vmatpush1.msra.mxu0 0.0
    %2458 = vmatprep.subr.mxu0 0.0
    %2459 = vmatpush1.msra.mxu0 0.0
    %2460 = vmatprep.subr.mxu0 0.0
    %2461 = vmatpush1.msra.mxu0 0.0
    %2462 = vmatprep.subr.mxu0 0.0
    %v2463 = vand.u32 %v1597, 4294901760
    %v2464 = vsub.f32 %v1597, %v2463
    %v2465 = vand.u32 %v2464, 4294901760
    %2466 = vmatpush1.msra.mxu0 %v2465
    %2467 = vmatprep.subr.mxu0 0.0
    %v2468 = vand.u32 %v1596, 4294901760
    %v2469 = vsub.f32 %v1596, %v2468
    %v2470 = vand.u32 %v2469, 4294901760
    %2471 = vmatpush1.msra.mxu0 %v2470
    %2472 = vmatprep.subr.mxu0 0.0
    %v2473 = vand.u32 %v1595, 4294901760
    %v2474 = vsub.f32 %v1595, %v2473
    %v2475 = vand.u32 %v2474, 4294901760
    %2476 = vmatpush1.msra.mxu0 %v2475
    %2477 = vmatprep.subr.mxu0 0.0
    %v2478 = vand.u32 %v1594, 4294901760
    %v2479 = vsub.f32 %v1594, %v2478
    %v2480 = vand.u32 %v2479, 4294901760
    %2481 = vmatpush1.msra.mxu0 %v2480
    %2482 = vmatprep.subr.mxu0 0.0
    %2483 = vmatpush2.msra.mxu0 0.0
    %2484 = vmatprep.subr.mxu0 0.0
    %2485 = vmatpush2.msra.mxu0 0.0
    %2486 = vmatprep.subr.mxu0 0.0
    %2487 = vmatpush2.msra.mxu0 0.0
    %2488 = vmatprep.subr.mxu0 0.0
    %2489 = vmatpush2.msra.mxu0 0.0
    %2490 = vmatprep.subr.mxu0 0.0
    %2491 = vmatpush2.msra.mxu0 0.0
    %2492 = vmatprep.subr.mxu0 0.0
    %2493 = vmatpush2.msra.mxu0 0.0
    %2494 = vmatprep.subr.mxu0 0.0
    %2495 = vmatpush2.msra.mxu0 0.0
    %2496 = vmatprep.subr.mxu0 0.0
    %2497 = vmatpush2.msra.mxu0 0.0
    %2498 = vmatprep.subr.mxu0 0.0
    %2499 = vmatpush2.msra.mxu0 0.0
    %2500 = vmatprep.subr.mxu0 0.0
    %2501 = vmatpush2.msra.mxu0 0.0
    %2502 = vmatprep.subr.mxu0 0.0
    %2503 = vmatpush2.msra.mxu0 0.0
    %2504 = vmatprep.subr.mxu0 0.0
    %2505 = vmatpush2.msra.mxu0 0.0
    %2506 = vmatprep.subr.mxu0 0.0
    %2507 = vmatpush2.msra.mxu0 0.0
    %2508 = vmatprep.subr.mxu0 0.0
    %2509 = vmatpush2.msra.mxu0 0.0
    %2510 = vmatprep.subr.mxu0 0.0
    %2511 = vmatpush2.msra.mxu0 0.0
    %2512 = vmatprep.subr.mxu0 0.0
    %2513 = vmatpush2.msra.mxu0 0.0
    %2514 = vmatprep.mubr.f32.mxu0 0.0
    %v2515 = vand.u32 %v1601, 4294901760
    %2516 = vmatmul.mubr.f32.gmra.mxu0 %v2515
    %v2517 = vpop.f32.mrf.mxu0
    %v2518 = vadd.f32 %v2435, %v2517
    %v2519 = vpop.f32.mrf.mxu0
    %2520 = vdwg.mxu0
    %2521 = vmatprep.subr.mxu0 0.0
    %2522 = vmatpush1.msra.mxu0 0.0
    %2523 = vmatprep.subr.mxu0 0.0
    %2524 = vmatpush1.msra.mxu0 0.0
    %2525 = vmatprep.subr.mxu0 0.0
    %2526 = vmatpush1.msra.mxu0 0.0
    %2527 = vmatprep.subr.mxu0 0.0
    %2528 = vmatpush1.msra.mxu0 0.0
    %2529 = vmatprep.subr.mxu0 0.0
    %2530 = vmatpush1.msra.mxu0 0.0
    %2531 = vmatprep.subr.mxu0 0.0
    %2532 = vmatpush1.msra.mxu0 0.0
    %2533 = vmatprep.subr.mxu0 0.0
    %2534 = vmatpush1.msra.mxu0 0.0
    %2535 = vmatprep.subr.mxu0 0.0
    %2536 = vmatpush1.msra.mxu0 0.0
    %2537 = vmatprep.subr.mxu0 0.0
    %2538 = vmatpush1.msra.mxu0 0.0
    %2539 = vmatprep.subr.mxu0 0.0
    %2540 = vmatpush1.msra.mxu0 0.0
    %2541 = vmatprep.subr.mxu0 0.0
    %2542 = vmatpush1.msra.mxu0 0.0
    %2543 = vmatprep.subr.mxu0 0.0
    %2544 = vmatpush1.msra.mxu0 0.0
    %2545 = vmatprep.subr.mxu0 0.0
    %v2546 = vand.u32 %v1597, 4294901760
    %2547 = vmatpush1.msra.mxu0 %v2546
    %2548 = vmatprep.subr.mxu0 0.0
    %v2549 = vand.u32 %v1596, 4294901760
    %2550 = vmatpush1.msra.mxu0 %v2549
    %2551 = vmatprep.subr.mxu0 0.0
    %v2552 = vand.u32 %v1595, 4294901760
    %2553 = vmatpush1.msra.mxu0 %v2552
    %2554 = vmatprep.subr.mxu0 0.0
    %v2555 = vand.u32 %v1594, 4294901760
    %2556 = vmatpush1.msra.mxu0 %v2555
    %2557 = vmatprep.subr.mxu0 0.0
    %2558 = vmatpush2.msra.mxu0 0.0
    %2559 = vmatprep.subr.mxu0 0.0
    %2560 = vmatpush2.msra.mxu0 0.0
    %2561 = vmatprep.subr.mxu0 0.0
    %2562 = vmatpush2.msra.mxu0 0.0
    %2563 = vmatprep.subr.mxu0 0.0
    %2564 = vmatpush2.msra.mxu0 0.0
    %2565 = vmatprep.subr.mxu0 0.0
    %2566 = vmatpush2.msra.mxu0 0.0
    %2567 = vmatprep.subr.mxu0 0.0
    %2568 = vmatpush2.msra.mxu0 0.0
    %2569 = vmatprep.subr.mxu0 0.0
    %2570 = vmatpush2.msra.mxu0 0.0
    %2571 = vmatprep.subr.mxu0 0.0
    %2572 = vmatpush2.msra.mxu0 0.0
    %2573 = vmatprep.subr.mxu0 0.0
    %2574 = vmatpush2.msra.mxu0 0.0
    %2575 = vmatprep.subr.mxu0 0.0
    %2576 = vmatpush2.msra.mxu0 0.0
    %2577 = vmatprep.subr.mxu0 0.0
    %2578 = vmatpush2.msra.mxu0 0.0
    %2579 = vmatprep.subr.mxu0 0.0
    %2580 = vmatpush2.msra.mxu0 0.0
    %2581 = vmatprep.subr.mxu0 0.0
    %2582 = vmatpush2.msra.mxu0 0.0
    %2583 = vmatprep.subr.mxu0 0.0
    %2584 = vmatpush2.msra.mxu0 0.0
    %2585 = vmatprep.subr.mxu0 0.0
    %2586 = vmatpush2.msra.mxu0 0.0
    %2587 = vmatprep.subr.mxu0 0.0
    %2588 = vmatpush2.msra.mxu0 0.0
    %2589 = vmatprep.mubr.f32.mxu0 0.0
    %v2590 = vand.u32 %v1601, 4294901760
    %2591 = vmatmul.mubr.f32.gmra.mxu0 %v2590
    %v2592 = vpop.f32.mrf.mxu0
    %v2593 = vadd.f32 %v2518, %v2592
    %v2594 = vpop.f32.mrf.mxu0
    %2595 = vdwg.mxu0
    %v2597 = vrot.slane %v2593, 2
    %v2599 = vadd.f32 %v1588, %v2597
    %v2600 = vmul.f32 %v2599, 0.5
    %v2601 = vtanh.pop %v2600
    %v2602 = vadd.f32 %v2601, 1.0
    %v2603 = vmul.f32 %v2602, 0.5
    %v2604 = vtanh.pop %v2599
    %v2605 = vmul.f32 %v2603, 0.0
    %2607 = vrot.lane.b32.xlu0 %v2604, 64
    %v2608 = vpop.permute.xlu0 %2607
    %v2610 = vmul.f32 %v2603, %v2608
    %2612 = vrot.lane.b32.xlu0 %v2610, 32
    %v2613 = vpop.permute.xlu0 %2612
    %v2615 = vadd.f32 %v2605, %v2613
    %v2616 = vtanh.pop %v2615
    %2618 = vrot.lane.b32.xlu0 %v2616, 64
    %v2619 = vpop.permute.xlu0 %2618
    %v2621 = vmul.f32 %v2603, %v2619
    %vm2622 = vcmp.gt.s32.totalorder %v1598, 0
    %vm2623 = vcmp.gt.s32.totalorder %v1598, 7
    %v2624 = vsel %vm2622, 1, 0
    %2625 = vset.pattern.permute.xlu0 0
    %2626 = vperm.xlu0 %2625, %v2624
    %v2627 = vpop.permute.xlu0 %2626
    %vm2628 = vcmp.eq.s32.totalorder %v2627, 1
    %v2629 = vsel %vm2628, %v2110, 0.0
    %2631 = vrot.lane.b32.xlu0 %v2629, 32
    %v2632 = vpop.permute.xlu0 %2631
    %vm2634 = vcmask 254976
    %2635 = vst.msk [vmem:[#allocation2] sm:$0x3] %vm2634, %v2632
    %v2636 = vsel %vm2623, 1, 0
    %2637 = vset.pattern.permute.xlu0 0
    %2638 = vperm.xlu0 %2637, %v2636
    %v2639 = vpop.permute.xlu0 %2638
    %vm2640 = vcmp.eq.s32.totalorder %v2639, 1
    %v2642 = vrot.slane %v2621, 6
    %2643 = vrot.lane.b32.xlu0 %v2642, 32
    %v2644 = vpop.permute.xlu0 %2643
    %v2646 = vsel %vm2640, %v2644, 0.0
    %2648 = vrot.lane.b32.xlu0 %v2646, 32
    %v2649 = vpop.permute.xlu0 %2648
    %s2651 = scalar_lea.vmem [#allocation2], 14
    %vm2652 = vcmask 517376
    %2653 = vst.msk [vmem:[%s2651] sm:$0x3] %vm2652, %v2649
    %v2654 = vsel %vm2628, %v2104, 0.0
    %v2656 = vrot.slane %v2615, 6
    %2657 = vrot.lane.b32.xlu0 %v2656, 96
    %v2658 = vpop.permute.xlu0 %2657
    %v2660 = vsel %vm2640, %v2658, 0.0
    %v2661 = vsel %vm1599, %v2632, 0
    %2663 = vmatprep.subr.mxu0 0.0
    %2664 = vmatpush1.msra.mxu0 0.0
    %2665 = vmatprep.subr.mxu0 0.0
    %2666 = vmatpush1.msra.mxu0 0.0
    %2667 = vmatprep.subr.mxu0 0.0
    %2668 = vmatpush1.msra.mxu0 0.0
    %2669 = vmatprep.subr.mxu0 0.0
    %2670 = vmatpush1.msra.mxu0 0.0
    %2671 = vmatprep.subr.mxu0 0.0
    %2672 = vmatpush1.msra.mxu0 0.0
    %2673 = vmatprep.subr.mxu0 0.0
    %2674 = vmatpush1.msra.mxu0 0.0
    %2675 = vmatprep.subr.mxu0 0.0
    %2676 = vmatpush1.msra.mxu0 0.0
    %2677 = vmatprep.subr.mxu0 0.0
    %2678 = vmatpush1.msra.mxu0 0.0
    %2679 = vmatprep.subr.mxu0 0.0
    %2680 = vmatpush1.msra.mxu0 0.0
    %2681 = vmatprep.subr.mxu0 0.0
    %2682 = vmatpush1.msra.mxu0 0.0
    %2683 = vmatprep.subr.mxu0 0.0
    %2684 = vmatpush1.msra.mxu0 0.0
    %2685 = vmatprep.subr.mxu0 0.0
    %2686 = vmatpush1.msra.mxu0 0.0
    %2687 = vmatprep.subr.mxu0 0.0
    %v2688 = vand.u32 %v1593, 4294901760
    %2689 = vmatpush1.msra.mxu0 %v2688
    %2690 = vmatprep.subr.mxu0 0.0
    %v2691 = vand.u32 %v1592, 4294901760
    %2692 = vmatpush1.msra.mxu0 %v2691
    %2693 = vmatprep.subr.mxu0 0.0
    %v2694 = vand.u32 %v1591, 4294901760
    %2695 = vmatpush1.msra.mxu0 %v2694
    %2696 = vmatprep.subr.mxu0 0.0
    %v2697 = vand.u32 %v1590, 4294901760
    %2698 = vmatpush1.msra.mxu0 %v2697
    %2699 = vmatprep.subr.mxu0 0.0
    %2700 = vmatpush2.msra.mxu0 0.0
    %2701 = vmatprep.subr.mxu0 0.0
    %2702 = vmatpush2.msra.mxu0 0.0
    %2703 = vmatprep.subr.mxu0 0.0
    %2704 = vmatpush2.msra.mxu0 0.0
    %2705 = vmatprep.subr.mxu0 0.0
    %2706 = vmatpush2.msra.mxu0 0.0
    %2707 = vmatprep.subr.mxu0 0.0
    %2708 = vmatpush2.msra.mxu0 0.0
    %2709 = vmatprep.subr.mxu0 0.0
    %2710 = vmatpush2.msra.mxu0 0.0
    %2711 = vmatprep.subr.mxu0 0.0
    %2712 = vmatpush2.msra.mxu0 0.0
    %2713 = vmatprep.subr.mxu0 0.0
    %2714 = vmatpush2.msra.mxu0 0.0
    %2715 = vmatprep.subr.mxu0 0.0
    %2716 = vmatpush2.msra.mxu0 0.0
    %2717 = vmatprep.subr.mxu0 0.0
    %2718 = vmatpush2.msra.mxu0 0.0
    %2719 = vmatprep.subr.mxu0 0.0
    %2720 = vmatpush2.msra.mxu0 0.0
    %2721 = vmatprep.subr.mxu0 0.0
    %2722 = vmatpush2.msra.mxu0 0.0
    %2723 = vmatprep.subr.mxu0 0.0
    %2724 = vmatpush2.msra.mxu0 0.0
    %2725 = vmatprep.subr.mxu0 0.0
    %2726 = vmatpush2.msra.mxu0 0.0
    %2727 = vmatprep.subr.mxu0 0.0
    %2728 = vmatpush2.msra.mxu0 0.0
    %2729 = vmatprep.subr.mxu0 0.0
    %2730 = vmatpush2.msra.mxu0 0.0
    %2731 = vmatprep.mubr.f32.mxu0 0.0
    %v2732 = vand.u32 %v2661, 4294901760
    %v2733 = vsub.f32 %v2661, %v2732
    %v2734 = vand.u32 %v2733, 4294901760
    %v2735 = vsub.f32 %v2733, %v2734
    %v2736 = vand.u32 %v2735, 4294901760
    %2737 = vmatmul.mubr.f32.gmra.mxu0 %v2736
    %v2738 = vpop.f32.mrf.mxu0
    %v2739 = vadd.f32 0.0, %v2738
    %v2740 = vpop.f32.mrf.mxu0
    %2741 = vdwg.mxu0
    %2742 = vmatprep.subr.mxu0 0.0
    %2743 = vmatpush1.msra.mxu0 0.0
    %2744 = vmatprep.subr.mxu0 0.0
    %2745 = vmatpush1.msra.mxu0 0.0
    %2746 = vmatprep.subr.mxu0 0.0
    %2747 = vmatpush1.msra.mxu0 0.0
    %2748 = vmatprep.subr.mxu0 0.0
    %2749 = vmatpush1.msra.mxu0 0.0
    %2750 = vmatprep.subr.mxu0 0.0
    %2751 = vmatpush1.msra.mxu0 0.0
    %2752 = vmatprep.subr.mxu0 0.0
    %2753 = vmatpush1.msra.mxu0 0.0
    %2754 = vmatprep.subr.mxu0 0.0
    %2755 = vmatpush1.msra.mxu0 0.0
    %2756 = vmatprep.subr.mxu0 0.0
    %2757 = vmatpush1.msra.mxu0 0.0
    %2758 = vmatprep.subr.mxu0 0.0
    %2759 = vmatpush1.msra.mxu0 0.0
    %2760 = vmatprep.subr.mxu0 0.0
    %2761 = vmatpush1.msra.mxu0 0.0
    %2762 = vmatprep.subr.mxu0 0.0
    %2763 = vmatpush1.msra.mxu0 0.0
    %2764 = vmatprep.subr.mxu0 0.0
    %2765 = vmatpush1.msra.mxu0 0.0
    %2766 = vmatprep.subr.mxu0 0.0
    %v2767 = vand.u32 %v1593, 4294901760
    %v2768 = vsub.f32 %v1593, %v2767
    %v2769 = vand.u32 %v2768, 4294901760
    %v2770 = vsub.f32 %v2768, %v2769
    %v2771 = vand.u32 %v2770, 4294901760
    %2772 = vmatpush1.msra.mxu0 %v2771
    %2773 = vmatprep.subr.mxu0 0.0
    %v2774 = vand.u32 %v1592, 4294901760
    %v2775 = vsub.f32 %v1592, %v2774
    %v2776 = vand.u32 %v2775, 4294901760
    %v2777 = vsub.f32 %v2775, %v2776
    %v2778 = vand.u32 %v2777, 4294901760
    %2779 = vmatpush1.msra.mxu0 %v2778
    %2780 = vmatprep.subr.mxu0 0.0
    %v2781 = vand.u32 %v1591, 4294901760
    %v2782 = vsub.f32 %v1591, %v2781
    %v2783 = vand.u32 %v2782, 4294901760
    %v2784 = vsub.f32 %v2782, %v2783
    %v2785 = vand.u32 %v2784, 4294901760
    %2786 = vmatpush1.msra.mxu0 %v2785
    %2787 = vmatprep.subr.mxu0 0.0
    %v2788 = vand.u32 %v1590, 4294901760
    %v2789 = vsub.f32 %v1590, %v2788
    %v2790 = vand.u32 %v2789, 4294901760
    %v2791 = vsub.f32 %v2789, %v2790
    %v2792 = vand.u32 %v2791, 4294901760
    %2793 = vmatpush1.msra.mxu0 %v2792
    %2794 = vmatprep.subr.mxu0 0.0
    %2795 = vmatpush2.msra.mxu0 0.0
    %2796 = vmatprep.subr.mxu0 0.0
    %2797 = vmatpush2.msra.mxu0 0.0
    %2798 = vmatprep.subr.mxu0 0.0
    %2799 = vmatpush2.msra.mxu0 0.0
    %2800 = vmatprep.subr.mxu0 0.0
    %2801 = vmatpush2.msra.mxu0 0.0
    %2802 = vmatprep.subr.mxu0 0.0
    %2803 = vmatpush2.msra.mxu0 0.0
    %2804 = vmatprep.subr.mxu0 0.0
    %2805 = vmatpush2.msra.mxu0 0.0
    %2806 = vmatprep.subr.mxu0 0.0
    %2807 = vmatpush2.msra.mxu0 0.0
    %2808 = vmatprep.subr.mxu0 0.0
    %2809 = vmatpush2.msra.mxu0 0.0
    %2810 = vmatprep.subr.mxu0 0.0
    %2811 = vmatpush2.msra.mxu0 0.0
    %2812 = vmatprep.subr.mxu0 0.0
    %2813 = vmatpush2.msra.mxu0 0.0
    %2814 = vmatprep.subr.mxu0 0.0
    %2815 = vmatpush2.msra.mxu0 0.0
    %2816 = vmatprep.subr.mxu0 0.0
    %2817 = vmatpush2.msra.mxu0 0.0
    %2818 = vmatprep.subr.mxu0 0.0
    %2819 = vmatpush2.msra.mxu0 0.0
    %2820 = vmatprep.subr.mxu0 0.0
    %2821 = vmatpush2.msra.mxu0 0.0
    %2822 = vmatprep.subr.mxu0 0.0
    %2823 = vmatpush2.msra.mxu0 0.0
    %2824 = vmatprep.subr.mxu0 0.0
    %2825 = vmatpush2.msra.mxu0 0.0
    %2826 = vmatprep.mubr.f32.mxu0 0.0
    %v2827 = vand.u32 %v2661, 4294901760
    %2828 = vmatmul.mubr.f32.gmra.mxu0 %v2827
    %v2829 = vpop.f32.mrf.mxu0
    %v2830 = vadd.f32 %v2739, %v2829
    %v2831 = vpop.f32.mrf.mxu0
    %2832 = vdwg.mxu0
    %2833 = vmatprep.subr.mxu0 0.0
    %2834 = vmatpush1.msra.mxu0 0.0
    %2835 = vmatprep.subr.mxu0 0.0
    %2836 = vmatpush1.msra.mxu0 0.0
    %2837 = vmatprep.subr.mxu0 0.0
    %2838 = vmatpush1.msra.mxu0 0.0
    %2839 = vmatprep.subr.mxu0 0.0
    %2840 = vmatpush1.msra.mxu0 0.0
    %2841 = vmatprep.subr.mxu0 0.0
    %2842 = vmatpush1.msra.mxu0 0.0
    %2843 = vmatprep.subr.mxu0 0.0
    %2844 = vmatpush1.msra.mxu0 0.0
    %2845 = vmatprep.subr.mxu0 0.0
    %2846 = vmatpush1.msra.mxu0 0.0
    %2847 = vmatprep.subr.mxu0 0.0
    %2848 = vmatpush1.msra.mxu0 0.0
    %2849 = vmatprep.subr.mxu0 0.0
    %2850 = vmatpush1.msra.mxu0 0.0
    %2851 = vmatprep.subr.mxu0 0.0
    %2852 = vmatpush1.msra.mxu0 0.0
    %2853 = vmatprep.subr.mxu0 0.0
    %2854 = vmatpush1.msra.mxu0 0.0
    %2855 = vmatprep.subr.mxu0 0.0
    %2856 = vmatpush1.msra.mxu0 0.0
    %2857 = vmatprep.subr.mxu0 0.0
    %v2858 = vand.u32 %v1593, 4294901760
    %v2859 = vsub.f32 %v1593, %v2858
    %2860 = vmatpush1.msra.mxu0 %v2859
    %2861 = vmatprep.subr.mxu0 0.0
    %v2862 = vand.u32 %v1592, 4294901760
    %v2863 = vsub.f32 %v1592, %v2862
    %2864 = vmatpush1.msra.mxu0 %v2863
    %2865 = vmatprep.subr.mxu0 0.0
    %v2866 = vand.u32 %v1591, 4294901760
    %v2867 = vsub.f32 %v1591, %v2866
    %2868 = vmatpush1.msra.mxu0 %v2867
    %2869 = vmatprep.subr.mxu0 0.0
    %v2870 = vand.u32 %v1590, 4294901760
    %v2871 = vsub.f32 %v1590, %v2870
    %2872 = vmatpush1.msra.mxu0 %v2871
    %2873 = vmatprep.subr.mxu0 0.0
    %2874 = vmatpush2.msra.mxu0 0.0
    %2875 = vmatprep.subr.mxu0 0.0
    %2876 = vmatpush2.msra.mxu0 0.0
    %2877 = vmatprep.subr.mxu0 0.0
    %2878 = vmatpush2.msra.mxu0 0.0
    %2879 = vmatprep.subr.mxu0 0.0
    %2880 = vmatpush2.msra.mxu0 0.0
    %2881 = vmatprep.subr.mxu0 0.0
    %2882 = vmatpush2.msra.mxu0 0.0
    %2883 = vmatprep.subr.mxu0 0.0
    %2884 = vmatpush2.msra.mxu0 0.0
    %2885 = vmatprep.subr.mxu0 0.0
    %2886 = vmatpush2.msra.mxu0 0.0
    %2887 = vmatprep.subr.mxu0 0.0
    %2888 = vmatpush2.msra.mxu0 0.0
    %2889 = vmatprep.subr.mxu0 0.0
    %2890 = vmatpush2.msra.mxu0 0.0
    %2891 = vmatprep.subr.mxu0 0.0
    %2892 = vmatpush2.msra.mxu0 0.0
    %2893 = vmatprep.subr.mxu0 0.0
    %2894 = vmatpush2.msra.mxu0 0.0
    %2895 = vmatprep.subr.mxu0 0.0
    %2896 = vmatpush2.msra.mxu0 0.0
    %2897 = vmatprep.subr.mxu0 0.0
    %2898 = vmatpush2.msra.mxu0 0.0
    %2899 = vmatprep.subr.mxu0 0.0
    %2900 = vmatpush2.msra.mxu0 0.0
    %2901 = vmatprep.subr.mxu0 0.0
    %2902 = vmatpush2.msra.mxu0 0.0
    %2903 = vmatprep.subr.mxu0 0.0
    %2904 = vmatpush2.msra.mxu0 0.0
    %2905 = vmatprep.mubr.f32.mxu0 0.0
    %v2906 = vand.u32 %v2661, 4294901760
    %v2907 = vsub.f32 %v2661, %v2906
    %2908 = vmatmul.mubr.f32.gmra.mxu0 %v2907
    %v2909 = vpop.f32.mrf.mxu0
    %v2910 = vadd.f32 %v2830, %v2909
    %v2911 = vpop.f32.mrf.mxu0
    %2912 = vdwg.mxu0
    %2913 = vmatprep.subr.mxu0 0.0
    %2914 = vmatpush1.msra.mxu0 0.0
    %2915 = vmatprep.subr.mxu0 0.0
    %2916 = vmatpush1.msra.mxu0 0.0
    %2917 = vmatprep.subr.mxu0 0.0
    %2918 = vmatpush1.msra.mxu0 0.0
    %2919 = vmatprep.subr.mxu0 0.0
    %2920 = vmatpush1.msra.mxu0 0.0
    %2921 = vmatprep.subr.mxu0 0.0
    %2922 = vmatpush1.msra.mxu0 0.0
    %2923 = vmatprep.subr.mxu0 0.0
    %2924 = vmatpush1.msra.mxu0 0.0
    %2925 = vmatprep.subr.mxu0 0.0
    %2926 = vmatpush1.msra.mxu0 0.0
    %2927 = vmatprep.subr.mxu0 0.0
    %2928 = vmatpush1.msra.mxu0 0.0
    %2929 = vmatprep.subr.mxu0 0.0
    %2930 = vmatpush1.msra.mxu0 0.0
    %2931 = vmatprep.subr.mxu0 0.0
    %2932 = vmatpush1.msra.mxu0 0.0
    %2933 = vmatprep.subr.mxu0 0.0
    %2934 = vmatpush1.msra.mxu0 0.0
    %2935 = vmatprep.subr.mxu0 0.0
    %2936 = vmatpush1.msra.mxu0 0.0
    %2937 = vmatprep.subr.mxu0 0.0
    %v2938 = vand.u32 %v1593, 4294901760
    %2939 = vmatpush1.msra.mxu0 %v2938
    %2940 = vmatprep.subr.mxu0 0.0
    %v2941 = vand.u32 %v1592, 4294901760
    %2942 = vmatpush1.msra.mxu0 %v2941
    %2943 = vmatprep.subr.mxu0 0.0
    %v2944 = vand.u32 %v1591, 4294901760
    %2945 = vmatpush1.msra.mxu0 %v2944
    %2946 = vmatprep.subr.mxu0 0.0
    %v2947 = vand.u32 %v1590, 4294901760
    %2948 = vmatpush1.msra.mxu0 %v2947
    %2949 = vmatprep.subr.mxu0 0.0
    %2950 = vmatpush2.msra.mxu0 0.0
    %2951 = vmatprep.subr.mxu0 0.0
    %2952 = vmatpush2.msra.mxu0 0.0
    %2953 = vmatprep.subr.mxu0 0.0
    %2954 = vmatpush2.msra.mxu0 0.0
    %2955 = vmatprep.subr.mxu0 0.0
    %2956 = vmatpush2.msra.mxu0 0.0
    %2957 = vmatprep.subr.mxu0 0.0
    %2958 = vmatpush2.msra.mxu0 0.0
    %2959 = vmatprep.subr.mxu0 0.0
    %2960 = vmatpush2.msra.mxu0 0.0
    %2961 = vmatprep.subr.mxu0 0.0
    %2962 = vmatpush2.msra.mxu0 0.0
    %2963 = vmatprep.subr.mxu0 0.0
    %2964 = vmatpush2.msra.mxu0 0.0
    %2965 = vmatprep.subr.mxu0 0.0
    %2966 = vmatpush2.msra.mxu0 0.0
    %2967 = vmatprep.subr.mxu0 0.0
    %2968 = vmatpush2.msra.mxu0 0.0
    %2969 = vmatprep.subr.mxu0 0.0
    %2970 = vmatpush2.msra.mxu0 0.0
    %2971 = vmatprep.subr.mxu0 0.0
    %2972 = vmatpush2.msra.mxu0 0.0
    %2973 = vmatprep.subr.mxu0 0.0
    %2974 = vmatpush2.msra.mxu0 0.0
    %2975 = vmatprep.subr.mxu0 0.0
    %2976 = vmatpush2.msra.mxu0 0.0
    %2977 = vmatprep.subr.mxu0 0.0
    %2978 = vmatpush2.msra.mxu0 0.0
    %2979 = vmatprep.subr.mxu0 0.0
    %2980 = vmatpush2.msra.mxu0 0.0
    %2981 = vmatprep.mubr.f32.mxu0 0.0
    %v2982 = vand.u32 %v2661, 4294901760
    %v2983 = vsub.f32 %v2661, %v2982
    %v2984 = vand.u32 %v2983, 4294901760
    %2985 = vmatmul.mubr.f32.gmra.mxu0 %v2984
    %v2986 = vpop.f32.mrf.mxu0
    %v2987 = vadd.f32 %v2910, %v2986
    %v2988 = vpop.f32.mrf.mxu0
    %2989 = vdwg.mxu0
    %2990 = vmatprep.subr.mxu0 0.0
    %2991 = vmatpush1.msra.mxu0 0.0
    %2992 = vmatprep.subr.mxu0 0.0
    %2993 = vmatpush1.msra.mxu0 0.0
    %2994 = vmatprep.subr.mxu0 0.0
    %2995 = vmatpush1.msra.mxu0 0.0
    %2996 = vmatprep.subr.mxu0 0.0
    %2997 = vmatpush1.msra.mxu0 0.0
    %2998 = vmatprep.subr.mxu0 0.0
    %2999 = vmatpush1.msra.mxu0 0.0
    %3000 = vmatprep.subr.mxu0 0.0
    %3001 = vmatpush1.msra.mxu0 0.0
    %3002 = vmatprep.subr.mxu0 0.0
    %3003 = vmatpush1.msra.mxu0 0.0
    %3004 = vmatprep.subr.mxu0 0.0
    %3005 = vmatpush1.msra.mxu0 0.0
    %3006 = vmatprep.subr.mxu0 0.0
    %3007 = vmatpush1.msra.mxu0 0.0
    %3008 = vmatprep.subr.mxu0 0.0
    %3009 = vmatpush1.msra.mxu0 0.0
    %3010 = vmatprep.subr.mxu0 0.0
    %3011 = vmatpush1.msra.mxu0 0.0
    %3012 = vmatprep.subr.mxu0 0.0
    %3013 = vmatpush1.msra.mxu0 0.0
    %3014 = vmatprep.subr.mxu0 0.0
    %v3015 = vand.u32 %v1593, 4294901760
    %v3016 = vsub.f32 %v1593, %v3015
    %v3017 = vand.u32 %v3016, 4294901760
    %3018 = vmatpush1.msra.mxu0 %v3017
    %3019 = vmatprep.subr.mxu0 0.0
    %v3020 = vand.u32 %v1592, 4294901760
    %v3021 = vsub.f32 %v1592, %v3020
    %v3022 = vand.u32 %v3021, 4294901760
    %3023 = vmatpush1.msra.mxu0 %v3022
    %3024 = vmatprep.subr.mxu0 0.0
    %v3025 = vand.u32 %v1591, 4294901760
    %v3026 = vsub.f32 %v1591, %v3025
    %v3027 = vand.u32 %v3026, 4294901760
    %3028 = vmatpush1.msra.mxu0 %v3027
    %3029 = vmatprep.subr.mxu0 0.0
    %v3030 = vand.u32 %v1590, 4294901760
    %v3031 = vsub.f32 %v1590, %v3030
    %v3032 = vand.u32 %v3031, 4294901760
    %3033 = vmatpush1.msra.mxu0 %v3032
    %3034 = vmatprep.subr.mxu0 0.0
    %3035 = vmatpush2.msra.mxu0 0.0
    %3036 = vmatprep.subr.mxu0 0.0
    %3037 = vmatpush2.msra.mxu0 0.0
    %3038 = vmatprep.subr.mxu0 0.0
    %3039 = vmatpush2.msra.mxu0 0.0
    %3040 = vmatprep.subr.mxu0 0.0
    %3041 = vmatpush2.msra.mxu0 0.0
    %3042 = vmatprep.subr.mxu0 0.0
    %3043 = vmatpush2.msra.mxu0 0.0
    %3044 = vmatprep.subr.mxu0 0.0
    %3045 = vmatpush2.msra.mxu0 0.0
    %3046 = vmatprep.subr.mxu0 0.0
    %3047 = vmatpush2.msra.mxu0 0.0
    %3048 = vmatprep.subr.mxu0 0.0
    %3049 = vmatpush2.msra.mxu0 0.0
    %3050 = vmatprep.subr.mxu0 0.0
    %3051 = vmatpush2.msra.mxu0 0.0
    %3052 = vmatprep.subr.mxu0 0.0
    %3053 = vmatpush2.msra.mxu0 0.0
    %3054 = vmatprep.subr.mxu0 0.0
    %3055 = vmatpush2.msra.mxu0 0.0
    %3056 = vmatprep.subr.mxu0 0.0
    %3057 = vmatpush2.msra.mxu0 0.0
    %3058 = vmatprep.subr.mxu0 0.0
    %3059 = vmatpush2.msra.mxu0 0.0
    %3060 = vmatprep.subr.mxu0 0.0
    %3061 = vmatpush2.msra.mxu0 0.0
    %3062 = vmatprep.subr.mxu0 0.0
    %3063 = vmatpush2.msra.mxu0 0.0
    %3064 = vmatprep.subr.mxu0 0.0
    %3065 = vmatpush2.msra.mxu0 0.0
    %3066 = vmatprep.mubr.f32.mxu0 0.0
    %v3067 = vand.u32 %v2661, 4294901760
    %3068 = vmatmul.mubr.f32.gmra.mxu0 %v3067
    %v3069 = vpop.f32.mrf.mxu0
    %v3070 = vadd.f32 %v2987, %v3069
    %v3071 = vpop.f32.mrf.mxu0
    %3072 = vdwg.mxu0
    %3073 = vmatprep.subr.mxu0 0.0
    %3074 = vmatpush1.msra.mxu0 0.0
    %3075 = vmatprep.subr.mxu0 0.0
    %3076 = vmatpush1.msra.mxu0 0.0
    %3077 = vmatprep.subr.mxu0 0.0
    %3078 = vmatpush1.msra.mxu0 0.0
    %3079 = vmatprep.subr.mxu0 0.0
    %3080 = vmatpush1.msra.mxu0 0.0
    %3081 = vmatprep.subr.mxu0 0.0
    %3082 = vmatpush1.msra.mxu0 0.0
    %3083 = vmatprep.subr.mxu0 0.0
    %3084 = vmatpush1.msra.mxu0 0.0
    %3085 = vmatprep.subr.mxu0 0.0
    %3086 = vmatpush1.msra.mxu0 0.0
    %3087 = vmatprep.subr.mxu0 0.0
    %3088 = vmatpush1.msra.mxu0 0.0
    %3089 = vmatprep.subr.mxu0 0.0
    %3090 = vmatpush1.msra.mxu0 0.0
    %3091 = vmatprep.subr.mxu0 0.0
    %3092 = vmatpush1.msra.mxu0 0.0
    %3093 = vmatprep.subr.mxu0 0.0
    %3094 = vmatpush1.msra.mxu0 0.0
    %3095 = vmatprep.subr.mxu0 0.0
    %3096 = vmatpush1.msra.mxu0 0.0
    %3097 = vmatprep.subr.mxu0 0.0
    %v3098 = vand.u32 %v1593, 4294901760
    %3099 = vmatpush1.msra.mxu0 %v3098
    %3100 = vmatprep.subr.mxu0 0.0
    %v3101 = vand.u32 %v1592, 4294901760
    %3102 = vmatpush1.msra.mxu0 %v3101
    %3103 = vmatprep.subr.mxu0 0.0
    %v3104 = vand.u32 %v1591, 4294901760
    %3105 = vmatpush1.msra.mxu0 %v3104
    %3106 = vmatprep.subr.mxu0 0.0
    %v3107 = vand.u32 %v1590, 4294901760
    %3108 = vmatpush1.msra.mxu0 %v3107
    %3109 = vmatprep.subr.mxu0 0.0
    %3110 = vmatpush2.msra.mxu0 0.0
    %3111 = vmatprep.subr.mxu0 0.0
    %3112 = vmatpush2.msra.mxu0 0.0
    %3113 = vmatprep.subr.mxu0 0.0
    %3114 = vmatpush2.msra.mxu0 0.0
    %3115 = vmatprep.subr.mxu0 0.0
    %3116 = vmatpush2.msra.mxu0 0.0
    %3117 = vmatprep.subr.mxu0 0.0
    %3118 = vmatpush2.msra.mxu0 0.0
    %3119 = vmatprep.subr.mxu0 0.0
    %3120 = vmatpush2.msra.mxu0 0.0
    %3121 = vmatprep.subr.mxu0 0.0
    %3122 = vmatpush2.msra.mxu0 0.0
    %3123 = vmatprep.subr.mxu0 0.0
    %3124 = vmatpush2.msra.mxu0 0.0
    %3125 = vmatprep.subr.mxu0 0.0
    %3126 = vmatpush2.msra.mxu0 0.0
    %3127 = vmatprep.subr.mxu0 0.0
    %3128 = vmatpush2.msra.mxu0 0.0
    %3129 = vmatprep.subr.mxu0 0.0
    %3130 = vmatpush2.msra.mxu0 0.0
    %3131 = vmatprep.subr.mxu0 0.0
    %3132 = vmatpush2.msra.mxu0 0.0
    %3133 = vmatprep.subr.mxu0 0.0
    %3134 = vmatpush2.msra.mxu0 0.0
    %3135 = vmatprep.subr.mxu0 0.0
    %3136 = vmatpush2.msra.mxu0 0.0
    %3137 = vmatprep.subr.mxu0 0.0
    %3138 = vmatpush2.msra.mxu0 0.0
    %3139 = vmatprep.subr.mxu0 0.0
    %3140 = vmatpush2.msra.mxu0 0.0
    %3141 = vmatprep.mubr.f32.mxu0 0.0
    %v3142 = vand.u32 %v2661, 4294901760
    %3143 = vmatmul.mubr.f32.gmra.mxu0 %v3142
    %v3144 = vpop.f32.mrf.mxu0
    %v3145 = vadd.f32 %v3070, %v3144
    %v3146 = vpop.f32.mrf.mxu0
    %3147 = vdwg.mxu0
    %v3149 = vrot.slane %v3145, 6
    %v3151 = vadd.f32 %v1579, %v3149
    %v3152 = vmul.f32 %v3151, 0.5
    %v3153 = vtanh.pop %v3152
    %v3154 = vadd.f32 %v3153, 1.0
    %v3155 = vmul.f32 %v3154, 0.5
    %v3156 = vtanh.pop %v3151
    %v3158 = vrot.slane %v2654, 6
    %v3160 = vmul.f32 %v3155, %v3158
    %3162 = vrot.lane.b32.xlu0 %v3156, 64
    %v3163 = vpop.permute.xlu0 %3162
    %v3165 = vmul.f32 %v3155, %v3163
    %3167 = vrot.lane.b32.xlu0 %v3165, 32
    %v3168 = vpop.permute.xlu0 %3167
    %v3170 = vadd.f32 %v3160, %v3168
    %v3171 = vtanh.pop %v3170
    %3173 = vrot.lane.b32.xlu0 %v3171, 64
    %v3174 = vpop.permute.xlu0 %3173
    %v3176 = vmul.f32 %v3155, %v3174
    %v3177 = vsel %vm1599, %v2646, 0
    %3179 = vmatprep.subr.mxu0 0.0
    %3180 = vmatpush1.msra.mxu0 0.0
    %3181 = vmatprep.subr.mxu0 0.0
    %3182 = vmatpush1.msra.mxu0 0.0
    %3183 = vmatprep.subr.mxu0 0.0
    %3184 = vmatpush1.msra.mxu0 0.0
    %3185 = vmatprep.subr.mxu0 0.0
    %3186 = vmatpush1.msra.mxu0 0.0
    %3187 = vmatprep.subr.mxu0 0.0
    %3188 = vmatpush1.msra.mxu0 0.0
    %3189 = vmatprep.subr.mxu0 0.0
    %3190 = vmatpush1.msra.mxu0 0.0
    %3191 = vmatprep.subr.mxu0 0.0
    %3192 = vmatpush1.msra.mxu0 0.0
    %3193 = vmatprep.subr.mxu0 0.0
    %3194 = vmatpush1.msra.mxu0 0.0
    %3195 = vmatprep.subr.mxu0 0.0
    %3196 = vmatpush1.msra.mxu0 0.0
    %3197 = vmatprep.subr.mxu0 0.0
    %3198 = vmatpush1.msra.mxu0 0.0
    %3199 = vmatprep.subr.mxu0 0.0
    %3200 = vmatpush1.msra.mxu0 0.0
    %3201 = vmatprep.subr.mxu0 0.0
    %3202 = vmatpush1.msra.mxu0 0.0
    %3203 = vmatprep.subr.mxu0 0.0
    %v3204 = vand.u32 %v1597, 4294901760
    %3205 = vmatpush1.msra.mxu0 %v3204
    %3206 = vmatprep.subr.mxu0 0.0
    %v3207 = vand.u32 %v1596, 4294901760
    %3208 = vmatpush1.msra.mxu0 %v3207
    %3209 = vmatprep.subr.mxu0 0.0
    %v3210 = vand.u32 %v1595, 4294901760
    %3211 = vmatpush1.msra.mxu0 %v3210
    %3212 = vmatprep.subr.mxu0 0.0
    %v3213 = vand.u32 %v1594, 4294901760
    %3214 = vmatpush1.msra.mxu0 %v3213
    %3215 = vmatprep.subr.mxu0 0.0
    %3216 = vmatpush2.msra.mxu0 0.0
    %3217 = vmatprep.subr.mxu0 0.0
    %3218 = vmatpush2.msra.mxu0 0.0
    %3219 = vmatprep.subr.mxu0 0.0
    %3220 = vmatpush2.msra.mxu0 0.0
    %3221 = vmatprep.subr.mxu0 0.0
    %3222 = vmatpush2.msra.mxu0 0.0
    %3223 = vmatprep.subr.mxu0 0.0
    %3224 = vmatpush2.msra.mxu0 0.0
    %3225 = vmatprep.subr.mxu0 0.0
    %3226 = vmatpush2.msra.mxu0 0.0
    %3227 = vmatprep.subr.mxu0 0.0
    %3228 = vmatpush2.msra.mxu0 0.0
    %3229 = vmatprep.subr.mxu0 0.0
    %3230 = vmatpush2.msra.mxu0 0.0
    %3231 = vmatprep.subr.mxu0 0.0
    %3232 = vmatpush2.msra.mxu0 0.0
    %3233 = vmatprep.subr.mxu0 0.0
    %3234 = vmatpush2.msra.mxu0 0.0
    %3235 = vmatprep.subr.mxu0 0.0
    %3236 = vmatpush2.msra.mxu0 0.0
    %3237 = vmatprep.subr.mxu0 0.0
    %3238 = vmatpush2.msra.mxu0 0.0
    %3239 = vmatprep.subr.mxu0 0.0
    %3240 = vmatpush2.msra.mxu0 0.0
    %3241 = vmatprep.subr.mxu0 0.0
    %3242 = vmatpush2.msra.mxu0 0.0
    %3243 = vmatprep.subr.mxu0 0.0
    %3244 = vmatpush2.msra.mxu0 0.0
    %3245 = vmatprep.subr.mxu0 0.0
    %3246 = vmatpush2.msra.mxu0 0.0
    %3247 = vmatprep.mubr.f32.mxu0 0.0
    %v3248 = vand.u32 %v3177, 4294901760
    %v3249 = vsub.f32 %v3177, %v3248
    %v3250 = vand.u32 %v3249, 4294901760
    %v3251 = vsub.f32 %v3249, %v3250
    %v3252 = vand.u32 %v3251, 4294901760
    %3253 = vmatmul.mubr.f32.gmra.mxu0 %v3252
    %v3254 = vpop.f32.mrf.mxu0
    %v3255 = vadd.f32 0.0, %v3254
    %v3256 = vpop.f32.mrf.mxu0
    %3257 = vdwg.mxu0
    %3258 = vmatprep.subr.mxu0 0.0
    %3259 = vmatpush1.msra.mxu0 0.0
    %3260 = vmatprep.subr.mxu0 0.0
    %3261 = vmatpush1.msra.mxu0 0.0
    %3262 = vmatprep.subr.mxu0 0.0
    %3263 = vmatpush1.msra.mxu0 0.0
    %3264 = vmatprep.subr.mxu0 0.0
    %3265 = vmatpush1.msra.mxu0 0.0
    %3266 = vmatprep.subr.mxu0 0.0
    %3267 = vmatpush1.msra.mxu0 0.0
    %3268 = vmatprep.subr.mxu0 0.0
    %3269 = vmatpush1.msra.mxu0 0.0
    %3270 = vmatprep.subr.mxu0 0.0
    %3271 = vmatpush1.msra.mxu0 0.0
    %3272 = vmatprep.subr.mxu0 0.0
    %3273 = vmatpush1.msra.mxu0 0.0
    %3274 = vmatprep.subr.mxu0 0.0
    %3275 = vmatpush1.msra.mxu0 0.0
    %3276 = vmatprep.subr.mxu0 0.0
    %3277 = vmatpush1.msra.mxu0 0.0
    %3278 = vmatprep.subr.mxu0 0.0
    %3279 = vmatpush1.msra.mxu0 0.0
    %3280 = vmatprep.subr.mxu0 0.0
    %3281 = vmatpush1.msra.mxu0 0.0
    %3282 = vmatprep.subr.mxu0 0.0
    %v3283 = vand.u32 %v1597, 4294901760
    %v3284 = vsub.f32 %v1597, %v3283
    %v3285 = vand.u32 %v3284, 4294901760
    %v3286 = vsub.f32 %v3284, %v3285
    %v3287 = vand.u32 %v3286, 4294901760
    %3288 = vmatpush1.msra.mxu0 %v3287
    %3289 = vmatprep.subr.mxu0 0.0
    %v3290 = vand.u32 %v1596, 4294901760
    %v3291 = vsub.f32 %v1596, %v3290
    %v3292 = vand.u32 %v3291, 4294901760
    %v3293 = vsub.f32 %v3291, %v3292
    %v3294 = vand.u32 %v3293, 4294901760
    %3295 = vmatpush1.msra.mxu0 %v3294
    %3296 = vmatprep.subr.mxu0 0.0
    %v3297 = vand.u32 %v1595, 4294901760
    %v3298 = vsub.f32 %v1595, %v3297
    %v3299 = vand.u32 %v3298, 4294901760
    %v3300 = vsub.f32 %v3298, %v3299
    %v3301 = vand.u32 %v3300, 4294901760
    %3302 = vmatpush1.msra.mxu0 %v3301
    %3303 = vmatprep.subr.mxu0 0.0
    %v3304 = vand.u32 %v1594, 4294901760
    %v3305 = vsub.f32 %v1594, %v3304
    %v3306 = vand.u32 %v3305, 4294901760
    %v3307 = vsub.f32 %v3305, %v3306
    %v3308 = vand.u32 %v3307, 4294901760
    %3309 = vmatpush1.msra.mxu0 %v3308
    %3310 = vmatprep.subr.mxu0 0.0
    %3311 = vmatpush2.msra.mxu0 0.0
    %3312 = vmatprep.subr.mxu0 0.0
    %3313 = vmatpush2.msra.mxu0 0.0
    %3314 = vmatprep.subr.mxu0 0.0
    %3315 = vmatpush2.msra.mxu0 0.0
    %3316 = vmatprep.subr.mxu0 0.0
    %3317 = vmatpush2.msra.mxu0 0.0
    %3318 = vmatprep.subr.mxu0 0.0
    %3319 = vmatpush2.msra.mxu0 0.0
    %3320 = vmatprep.subr.mxu0 0.0
    %3321 = vmatpush2.msra.mxu0 0.0
    %3322 = vmatprep.subr.mxu0 0.0
    %3323 = vmatpush2.msra.mxu0 0.0
    %3324 = vmatprep.subr.mxu0 0.0
    %3325 = vmatpush2.msra.mxu0 0.0
    %3326 = vmatprep.subr.mxu0 0.0
    %3327 = vmatpush2.msra.mxu0 0.0
    %3328 = vmatprep.subr.mxu0 0.0
    %3329 = vmatpush2.msra.mxu0 0.0
    %3330 = vmatprep.subr.mxu0 0.0
    %3331 = vmatpush2.msra.mxu0 0.0
    %3332 = vmatprep.subr.mxu0 0.0
    %3333 = vmatpush2.msra.mxu0 0.0
    %3334 = vmatprep.subr.mxu0 0.0
    %3335 = vmatpush2.msra.mxu0 0.0
    %3336 = vmatprep.subr.mxu0 0.0
    %3337 = vmatpush2.msra.mxu0 0.0
    %3338 = vmatprep.subr.mxu0 0.0
    %3339 = vmatpush2.msra.mxu0 0.0
    %3340 = vmatprep.subr.mxu0 0.0
    %3341 = vmatpush2.msra.mxu0 0.0
    %3342 = vmatprep.mubr.f32.mxu0 0.0
    %v3343 = vand.u32 %v3177, 4294901760
    %3344 = vmatmul.mubr.f32.gmra.mxu0 %v3343
    %v3345 = vpop.f32.mrf.mxu0
    %v3346 = vadd.f32 %v3255, %v3345
    %v3347 = vpop.f32.mrf.mxu0
    %3348 = vdwg.mxu0
    %3349 = vmatprep.subr.mxu0 0.0
    %3350 = vmatpush1.msra.mxu0 0.0
    %3351 = vmatprep.subr.mxu0 0.0
    %3352 = vmatpush1.msra.mxu0 0.0
    %3353 = vmatprep.subr.mxu0 0.0
    %3354 = vmatpush1.msra.mxu0 0.0
    %3355 = vmatprep.subr.mxu0 0.0
    %3356 = vmatpush1.msra.mxu0 0.0
    %3357 = vmatprep.subr.mxu0 0.0
    %3358 = vmatpush1.msra.mxu0 0.0
    %3359 = vmatprep.subr.mxu0 0.0
    %3360 = vmatpush1.msra.mxu0 0.0
    %3361 = vmatprep.subr.mxu0 0.0
    %3362 = vmatpush1.msra.mxu0 0.0
    %3363 = vmatprep.subr.mxu0 0.0
    %3364 = vmatpush1.msra.mxu0 0.0
    %3365 = vmatprep.subr.mxu0 0.0
    %3366 = vmatpush1.msra.mxu0 0.0
    %3367 = vmatprep.subr.mxu0 0.0
    %3368 = vmatpush1.msra.mxu0 0.0
    %3369 = vmatprep.subr.mxu0 0.0
    %3370 = vmatpush1.msra.mxu0 0.0
    %3371 = vmatprep.subr.mxu0 0.0
    %3372 = vmatpush1.msra.mxu0 0.0
    %3373 = vmatprep.subr.mxu0 0.0
    %v3374 = vand.u32 %v1597, 4294901760
    %v3375 = vsub.f32 %v1597, %v3374
    %3376 = vmatpush1.msra.mxu0 %v3375
    %3377 = vmatprep.subr.mxu0 0.0
    %v3378 = vand.u32 %v1596, 4294901760
    %v3379 = vsub.f32 %v1596, %v3378
    %3380 = vmatpush1.msra.mxu0 %v3379
    %3381 = vmatprep.subr.mxu0 0.0
    %v3382 = vand.u32 %v1595, 4294901760
    %v3383 = vsub.f32 %v1595, %v3382
    %3384 = vmatpush1.msra.mxu0 %v3383
    %3385 = vmatprep.subr.mxu0 0.0
    %v3386 = vand.u32 %v1594, 4294901760
    %v3387 = vsub.f32 %v1594, %v3386
    %3388 = vmatpush1.msra.mxu0 %v3387
    %3389 = vmatprep.subr.mxu0 0.0
    %3390 = vmatpush2.msra.mxu0 0.0
    %3391 = vmatprep.subr.mxu0 0.0
    %3392 = vmatpush2.msra.mxu0 0.0
    %3393 = vmatprep.subr.mxu0 0.0
    %3394 = vmatpush2.msra.mxu0 0.0
    %3395 = vmatprep.subr.mxu0 0.0
    %3396 = vmatpush2.msra.mxu0 0.0
    %3397 = vmatprep.subr.mxu0 0.0
    %3398 = vmatpush2.msra.mxu0 0.0
    %3399 = vmatprep.subr.mxu0 0.0
    %3400 = vmatpush2.msra.mxu0 0.0
    %3401 = vmatprep.subr.mxu0 0.0
    %3402 = vmatpush2.msra.mxu0 0.0
    %3403 = vmatprep.subr.mxu0 0.0
    %3404 = vmatpush2.msra.mxu0 0.0
    %3405 = vmatprep.subr.mxu0 0.0
    %3406 = vmatpush2.msra.mxu0 0.0
    %3407 = vmatprep.subr.mxu0 0.0
    %3408 = vmatpush2.msra.mxu0 0.0
    %3409 = vmatprep.subr.mxu0 0.0
    %3410 = vmatpush2.msra.mxu0 0.0
    %3411 = vmatprep.subr.mxu0 0.0
    %3412 = vmatpush2.msra.mxu0 0.0
    %3413 = vmatprep.subr.mxu0 0.0
    %3414 = vmatpush2.msra.mxu0 0.0
    %3415 = vmatprep.subr.mxu0 0.0
    %3416 = vmatpush2.msra.mxu0 0.0
    %3417 = vmatprep.subr.mxu0 0.0
    %3418 = vmatpush2.msra.mxu0 0.0
    %3419 = vmatprep.subr.mxu0 0.0
    %3420 = vmatpush2.msra.mxu0 0.0
    %3421 = vmatprep.mubr.f32.mxu0 0.0
    %v3422 = vand.u32 %v3177, 4294901760
    %v3423 = vsub.f32 %v3177, %v3422
    %3424 = vmatmul.mubr.f32.gmra.mxu0 %v3423
    %v3425 = vpop.f32.mrf.mxu0
    %v3426 = vadd.f32 %v3346, %v3425
    %v3427 = vpop.f32.mrf.mxu0
    %3428 = vdwg.mxu0
    %3429 = vmatprep.subr.mxu0 0.0
    %3430 = vmatpush1.msra.mxu0 0.0
    %3431 = vmatprep.subr.mxu0 0.0
    %3432 = vmatpush1.msra.mxu0 0.0
    %3433 = vmatprep.subr.mxu0 0.0
    %3434 = vmatpush1.msra.mxu0 0.0
    %3435 = vmatprep.subr.mxu0 0.0
    %3436 = vmatpush1.msra.mxu0 0.0
    %3437 = vmatprep.subr.mxu0 0.0
    %3438 = vmatpush1.msra.mxu0 0.0
    %3439 = vmatprep.subr.mxu0 0.0
    %3440 = vmatpush1.msra.mxu0 0.0
    %3441 = vmatprep.subr.mxu0 0.0
    %3442 = vmatpush1.msra.mxu0 0.0
    %3443 = vmatprep.subr.mxu0 0.0
    %3444 = vmatpush1.msra.mxu0 0.0
    %3445 = vmatprep.subr.mxu0 0.0
    %3446 = vmatpush1.msra.mxu0 0.0
    %3447 = vmatprep.subr.mxu0 0.0
    %3448 = vmatpush1.msra.mxu0 0.0
    %3449 = vmatprep.subr.mxu0 0.0
    %3450 = vmatpush1.msra.mxu0 0.0
    %3451 = vmatprep.subr.mxu0 0.0
    %3452 = vmatpush1.msra.mxu0 0.0
    %3453 = vmatprep.subr.mxu0 0.0
    %v3454 = vand.u32 %v1597, 4294901760
    %3455 = vmatpush1.msra.mxu0 %v3454
    %3456 = vmatprep.subr.mxu0 0.0
    %v3457 = vand.u32 %v1596, 4294901760
    %3458 = vmatpush1.msra.mxu0 %v3457
    %3459 = vmatprep.subr.mxu0 0.0
    %v3460 = vand.u32 %v1595, 4294901760
    %3461 = vmatpush1.msra.mxu0 %v3460
    %3462 = vmatprep.subr.mxu0 0.0
    %v3463 = vand.u32 %v1594, 4294901760
    %3464 = vmatpush1.msra.mxu0 %v3463
    %3465 = vmatprep.subr.mxu0 0.0
    %3466 = vmatpush2.msra.mxu0 0.0
    %3467 = vmatprep.subr.mxu0 0.0
    %3468 = vmatpush2.msra.mxu0 0.0
    %3469 = vmatprep.subr.mxu0 0.0
    %3470 = vmatpush2.msra.mxu0 0.0
    %3471 = vmatprep.subr.mxu0 0.0
    %3472 = vmatpush2.msra.mxu0 0.0
    %3473 = vmatprep.subr.mxu0 0.0
    %3474 = vmatpush2.msra.mxu0 0.0
    %3475 = vmatprep.subr.mxu0 0.0
    %3476 = vmatpush2.msra.mxu0 0.0
    %3477 = vmatprep.subr.mxu0 0.0
    %3478 = vmatpush2.msra.mxu0 0.0
    %3479 = vmatprep.subr.mxu0 0.0
    %3480 = vmatpush2.msra.mxu0 0.0
    %3481 = vmatprep.subr.mxu0 0.0
    %3482 = vmatpush2.msra.mxu0 0.0
    %3483 = vmatprep.subr.mxu0 0.0
    %3484 = vmatpush2.msra.mxu0 0.0
    %3485 = vmatprep.subr.mxu0 0.0
    %3486 = vmatpush2.msra.mxu0 0.0
    %3487 = vmatprep.subr.mxu0 0.0
    %3488 = vmatpush2.msra.mxu0 0.0
    %3489 = vmatprep.subr.mxu0 0.0
    %3490 = vmatpush2.msra.mxu0 0.0
    %3491 = vmatprep.subr.mxu0 0.0
    %3492 = vmatpush2.msra.mxu0 0.0
    %3493 = vmatprep.subr.mxu0 0.0
    %3494 = vmatpush2.msra.mxu0 0.0
    %3495 = vmatprep.subr.mxu0 0.0
    %3496 = vmatpush2.msra.mxu0 0.0
    %3497 = vmatprep.mubr.f32.mxu0 0.0
    %v3498 = vand.u32 %v3177, 4294901760
    %v3499 = vsub.f32 %v3177, %v3498
    %v3500 = vand.u32 %v3499, 4294901760
    %3501 = vmatmul.mubr.f32.gmra.mxu0 %v3500
    %v3502 = vpop.f32.mrf.mxu0
    %v3503 = vadd.f32 %v3426, %v3502
    %v3504 = vpop.f32.mrf.mxu0
    %3505 = vdwg.mxu0
    %3506 = vmatprep.subr.mxu0 0.0
    %3507 = vmatpush1.msra.mxu0 0.0
    %3508 = vmatprep.subr.mxu0 0.0
    %3509 = vmatpush1.msra.mxu0 0.0
    %3510 = vmatprep.subr.mxu0 0.0
    %3511 = vmatpush1.msra.mxu0 0.0
    %3512 = vmatprep.subr.mxu0 0.0
    %3513 = vmatpush1.msra.mxu0 0.0
    %3514 = vmatprep.subr.mxu0 0.0
    %3515 = vmatpush1.msra.mxu0 0.0
    %3516 = vmatprep.subr.mxu0 0.0
    %3517 = vmatpush1.msra.mxu0 0.0
    %3518 = vmatprep.subr.mxu0 0.0
    %3519 = vmatpush1.msra.mxu0 0.0
    %3520 = vmatprep.subr.mxu0 0.0
    %3521 = vmatpush1.msra.mxu0 0.0
    %3522 = vmatprep.subr.mxu0 0.0
    %3523 = vmatpush1.msra.mxu0 0.0
    %3524 = vmatprep.subr.mxu0 0.0
    %3525 = vmatpush1.msra.mxu0 0.0
    %3526 = vmatprep.subr.mxu0 0.0
    %3527 = vmatpush1.msra.mxu0 0.0
    %3528 = vmatprep.subr.mxu0 0.0
    %3529 = vmatpush1.msra.mxu0 0.0
    %3530 = vmatprep.subr.mxu0 0.0
    %v3531 = vand.u32 %v1597, 4294901760
    %v3532 = vsub.f32 %v1597, %v3531
    %v3533 = vand.u32 %v3532, 4294901760
    %3534 = vmatpush1.msra.mxu0 %v3533
    %3535 = vmatprep.subr.mxu0 0.0
    %v3536 = vand.u32 %v1596, 4294901760
    %v3537 = vsub.f32 %v1596, %v3536
    %v3538 = vand.u32 %v3537, 4294901760
    %3539 = vmatpush1.msra.mxu0 %v3538
    %3540 = vmatprep.subr.mxu0 0.0
    %v3541 = vand.u32 %v1595, 4294901760
    %v3542 = vsub.f32 %v1595, %v3541
    %v3543 = vand.u32 %v3542, 4294901760
    %3544 = vmatpush1.msra.mxu0 %v3543
    %3545 = vmatprep.subr.mxu0 0.0
    %v3546 = vand.u32 %v1594, 4294901760
    %v3547 = vsub.f32 %v1594, %v3546
    %v3548 = vand.u32 %v3547, 4294901760
    %3549 = vmatpush1.msra.mxu0 %v3548
    %3550 = vmatprep.subr.mxu0 0.0
    %3551 = vmatpush2.msra.mxu0 0.0
    %3552 = vmatprep.subr.mxu0 0.0
    %3553 = vmatpush2.msra.mxu0 0.0
    %3554 = vmatprep.subr.mxu0 0.0
    %3555 = vmatpush2.msra.mxu0 0.0
    %3556 = vmatprep.subr.mxu0 0.0
    %3557 = vmatpush2.msra.mxu0 0.0
    %3558 = vmatprep.subr.mxu0 0.0
    %3559 = vmatpush2.msra.mxu0 0.0
    %3560 = vmatprep.subr.mxu0 0.0
    %3561 = vmatpush2.msra.mxu0 0.0
    %3562 = vmatprep.subr.mxu0 0.0
    %3563 = vmatpush2.msra.mxu0 0.0
    %3564 = vmatprep.subr.mxu0 0.0
    %3565 = vmatpush2.msra.mxu0 0.0
    %3566 = vmatprep.subr.mxu0 0.0
    %3567 = vmatpush2.msra.mxu0 0.0
    %3568 = vmatprep.subr.mxu0 0.0
    %3569 = vmatpush2.msra.mxu0 0.0
    %3570 = vmatprep.subr.mxu0 0.0
    %3571 = vmatpush2.msra.mxu0 0.0
    %3572 = vmatprep.subr.mxu0 0.0
    %3573 = vmatpush2.msra.mxu0 0.0
    %3574 = vmatprep.subr.mxu0 0.0
    %3575 = vmatpush2.msra.mxu0 0.0
    %3576 = vmatprep.subr.mxu0 0.0
    %3577 = vmatpush2.msra.mxu0 0.0
    %3578 = vmatprep.subr.mxu0 0.0
    %3579 = vmatpush2.msra.mxu0 0.0
    %3580 = vmatprep.subr.mxu0 0.0
    %3581 = vmatpush2.msra.mxu0 0.0
    %3582 = vmatprep.mubr.f32.mxu0 0.0
    %v3583 = vand.u32 %v3177, 4294901760
    %3584 = vmatmul.mubr.f32.gmra.mxu0 %v3583
    %v3585 = vpop.f32.mrf.mxu0
    %v3586 = vadd.f32 %v3503, %v3585
    %v3587 = vpop.f32.mrf.mxu0
    %3588 = vdwg.mxu0
    %3589 = vmatprep.subr.mxu0 0.0
    %3590 = vmatpush1.msra.mxu0 0.0
    %3591 = vmatprep.subr.mxu0 0.0
    %3592 = vmatpush1.msra.mxu0 0.0
    %3593 = vmatprep.subr.mxu0 0.0
    %3594 = vmatpush1.msra.mxu0 0.0
    %3595 = vmatprep.subr.mxu0 0.0
    %3596 = vmatpush1.msra.mxu0 0.0
    %3597 = vmatprep.subr.mxu0 0.0
    %3598 = vmatpush1.msra.mxu0 0.0
    %3599 = vmatprep.subr.mxu0 0.0
    %3600 = vmatpush1.msra.mxu0 0.0
    %3601 = vmatprep.subr.mxu0 0.0
    %3602 = vmatpush1.msra.mxu0 0.0
    %3603 = vmatprep.subr.mxu0 0.0
    %3604 = vmatpush1.msra.mxu0 0.0
    %3605 = vmatprep.subr.mxu0 0.0
    %3606 = vmatpush1.msra.mxu0 0.0
    %3607 = vmatprep.subr.mxu0 0.0
    %3608 = vmatpush1.msra.mxu0 0.0
    %3609 = vmatprep.subr.mxu0 0.0
    %3610 = vmatpush1.msra.mxu0 0.0
    %3611 = vmatprep.subr.mxu0 0.0
    %3612 = vmatpush1.msra.mxu0 0.0
    %3613 = vmatprep.subr.mxu0 0.0
    %v3614 = vand.u32 %v1597, 4294901760
    %3615 = vmatpush1.msra.mxu0 %v3614
    %3616 = vmatprep.subr.mxu0 0.0
    %v3617 = vand.u32 %v1596, 4294901760
    %3618 = vmatpush1.msra.mxu0 %v3617
    %3619 = vmatprep.subr.mxu0 0.0
    %v3620 = vand.u32 %v1595, 4294901760
    %3621 = vmatpush1.msra.mxu0 %v3620
    %3622 = vmatprep.subr.mxu0 0.0
    %v3623 = vand.u32 %v1594, 4294901760
    %3624 = vmatpush1.msra.mxu0 %v3623
    %3625 = vmatprep.subr.mxu0 0.0
    %3626 = vmatpush2.msra.mxu0 0.0
    %3627 = vmatprep.subr.mxu0 0.0
    %3628 = vmatpush2.msra.mxu0 0.0
    %3629 = vmatprep.subr.mxu0 0.0
    %3630 = vmatpush2.msra.mxu0 0.0
    %3631 = vmatprep.subr.mxu0 0.0
    %3632 = vmatpush2.msra.mxu0 0.0
    %3633 = vmatprep.subr.mxu0 0.0
    %3634 = vmatpush2.msra.mxu0 0.0
    %3635 = vmatprep.subr.mxu0 0.0
    %3636 = vmatpush2.msra.mxu0 0.0
    %3637 = vmatprep.subr.mxu0 0.0
    %3638 = vmatpush2.msra.mxu0 0.0
    %3639 = vmatprep.subr.mxu0 0.0
    %3640 = vmatpush2.msra.mxu0 0.0
    %3641 = vmatprep.subr.mxu0 0.0
    %3642 = vmatpush2.msra.mxu0 0.0
    %3643 = vmatprep.subr.mxu0 0.0
    %3644 = vmatpush2.msra.mxu0 0.0
    %3645 = vmatprep.subr.mxu0 0.0
    %3646 = vmatpush2.msra.mxu0 0.0
    %3647 = vmatprep.subr.mxu0 0.0
    %3648 = vmatpush2.msra.mxu0 0.0
    %3649 = vmatprep.subr.mxu0 0.0
    %3650 = vmatpush2.msra.mxu0 0.0
    %3651 = vmatprep.subr.mxu0 0.0
    %3652 = vmatpush2.msra.mxu0 0.0
    %3653 = vmatprep.subr.mxu0 0.0
    %3654 = vmatpush2.msra.mxu0 0.0
    %3655 = vmatprep.subr.mxu0 0.0
    %3656 = vmatpush2.msra.mxu0 0.0
    %3657 = vmatprep.mubr.f32.mxu0 0.0
    %v3658 = vand.u32 %v3177, 4294901760
    %3659 = vmatmul.mubr.f32.gmra.mxu0 %v3658
    %v3660 = vpop.f32.mrf.mxu0
    %v3661 = vadd.f32 %v3586, %v3660
    %v3662 = vpop.f32.mrf.mxu0
    %3663 = vdwg.mxu0
    %v3665 = vrot.slane %v3661, 4
    %v3667 = vadd.f32 %v1588, %v3665
    %v3668 = vmul.f32 %v3667, 0.5
    %v3669 = vtanh.pop %v3668
    %v3670 = vadd.f32 %v3669, 1.0
    %v3671 = vmul.f32 %v3670, 0.5
    %v3672 = vtanh.pop %v3667
    %v3674 = vrot.slane %v2660, 4
    %3675 = vrot.lane.b32.xlu0 %v3674, 32
    %v3676 = vpop.permute.xlu0 %3675
    %v3678 = vmul.f32 %v3671, %v3676
    %3680 = vrot.lane.b32.xlu0 %v3672, 64
    %v3681 = vpop.permute.xlu0 %3680
    %v3683 = vmul.f32 %v3671, %v3681
    %3685 = vrot.lane.b32.xlu0 %v3683, 32
    %v3686 = vpop.permute.xlu0 %3685
    %v3688 = vadd.f32 %v3678, %v3686
    %v3689 = vtanh.pop %v3688
    %3691 = vrot.lane.b32.xlu0 %v3689, 64
    %v3692 = vpop.permute.xlu0 %3691
    %v3694 = vmul.f32 %v3671, %v3692
    %vm3695 = vcmp.gt.s32.totalorder %v1598, 1
    %vm3696 = vcmp.gt.s32.totalorder %v1598, 6
    %v3697 = vsel %vm3695, 1, 0
    %3698 = vset.pattern.permute.xlu0 0
    %3699 = vperm.xlu0 %3698, %v3697
    %v3700 = vpop.permute.xlu0 %3699
    %vm3701 = vcmp.eq.s32.totalorder %v3700, 1
    %v3703 = vrot.slane %v3176, 2
    %3704 = vrot.lane.b32.xlu0 %v3703, 32
    %v3705 = vpop.permute.xlu0 %3704
    %v3707 = vsel %vm3701, %v3705, 0.0
    %s3708 = scalar_lea.vmem [#allocation2], 2
    %3709 = vst.msk [vmem:[%s3708] sm:$0x3] %vm2634, %v3707
    %v3710 = vsel %vm3696, 1, 0
    %3711 = vset.pattern.permute.xlu0 0
    %3712 = vperm.xlu0 %3711, %v3710
    %v3713 = vpop.permute.xlu0 %3712
    %vm3714 = vcmp.eq.s32.totalorder %v3713, 1
    %v3716 = vrot.slane %v3694, 4
    %3717 = vrot.lane.b32.xlu0 %v3716, 32
    %v3718 = vpop.permute.xlu0 %3717
    %v3720 = vsel %vm3714, %v3718, 0.0
    %3722 = vrot.lane.b32.xlu0 %v3720, 32
    %v3723 = vpop.permute.xlu0 %3722
    %s3725 = scalar_lea.vmem [#allocation2], 12
    %3726 = vst.msk [vmem:[%s3725] sm:$0x3] %vm2652, %v3723
    %v3727 = vsel %vm3701, %v3705, %v2632
    %v3729 = vrot.slane %v3170, 2
    %3730 = vrot.lane.b32.xlu0 %v3729, 96
    %v3731 = vpop.permute.xlu0 %3730
    %3733 = vrot.lane.b32.xlu0 %v2654, 96
    %v3734 = vpop.permute.xlu0 %3733
    %v3736 = vsel %vm3701, %v3731, %v3734
    %v3737 = vsel %vm3714, %v3718, %v2646
    %v3739 = vrot.slane %v3688, 4
    %3740 = vrot.lane.b32.xlu0 %v3739, 96
    %v3741 = vpop.permute.xlu0 %3740
    %v3743 = vsel %vm3714, %v3741, %v2660
    %v3745 = vsel %vm1599, %v3727, 0
    %3747 = vmatprep.subr.mxu0 0.0
    %3748 = vmatpush1.msra.mxu0 0.0
    %3749 = vmatprep.subr.mxu0 0.0
    %3750 = vmatpush1.msra.mxu0 0.0
    %3751 = vmatprep.subr.mxu0 0.0
    %3752 = vmatpush1.msra.mxu0 0.0
    %3753 = vmatprep.subr.mxu0 0.0
    %3754 = vmatpush1.msra.mxu0 0.0
    %3755 = vmatprep.subr.mxu0 0.0
    %3756 = vmatpush1.msra.mxu0 0.0
    %3757 = vmatprep.subr.mxu0 0.0
    %3758 = vmatpush1.msra.mxu0 0.0
    %3759 = vmatprep.subr.mxu0 0.0
    %3760 = vmatpush1.msra.mxu0 0.0
    %3761 = vmatprep.subr.mxu0 0.0
    %3762 = vmatpush1.msra.mxu0 0.0
    %3763 = vmatprep.subr.mxu0 0.0
    %3764 = vmatpush1.msra.mxu0 0.0
    %3765 = vmatprep.subr.mxu0 0.0
    %3766 = vmatpush1.msra.mxu0 0.0
    %3767 = vmatprep.subr.mxu0 0.0
    %3768 = vmatpush1.msra.mxu0 0.0
    %3769 = vmatprep.subr.mxu0 0.0
    %3770 = vmatpush1.msra.mxu0 0.0
    %3771 = vmatprep.subr.mxu0 0.0
    %v3772 = vand.u32 %v1593, 4294901760
    %3773 = vmatpush1.msra.mxu0 %v3772
    %3774 = vmatprep.subr.mxu0 0.0
    %v3775 = vand.u32 %v1592, 4294901760
    %3776 = vmatpush1.msra.mxu0 %v3775
    %3777 = vmatprep.subr.mxu0 0.0
    %v3778 = vand.u32 %v1591, 4294901760
    %3779 = vmatpush1.msra.mxu0 %v3778
    %3780 = vmatprep.subr.mxu0 0.0
    %v3781 = vand.u32 %v1590, 4294901760
    %3782 = vmatpush1.msra.mxu0 %v3781
    %3783 = vmatprep.subr.mxu0 0.0
    %3784 = vmatpush2.msra.mxu0 0.0
    %3785 = vmatprep.subr.mxu0 0.0
    %3786 = vmatpush2.msra.mxu0 0.0
    %3787 = vmatprep.subr.mxu0 0.0
    %3788 = vmatpush2.msra.mxu0 0.0
    %3789 = vmatprep.subr.mxu0 0.0
    %3790 = vmatpush2.msra.mxu0 0.0
    %3791 = vmatprep.subr.mxu0 0.0
    %3792 = vmatpush2.msra.mxu0 0.0
    %3793 = vmatprep.subr.mxu0 0.0
    %3794 = vmatpush2.msra.mxu0 0.0
    %3795 = vmatprep.subr.mxu0 0.0
    %3796 = vmatpush2.msra.mxu0 0.0
    %3797 = vmatprep.subr.mxu0 0.0
    %3798 = vmatpush2.msra.mxu0 0.0
    %3799 = vmatprep.subr.mxu0 0.0
    %3800 = vmatpush2.msra.mxu0 0.0
    %3801 = vmatprep.subr.mxu0 0.0
    %3802 = vmatpush2.msra.mxu0 0.0
    %3803 = vmatprep.subr.mxu0 0.0
    %3804 = vmatpush2.msra.mxu0 0.0
    %3805 = vmatprep.subr.mxu0 0.0
    %3806 = vmatpush2.msra.mxu0 0.0
    %3807 = vmatprep.subr.mxu0 0.0
    %3808 = vmatpush2.msra.mxu0 0.0
    %3809 = vmatprep.subr.mxu0 0.0
    %3810 = vmatpush2.msra.mxu0 0.0
    %3811 = vmatprep.subr.mxu0 0.0
    %3812 = vmatpush2.msra.mxu0 0.0
    %3813 = vmatprep.subr.mxu0 0.0
    %3814 = vmatpush2.msra.mxu0 0.0
    %3815 = vmatprep.mubr.f32.mxu0 0.0
    %v3816 = vand.u32 %v3745, 4294901760
    %v3817 = vsub.f32 %v3745, %v3816
    %v3818 = vand.u32 %v3817, 4294901760
    %v3819 = vsub.f32 %v3817, %v3818
    %v3820 = vand.u32 %v3819, 4294901760
    %3821 = vmatmul.mubr.f32.gmra.mxu0 %v3820
    %v3822 = vpop.f32.mrf.mxu0
    %v3823 = vadd.f32 0.0, %v3822
    %v3824 = vpop.f32.mrf.mxu0
    %3825 = vdwg.mxu0
    %3826 = vmatprep.subr.mxu0 0.0
    %3827 = vmatpush1.msra.mxu0 0.0
    %3828 = vmatprep.subr.mxu0 0.0
    %3829 = vmatpush1.msra.mxu0 0.0
    %3830 = vmatprep.subr.mxu0 0.0
    %3831 = vmatpush1.msra.mxu0 0.0
    %3832 = vmatprep.subr.mxu0 0.0
    %3833 = vmatpush1.msra.mxu0 0.0
    %3834 = vmatprep.subr.mxu0 0.0
    %3835 = vmatpush1.msra.mxu0 0.0
    %3836 = vmatprep.subr.mxu0 0.0
    %3837 = vmatpush1.msra.mxu0 0.0
    %3838 = vmatprep.subr.mxu0 0.0
    %3839 = vmatpush1.msra.mxu0 0.0
    %3840 = vmatprep.subr.mxu0 0.0
    %3841 = vmatpush1.msra.mxu0 0.0
    %3842 = vmatprep.subr.mxu0 0.0
    %3843 = vmatpush1.msra.mxu0 0.0
    %3844 = vmatprep.subr.mxu0 0.0
    %3845 = vmatpush1.msra.mxu0 0.0
    %3846 = vmatprep.subr.mxu0 0.0
    %3847 = vmatpush1.msra.mxu0 0.0
    %3848 = vmatprep.subr.mxu0 0.0
    %3849 = vmatpush1.msra.mxu0 0.0
    %3850 = vmatprep.subr.mxu0 0.0
    %v3851 = vand.u32 %v1593, 4294901760
    %v3852 = vsub.f32 %v1593, %v3851
    %v3853 = vand.u32 %v3852, 4294901760
    %v3854 = vsub.f32 %v3852, %v3853
    %v3855 = vand.u32 %v3854, 4294901760
    %3856 = vmatpush1.msra.mxu0 %v3855
    %3857 = vmatprep.subr.mxu0 0.0
    %v3858 = vand.u32 %v1592, 4294901760
    %v3859 = vsub.f32 %v1592, %v3858
    %v3860 = vand.u32 %v3859, 4294901760
    %v3861 = vsub.f32 %v3859, %v3860
    %v3862 = vand.u32 %v3861, 4294901760
    %3863 = vmatpush1.msra.mxu0 %v3862
    %3864 = vmatprep.subr.mxu0 0.0
    %v3865 = vand.u32 %v1591, 4294901760
    %v3866 = vsub.f32 %v1591, %v3865
    %v3867 = vand.u32 %v3866, 4294901760
    %v3868 = vsub.f32 %v3866, %v3867
    %v3869 = vand.u32 %v3868, 4294901760
    %3870 = vmatpush1.msra.mxu0 %v3869
    %3871 = vmatprep.subr.mxu0 0.0
    %v3872 = vand.u32 %v1590, 4294901760
    %v3873 = vsub.f32 %v1590, %v3872
    %v3874 = vand.u32 %v3873, 4294901760
    %v3875 = vsub.f32 %v3873, %v3874
    %v3876 = vand.u32 %v3875, 4294901760
    %3877 = vmatpush1.msra.mxu0 %v3876
    %3878 = vmatprep.subr.mxu0 0.0
    %3879 = vmatpush2.msra.mxu0 0.0
    %3880 = vmatprep.subr.mxu0 0.0
    %3881 = vmatpush2.msra.mxu0 0.0
    %3882 = vmatprep.subr.mxu0 0.0
    %3883 = vmatpush2.msra.mxu0 0.0
    %3884 = vmatprep.subr.mxu0 0.0
    %3885 = vmatpush2.msra.mxu0 0.0
    %3886 = vmatprep.subr.mxu0 0.0
    %3887 = vmatpush2.msra.mxu0 0.0
    %3888 = vmatprep.subr.mxu0 0.0
    %3889 = vmatpush2.msra.mxu0 0.0
    %3890 = vmatprep.subr.mxu0 0.0
    %3891 = vmatpush2.msra.mxu0 0.0
    %3892 = vmatprep.subr.mxu0 0.0
    %3893 = vmatpush2.msra.mxu0 0.0
    %3894 = vmatprep.subr.mxu0 0.0
    %3895 = vmatpush2.msra.mxu0 0.0
    %3896 = vmatprep.subr.mxu0 0.0
    %3897 = vmatpush2.msra.mxu0 0.0
    %3898 = vmatprep.subr.mxu0 0.0
    %3899 = vmatpush2.msra.mxu0 0.0
    %3900 = vmatprep.subr.mxu0 0.0
    %3901 = vmatpush2.msra.mxu0 0.0
    %3902 = vmatprep.subr.mxu0 0.0
    %3903 = vmatpush2.msra.mxu0 0.0
    %3904 = vmatprep.subr.mxu0 0.0
    %3905 = vmatpush2.msra.mxu0 0.0
    %3906 = vmatprep.subr.mxu0 0.0
    %3907 = vmatpush2.msra.mxu0 0.0
    %3908 = vmatprep.subr.mxu0 0.0
    %3909 = vmatpush2.msra.mxu0 0.0
    %3910 = vmatprep.mubr.f32.mxu0 0.0
    %v3911 = vand.u32 %v3745, 4294901760
    %3912 = vmatmul.mubr.f32.gmra.mxu0 %v3911
    %v3913 = vpop.f32.mrf.mxu0
    %v3914 = vadd.f32 %v3823, %v3913
    %v3915 = vpop.f32.mrf.mxu0
    %3916 = vdwg.mxu0
    %3917 = vmatprep.subr.mxu0 0.0
    %3918 = vmatpush1.msra.mxu0 0.0
    %3919 = vmatprep.subr.mxu0 0.0
    %3920 = vmatpush1.msra.mxu0 0.0
    %3921 = vmatprep.subr.mxu0 0.0
    %3922 = vmatpush1.msra.mxu0 0.0
    %3923 = vmatprep.subr.mxu0 0.0
    %3924 = vmatpush1.msra.mxu0 0.0
    %3925 = vmatprep.subr.mxu0 0.0
    %3926 = vmatpush1.msra.mxu0 0.0
    %3927 = vmatprep.subr.mxu0 0.0
    %3928 = vmatpush1.msra.mxu0 0.0
    %3929 = vmatprep.subr.mxu0 0.0
    %3930 = vmatpush1.msra.mxu0 0.0
    %3931 = vmatprep.subr.mxu0 0.0
    %3932 = vmatpush1.msra.mxu0 0.0
    %3933 = vmatprep.subr.mxu0 0.0
    %3934 = vmatpush1.msra.mxu0 0.0
    %3935 = vmatprep.subr.mxu0 0.0
    %3936 = vmatpush1.msra.mxu0 0.0
    %3937 = vmatprep.subr.mxu0 0.0
    %3938 = vmatpush1.msra.mxu0 0.0
    %3939 = vmatprep.subr.mxu0 0.0
    %3940 = vmatpush1.msra.mxu0 0.0
    %3941 = vmatprep.subr.mxu0 0.0
    %v3942 = vand.u32 %v1593, 4294901760
    %v3943 = vsub.f32 %v1593, %v3942
    %3944 = vmatpush1.msra.mxu0 %v3943
    %3945 = vmatprep.subr.mxu0 0.0
    %v3946 = vand.u32 %v1592, 4294901760
    %v3947 = vsub.f32 %v1592, %v3946
    %3948 = vmatpush1.msra.mxu0 %v3947
    %3949 = vmatprep.subr.mxu0 0.0
    %v3950 = vand.u32 %v1591, 4294901760
    %v3951 = vsub.f32 %v1591, %v3950
    %3952 = vmatpush1.msra.mxu0 %v3951
    %3953 = vmatprep.subr.mxu0 0.0
    %v3954 = vand.u32 %v1590, 4294901760
    %v3955 = vsub.f32 %v1590, %v3954
    %3956 = vmatpush1.msra.mxu0 %v3955
    %3957 = vmatprep.subr.mxu0 0.0
    %3958 = vmatpush2.msra.mxu0 0.0
    %3959 = vmatprep.subr.mxu0 0.0
    %3960 = vmatpush2.msra.mxu0 0.0
    %3961 = vmatprep.subr.mxu0 0.0
    %3962 = vmatpush2.msra.mxu0 0.0
    %3963 = vmatprep.subr.mxu0 0.0
    %3964 = vmatpush2.msra.mxu0 0.0
    %3965 = vmatprep.subr.mxu0 0.0
    %3966 = vmatpush2.msra.mxu0 0.0
    %3967 = vmatprep.subr.mxu0 0.0
    %3968 = vmatpush2.msra.mxu0 0.0
    %3969 = vmatprep.subr.mxu0 0.0
    %3970 = vmatpush2.msra.mxu0 0.0
    %3971 = vmatprep.subr.mxu0 0.0
    %3972 = vmatpush2.msra.mxu0 0.0
    %3973 = vmatprep.subr.mxu0 0.0
    %3974 = vmatpush2.msra.mxu0 0.0
    %3975 = vmatprep.subr.mxu0 0.0
    %3976 = vmatpush2.msra.mxu0 0.0
    %3977 = vmatprep.subr.mxu0 0.0
    %3978 = vmatpush2.msra.mxu0 0.0
    %3979 = vmatprep.subr.mxu0 0.0
    %3980 = vmatpush2.msra.mxu0 0.0
    %3981 = vmatprep.subr.mxu0 0.0
    %3982 = vmatpush2.msra.mxu0 0.0
    %3983 = vmatprep.subr.mxu0 0.0
    %3984 = vmatpush2.msra.mxu0 0.0
    %3985 = vmatprep.subr.mxu0 0.0
    %3986 = vmatpush2.msra.mxu0 0.0
    %3987 = vmatprep.subr.mxu0 0.0
    %3988 = vmatpush2.msra.mxu0 0.0
    %3989 = vmatprep.mubr.f32.mxu0 0.0
    %v3990 = vand.u32 %v3745, 4294901760
    %v3991 = vsub.f32 %v3745, %v3990
    %3992 = vmatmul.mubr.f32.gmra.mxu0 %v3991
    %v3993 = vpop.f32.mrf.mxu0
    %v3994 = vadd.f32 %v3914, %v3993
    %v3995 = vpop.f32.mrf.mxu0
    %3996 = vdwg.mxu0
    %3997 = vmatprep.subr.mxu0 0.0
    %3998 = vmatpush1.msra.mxu0 0.0
    %3999 = vmatprep.subr.mxu0 0.0
    %4000 = vmatpush1.msra.mxu0 0.0
    %4001 = vmatprep.subr.mxu0 0.0
    %4002 = vmatpush1.msra.mxu0 0.0
    %4003 = vmatprep.subr.mxu0 0.0
    %4004 = vmatpush1.msra.mxu0 0.0
    %4005 = vmatprep.subr.mxu0 0.0
    %4006 = vmatpush1.msra.mxu0 0.0
    %4007 = vmatprep.subr.mxu0 0.0
    %4008 = vmatpush1.msra.mxu0 0.0
    %4009 = vmatprep.subr.mxu0 0.0
    %4010 = vmatpush1.msra.mxu0 0.0
    %4011 = vmatprep.subr.mxu0 0.0
    %4012 = vmatpush1.msra.mxu0 0.0
    %4013 = vmatprep.subr.mxu0 0.0
    %4014 = vmatpush1.msra.mxu0 0.0
    %4015 = vmatprep.subr.mxu0 0.0
    %4016 = vmatpush1.msra.mxu0 0.0
    %4017 = vmatprep.subr.mxu0 0.0
    %4018 = vmatpush1.msra.mxu0 0.0
    %4019 = vmatprep.subr.mxu0 0.0
    %4020 = vmatpush1.msra.mxu0 0.0
    %4021 = vmatprep.subr.mxu0 0.0
    %v4022 = vand.u32 %v1593, 4294901760
    %4023 = vmatpush1.msra.mxu0 %v4022
    %4024 = vmatprep.subr.mxu0 0.0
    %v4025 = vand.u32 %v1592, 4294901760
    %4026 = vmatpush1.msra.mxu0 %v4025
    %4027 = vmatprep.subr.mxu0 0.0
    %v4028 = vand.u32 %v1591, 4294901760
    %4029 = vmatpush1.msra.mxu0 %v4028
    %4030 = vmatprep.subr.mxu0 0.0
    %v4031 = vand.u32 %v1590, 4294901760
    %4032 = vmatpush1.msra.mxu0 %v4031
    %4033 = vmatprep.subr.mxu0 0.0
    %4034 = vmatpush2.msra.mxu0 0.0
    %4035 = vmatprep.subr.mxu0 0.0
    %4036 = vmatpush2.msra.mxu0 0.0
    %4037 = vmatprep.subr.mxu0 0.0
    %4038 = vmatpush2.msra.mxu0 0.0
    %4039 = vmatprep.subr.mxu0 0.0
    %4040 = vmatpush2.msra.mxu0 0.0
    %4041 = vmatprep.subr.mxu0 0.0
    %4042 = vmatpush2.msra.mxu0 0.0
    %4043 = vmatprep.subr.mxu0 0.0
    %4044 = vmatpush2.msra.mxu0 0.0
    %4045 = vmatprep.subr.mxu0 0.0
    %4046 = vmatpush2.msra.mxu0 0.0
    %4047 = vmatprep.subr.mxu0 0.0
    %4048 = vmatpush2.msra.mxu0 0.0
    %4049 = vmatprep.subr.mxu0 0.0
    %4050 = vmatpush2.msra.mxu0 0.0
    %4051 = vmatprep.subr.mxu0 0.0
    %4052 = vmatpush2.msra.mxu0 0.0
    %4053 = vmatprep.subr.mxu0 0.0
    %4054 = vmatpush2.msra.mxu0 0.0
    %4055 = vmatprep.subr.mxu0 0.0
    %4056 = vmatpush2.msra.mxu0 0.0
    %4057 = vmatprep.subr.mxu0 0.0
    %4058 = vmatpush2.msra.mxu0 0.0
    %4059 = vmatprep.subr.mxu0 0.0
    %4060 = vmatpush2.msra.mxu0 0.0
    %4061 = vmatprep.subr.mxu0 0.0
    %4062 = vmatpush2.msra.mxu0 0.0
    %4063 = vmatprep.subr.mxu0 0.0
    %4064 = vmatpush2.msra.mxu0 0.0
    %4065 = vmatprep.mubr.f32.mxu0 0.0
    %v4066 = vand.u32 %v3745, 4294901760
    %v4067 = vsub.f32 %v3745, %v4066
    %v4068 = vand.u32 %v4067, 4294901760
    %4069 = vmatmul.mubr.f32.gmra.mxu0 %v4068
    %v4070 = vpop.f32.mrf.mxu0
    %v4071 = vadd.f32 %v3994, %v4070
    %v4072 = vpop.f32.mrf.mxu0
    %4073 = vdwg.mxu0
    %4074 = vmatprep.subr.mxu0 0.0
    %4075 = vmatpush1.msra.mxu0 0.0
    %4076 = vmatprep.subr.mxu0 0.0
    %4077 = vmatpush1.msra.mxu0 0.0
    %4078 = vmatprep.subr.mxu0 0.0
    %4079 = vmatpush1.msra.mxu0 0.0
    %4080 = vmatprep.subr.mxu0 0.0
    %4081 = vmatpush1.msra.mxu0 0.0
    %4082 = vmatprep.subr.mxu0 0.0
    %4083 = vmatpush1.msra.mxu0 0.0
    %4084 = vmatprep.subr.mxu0 0.0
    %4085 = vmatpush1.msra.mxu0 0.0
    %4086 = vmatprep.subr.mxu0 0.0
    %4087 = vmatpush1.msra.mxu0 0.0
    %4088 = vmatprep.subr.mxu0 0.0
    %4089 = vmatpush1.msra.mxu0 0.0
    %4090 = vmatprep.subr.mxu0 0.0
    %4091 = vmatpush1.msra.mxu0 0.0
    %4092 = vmatprep.subr.mxu0 0.0
    %4093 = vmatpush1.msra.mxu0 0.0
    %4094 = vmatprep.subr.mxu0 0.0
    %4095 = vmatpush1.msra.mxu0 0.0
    %4096 = vmatprep.subr.mxu0 0.0
    %4097 = vmatpush1.msra.mxu0 0.0
    %4098 = vmatprep.subr.mxu0 0.0
    %v4099 = vand.u32 %v1593, 4294901760
    %v4100 = vsub.f32 %v1593, %v4099
    %v4101 = vand.u32 %v4100, 4294901760
    %4102 = vmatpush1.msra.mxu0 %v4101
    %4103 = vmatprep.subr.mxu0 0.0
    %v4104 = vand.u32 %v1592, 4294901760
    %v4105 = vsub.f32 %v1592, %v4104
    %v4106 = vand.u32 %v4105, 4294901760
    %4107 = vmatpush1.msra.mxu0 %v4106
    %4108 = vmatprep.subr.mxu0 0.0
    %v4109 = vand.u32 %v1591, 4294901760
    %v4110 = vsub.f32 %v1591, %v4109
    %v4111 = vand.u32 %v4110, 4294901760
    %4112 = vmatpush1.msra.mxu0 %v4111
    %4113 = vmatprep.subr.mxu0 0.0
    %v4114 = vand.u32 %v1590, 4294901760
    %v4115 = vsub.f32 %v1590, %v4114
    %v4116 = vand.u32 %v4115, 4294901760
    %4117 = vmatpush1.msra.mxu0 %v4116
    %4118 = vmatprep.subr.mxu0 0.0
    %4119 = vmatpush2.msra.mxu0 0.0
    %4120 = vmatprep.subr.mxu0 0.0
    %4121 = vmatpush2.msra.mxu0 0.0
    %4122 = vmatprep.subr.mxu0 0.0
    %4123 = vmatpush2.msra.mxu0 0.0
    %4124 = vmatprep.subr.mxu0 0.0
    %4125 = vmatpush2.msra.mxu0 0.0
    %4126 = vmatprep.subr.mxu0 0.0
    %4127 = vmatpush2.msra.mxu0 0.0
    %4128 = vmatprep.subr.mxu0 0.0
    %4129 = vmatpush2.msra.mxu0 0.0
    %4130 = vmatprep.subr.mxu0 0.0
    %4131 = vmatpush2.msra.mxu0 0.0
    %4132 = vmatprep.subr.mxu0 0.0
    %4133 = vmatpush2.msra.mxu0 0.0
    %4134 = vmatprep.subr.mxu0 0.0
    %4135 = vmatpush2.msra.mxu0 0.0
    %4136 = vmatprep.subr.mxu0 0.0
    %4137 = vmatpush2.msra.mxu0 0.0
    %4138 = vmatprep.subr.mxu0 0.0
    %4139 = vmatpush2.msra.mxu0 0.0
    %4140 = vmatprep.subr.mxu0 0.0
    %4141 = vmatpush2.msra.mxu0 0.0
    %4142 = vmatprep.subr.mxu0 0.0
    %4143 = vmatpush2.msra.mxu0 0.0
    %4144 = vmatprep.subr.mxu0 0.0
    %4145 = vmatpush2.msra.mxu0 0.0
    %4146 = vmatprep.subr.mxu0 0.0
    %4147 = vmatpush2.msra.mxu0 0.0
    %4148 = vmatprep.subr.mxu0 0.0
    %4149 = vmatpush2.msra.mxu0 0.0
    %4150 = vmatprep.mubr.f32.mxu0 0.0
    %v4151 = vand.u32 %v3745, 4294901760
    %4152 = vmatmul.mubr.f32.gmra.mxu0 %v4151
    %v4153 = vpop.f32.mrf.mxu0
    %v4154 = vadd.f32 %v4071, %v4153
    %v4155 = vpop.f32.mrf.mxu0
    %4156 = vdwg.mxu0
    %4157 = vmatprep.subr.mxu0 0.0
    %4158 = vmatpush1.msra.mxu0 0.0
    %4159 = vmatprep.subr.mxu0 0.0
    %4160 = vmatpush1.msra.mxu0 0.0
    %4161 = vmatprep.subr.mxu0 0.0
    %4162 = vmatpush1.msra.mxu0 0.0
    %4163 = vmatprep.subr.mxu0 0.0
    %4164 = vmatpush1.msra.mxu0 0.0
    %4165 = vmatprep.subr.mxu0 0.0
    %4166 = vmatpush1.msra.mxu0 0.0
    %4167 = vmatprep.subr.mxu0 0.0
    %4168 = vmatpush1.msra.mxu0 0.0
    %4169 = vmatprep.subr.mxu0 0.0
    %4170 = vmatpush1.msra.mxu0 0.0
    %4171 = vmatprep.subr.mxu0 0.0
    %4172 = vmatpush1.msra.mxu0 0.0
    %4173 = vmatprep.subr.mxu0 0.0
    %4174 = vmatpush1.msra.mxu0 0.0
    %4175 = vmatprep.subr.mxu0 0.0
    %4176 = vmatpush1.msra.mxu0 0.0
    %4177 = vmatprep.subr.mxu0 0.0
    %4178 = vmatpush1.msra.mxu0 0.0
    %4179 = vmatprep.subr.mxu0 0.0
    %4180 = vmatpush1.msra.mxu0 0.0
    %4181 = vmatprep.subr.mxu0 0.0
    %v4182 = vand.u32 %v1593, 4294901760
    %4183 = vmatpush1.msra.mxu0 %v4182
    %4184 = vmatprep.subr.mxu0 0.0
    %v4185 = vand.u32 %v1592, 4294901760
    %4186 = vmatpush1.msra.mxu0 %v4185
    %4187 = vmatprep.subr.mxu0 0.0
    %v4188 = vand.u32 %v1591, 4294901760
    %4189 = vmatpush1.msra.mxu0 %v4188
    %4190 = vmatprep.subr.mxu0 0.0
    %v4191 = vand.u32 %v1590, 4294901760
    %4192 = vmatpush1.msra.mxu0 %v4191
    %4193 = vmatprep.subr.mxu0 0.0
    %4194 = vmatpush2.msra.mxu0 0.0
    %4195 = vmatprep.subr.mxu0 0.0
    %4196 = vmatpush2.msra.mxu0 0.0
    %4197 = vmatprep.subr.mxu0 0.0
    %4198 = vmatpush2.msra.mxu0 0.0
    %4199 = vmatprep.subr.mxu0 0.0
    %4200 = vmatpush2.msra.mxu0 0.0
    %4201 = vmatprep.subr.mxu0 0.0
    %4202 = vmatpush2.msra.mxu0 0.0
    %4203 = vmatprep.subr.mxu0 0.0
    %4204 = vmatpush2.msra.mxu0 0.0
    %4205 = vmatprep.subr.mxu0 0.0
    %4206 = vmatpush2.msra.mxu0 0.0
    %4207 = vmatprep.subr.mxu0 0.0
    %4208 = vmatpush2.msra.mxu0 0.0
    %4209 = vmatprep.subr.mxu0 0.0
    %4210 = vmatpush2.msra.mxu0 0.0
    %4211 = vmatprep.subr.mxu0 0.0
    %4212 = vmatpush2.msra.mxu0 0.0
    %4213 = vmatprep.subr.mxu0 0.0
    %4214 = vmatpush2.msra.mxu0 0.0
    %4215 = vmatprep.subr.mxu0 0.0
    %4216 = vmatpush2.msra.mxu0 0.0
    %4217 = vmatprep.subr.mxu0 0.0
    %4218 = vmatpush2.msra.mxu0 0.0
    %4219 = vmatprep.subr.mxu0 0.0
    %4220 = vmatpush2.msra.mxu0 0.0
    %4221 = vmatprep.subr.mxu0 0.0
    %4222 = vmatpush2.msra.mxu0 0.0
    %4223 = vmatprep.subr.mxu0 0.0
    %4224 = vmatpush2.msra.mxu0 0.0
    %4225 = vmatprep.mubr.f32.mxu0 0.0
    %v4226 = vand.u32 %v3745, 4294901760
    %4227 = vmatmul.mubr.f32.gmra.mxu0 %v4226
    %v4228 = vpop.f32.mrf.mxu0
    %v4229 = vadd.f32 %v4154, %v4228
    %v4230 = vpop.f32.mrf.mxu0
    %4231 = vdwg.mxu0
    %v4233 = vrot.slane %v4229, 4
    %v4235 = vadd.f32 %v1579, %v4233
    %v4236 = vmul.f32 %v4235, 0.5
    %v4237 = vtanh.pop %v4236
    %v4238 = vadd.f32 %v4237, 1.0
    %v4239 = vmul.f32 %v4238, 0.5
    %v4240 = vtanh.pop %v4235
    %v4242 = vrot.slane %v3736, 4
    %4243 = vrot.lane.b32.xlu0 %v4242, 32
    %v4244 = vpop.permute.xlu0 %4243
    %v4246 = vmul.f32 %v4239, %v4244
    %4248 = vrot.lane.b32.xlu0 %v4240, 64
    %v4249 = vpop.permute.xlu0 %4248
    %v4251 = vmul.f32 %v4239, %v4249
    %4253 = vrot.lane.b32.xlu0 %v4251, 32
    %v4254 = vpop.permute.xlu0 %4253
    %v4256 = vadd.f32 %v4246, %v4254
    %v4257 = vtanh.pop %v4256
    %4259 = vrot.lane.b32.xlu0 %v4257, 64
    %v4260 = vpop.permute.xlu0 %4259
    %v4262 = vmul.f32 %v4239, %v4260
    %v4264 = vsel %vm1599, %v3737, 0
    %4266 = vmatprep.subr.mxu0 0.0
    %4267 = vmatpush1.msra.mxu0 0.0
    %4268 = vmatprep.subr.mxu0 0.0
    %4269 = vmatpush1.msra.mxu0 0.0
    %4270 = vmatprep.subr.mxu0 0.0
    %4271 = vmatpush1.msra.mxu0 0.0
    %4272 = vmatprep.subr.mxu0 0.0
    %4273 = vmatpush1.msra.mxu0 0.0
    %4274 = vmatprep.subr.mxu0 0.0
    %4275 = vmatpush1.msra.mxu0 0.0
    %4276 = vmatprep.subr.mxu0 0.0
    %4277 = vmatpush1.msra.mxu0 0.0
    %4278 = vmatprep.subr.mxu0 0.0
    %4279 = vmatpush1.msra.mxu0 0.0
    %4280 = vmatprep.subr.mxu0 0.0
    %4281 = vmatpush1.msra.mxu0 0.0
    %4282 = vmatprep.subr.mxu0 0.0
    %4283 = vmatpush1.msra.mxu0 0.0
    %4284 = vmatprep.subr.mxu0 0.0
    %4285 = vmatpush1.msra.mxu0 0.0
    %4286 = vmatprep.subr.mxu0 0.0
    %4287 = vmatpush1.msra.mxu0 0.0
    %4288 = vmatprep.subr.mxu0 0.0
    %4289 = vmatpush1.msra.mxu0 0.0
    %4290 = vmatprep.subr.mxu0 0.0
    %v4291 = vand.u32 %v1597, 4294901760
    %4292 = vmatpush1.msra.mxu0 %v4291
    %4293 = vmatprep.subr.mxu0 0.0
    %v4294 = vand.u32 %v1596, 4294901760
    %4295 = vmatpush1.msra.mxu0 %v4294
    %4296 = vmatprep.subr.mxu0 0.0
    %v4297 = vand.u32 %v1595, 4294901760
    %4298 = vmatpush1.msra.mxu0 %v4297
    %4299 = vmatprep.subr.mxu0 0.0
    %v4300 = vand.u32 %v1594, 4294901760
    %4301 = vmatpush1.msra.mxu0 %v4300
    %4302 = vmatprep.subr.mxu0 0.0
    %4303 = vmatpush2.msra.mxu0 0.0
    %4304 = vmatprep.subr.mxu0 0.0
    %4305 = vmatpush2.msra.mxu0 0.0
    %4306 = vmatprep.subr.mxu0 0.0
    %4307 = vmatpush2.msra.mxu0 0.0
    %4308 = vmatprep.subr.mxu0 0.0
    %4309 = vmatpush2.msra.mxu0 0.0
    %4310 = vmatprep.subr.mxu0 0.0
    %4311 = vmatpush2.msra.mxu0 0.0
    %4312 = vmatprep.subr.mxu0 0.0
    %4313 = vmatpush2.msra.mxu0 0.0
    %4314 = vmatprep.subr.mxu0 0.0
    %4315 = vmatpush2.msra.mxu0 0.0
    %4316 = vmatprep.subr.mxu0 0.0
    %4317 = vmatpush2.msra.mxu0 0.0
    %4318 = vmatprep.subr.mxu0 0.0
    %4319 = vmatpush2.msra.mxu0 0.0
    %4320 = vmatprep.subr.mxu0 0.0
    %4321 = vmatpush2.msra.mxu0 0.0
    %4322 = vmatprep.subr.mxu0 0.0
    %4323 = vmatpush2.msra.mxu0 0.0
    %4324 = vmatprep.subr.mxu0 0.0
    %4325 = vmatpush2.msra.mxu0 0.0
    %4326 = vmatprep.subr.mxu0 0.0
    %4327 = vmatpush2.msra.mxu0 0.0
    %4328 = vmatprep.subr.mxu0 0.0
    %4329 = vmatpush2.msra.mxu0 0.0
    %4330 = vmatprep.subr.mxu0 0.0
    %4331 = vmatpush2.msra.mxu0 0.0
    %4332 = vmatprep.subr.mxu0 0.0
    %4333 = vmatpush2.msra.mxu0 0.0
    %4334 = vmatprep.mubr.f32.mxu0 0.0
    %v4335 = vand.u32 %v4264, 4294901760
    %v4336 = vsub.f32 %v4264, %v4335
    %v4337 = vand.u32 %v4336, 4294901760
    %v4338 = vsub.f32 %v4336, %v4337
    %v4339 = vand.u32 %v4338, 4294901760
    %4340 = vmatmul.mubr.f32.gmra.mxu0 %v4339
    %v4341 = vpop.f32.mrf.mxu0
    %v4342 = vadd.f32 0.0, %v4341
    %v4343 = vpop.f32.mrf.mxu0
    %4344 = vdwg.mxu0
    %4345 = vmatprep.subr.mxu0 0.0
    %4346 = vmatpush1.msra.mxu0 0.0
    %4347 = vmatprep.subr.mxu0 0.0
    %4348 = vmatpush1.msra.mxu0 0.0
    %4349 = vmatprep.subr.mxu0 0.0
    %4350 = vmatpush1.msra.mxu0 0.0
    %4351 = vmatprep.subr.mxu0 0.0
    %4352 = vmatpush1.msra.mxu0 0.0
    %4353 = vmatprep.subr.mxu0 0.0
    %4354 = vmatpush1.msra.mxu0 0.0
    %4355 = vmatprep.subr.mxu0 0.0
    %4356 = vmatpush1.msra.mxu0 0.0
    %4357 = vmatprep.subr.mxu0 0.0
    %4358 = vmatpush1.msra.mxu0 0.0
    %4359 = vmatprep.subr.mxu0 0.0
    %4360 = vmatpush1.msra.mxu0 0.0
    %4361 = vmatprep.subr.mxu0 0.0
    %4362 = vmatpush1.msra.mxu0 0.0
    %4363 = vmatprep.subr.mxu0 0.0
    %4364 = vmatpush1.msra.mxu0 0.0
    %4365 = vmatprep.subr.mxu0 0.0
    %4366 = vmatpush1.msra.mxu0 0.0
    %4367 = vmatprep.subr.mxu0 0.0
    %4368 = vmatpush1.msra.mxu0 0.0
    %4369 = vmatprep.subr.mxu0 0.0
    %v4370 = vand.u32 %v1597, 4294901760
    %v4371 = vsub.f32 %v1597, %v4370
    %v4372 = vand.u32 %v4371, 4294901760
    %v4373 = vsub.f32 %v4371, %v4372
    %v4374 = vand.u32 %v4373, 4294901760
    %4375 = vmatpush1.msra.mxu0 %v4374
    %4376 = vmatprep.subr.mxu0 0.0
    %v4377 = vand.u32 %v1596, 4294901760
    %v4378 = vsub.f32 %v1596, %v4377
    %v4379 = vand.u32 %v4378, 4294901760
    %v4380 = vsub.f32 %v4378, %v4379
    %v4381 = vand.u32 %v4380, 4294901760
    %4382 = vmatpush1.msra.mxu0 %v4381
    %4383 = vmatprep.subr.mxu0 0.0
    %v4384 = vand.u32 %v1595, 4294901760
    %v4385 = vsub.f32 %v1595, %v4384
    %v4386 = vand.u32 %v4385, 4294901760
    %v4387 = vsub.f32 %v4385, %v4386
    %v4388 = vand.u32 %v4387, 4294901760
    %4389 = vmatpush1.msra.mxu0 %v4388
    %4390 = vmatprep.subr.mxu0 0.0
    %v4391 = vand.u32 %v1594, 4294901760
    %v4392 = vsub.f32 %v1594, %v4391
    %v4393 = vand.u32 %v4392, 4294901760
    %v4394 = vsub.f32 %v4392, %v4393
    %v4395 = vand.u32 %v4394, 4294901760
    %4396 = vmatpush1.msra.mxu0 %v4395
    %4397 = vmatprep.subr.mxu0 0.0
    %4398 = vmatpush2.msra.mxu0 0.0
    %4399 = vmatprep.subr.mxu0 0.0
    %4400 = vmatpush2.msra.mxu0 0.0
    %4401 = vmatprep.subr.mxu0 0.0
    %4402 = vmatpush2.msra.mxu0 0.0
    %4403 = vmatprep.subr.mxu0 0.0
    %4404 = vmatpush2.msra.mxu0 0.0
    %4405 = vmatprep.subr.mxu0 0.0
    %4406 = vmatpush2.msra.mxu0 0.0
    %4407 = vmatprep.subr.mxu0 0.0
    %4408 = vmatpush2.msra.mxu0 0.0
    %4409 = vmatprep.subr.mxu0 0.0
    %4410 = vmatpush2.msra.mxu0 0.0
    %4411 = vmatprep.subr.mxu0 0.0
    %4412 = vmatpush2.msra.mxu0 0.0
    %4413 = vmatprep.subr.mxu0 0.0
    %4414 = vmatpush2.msra.mxu0 0.0
    %4415 = vmatprep.subr.mxu0 0.0
    %4416 = vmatpush2.msra.mxu0 0.0
    %4417 = vmatprep.subr.mxu0 0.0
    %4418 = vmatpush2.msra.mxu0 0.0
    %4419 = vmatprep.subr.mxu0 0.0
    %4420 = vmatpush2.msra.mxu0 0.0
    %4421 = vmatprep.subr.mxu0 0.0
    %4422 = vmatpush2.msra.mxu0 0.0
    %4423 = vmatprep.subr.mxu0 0.0
    %4424 = vmatpush2.msra.mxu0 0.0
    %4425 = vmatprep.subr.mxu0 0.0
    %4426 = vmatpush2.msra.mxu0 0.0
    %4427 = vmatprep.subr.mxu0 0.0
    %4428 = vmatpush2.msra.mxu0 0.0
    %4429 = vmatprep.mubr.f32.mxu0 0.0
    %v4430 = vand.u32 %v4264, 4294901760
    %4431 = vmatmul.mubr.f32.gmra.mxu0 %v4430
    %v4432 = vpop.f32.mrf.mxu0
    %v4433 = vadd.f32 %v4342, %v4432
    %v4434 = vpop.f32.mrf.mxu0
    %4435 = vdwg.mxu0
    %4436 = vmatprep.subr.mxu0 0.0
    %4437 = vmatpush1.msra.mxu0 0.0
    %4438 = vmatprep.subr.mxu0 0.0
    %4439 = vmatpush1.msra.mxu0 0.0
    %4440 = vmatprep.subr.mxu0 0.0
    %4441 = vmatpush1.msra.mxu0 0.0
    %4442 = vmatprep.subr.mxu0 0.0
    %4443 = vmatpush1.msra.mxu0 0.0
    %4444 = vmatprep.subr.mxu0 0.0
    %4445 = vmatpush1.msra.mxu0 0.0
    %4446 = vmatprep.subr.mxu0 0.0
    %4447 = vmatpush1.msra.mxu0 0.0
    %4448 = vmatprep.subr.mxu0 0.0
    %4449 = vmatpush1.msra.mxu0 0.0
    %4450 = vmatprep.subr.mxu0 0.0
    %4451 = vmatpush1.msra.mxu0 0.0
    %4452 = vmatprep.subr.mxu0 0.0
    %4453 = vmatpush1.msra.mxu0 0.0
    %4454 = vmatprep.subr.mxu0 0.0
    %4455 = vmatpush1.msra.mxu0 0.0
    %4456 = vmatprep.subr.mxu0 0.0
    %4457 = vmatpush1.msra.mxu0 0.0
    %4458 = vmatprep.subr.mxu0 0.0
    %4459 = vmatpush1.msra.mxu0 0.0
    %4460 = vmatprep.subr.mxu0 0.0
    %v4461 = vand.u32 %v1597, 4294901760
    %v4462 = vsub.f32 %v1597, %v4461
    %4463 = vmatpush1.msra.mxu0 %v4462
    %4464 = vmatprep.subr.mxu0 0.0
    %v4465 = vand.u32 %v1596, 4294901760
    %v4466 = vsub.f32 %v1596, %v4465
    %4467 = vmatpush1.msra.mxu0 %v4466
    %4468 = vmatprep.subr.mxu0 0.0
    %v4469 = vand.u32 %v1595, 4294901760
    %v4470 = vsub.f32 %v1595, %v4469
    %4471 = vmatpush1.msra.mxu0 %v4470
    %4472 = vmatprep.subr.mxu0 0.0
    %v4473 = vand.u32 %v1594, 4294901760
    %v4474 = vsub.f32 %v1594, %v4473
    %4475 = vmatpush1.msra.mxu0 %v4474
    %4476 = vmatprep.subr.mxu0 0.0
    %4477 = vmatpush2.msra.mxu0 0.0
    %4478 = vmatprep.subr.mxu0 0.0
    %4479 = vmatpush2.msra.mxu0 0.0
    %4480 = vmatprep.subr.mxu0 0.0
    %4481 = vmatpush2.msra.mxu0 0.0
    %4482 = vmatprep.subr.mxu0 0.0
    %4483 = vmatpush2.msra.mxu0 0.0
    %4484 = vmatprep.subr.mxu0 0.0
    %4485 = vmatpush2.msra.mxu0 0.0
    %4486 = vmatprep.subr.mxu0 0.0
    %4487 = vmatpush2.msra.mxu0 0.0
    %4488 = vmatprep.subr.mxu0 0.0
    %4489 = vmatpush2.msra.mxu0 0.0
    %4490 = vmatprep.subr.mxu0 0.0
    %4491 = vmatpush2.msra.mxu0 0.0
    %4492 = vmatprep.subr.mxu0 0.0
    %4493 = vmatpush2.msra.mxu0 0.0
    %4494 = vmatprep.subr.mxu0 0.0
    %4495 = vmatpush2.msra.mxu0 0.0
    %4496 = vmatprep.subr.mxu0 0.0
    %4497 = vmatpush2.msra.mxu0 0.0
    %4498 = vmatprep.subr.mxu0 0.0
    %4499 = vmatpush2.msra.mxu0 0.0
    %4500 = vmatprep.subr.mxu0 0.0
    %4501 = vmatpush2.msra.mxu0 0.0
    %4502 = vmatprep.subr.mxu0 0.0
    %4503 = vmatpush2.msra.mxu0 0.0
    %4504 = vmatprep.subr.mxu0 0.0
    %4505 = vmatpush2.msra.mxu0 0.0
    %4506 = vmatprep.subr.mxu0 0.0
    %4507 = vmatpush2.msra.mxu0 0.0
    %4508 = vmatprep.mubr.f32.mxu0 0.0
    %v4509 = vand.u32 %v4264, 4294901760
    %v4510 = vsub.f32 %v4264, %v4509
    %4511 = vmatmul.mubr.f32.gmra.mxu0 %v4510
    %v4512 = vpop.f32.mrf.mxu0
    %v4513 = vadd.f32 %v4433, %v4512
    %v4514 = vpop.f32.mrf.mxu0
    %4515 = vdwg.mxu0
    %4516 = vmatprep.subr.mxu0 0.0
    %4517 = vmatpush1.msra.mxu0 0.0
    %4518 = vmatprep.subr.mxu0 0.0
    %4519 = vmatpush1.msra.mxu0 0.0
    %4520 = vmatprep.subr.mxu0 0.0
    %4521 = vmatpush1.msra.mxu0 0.0
    %4522 = vmatprep.subr.mxu0 0.0
    %4523 = vmatpush1.msra.mxu0 0.0
    %4524 = vmatprep.subr.mxu0 0.0
    %4525 = vmatpush1.msra.mxu0 0.0
    %4526 = vmatprep.subr.mxu0 0.0
    %4527 = vmatpush1.msra.mxu0 0.0
    %4528 = vmatprep.subr.mxu0 0.0
    %4529 = vmatpush1.msra.mxu0 0.0
    %4530 = vmatprep.subr.mxu0 0.0
    %4531 = vmatpush1.msra.mxu0 0.0
    %4532 = vmatprep.subr.mxu0 0.0
    %4533 = vmatpush1.msra.mxu0 0.0
    %4534 = vmatprep.subr.mxu0 0.0
    %4535 = vmatpush1.msra.mxu0 0.0
    %4536 = vmatprep.subr.mxu0 0.0
    %4537 = vmatpush1.msra.mxu0 0.0
    %4538 = vmatprep.subr.mxu0 0.0
    %4539 = vmatpush1.msra.mxu0 0.0
    %4540 = vmatprep.subr.mxu0 0.0
    %v4541 = vand.u32 %v1597, 4294901760
    %4542 = vmatpush1.msra.mxu0 %v4541
    %4543 = vmatprep.subr.mxu0 0.0
    %v4544 = vand.u32 %v1596, 4294901760
    %4545 = vmatpush1.msra.mxu0 %v4544
    %4546 = vmatprep.subr.mxu0 0.0
    %v4547 = vand.u32 %v1595, 4294901760
    %4548 = vmatpush1.msra.mxu0 %v4547
    %4549 = vmatprep.subr.mxu0 0.0
    %v4550 = vand.u32 %v1594, 4294901760
    %4551 = vmatpush1.msra.mxu0 %v4550
    %4552 = vmatprep.subr.mxu0 0.0
    %4553 = vmatpush2.msra.mxu0 0.0
    %4554 = vmatprep.subr.mxu0 0.0
    %4555 = vmatpush2.msra.mxu0 0.0
    %4556 = vmatprep.subr.mxu0 0.0
    %4557 = vmatpush2.msra.mxu0 0.0
    %4558 = vmatprep.subr.mxu0 0.0
    %4559 = vmatpush2.msra.mxu0 0.0
    %4560 = vmatprep.subr.mxu0 0.0
    %4561 = vmatpush2.msra.mxu0 0.0
    %4562 = vmatprep.subr.mxu0 0.0
    %4563 = vmatpush2.msra.mxu0 0.0
    %4564 = vmatprep.subr.mxu0 0.0
    %4565 = vmatpush2.msra.mxu0 0.0
    %4566 = vmatprep.subr.mxu0 0.0
    %4567 = vmatpush2.msra.mxu0 0.0
    %4568 = vmatprep.subr.mxu0 0.0
    %4569 = vmatpush2.msra.mxu0 0.0
    %4570 = vmatprep.subr.mxu0 0.0
    %4571 = vmatpush2.msra.mxu0 0.0
    %4572 = vmatprep.subr.mxu0 0.0
    %4573 = vmatpush2.msra.mxu0 0.0
    %4574 = vmatprep.subr.mxu0 0.0
    %4575 = vmatpush2.msra.mxu0 0.0
    %4576 = vmatprep.subr.mxu0 0.0
    %4577 = vmatpush2.msra.mxu0 0.0
    %4578 = vmatprep.subr.mxu0 0.0
    %4579 = vmatpush2.msra.mxu0 0.0
    %4580 = vmatprep.subr.mxu0 0.0
    %4581 = vmatpush2.msra.mxu0 0.0
    %4582 = vmatprep.subr.mxu0 0.0
    %4583 = vmatpush2.msra.mxu0 0.0
    %4584 = vmatprep.mubr.f32.mxu0 0.0
    %v4585 = vand.u32 %v4264, 4294901760
    %v4586 = vsub.f32 %v4264, %v4585
    %v4587 = vand.u32 %v4586, 4294901760
    %4588 = vmatmul.mubr.f32.gmra.mxu0 %v4587
    %v4589 = vpop.f32.mrf.mxu0
    %v4590 = vadd.f32 %v4513, %v4589
    %v4591 = vpop.f32.mrf.mxu0
    %4592 = vdwg.mxu0
    %4593 = vmatprep.subr.mxu0 0.0
    %4594 = vmatpush1.msra.mxu0 0.0
    %4595 = vmatprep.subr.mxu0 0.0
    %4596 = vmatpush1.msra.mxu0 0.0
    %4597 = vmatprep.subr.mxu0 0.0
    %4598 = vmatpush1.msra.mxu0 0.0
    %4599 = vmatprep.subr.mxu0 0.0
    %4600 = vmatpush1.msra.mxu0 0.0
    %4601 = vmatprep.subr.mxu0 0.0
    %4602 = vmatpush1.msra.mxu0 0.0
    %4603 = vmatprep.subr.mxu0 0.0
    %4604 = vmatpush1.msra.mxu0 0.0
    %4605 = vmatprep.subr.mxu0 0.0
    %4606 = vmatpush1.msra.mxu0 0.0
    %4607 = vmatprep.subr.mxu0 0.0
    %4608 = vmatpush1.msra.mxu0 0.0
    %4609 = vmatprep.subr.mxu0 0.0
    %4610 = vmatpush1.msra.mxu0 0.0
    %4611 = vmatprep.subr.mxu0 0.0
    %4612 = vmatpush1.msra.mxu0 0.0
    %4613 = vmatprep.subr.mxu0 0.0
    %4614 = vmatpush1.msra.mxu0 0.0
    %4615 = vmatprep.subr.mxu0 0.0
    %4616 = vmatpush1.msra.mxu0 0.0
    %4617 = vmatprep.subr.mxu0 0.0
    %v4618 = vand.u32 %v1597, 4294901760
    %v4619 = vsub.f32 %v1597, %v4618
    %v4620 = vand.u32 %v4619, 4294901760
    %4621 = vmatpush1.msra.mxu0 %v4620
    %4622 = vmatprep.subr.mxu0 0.0
    %v4623 = vand.u32 %v1596, 4294901760
    %v4624 = vsub.f32 %v1596, %v4623
    %v4625 = vand.u32 %v4624, 4294901760
    %4626 = vmatpush1.msra.mxu0 %v4625
    %4627 = vmatprep.subr.mxu0 0.0
    %v4628 = vand.u32 %v1595, 4294901760
    %v4629 = vsub.f32 %v1595, %v4628
    %v4630 = vand.u32 %v4629, 4294901760
    %4631 = vmatpush1.msra.mxu0 %v4630
    %4632 = vmatprep.subr.mxu0 0.0
    %v4633 = vand.u32 %v1594, 4294901760
    %v4634 = vsub.f32 %v1594, %v4633
    %v4635 = vand.u32 %v4634, 4294901760
    %4636 = vmatpush1.msra.mxu0 %v4635
    %4637 = vmatprep.subr.mxu0 0.0
    %4638 = vmatpush2.msra.mxu0 0.0
    %4639 = vmatprep.subr.mxu0 0.0
    %4640 = vmatpush2.msra.mxu0 0.0
    %4641 = vmatprep.subr.mxu0 0.0
    %4642 = vmatpush2.msra.mxu0 0.0
    %4643 = vmatprep.subr.mxu0 0.0
    %4644 = vmatpush2.msra.mxu0 0.0
    %4645 = vmatprep.subr.mxu0 0.0
    %4646 = vmatpush2.msra.mxu0 0.0
    %4647 = vmatprep.subr.mxu0 0.0
    %4648 = vmatpush2.msra.mxu0 0.0
    %4649 = vmatprep.subr.mxu0 0.0
    %4650 = vmatpush2.msra.mxu0 0.0
    %4651 = vmatprep.subr.mxu0 0.0
    %4652 = vmatpush2.msra.mxu0 0.0
    %4653 = vmatprep.subr.mxu0 0.0
    %4654 = vmatpush2.msra.mxu0 0.0
    %4655 = vmatprep.subr.mxu0 0.0
    %4656 = vmatpush2.msra.mxu0 0.0
    %4657 = vmatprep.subr.mxu0 0.0
    %4658 = vmatpush2.msra.mxu0 0.0
    %4659 = vmatprep.subr.mxu0 0.0
    %4660 = vmatpush2.msra.mxu0 0.0
    %4661 = vmatprep.subr.mxu0 0.0
    %4662 = vmatpush2.msra.mxu0 0.0
    %4663 = vmatprep.subr.mxu0 0.0
    %4664 = vmatpush2.msra.mxu0 0.0
    %4665 = vmatprep.subr.mxu0 0.0
    %4666 = vmatpush2.msra.mxu0 0.0
    %4667 = vmatprep.subr.mxu0 0.0
    %4668 = vmatpush2.msra.mxu0 0.0
    %4669 = vmatprep.mubr.f32.mxu0 0.0
    %v4670 = vand.u32 %v4264, 4294901760
    %4671 = vmatmul.mubr.f32.gmra.mxu0 %v4670
    %v4672 = vpop.f32.mrf.mxu0
    %v4673 = vadd.f32 %v4590, %v4672
    %v4674 = vpop.f32.mrf.mxu0
    %4675 = vdwg.mxu0
    %4676 = vmatprep.subr.mxu0 0.0
    %4677 = vmatpush1.msra.mxu0 0.0
    %4678 = vmatprep.subr.mxu0 0.0
    %4679 = vmatpush1.msra.mxu0 0.0
    %4680 = vmatprep.subr.mxu0 0.0
    %4681 = vmatpush1.msra.mxu0 0.0
    %4682 = vmatprep.subr.mxu0 0.0
    %4683 = vmatpush1.msra.mxu0 0.0
    %4684 = vmatprep.subr.mxu0 0.0
    %4685 = vmatpush1.msra.mxu0 0.0
    %4686 = vmatprep.subr.mxu0 0.0
    %4687 = vmatpush1.msra.mxu0 0.0
    %4688 = vmatprep.subr.mxu0 0.0
    %4689 = vmatpush1.msra.mxu0 0.0
    %4690 = vmatprep.subr.mxu0 0.0
    %4691 = vmatpush1.msra.mxu0 0.0
    %4692 = vmatprep.subr.mxu0 0.0
    %4693 = vmatpush1.msra.mxu0 0.0
    %4694 = vmatprep.subr.mxu0 0.0
    %4695 = vmatpush1.msra.mxu0 0.0
    %4696 = vmatprep.subr.mxu0 0.0
    %4697 = vmatpush1.msra.mxu0 0.0
    %4698 = vmatprep.subr.mxu0 0.0
    %4699 = vmatpush1.msra.mxu0 0.0
    %4700 = vmatprep.subr.mxu0 0.0
    %v4701 = vand.u32 %v1597, 4294901760
    %4702 = vmatpush1.msra.mxu0 %v4701
    %4703 = vmatprep.subr.mxu0 0.0
    %v4704 = vand.u32 %v1596, 4294901760
    %4705 = vmatpush1.msra.mxu0 %v4704
    %4706 = vmatprep.subr.mxu0 0.0
    %v4707 = vand.u32 %v1595, 4294901760
    %4708 = vmatpush1.msra.mxu0 %v4707
    %4709 = vmatprep.subr.mxu0 0.0
    %v4710 = vand.u32 %v1594, 4294901760
    %4711 = vmatpush1.msra.mxu0 %v4710
    %4712 = vmatprep.subr.mxu0 0.0
    %4713 = vmatpush2.msra.mxu0 0.0
    %4714 = vmatprep.subr.mxu0 0.0
    %4715 = vmatpush2.msra.mxu0 0.0
    %4716 = vmatprep.subr.mxu0 0.0
    %4717 = vmatpush2.msra.mxu0 0.0
    %4718 = vmatprep.subr.mxu0 0.0
    %4719 = vmatpush2.msra.mxu0 0.0
    %4720 = vmatprep.subr.mxu0 0.0
    %4721 = vmatpush2.msra.mxu0 0.0
    %4722 = vmatprep.subr.mxu0 0.0
    %4723 = vmatpush2.msra.mxu0 0.0
    %4724 = vmatprep.subr.mxu0 0.0
    %4725 = vmatpush2.msra.mxu0 0.0
    %4726 = vmatprep.subr.mxu0 0.0
    %4727 = vmatpush2.msra.mxu0 0.0
    %4728 = vmatprep.subr.mxu0 0.0
    %4729 = vmatpush2.msra.mxu0 0.0
    %4730 = vmatprep.subr.mxu0 0.0
    %4731 = vmatpush2.msra.mxu0 0.0
    %4732 = vmatprep.subr.mxu0 0.0
    %4733 = vmatpush2.msra.mxu0 0.0
    %4734 = vmatprep.subr.mxu0 0.0
    %4735 = vmatpush2.msra.mxu0 0.0
    %4736 = vmatprep.subr.mxu0 0.0
    %4737 = vmatpush2.msra.mxu0 0.0
    %4738 = vmatprep.subr.mxu0 0.0
    %4739 = vmatpush2.msra.mxu0 0.0
    %4740 = vmatprep.subr.mxu0 0.0
    %4741 = vmatpush2.msra.mxu0 0.0
    %4742 = vmatprep.subr.mxu0 0.0
    %4743 = vmatpush2.msra.mxu0 0.0
    %4744 = vmatprep.mubr.f32.mxu0 0.0
    %v4745 = vand.u32 %v4264, 4294901760
    %4746 = vmatmul.mubr.f32.gmra.mxu0 %v4745
    %v4747 = vpop.f32.mrf.mxu0
    %v4748 = vadd.f32 %v4673, %v4747
    %v4749 = vpop.f32.mrf.mxu0
    %4750 = vdwg.mxu0
    %v4752 = vrot.slane %v4748, 6
    %v4754 = vadd.f32 %v1588, %v4752
    %v4755 = vmul.f32 %v4754, 0.5
    %v4756 = vtanh.pop %v4755
    %v4757 = vadd.f32 %v4756, 1.0
    %v4758 = vmul.f32 %v4757, 0.5
    %v4759 = vtanh.pop %v4754
    %v4761 = vrot.slane %v3743, 6
    %4762 = vrot.lane.b32.xlu0 %v4761, 32
    %v4763 = vpop.permute.xlu0 %4762
    %v4765 = vmul.f32 %v4758, %v4763
    %4767 = vrot.lane.b32.xlu0 %v4759, 64
    %v4768 = vpop.permute.xlu0 %4767
    %v4770 = vmul.f32 %v4758, %v4768
    %4772 = vrot.lane.b32.xlu0 %v4770, 32
    %v4773 = vpop.permute.xlu0 %4772
    %v4775 = vadd.f32 %v4765, %v4773
    %v4776 = vtanh.pop %v4775
    %4778 = vrot.lane.b32.xlu0 %v4776, 64
    %v4779 = vpop.permute.xlu0 %4778
    %v4781 = vmul.f32 %v4758, %v4779
    %vm4782 = vcmp.gt.s32.totalorder %v1598, 2
    %vm4783 = vcmp.gt.s32.totalorder %v1598, 5
    %v4784 = vsel %vm4782, 1, 0
    %4785 = vset.pattern.permute.xlu0 0
    %4786 = vperm.xlu0 %4785, %v4784
    %v4787 = vpop.permute.xlu0 %4786
    %vm4788 = vcmp.eq.s32.totalorder %v4787, 1
    %v4790 = vrot.slane %v4262, 4
    %4791 = vrot.lane.b32.xlu0 %v4790, 32
    %v4792 = vpop.permute.xlu0 %4791
    %v4794 = vsel %vm4788, %v4792, 0.0
    %s4795 = scalar_lea.vmem [#allocation2], 4
    %4796 = vst.msk [vmem:[%s4795] sm:$0x3] %vm2634, %v4794
    %v4797 = vsel %vm4783, 1, 0
    %4798 = vset.pattern.permute.xlu0 0
    %4799 = vperm.xlu0 %4798, %v4797
    %v4800 = vpop.permute.xlu0 %4799
    %vm4801 = vcmp.eq.s32.totalorder %v4800, 1
    %v4803 = vrot.slane %v4781, 2
    %4804 = vrot.lane.b32.xlu0 %v4803, 32
    %v4805 = vpop.permute.xlu0 %4804
    %v4807 = vsel %vm4801, %v4805, 0.0
    %4809 = vrot.lane.b32.xlu0 %v4807, 32
    %v4810 = vpop.permute.xlu0 %4809
    %s4812 = scalar_lea.vmem [#allocation2], 10
    %4813 = vst.msk [vmem:[%s4812] sm:$0x3] %vm2652, %v4810
    %v4814 = vsel %vm4788, %v4792, %v3727
    %v4816 = vrot.slane %v4256, 4
    %4817 = vrot.lane.b32.xlu0 %v4816, 96
    %v4818 = vpop.permute.xlu0 %4817
    %v4820 = vsel %vm4788, %v4818, %v3736
    %v4821 = vsel %vm4801, %v4805, %v3737
    %v4823 = vrot.slane %v4775, 2
    %4824 = vrot.lane.b32.xlu0 %v4823, 96
    %v4825 = vpop.permute.xlu0 %4824
    %v4827 = vsel %vm4801, %v4825, %v3743
    %v4829 = vsel %vm1599, %v4814, 0
    %4831 = vmatprep.subr.mxu0 0.0
    %4832 = vmatpush1.msra.mxu0 0.0
    %4833 = vmatprep.subr.mxu0 0.0
    %4834 = vmatpush1.msra.mxu0 0.0
    %4835 = vmatprep.subr.mxu0 0.0
    %4836 = vmatpush1.msra.mxu0 0.0
    %4837 = vmatprep.subr.mxu0 0.0
    %4838 = vmatpush1.msra.mxu0 0.0
    %4839 = vmatprep.subr.mxu0 0.0
    %4840 = vmatpush1.msra.mxu0 0.0
    %4841 = vmatprep.subr.mxu0 0.0
    %4842 = vmatpush1.msra.mxu0 0.0
    %4843 = vmatprep.subr.mxu0 0.0
    %4844 = vmatpush1.msra.mxu0 0.0
    %4845 = vmatprep.subr.mxu0 0.0
    %4846 = vmatpush1.msra.mxu0 0.0
    %4847 = vmatprep.subr.mxu0 0.0
    %4848 = vmatpush1.msra.mxu0 0.0
    %4849 = vmatprep.subr.mxu0 0.0
    %4850 = vmatpush1.msra.mxu0 0.0
    %4851 = vmatprep.subr.mxu0 0.0
    %4852 = vmatpush1.msra.mxu0 0.0
    %4853 = vmatprep.subr.mxu0 0.0
    %4854 = vmatpush1.msra.mxu0 0.0
    %4855 = vmatprep.subr.mxu0 0.0
    %v4856 = vand.u32 %v1593, 4294901760
    %4857 = vmatpush1.msra.mxu0 %v4856
    %4858 = vmatprep.subr.mxu0 0.0
    %v4859 = vand.u32 %v1592, 4294901760
    %4860 = vmatpush1.msra.mxu0 %v4859
    %4861 = vmatprep.subr.mxu0 0.0
    %v4862 = vand.u32 %v1591, 4294901760
    %4863 = vmatpush1.msra.mxu0 %v4862
    %4864 = vmatprep.subr.mxu0 0.0
    %v4865 = vand.u32 %v1590, 4294901760
    %4866 = vmatpush1.msra.mxu0 %v4865
    %4867 = vmatprep.subr.mxu0 0.0
    %4868 = vmatpush2.msra.mxu0 0.0
    %4869 = vmatprep.subr.mxu0 0.0
    %4870 = vmatpush2.msra.mxu0 0.0
    %4871 = vmatprep.subr.mxu0 0.0
    %4872 = vmatpush2.msra.mxu0 0.0
    %4873 = vmatprep.subr.mxu0 0.0
    %4874 = vmatpush2.msra.mxu0 0.0
    %4875 = vmatprep.subr.mxu0 0.0
    %4876 = vmatpush2.msra.mxu0 0.0
    %4877 = vmatprep.subr.mxu0 0.0
    %4878 = vmatpush2.msra.mxu0 0.0
    %4879 = vmatprep.subr.mxu0 0.0
    %4880 = vmatpush2.msra.mxu0 0.0
    %4881 = vmatprep.subr.mxu0 0.0
    %4882 = vmatpush2.msra.mxu0 0.0
    %4883 = vmatprep.subr.mxu0 0.0
    %4884 = vmatpush2.msra.mxu0 0.0
    %4885 = vmatprep.subr.mxu0 0.0
    %4886 = vmatpush2.msra.mxu0 0.0
    %4887 = vmatprep.subr.mxu0 0.0
    %4888 = vmatpush2.msra.mxu0 0.0
    %4889 = vmatprep.subr.mxu0 0.0
    %4890 = vmatpush2.msra.mxu0 0.0
    %4891 = vmatprep.subr.mxu0 0.0
    %4892 = vmatpush2.msra.mxu0 0.0
    %4893 = vmatprep.subr.mxu0 0.0
    %4894 = vmatpush2.msra.mxu0 0.0
    %4895 = vmatprep.subr.mxu0 0.0
    %4896 = vmatpush2.msra.mxu0 0.0
    %4897 = vmatprep.subr.mxu0 0.0
    %4898 = vmatpush2.msra.mxu0 0.0
    %4899 = vmatprep.mubr.f32.mxu0 0.0
    %v4900 = vand.u32 %v4829, 4294901760
    %v4901 = vsub.f32 %v4829, %v4900
    %v4902 = vand.u32 %v4901, 4294901760
    %v4903 = vsub.f32 %v4901, %v4902
    %v4904 = vand.u32 %v4903, 4294901760
    %4905 = vmatmul.mubr.f32.gmra.mxu0 %v4904
    %v4906 = vpop.f32.mrf.mxu0
    %v4907 = vadd.f32 0.0, %v4906
    %v4908 = vpop.f32.mrf.mxu0
    %4909 = vdwg.mxu0
    %4910 = vmatprep.subr.mxu0 0.0
    %4911 = vmatpush1.msra.mxu0 0.0
    %4912 = vmatprep.subr.mxu0 0.0
    %4913 = vmatpush1.msra.mxu0 0.0
    %4914 = vmatprep.subr.mxu0 0.0
    %4915 = vmatpush1.msra.mxu0 0.0
    %4916 = vmatprep.subr.mxu0 0.0
    %4917 = vmatpush1.msra.mxu0 0.0
    %4918 = vmatprep.subr.mxu0 0.0
    %4919 = vmatpush1.msra.mxu0 0.0
    %4920 = vmatprep.subr.mxu0 0.0
    %4921 = vmatpush1.msra.mxu0 0.0
    %4922 = vmatprep.subr.mxu0 0.0
    %4923 = vmatpush1.msra.mxu0 0.0
    %4924 = vmatprep.subr.mxu0 0.0
    %4925 = vmatpush1.msra.mxu0 0.0
    %4926 = vmatprep.subr.mxu0 0.0
    %4927 = vmatpush1.msra.mxu0 0.0
    %4928 = vmatprep.subr.mxu0 0.0
    %4929 = vmatpush1.msra.mxu0 0.0
    %4930 = vmatprep.subr.mxu0 0.0
    %4931 = vmatpush1.msra.mxu0 0.0
    %4932 = vmatprep.subr.mxu0 0.0
    %4933 = vmatpush1.msra.mxu0 0.0
    %4934 = vmatprep.subr.mxu0 0.0
    %v4935 = vand.u32 %v1593, 4294901760
    %v4936 = vsub.f32 %v1593, %v4935
    %v4937 = vand.u32 %v4936, 4294901760
    %v4938 = vsub.f32 %v4936, %v4937
    %v4939 = vand.u32 %v4938, 4294901760
    %4940 = vmatpush1.msra.mxu0 %v4939
    %4941 = vmatprep.subr.mxu0 0.0
    %v4942 = vand.u32 %v1592, 4294901760
    %v4943 = vsub.f32 %v1592, %v4942
    %v4944 = vand.u32 %v4943, 4294901760
    %v4945 = vsub.f32 %v4943, %v4944
    %v4946 = vand.u32 %v4945, 4294901760
    %4947 = vmatpush1.msra.mxu0 %v4946
    %4948 = vmatprep.subr.mxu0 0.0
    %v4949 = vand.u32 %v1591, 4294901760
    %v4950 = vsub.f32 %v1591, %v4949
    %v4951 = vand.u32 %v4950, 4294901760
    %v4952 = vsub.f32 %v4950, %v4951
    %v4953 = vand.u32 %v4952, 4294901760
    %4954 = vmatpush1.msra.mxu0 %v4953
    %4955 = vmatprep.subr.mxu0 0.0
    %v4956 = vand.u32 %v1590, 4294901760
    %v4957 = vsub.f32 %v1590, %v4956
    %v4958 = vand.u32 %v4957, 4294901760
    %v4959 = vsub.f32 %v4957, %v4958
    %v4960 = vand.u32 %v4959, 4294901760
    %4961 = vmatpush1.msra.mxu0 %v4960
    %4962 = vmatprep.subr.mxu0 0.0
    %4963 = vmatpush2.msra.mxu0 0.0
    %4964 = vmatprep.subr.mxu0 0.0
    %4965 = vmatpush2.msra.mxu0 0.0
    %4966 = vmatprep.subr.mxu0 0.0
    %4967 = vmatpush2.msra.mxu0 0.0
    %4968 = vmatprep.subr.mxu0 0.0
    %4969 = vmatpush2.msra.mxu0 0.0
    %4970 = vmatprep.subr.mxu0 0.0
    %4971 = vmatpush2.msra.mxu0 0.0
    %4972 = vmatprep.subr.mxu0 0.0
    %4973 = vmatpush2.msra.mxu0 0.0
    %4974 = vmatprep.subr.mxu0 0.0
    %4975 = vmatpush2.msra.mxu0 0.0
    %4976 = vmatprep.subr.mxu0 0.0
    %4977 = vmatpush2.msra.mxu0 0.0
    %4978 = vmatprep.subr.mxu0 0.0
    %4979 = vmatpush2.msra.mxu0 0.0
    %4980 = vmatprep.subr.mxu0 0.0
    %4981 = vmatpush2.msra.mxu0 0.0
    %4982 = vmatprep.subr.mxu0 0.0
    %4983 = vmatpush2.msra.mxu0 0.0
    %4984 = vmatprep.subr.mxu0 0.0
    %4985 = vmatpush2.msra.mxu0 0.0
    %4986 = vmatprep.subr.mxu0 0.0
    %4987 = vmatpush2.msra.mxu0 0.0
    %4988 = vmatprep.subr.mxu0 0.0
    %4989 = vmatpush2.msra.mxu0 0.0
    %4990 = vmatprep.subr.mxu0 0.0
    %4991 = vmatpush2.msra.mxu0 0.0
    %4992 = vmatprep.subr.mxu0 0.0
    %4993 = vmatpush2.msra.mxu0 0.0
    %4994 = vmatprep.mubr.f32.mxu0 0.0
    %v4995 = vand.u32 %v4829, 4294901760
    %4996 = vmatmul.mubr.f32.gmra.mxu0 %v4995
    %v4997 = vpop.f32.mrf.mxu0
    %v4998 = vadd.f32 %v4907, %v4997
    %v4999 = vpop.f32.mrf.mxu0
    %5000 = vdwg.mxu0
    %5001 = vmatprep.subr.mxu0 0.0
    %5002 = vmatpush1.msra.mxu0 0.0
    %5003 = vmatprep.subr.mxu0 0.0
    %5004 = vmatpush1.msra.mxu0 0.0
    %5005 = vmatprep.subr.mxu0 0.0
    %5006 = vmatpush1.msra.mxu0 0.0
    %5007 = vmatprep.subr.mxu0 0.0
    %5008 = vmatpush1.msra.mxu0 0.0
    %5009 = vmatprep.subr.mxu0 0.0
    %5010 = vmatpush1.msra.mxu0 0.0
    %5011 = vmatprep.subr.mxu0 0.0
    %5012 = vmatpush1.msra.mxu0 0.0
    %5013 = vmatprep.subr.mxu0 0.0
    %5014 = vmatpush1.msra.mxu0 0.0
    %5015 = vmatprep.subr.mxu0 0.0
    %5016 = vmatpush1.msra.mxu0 0.0
    %5017 = vmatprep.subr.mxu0 0.0
    %5018 = vmatpush1.msra.mxu0 0.0
    %5019 = vmatprep.subr.mxu0 0.0
    %5020 = vmatpush1.msra.mxu0 0.0
    %5021 = vmatprep.subr.mxu0 0.0
    %5022 = vmatpush1.msra.mxu0 0.0
    %5023 = vmatprep.subr.mxu0 0.0
    %5024 = vmatpush1.msra.mxu0 0.0
    %5025 = vmatprep.subr.mxu0 0.0
    %v5026 = vand.u32 %v1593, 4294901760
    %v5027 = vsub.f32 %v1593, %v5026
    %5028 = vmatpush1.msra.mxu0 %v5027
    %5029 = vmatprep.subr.mxu0 0.0
    %v5030 = vand.u32 %v1592, 4294901760
    %v5031 = vsub.f32 %v1592, %v5030
    %5032 = vmatpush1.msra.mxu0 %v5031
    %5033 = vmatprep.subr.mxu0 0.0
    %v5034 = vand.u32 %v1591, 4294901760
    %v5035 = vsub.f32 %v1591, %v5034
    %5036 = vmatpush1.msra.mxu0 %v5035
    %5037 = vmatprep.subr.mxu0 0.0
    %v5038 = vand.u32 %v1590, 4294901760
    %v5039 = vsub.f32 %v1590, %v5038
    %5040 = vmatpush1.msra.mxu0 %v5039
    %5041 = vmatprep.subr.mxu0 0.0
    %5042 = vmatpush2.msra.mxu0 0.0
    %5043 = vmatprep.subr.mxu0 0.0
    %5044 = vmatpush2.msra.mxu0 0.0
    %5045 = vmatprep.subr.mxu0 0.0
    %5046 = vmatpush2.msra.mxu0 0.0
    %5047 = vmatprep.subr.mxu0 0.0
    %5048 = vmatpush2.msra.mxu0 0.0
    %5049 = vmatprep.subr.mxu0 0.0
    %5050 = vmatpush2.msra.mxu0 0.0
    %5051 = vmatprep.subr.mxu0 0.0
    %5052 = vmatpush2.msra.mxu0 0.0
    %5053 = vmatprep.subr.mxu0 0.0
    %5054 = vmatpush2.msra.mxu0 0.0
    %5055 = vmatprep.subr.mxu0 0.0
    %5056 = vmatpush2.msra.mxu0 0.0
    %5057 = vmatprep.subr.mxu0 0.0
    %5058 = vmatpush2.msra.mxu0 0.0
    %5059 = vmatprep.subr.mxu0 0.0
    %5060 = vmatpush2.msra.mxu0 0.0
    %5061 = vmatprep.subr.mxu0 0.0
    %5062 = vmatpush2.msra.mxu0 0.0
    %5063 = vmatprep.subr.mxu0 0.0
    %5064 = vmatpush2.msra.mxu0 0.0
    %5065 = vmatprep.subr.mxu0 0.0
    %5066 = vmatpush2.msra.mxu0 0.0
    %5067 = vmatprep.subr.mxu0 0.0
    %5068 = vmatpush2.msra.mxu0 0.0
    %5069 = vmatprep.subr.mxu0 0.0
    %5070 = vmatpush2.msra.mxu0 0.0
    %5071 = vmatprep.subr.mxu0 0.0
    %5072 = vmatpush2.msra.mxu0 0.0
    %5073 = vmatprep.mubr.f32.mxu0 0.0
    %v5074 = vand.u32 %v4829, 4294901760
    %v5075 = vsub.f32 %v4829, %v5074
    %5076 = vmatmul.mubr.f32.gmra.mxu0 %v5075
    %v5077 = vpop.f32.mrf.mxu0
    %v5078 = vadd.f32 %v4998, %v5077
    %v5079 = vpop.f32.mrf.mxu0
    %5080 = vdwg.mxu0
    %5081 = vmatprep.subr.mxu0 0.0
    %5082 = vmatpush1.msra.mxu0 0.0
    %5083 = vmatprep.subr.mxu0 0.0
    %5084 = vmatpush1.msra.mxu0 0.0
    %5085 = vmatprep.subr.mxu0 0.0
    %5086 = vmatpush1.msra.mxu0 0.0
    %5087 = vmatprep.subr.mxu0 0.0
    %5088 = vmatpush1.msra.mxu0 0.0
    %5089 = vmatprep.subr.mxu0 0.0
    %5090 = vmatpush1.msra.mxu0 0.0
    %5091 = vmatprep.subr.mxu0 0.0
    %5092 = vmatpush1.msra.mxu0 0.0
    %5093 = vmatprep.subr.mxu0 0.0
    %5094 = vmatpush1.msra.mxu0 0.0
    %5095 = vmatprep.subr.mxu0 0.0
    %5096 = vmatpush1.msra.mxu0 0.0
    %5097 = vmatprep.subr.mxu0 0.0
    %5098 = vmatpush1.msra.mxu0 0.0
    %5099 = vmatprep.subr.mxu0 0.0
    %5100 = vmatpush1.msra.mxu0 0.0
    %5101 = vmatprep.subr.mxu0 0.0
    %5102 = vmatpush1.msra.mxu0 0.0
    %5103 = vmatprep.subr.mxu0 0.0
    %5104 = vmatpush1.msra.mxu0 0.0
    %5105 = vmatprep.subr.mxu0 0.0
    %v5106 = vand.u32 %v1593, 4294901760
    %5107 = vmatpush1.msra.mxu0 %v5106
    %5108 = vmatprep.subr.mxu0 0.0
    %v5109 = vand.u32 %v1592, 4294901760
    %5110 = vmatpush1.msra.mxu0 %v5109
    %5111 = vmatprep.subr.mxu0 0.0
    %v5112 = vand.u32 %v1591, 4294901760
    %5113 = vmatpush1.msra.mxu0 %v5112
    %5114 = vmatprep.subr.mxu0 0.0
    %v5115 = vand.u32 %v1590, 4294901760
    %5116 = vmatpush1.msra.mxu0 %v5115
    %5117 = vmatprep.subr.mxu0 0.0
    %5118 = vmatpush2.msra.mxu0 0.0
    %5119 = vmatprep.subr.mxu0 0.0
    %5120 = vmatpush2.msra.mxu0 0.0
    %5121 = vmatprep.subr.mxu0 0.0
    %5122 = vmatpush2.msra.mxu0 0.0
    %5123 = vmatprep.subr.mxu0 0.0
    %5124 = vmatpush2.msra.mxu0 0.0
    %5125 = vmatprep.subr.mxu0 0.0
    %5126 = vmatpush2.msra.mxu0 0.0
    %5127 = vmatprep.subr.mxu0 0.0
    %5128 = vmatpush2.msra.mxu0 0.0
    %5129 = vmatprep.subr.mxu0 0.0
    %5130 = vmatpush2.msra.mxu0 0.0
    %5131 = vmatprep.subr.mxu0 0.0
    %5132 = vmatpush2.msra.mxu0 0.0
    %5133 = vmatprep.subr.mxu0 0.0
    %5134 = vmatpush2.msra.mxu0 0.0
    %5135 = vmatprep.subr.mxu0 0.0
    %5136 = vmatpush2.msra.mxu0 0.0
    %5137 = vmatprep.subr.mxu0 0.0
    %5138 = vmatpush2.msra.mxu0 0.0
    %5139 = vmatprep.subr.mxu0 0.0
    %5140 = vmatpush2.msra.mxu0 0.0
    %5141 = vmatprep.subr.mxu0 0.0
    %5142 = vmatpush2.msra.mxu0 0.0
    %5143 = vmatprep.subr.mxu0 0.0
    %5144 = vmatpush2.msra.mxu0 0.0
    %5145 = vmatprep.subr.mxu0 0.0
    %5146 = vmatpush2.msra.mxu0 0.0
    %5147 = vmatprep.subr.mxu0 0.0
    %5148 = vmatpush2.msra.mxu0 0.0
    %5149 = vmatprep.mubr.f32.mxu0 0.0
    %v5150 = vand.u32 %v4829, 4294901760
    %v5151 = vsub.f32 %v4829, %v5150
    %v5152 = vand.u32 %v5151, 4294901760
    %5153 = vmatmul.mubr.f32.gmra.mxu0 %v5152
    %v5154 = vpop.f32.mrf.mxu0
    %v5155 = vadd.f32 %v5078, %v5154
    %v5156 = vpop.f32.mrf.mxu0
    %5157 = vdwg.mxu0
    %5158 = vmatprep.subr.mxu0 0.0
    %5159 = vmatpush1.msra.mxu0 0.0
    %5160 = vmatprep.subr.mxu0 0.0
    %5161 = vmatpush1.msra.mxu0 0.0
    %5162 = vmatprep.subr.mxu0 0.0
    %5163 = vmatpush1.msra.mxu0 0.0
    %5164 = vmatprep.subr.mxu0 0.0
    %5165 = vmatpush1.msra.mxu0 0.0
    %5166 = vmatprep.subr.mxu0 0.0
    %5167 = vmatpush1.msra.mxu0 0.0
    %5168 = vmatprep.subr.mxu0 0.0
    %5169 = vmatpush1.msra.mxu0 0.0
    %5170 = vmatprep.subr.mxu0 0.0
    %5171 = vmatpush1.msra.mxu0 0.0
    %5172 = vmatprep.subr.mxu0 0.0
    %5173 = vmatpush1.msra.mxu0 0.0
    %5174 = vmatprep.subr.mxu0 0.0
    %5175 = vmatpush1.msra.mxu0 0.0
    %5176 = vmatprep.subr.mxu0 0.0
    %5177 = vmatpush1.msra.mxu0 0.0
    %5178 = vmatprep.subr.mxu0 0.0
    %5179 = vmatpush1.msra.mxu0 0.0
    %5180 = vmatprep.subr.mxu0 0.0
    %5181 = vmatpush1.msra.mxu0 0.0
    %5182 = vmatprep.subr.mxu0 0.0
    %v5183 = vand.u32 %v1593, 4294901760
    %v5184 = vsub.f32 %v1593, %v5183
    %v5185 = vand.u32 %v5184, 4294901760
    %5186 = vmatpush1.msra.mxu0 %v5185
    %5187 = vmatprep.subr.mxu0 0.0
    %v5188 = vand.u32 %v1592, 4294901760
    %v5189 = vsub.f32 %v1592, %v5188
    %v5190 = vand.u32 %v5189, 4294901760
    %5191 = vmatpush1.msra.mxu0 %v5190
    %5192 = vmatprep.subr.mxu0 0.0
    %v5193 = vand.u32 %v1591, 4294901760
    %v5194 = vsub.f32 %v1591, %v5193
    %v5195 = vand.u32 %v5194, 4294901760
    %5196 = vmatpush1.msra.mxu0 %v5195
    %5197 = vmatprep.subr.mxu0 0.0
    %v5198 = vand.u32 %v1590, 4294901760
    %v5199 = vsub.f32 %v1590, %v5198
    %v5200 = vand.u32 %v5199, 4294901760
    %5201 = vmatpush1.msra.mxu0 %v5200
    %5202 = vmatprep.subr.mxu0 0.0
    %5203 = vmatpush2.msra.mxu0 0.0
    %5204 = vmatprep.subr.mxu0 0.0
    %5205 = vmatpush2.msra.mxu0 0.0
    %5206 = vmatprep.subr.mxu0 0.0
    %5207 = vmatpush2.msra.mxu0 0.0
    %5208 = vmatprep.subr.mxu0 0.0
    %5209 = vmatpush2.msra.mxu0 0.0
    %5210 = vmatprep.subr.mxu0 0.0
    %5211 = vmatpush2.msra.mxu0 0.0
    %5212 = vmatprep.subr.mxu0 0.0
    %5213 = vmatpush2.msra.mxu0 0.0
    %5214 = vmatprep.subr.mxu0 0.0
    %5215 = vmatpush2.msra.mxu0 0.0
    %5216 = vmatprep.subr.mxu0 0.0
    %5217 = vmatpush2.msra.mxu0 0.0
    %5218 = vmatprep.subr.mxu0 0.0
    %5219 = vmatpush2.msra.mxu0 0.0
    %5220 = vmatprep.subr.mxu0 0.0
    %5221 = vmatpush2.msra.mxu0 0.0
    %5222 = vmatprep.subr.mxu0 0.0
    %5223 = vmatpush2.msra.mxu0 0.0
    %5224 = vmatprep.subr.mxu0 0.0
    %5225 = vmatpush2.msra.mxu0 0.0
    %5226 = vmatprep.subr.mxu0 0.0
    %5227 = vmatpush2.msra.mxu0 0.0
    %5228 = vmatprep.subr.mxu0 0.0
    %5229 = vmatpush2.msra.mxu0 0.0
    %5230 = vmatprep.subr.mxu0 0.0
    %5231 = vmatpush2.msra.mxu0 0.0
    %5232 = vmatprep.subr.mxu0 0.0
    %5233 = vmatpush2.msra.mxu0 0.0
    %5234 = vmatprep.mubr.f32.mxu0 0.0
    %v5235 = vand.u32 %v4829, 4294901760
    %5236 = vmatmul.mubr.f32.gmra.mxu0 %v5235
    %v5237 = vpop.f32.mrf.mxu0
    %v5238 = vadd.f32 %v5155, %v5237
    %v5239 = vpop.f32.mrf.mxu0
    %5240 = vdwg.mxu0
    %5241 = vmatprep.subr.mxu0 0.0
    %5242 = vmatpush1.msra.mxu0 0.0
    %5243 = vmatprep.subr.mxu0 0.0
    %5244 = vmatpush1.msra.mxu0 0.0
    %5245 = vmatprep.subr.mxu0 0.0
    %5246 = vmatpush1.msra.mxu0 0.0
    %5247 = vmatprep.subr.mxu0 0.0
    %5248 = vmatpush1.msra.mxu0 0.0
    %5249 = vmatprep.subr.mxu0 0.0
    %5250 = vmatpush1.msra.mxu0 0.0
    %5251 = vmatprep.subr.mxu0 0.0
    %5252 = vmatpush1.msra.mxu0 0.0
    %5253 = vmatprep.subr.mxu0 0.0
    %5254 = vmatpush1.msra.mxu0 0.0
    %5255 = vmatprep.subr.mxu0 0.0
    %5256 = vmatpush1.msra.mxu0 0.0
    %5257 = vmatprep.subr.mxu0 0.0
    %5258 = vmatpush1.msra.mxu0 0.0
    %5259 = vmatprep.subr.mxu0 0.0
    %5260 = vmatpush1.msra.mxu0 0.0
    %5261 = vmatprep.subr.mxu0 0.0
    %5262 = vmatpush1.msra.mxu0 0.0
    %5263 = vmatprep.subr.mxu0 0.0
    %5264 = vmatpush1.msra.mxu0 0.0
    %5265 = vmatprep.subr.mxu0 0.0
    %v5266 = vand.u32 %v1593, 4294901760
    %5267 = vmatpush1.msra.mxu0 %v5266
    %5268 = vmatprep.subr.mxu0 0.0
    %v5269 = vand.u32 %v1592, 4294901760
    %5270 = vmatpush1.msra.mxu0 %v5269
    %5271 = vmatprep.subr.mxu0 0.0
    %v5272 = vand.u32 %v1591, 4294901760
    %5273 = vmatpush1.msra.mxu0 %v5272
    %5274 = vmatprep.subr.mxu0 0.0
    %v5275 = vand.u32 %v1590, 4294901760
    %5276 = vmatpush1.msra.mxu0 %v5275
    %5277 = vmatprep.subr.mxu0 0.0
    %5278 = vmatpush2.msra.mxu0 0.0
    %5279 = vmatprep.subr.mxu0 0.0
    %5280 = vmatpush2.msra.mxu0 0.0
    %5281 = vmatprep.subr.mxu0 0.0
    %5282 = vmatpush2.msra.mxu0 0.0
    %5283 = vmatprep.subr.mxu0 0.0
    %5284 = vmatpush2.msra.mxu0 0.0
    %5285 = vmatprep.subr.mxu0 0.0
    %5286 = vmatpush2.msra.mxu0 0.0
    %5287 = vmatprep.subr.mxu0 0.0
    %5288 = vmatpush2.msra.mxu0 0.0
    %5289 = vmatprep.subr.mxu0 0.0
    %5290 = vmatpush2.msra.mxu0 0.0
    %5291 = vmatprep.subr.mxu0 0.0
    %5292 = vmatpush2.msra.mxu0 0.0
    %5293 = vmatprep.subr.mxu0 0.0
    %5294 = vmatpush2.msra.mxu0 0.0
    %5295 = vmatprep.subr.mxu0 0.0
    %5296 = vmatpush2.msra.mxu0 0.0
    %5297 = vmatprep.subr.mxu0 0.0
    %5298 = vmatpush2.msra.mxu0 0.0
    %5299 = vmatprep.subr.mxu0 0.0
    %5300 = vmatpush2.msra.mxu0 0.0
    %5301 = vmatprep.subr.mxu0 0.0
    %5302 = vmatpush2.msra.mxu0 0.0
    %5303 = vmatprep.subr.mxu0 0.0
    %5304 = vmatpush2.msra.mxu0 0.0
    %5305 = vmatprep.subr.mxu0 0.0
    %5306 = vmatpush2.msra.mxu0 0.0
    %5307 = vmatprep.subr.mxu0 0.0
    %5308 = vmatpush2.msra.mxu0 0.0
    %5309 = vmatprep.mubr.f32.mxu0 0.0
    %v5310 = vand.u32 %v4829, 4294901760
    %5311 = vmatmul.mubr.f32.gmra.mxu0 %v5310
    %v5312 = vpop.f32.mrf.mxu0
    %v5313 = vadd.f32 %v5238, %v5312
    %v5314 = vpop.f32.mrf.mxu0
    %5315 = vdwg.mxu0
    %v5317 = vrot.slane %v5313, 2
    %v5319 = vadd.f32 %v1579, %v5317
    %v5320 = vmul.f32 %v5319, 0.5
    %v5321 = vtanh.pop %v5320
    %v5322 = vadd.f32 %v5321, 1.0
    %v5323 = vmul.f32 %v5322, 0.5
    %v5324 = vtanh.pop %v5319
    %v5326 = vrot.slane %v4820, 2
    %5327 = vrot.lane.b32.xlu0 %v5326, 32
    %v5328 = vpop.permute.xlu0 %5327
    %v5330 = vmul.f32 %v5323, %v5328
    %5332 = vrot.lane.b32.xlu0 %v5324, 64
    %v5333 = vpop.permute.xlu0 %5332
    %v5335 = vmul.f32 %v5323, %v5333
    %5337 = vrot.lane.b32.xlu0 %v5335, 32
    %v5338 = vpop.permute.xlu0 %5337
    %v5340 = vadd.f32 %v5330, %v5338
    %v5341 = vtanh.pop %v5340
    %5343 = vrot.lane.b32.xlu0 %v5341, 64
    %v5344 = vpop.permute.xlu0 %5343
    %v5346 = vmul.f32 %v5323, %v5344
    %v5348 = vsel %vm1599, %v4821, 0
    %5350 = vmatprep.subr.mxu0 0.0
    %5351 = vmatpush1.msra.mxu0 0.0
    %5352 = vmatprep.subr.mxu0 0.0
    %5353 = vmatpush1.msra.mxu0 0.0
    %5354 = vmatprep.subr.mxu0 0.0
    %5355 = vmatpush1.msra.mxu0 0.0
    %5356 = vmatprep.subr.mxu0 0.0
    %5357 = vmatpush1.msra.mxu0 0.0
    %5358 = vmatprep.subr.mxu0 0.0
    %5359 = vmatpush1.msra.mxu0 0.0
    %5360 = vmatprep.subr.mxu0 0.0
    %5361 = vmatpush1.msra.mxu0 0.0
    %5362 = vmatprep.subr.mxu0 0.0
    %5363 = vmatpush1.msra.mxu0 0.0
    %5364 = vmatprep.subr.mxu0 0.0
    %5365 = vmatpush1.msra.mxu0 0.0
    %5366 = vmatprep.subr.mxu0 0.0
    %5367 = vmatpush1.msra.mxu0 0.0
    %5368 = vmatprep.subr.mxu0 0.0
    %5369 = vmatpush1.msra.mxu0 0.0
    %5370 = vmatprep.subr.mxu0 0.0
    %5371 = vmatpush1.msra.mxu0 0.0
    %5372 = vmatprep.subr.mxu0 0.0
    %5373 = vmatpush1.msra.mxu0 0.0
    %5374 = vmatprep.subr.mxu0 0.0
    %v5375 = vand.u32 %v1597, 4294901760
    %5376 = vmatpush1.msra.mxu0 %v5375
    %5377 = vmatprep.subr.mxu0 0.0
    %v5378 = vand.u32 %v1596, 4294901760
    %5379 = vmatpush1.msra.mxu0 %v5378
    %5380 = vmatprep.subr.mxu0 0.0
    %v5381 = vand.u32 %v1595, 4294901760
    %5382 = vmatpush1.msra.mxu0 %v5381
    %5383 = vmatprep.subr.mxu0 0.0
    %v5384 = vand.u32 %v1594, 4294901760
    %5385 = vmatpush1.msra.mxu0 %v5384
    %5386 = vmatprep.subr.mxu0 0.0
    %5387 = vmatpush2.msra.mxu0 0.0
    %5388 = vmatprep.subr.mxu0 0.0
    %5389 = vmatpush2.msra.mxu0 0.0
    %5390 = vmatprep.subr.mxu0 0.0
    %5391 = vmatpush2.msra.mxu0 0.0
    %5392 = vmatprep.subr.mxu0 0.0
    %5393 = vmatpush2.msra.mxu0 0.0
    %5394 = vmatprep.subr.mxu0 0.0
    %5395 = vmatpush2.msra.mxu0 0.0
    %5396 = vmatprep.subr.mxu0 0.0
    %5397 = vmatpush2.msra.mxu0 0.0
    %5398 = vmatprep.subr.mxu0 0.0
    %5399 = vmatpush2.msra.mxu0 0.0
    %5400 = vmatprep.subr.mxu0 0.0
    %5401 = vmatpush2.msra.mxu0 0.0
    %5402 = vmatprep.subr.mxu0 0.0
    %5403 = vmatpush2.msra.mxu0 0.0
    %5404 = vmatprep.subr.mxu0 0.0
    %5405 = vmatpush2.msra.mxu0 0.0
    %5406 = vmatprep.subr.mxu0 0.0
    %5407 = vmatpush2.msra.mxu0 0.0
    %5408 = vmatprep.subr.mxu0 0.0
    %5409 = vmatpush2.msra.mxu0 0.0
    %5410 = vmatprep.subr.mxu0 0.0
    %5411 = vmatpush2.msra.mxu0 0.0
    %5412 = vmatprep.subr.mxu0 0.0
    %5413 = vmatpush2.msra.mxu0 0.0
    %5414 = vmatprep.subr.mxu0 0.0
    %5415 = vmatpush2.msra.mxu0 0.0
    %5416 = vmatprep.subr.mxu0 0.0
    %5417 = vmatpush2.msra.mxu0 0.0
    %5418 = vmatprep.mubr.f32.mxu0 0.0
    %v5419 = vand.u32 %v5348, 4294901760
    %v5420 = vsub.f32 %v5348, %v5419
    %v5421 = vand.u32 %v5420, 4294901760
    %v5422 = vsub.f32 %v5420, %v5421
    %v5423 = vand.u32 %v5422, 4294901760
    %5424 = vmatmul.mubr.f32.gmra.mxu0 %v5423
    %v5425 = vpop.f32.mrf.mxu0
    %v5426 = vadd.f32 0.0, %v5425
    %v5427 = vpop.f32.mrf.mxu0
    %5428 = vdwg.mxu0
    %5429 = vmatprep.subr.mxu0 0.0
    %5430 = vmatpush1.msra.mxu0 0.0
    %5431 = vmatprep.subr.mxu0 0.0
    %5432 = vmatpush1.msra.mxu0 0.0
    %5433 = vmatprep.subr.mxu0 0.0
    %5434 = vmatpush1.msra.mxu0 0.0
    %5435 = vmatprep.subr.mxu0 0.0
    %5436 = vmatpush1.msra.mxu0 0.0
    %5437 = vmatprep.subr.mxu0 0.0
    %5438 = vmatpush1.msra.mxu0 0.0
    %5439 = vmatprep.subr.mxu0 0.0
    %5440 = vmatpush1.msra.mxu0 0.0
    %5441 = vmatprep.subr.mxu0 0.0
    %5442 = vmatpush1.msra.mxu0 0.0
    %5443 = vmatprep.subr.mxu0 0.0
    %5444 = vmatpush1.msra.mxu0 0.0
    %5445 = vmatprep.subr.mxu0 0.0
    %5446 = vmatpush1.msra.mxu0 0.0
    %5447 = vmatprep.subr.mxu0 0.0
    %5448 = vmatpush1.msra.mxu0 0.0
    %5449 = vmatprep.subr.mxu0 0.0
    %5450 = vmatpush1.msra.mxu0 0.0
    %5451 = vmatprep.subr.mxu0 0.0
    %5452 = vmatpush1.msra.mxu0 0.0
    %5453 = vmatprep.subr.mxu0 0.0
    %v5454 = vand.u32 %v1597, 4294901760
    %v5455 = vsub.f32 %v1597, %v5454
    %v5456 = vand.u32 %v5455, 4294901760
    %v5457 = vsub.f32 %v5455, %v5456
    %v5458 = vand.u32 %v5457, 4294901760
    %5459 = vmatpush1.msra.mxu0 %v5458
    %5460 = vmatprep.subr.mxu0 0.0
    %v5461 = vand.u32 %v1596, 4294901760
    %v5462 = vsub.f32 %v1596, %v5461
    %v5463 = vand.u32 %v5462, 4294901760
    %v5464 = vsub.f32 %v5462, %v5463
    %v5465 = vand.u32 %v5464, 4294901760
    %5466 = vmatpush1.msra.mxu0 %v5465
    %5467 = vmatprep.subr.mxu0 0.0
    %v5468 = vand.u32 %v1595, 4294901760
    %v5469 = vsub.f32 %v1595, %v5468
    %v5470 = vand.u32 %v5469, 4294901760
    %v5471 = vsub.f32 %v5469, %v5470
    %v5472 = vand.u32 %v5471, 4294901760
    %5473 = vmatpush1.msra.mxu0 %v5472
    %5474 = vmatprep.subr.mxu0 0.0
    %v5475 = vand.u32 %v1594, 4294901760
    %v5476 = vsub.f32 %v1594, %v5475
    %v5477 = vand.u32 %v5476, 4294901760
    %v5478 = vsub.f32 %v5476, %v5477
    %v5479 = vand.u32 %v5478, 4294901760
    %5480 = vmatpush1.msra.mxu0 %v5479
    %5481 = vmatprep.subr.mxu0 0.0
    %5482 = vmatpush2.msra.mxu0 0.0
    %5483 = vmatprep.subr.mxu0 0.0
    %5484 = vmatpush2.msra.mxu0 0.0
    %5485 = vmatprep.subr.mxu0 0.0
    %5486 = vmatpush2.msra.mxu0 0.0
    %5487 = vmatprep.subr.mxu0 0.0
    %5488 = vmatpush2.msra.mxu0 0.0
    %5489 = vmatprep.subr.mxu0 0.0
    %5490 = vmatpush2.msra.mxu0 0.0
    %5491 = vmatprep.subr.mxu0 0.0
    %5492 = vmatpush2.msra.mxu0 0.0
    %5493 = vmatprep.subr.mxu0 0.0
    %5494 = vmatpush2.msra.mxu0 0.0
    %5495 = vmatprep.subr.mxu0 0.0
    %5496 = vmatpush2.msra.mxu0 0.0
    %5497 = vmatprep.subr.mxu0 0.0
    %5498 = vmatpush2.msra.mxu0 0.0
    %5499 = vmatprep.subr.mxu0 0.0
    %5500 = vmatpush2.msra.mxu0 0.0
    %5501 = vmatprep.subr.mxu0 0.0
    %5502 = vmatpush2.msra.mxu0 0.0
    %5503 = vmatprep.subr.mxu0 0.0
    %5504 = vmatpush2.msra.mxu0 0.0
    %5505 = vmatprep.subr.mxu0 0.0
    %5506 = vmatpush2.msra.mxu0 0.0
    %5507 = vmatprep.subr.mxu0 0.0
    %5508 = vmatpush2.msra.mxu0 0.0
    %5509 = vmatprep.subr.mxu0 0.0
    %5510 = vmatpush2.msra.mxu0 0.0
    %5511 = vmatprep.subr.mxu0 0.0
    %5512 = vmatpush2.msra.mxu0 0.0
    %5513 = vmatprep.mubr.f32.mxu0 0.0
    %v5514 = vand.u32 %v5348, 4294901760
    %5515 = vmatmul.mubr.f32.gmra.mxu0 %v5514
    %v5516 = vpop.f32.mrf.mxu0
    %v5517 = vadd.f32 %v5426, %v5516
    %v5518 = vpop.f32.mrf.mxu0
    %5519 = vdwg.mxu0
    %5520 = vmatprep.subr.mxu0 0.0
    %5521 = vmatpush1.msra.mxu0 0.0
    %5522 = vmatprep.subr.mxu0 0.0
    %5523 = vmatpush1.msra.mxu0 0.0
    %5524 = vmatprep.subr.mxu0 0.0
    %5525 = vmatpush1.msra.mxu0 0.0
    %5526 = vmatprep.subr.mxu0 0.0
    %5527 = vmatpush1.msra.mxu0 0.0
    %5528 = vmatprep.subr.mxu0 0.0
    %5529 = vmatpush1.msra.mxu0 0.0
    %5530 = vmatprep.subr.mxu0 0.0
    %5531 = vmatpush1.msra.mxu0 0.0
    %5532 = vmatprep.subr.mxu0 0.0
    %5533 = vmatpush1.msra.mxu0 0.0
    %5534 = vmatprep.subr.mxu0 0.0
    %5535 = vmatpush1.msra.mxu0 0.0
    %5536 = vmatprep.subr.mxu0 0.0
    %5537 = vmatpush1.msra.mxu0 0.0
    %5538 = vmatprep.subr.mxu0 0.0
    %5539 = vmatpush1.msra.mxu0 0.0
    %5540 = vmatprep.subr.mxu0 0.0
    %5541 = vmatpush1.msra.mxu0 0.0
    %5542 = vmatprep.subr.mxu0 0.0
    %5543 = vmatpush1.msra.mxu0 0.0
    %5544 = vmatprep.subr.mxu0 0.0
    %v5545 = vand.u32 %v1597, 4294901760
    %v5546 = vsub.f32 %v1597, %v5545
    %5547 = vmatpush1.msra.mxu0 %v5546
    %5548 = vmatprep.subr.mxu0 0.0
    %v5549 = vand.u32 %v1596, 4294901760
    %v5550 = vsub.f32 %v1596, %v5549
    %5551 = vmatpush1.msra.mxu0 %v5550
    %5552 = vmatprep.subr.mxu0 0.0
    %v5553 = vand.u32 %v1595, 4294901760
    %v5554 = vsub.f32 %v1595, %v5553
    %5555 = vmatpush1.msra.mxu0 %v5554
    %5556 = vmatprep.subr.mxu0 0.0
    %v5557 = vand.u32 %v1594, 4294901760
    %v5558 = vsub.f32 %v1594, %v5557
    %5559 = vmatpush1.msra.mxu0 %v5558
    %5560 = vmatprep.subr.mxu0 0.0
    %5561 = vmatpush2.msra.mxu0 0.0
    %5562 = vmatprep.subr.mxu0 0.0
    %5563 = vmatpush2.msra.mxu0 0.0
    %5564 = vmatprep.subr.mxu0 0.0
    %5565 = vmatpush2.msra.mxu0 0.0
    %5566 = vmatprep.subr.mxu0 0.0
    %5567 = vmatpush2.msra.mxu0 0.0
    %5568 = vmatprep.subr.mxu0 0.0
    %5569 = vmatpush2.msra.mxu0 0.0
    %5570 = vmatprep.subr.mxu0 0.0
    %5571 = vmatpush2.msra.mxu0 0.0
    %5572 = vmatprep.subr.mxu0 0.0
    %5573 = vmatpush2.msra.mxu0 0.0
    %5574 = vmatprep.subr.mxu0 0.0
    %5575 = vmatpush2.msra.mxu0 0.0
    %5576 = vmatprep.subr.mxu0 0.0
    %5577 = vmatpush2.msra.mxu0 0.0
    %5578 = vmatprep.subr.mxu0 0.0
    %5579 = vmatpush2.msra.mxu0 0.0
    %5580 = vmatprep.subr.mxu0 0.0
    %5581 = vmatpush2.msra.mxu0 0.0
    %5582 = vmatprep.subr.mxu0 0.0
    %5583 = vmatpush2.msra.mxu0 0.0
    %5584 = vmatprep.subr.mxu0 0.0
    %5585 = vmatpush2.msra.mxu0 0.0
    %5586 = vmatprep.subr.mxu0 0.0
    %5587 = vmatpush2.msra.mxu0 0.0
    %5588 = vmatprep.subr.mxu0 0.0
    %5589 = vmatpush2.msra.mxu0 0.0
    %5590 = vmatprep.subr.mxu0 0.0
    %5591 = vmatpush2.msra.mxu0 0.0
    %5592 = vmatprep.mubr.f32.mxu0 0.0
    %v5593 = vand.u32 %v5348, 4294901760
    %v5594 = vsub.f32 %v5348, %v5593
    %5595 = vmatmul.mubr.f32.gmra.mxu0 %v5594
    %v5596 = vpop.f32.mrf.mxu0
    %v5597 = vadd.f32 %v5517, %v5596
    %v5598 = vpop.f32.mrf.mxu0
    %5599 = vdwg.mxu0
    %5600 = vmatprep.subr.mxu0 0.0
    %5601 = vmatpush1.msra.mxu0 0.0
    %5602 = vmatprep.subr.mxu0 0.0
    %5603 = vmatpush1.msra.mxu0 0.0
    %5604 = vmatprep.subr.mxu0 0.0
    %5605 = vmatpush1.msra.mxu0 0.0
    %5606 = vmatprep.subr.mxu0 0.0
    %5607 = vmatpush1.msra.mxu0 0.0
    %5608 = vmatprep.subr.mxu0 0.0
    %5609 = vmatpush1.msra.mxu0 0.0
    %5610 = vmatprep.subr.mxu0 0.0
    %5611 = vmatpush1.msra.mxu0 0.0
    %5612 = vmatprep.subr.mxu0 0.0
    %5613 = vmatpush1.msra.mxu0 0.0
    %5614 = vmatprep.subr.mxu0 0.0
    %5615 = vmatpush1.msra.mxu0 0.0
    %5616 = vmatprep.subr.mxu0 0.0
    %5617 = vmatpush1.msra.mxu0 0.0
    %5618 = vmatprep.subr.mxu0 0.0
    %5619 = vmatpush1.msra.mxu0 0.0
    %5620 = vmatprep.subr.mxu0 0.0
    %5621 = vmatpush1.msra.mxu0 0.0
    %5622 = vmatprep.subr.mxu0 0.0
    %5623 = vmatpush1.msra.mxu0 0.0
    %5624 = vmatprep.subr.mxu0 0.0
    %v5625 = vand.u32 %v1597, 4294901760
    %5626 = vmatpush1.msra.mxu0 %v5625
    %5627 = vmatprep.subr.mxu0 0.0
    %v5628 = vand.u32 %v1596, 4294901760
    %5629 = vmatpush1.msra.mxu0 %v5628
    %5630 = vmatprep.subr.mxu0 0.0
    %v5631 = vand.u32 %v1595, 4294901760
    %5632 = vmatpush1.msra.mxu0 %v5631
    %5633 = vmatprep.subr.mxu0 0.0
    %v5634 = vand.u32 %v1594, 4294901760
    %5635 = vmatpush1.msra.mxu0 %v5634
    %5636 = vmatprep.subr.mxu0 0.0
    %5637 = vmatpush2.msra.mxu0 0.0
    %5638 = vmatprep.subr.mxu0 0.0
    %5639 = vmatpush2.msra.mxu0 0.0
    %5640 = vmatprep.subr.mxu0 0.0
    %5641 = vmatpush2.msra.mxu0 0.0
    %5642 = vmatprep.subr.mxu0 0.0
    %5643 = vmatpush2.msra.mxu0 0.0
    %5644 = vmatprep.subr.mxu0 0.0
    %5645 = vmatpush2.msra.mxu0 0.0
    %5646 = vmatprep.subr.mxu0 0.0
    %5647 = vmatpush2.msra.mxu0 0.0
    %5648 = vmatprep.subr.mxu0 0.0
    %5649 = vmatpush2.msra.mxu0 0.0
    %5650 = vmatprep.subr.mxu0 0.0
    %5651 = vmatpush2.msra.mxu0 0.0
    %5652 = vmatprep.subr.mxu0 0.0
    %5653 = vmatpush2.msra.mxu0 0.0
    %5654 = vmatprep.subr.mxu0 0.0
    %5655 = vmatpush2.msra.mxu0 0.0
    %5656 = vmatprep.subr.mxu0 0.0
    %5657 = vmatpush2.msra.mxu0 0.0
    %5658 = vmatprep.subr.mxu0 0.0
    %5659 = vmatpush2.msra.mxu0 0.0
    %5660 = vmatprep.subr.mxu0 0.0
    %5661 = vmatpush2.msra.mxu0 0.0
    %5662 = vmatprep.subr.mxu0 0.0
    %5663 = vmatpush2.msra.mxu0 0.0
    %5664 = vmatprep.subr.mxu0 0.0
    %5665 = vmatpush2.msra.mxu0 0.0
    %5666 = vmatprep.subr.mxu0 0.0
    %5667 = vmatpush2.msra.mxu0 0.0
    %5668 = vmatprep.mubr.f32.mxu0 0.0
    %v5669 = vand.u32 %v5348, 4294901760
    %v5670 = vsub.f32 %v5348, %v5669
    %v5671 = vand.u32 %v5670, 4294901760
    %5672 = vmatmul.mubr.f32.gmra.mxu0 %v5671
    %v5673 = vpop.f32.mrf.mxu0
    %v5674 = vadd.f32 %v5597, %v5673
    %v5675 = vpop.f32.mrf.mxu0
    %5676 = vdwg.mxu0
    %5677 = vmatprep.subr.mxu0 0.0
    %5678 = vmatpush1.msra.mxu0 0.0
    %5679 = vmatprep.subr.mxu0 0.0
    %5680 = vmatpush1.msra.mxu0 0.0
    %5681 = vmatprep.subr.mxu0 0.0
    %5682 = vmatpush1.msra.mxu0 0.0
    %5683 = vmatprep.subr.mxu0 0.0
    %5684 = vmatpush1.msra.mxu0 0.0
    %5685 = vmatprep.subr.mxu0 0.0
    %5686 = vmatpush1.msra.mxu0 0.0
    %5687 = vmatprep.subr.mxu0 0.0
    %5688 = vmatpush1.msra.mxu0 0.0
    %5689 = vmatprep.subr.mxu0 0.0
    %5690 = vmatpush1.msra.mxu0 0.0
    %5691 = vmatprep.subr.mxu0 0.0
    %5692 = vmatpush1.msra.mxu0 0.0
    %5693 = vmatprep.subr.mxu0 0.0
    %5694 = vmatpush1.msra.mxu0 0.0
    %5695 = vmatprep.subr.mxu0 0.0
    %5696 = vmatpush1.msra.mxu0 0.0
    %5697 = vmatprep.subr.mxu0 0.0
    %5698 = vmatpush1.msra.mxu0 0.0
    %5699 = vmatprep.subr.mxu0 0.0
    %5700 = vmatpush1.msra.mxu0 0.0
    %5701 = vmatprep.subr.mxu0 0.0
    %v5702 = vand.u32 %v1597, 4294901760
    %v5703 = vsub.f32 %v1597, %v5702
    %v5704 = vand.u32 %v5703, 4294901760
    %5705 = vmatpush1.msra.mxu0 %v5704
    %5706 = vmatprep.subr.mxu0 0.0
    %v5707 = vand.u32 %v1596, 4294901760
    %v5708 = vsub.f32 %v1596, %v5707
    %v5709 = vand.u32 %v5708, 4294901760
    %5710 = vmatpush1.msra.mxu0 %v5709
    %5711 = vmatprep.subr.mxu0 0.0
    %v5712 = vand.u32 %v1595, 4294901760
    %v5713 = vsub.f32 %v1595, %v5712
    %v5714 = vand.u32 %v5713, 4294901760
    %5715 = vmatpush1.msra.mxu0 %v5714
    %5716 = vmatprep.subr.mxu0 0.0
    %v5717 = vand.u32 %v1594, 4294901760
    %v5718 = vsub.f32 %v1594, %v5717
    %v5719 = vand.u32 %v5718, 4294901760
    %5720 = vmatpush1.msra.mxu0 %v5719
    %5721 = vmatprep.subr.mxu0 0.0
    %5722 = vmatpush2.msra.mxu0 0.0
    %5723 = vmatprep.subr.mxu0 0.0
    %5724 = vmatpush2.msra.mxu0 0.0
    %5725 = vmatprep.subr.mxu0 0.0
    %5726 = vmatpush2.msra.mxu0 0.0
    %5727 = vmatprep.subr.mxu0 0.0
    %5728 = vmatpush2.msra.mxu0 0.0
    %5729 = vmatprep.subr.mxu0 0.0
    %5730 = vmatpush2.msra.mxu0 0.0
    %5731 = vmatprep.subr.mxu0 0.0
    %5732 = vmatpush2.msra.mxu0 0.0
    %5733 = vmatprep.subr.mxu0 0.0
    %5734 = vmatpush2.msra.mxu0 0.0
    %5735 = vmatprep.subr.mxu0 0.0
    %5736 = vmatpush2.msra.mxu0 0.0
    %5737 = vmatprep.subr.mxu0 0.0
    %5738 = vmatpush2.msra.mxu0 0.0
    %5739 = vmatprep.subr.mxu0 0.0
    %5740 = vmatpush2.msra.mxu0 0.0
    %5741 = vmatprep.subr.mxu0 0.0
    %5742 = vmatpush2.msra.mxu0 0.0
    %5743 = vmatprep.subr.mxu0 0.0
    %5744 = vmatpush2.msra.mxu0 0.0
    %5745 = vmatprep.subr.mxu0 0.0
    %5746 = vmatpush2.msra.mxu0 0.0
    %5747 = vmatprep.subr.mxu0 0.0
    %5748 = vmatpush2.msra.mxu0 0.0
    %5749 = vmatprep.subr.mxu0 0.0
    %5750 = vmatpush2.msra.mxu0 0.0
    %5751 = vmatprep.subr.mxu0 0.0
    %5752 = vmatpush2.msra.mxu0 0.0
    %5753 = vmatprep.mubr.f32.mxu0 0.0
    %v5754 = vand.u32 %v5348, 4294901760
    %5755 = vmatmul.mubr.f32.gmra.mxu0 %v5754
    %v5756 = vpop.f32.mrf.mxu0
    %v5757 = vadd.f32 %v5674, %v5756
    %v5758 = vpop.f32.mrf.mxu0
    %5759 = vdwg.mxu0
    %5760 = vmatprep.subr.mxu0 0.0
    %5761 = vmatpush1.msra.mxu0 0.0
    %5762 = vmatprep.subr.mxu0 0.0
    %5763 = vmatpush1.msra.mxu0 0.0
    %5764 = vmatprep.subr.mxu0 0.0
    %5765 = vmatpush1.msra.mxu0 0.0
    %5766 = vmatprep.subr.mxu0 0.0
    %5767 = vmatpush1.msra.mxu0 0.0
    %5768 = vmatprep.subr.mxu0 0.0
    %5769 = vmatpush1.msra.mxu0 0.0
    %5770 = vmatprep.subr.mxu0 0.0
    %5771 = vmatpush1.msra.mxu0 0.0
    %5772 = vmatprep.subr.mxu0 0.0
    %5773 = vmatpush1.msra.mxu0 0.0
    %5774 = vmatprep.subr.mxu0 0.0
    %5775 = vmatpush1.msra.mxu0 0.0
    %5776 = vmatprep.subr.mxu0 0.0
    %5777 = vmatpush1.msra.mxu0 0.0
    %5778 = vmatprep.subr.mxu0 0.0
    %5779 = vmatpush1.msra.mxu0 0.0
    %5780 = vmatprep.subr.mxu0 0.0
    %5781 = vmatpush1.msra.mxu0 0.0
    %5782 = vmatprep.subr.mxu0 0.0
    %5783 = vmatpush1.msra.mxu0 0.0
    %5784 = vmatprep.subr.mxu0 0.0
    %v5785 = vand.u32 %v1597, 4294901760
    %5786 = vmatpush1.msra.mxu0 %v5785
    %5787 = vmatprep.subr.mxu0 0.0
    %v5788 = vand.u32 %v1596, 4294901760
    %5789 = vmatpush1.msra.mxu0 %v5788
    %5790 = vmatprep.subr.mxu0 0.0
    %v5791 = vand.u32 %v1595, 4294901760
    %5792 = vmatpush1.msra.mxu0 %v5791
    %5793 = vmatprep.subr.mxu0 0.0
    %v5794 = vand.u32 %v1594, 4294901760
    %5795 = vmatpush1.msra.mxu0 %v5794
    %5796 = vmatprep.subr.mxu0 0.0
    %5797 = vmatpush2.msra.mxu0 0.0
    %5798 = vmatprep.subr.mxu0 0.0
    %5799 = vmatpush2.msra.mxu0 0.0
    %5800 = vmatprep.subr.mxu0 0.0
    %5801 = vmatpush2.msra.mxu0 0.0
    %5802 = vmatprep.subr.mxu0 0.0
    %5803 = vmatpush2.msra.mxu0 0.0
    %5804 = vmatprep.subr.mxu0 0.0
    %5805 = vmatpush2.msra.mxu0 0.0
    %5806 = vmatprep.subr.mxu0 0.0
    %5807 = vmatpush2.msra.mxu0 0.0
    %5808 = vmatprep.subr.mxu0 0.0
    %5809 = vmatpush2.msra.mxu0 0.0
    %5810 = vmatprep.subr.mxu0 0.0
    %5811 = vmatpush2.msra.mxu0 0.0
    %5812 = vmatprep.subr.mxu0 0.0
    %5813 = vmatpush2.msra.mxu0 0.0
    %5814 = vmatprep.subr.mxu0 0.0
    %5815 = vmatpush2.msra.mxu0 0.0
    %5816 = vmatprep.subr.mxu0 0.0
    %5817 = vmatpush2.msra.mxu0 0.0
    %5818 = vmatprep.subr.mxu0 0.0
    %5819 = vmatpush2.msra.mxu0 0.0
    %5820 = vmatprep.subr.mxu0 0.0
    %5821 = vmatpush2.msra.mxu0 0.0
    %5822 = vmatprep.subr.mxu0 0.0
    %5823 = vmatpush2.msra.mxu0 0.0
    %5824 = vmatprep.subr.mxu0 0.0
    %5825 = vmatpush2.msra.mxu0 0.0
    %5826 = vmatprep.subr.mxu0 0.0
    %5827 = vmatpush2.msra.mxu0 0.0
    %5828 = vmatprep.mubr.f32.mxu0 0.0
    %v5829 = vand.u32 %v5348, 4294901760
    %5830 = vmatmul.mubr.f32.gmra.mxu0 %v5829
    %v5831 = vpop.f32.mrf.mxu0
    %v5832 = vadd.f32 %v5757, %v5831
    %v5833 = vpop.f32.mrf.mxu0
    %5834 = vdwg.mxu0
    %v5835 = vadd.f32 %v1588, %v5832
    %v5836 = vmul.f32 %v5835, 0.5
    %v5837 = vtanh.pop %v5836
    %v5838 = vadd.f32 %v5837, 1.0
    %v5839 = vmul.f32 %v5838, 0.5
    %v5840 = vtanh.pop %v5835
    %5842 = vrot.lane.b32.xlu0 %v4827, 32
    %v5843 = vpop.permute.xlu0 %5842
    %v5845 = vmul.f32 %v5839, %v5843
    %5847 = vrot.lane.b32.xlu0 %v5840, 64
    %v5848 = vpop.permute.xlu0 %5847
    %v5850 = vmul.f32 %v5839, %v5848
    %5852 = vrot.lane.b32.xlu0 %v5850, 32
    %v5853 = vpop.permute.xlu0 %5852
    %v5855 = vadd.f32 %v5845, %v5853
    %v5856 = vtanh.pop %v5855
    %5858 = vrot.lane.b32.xlu0 %v5856, 64
    %v5859 = vpop.permute.xlu0 %5858
    %v5861 = vmul.f32 %v5839, %v5859
    %vm5862 = vcmp.gt.s32.totalorder %v1598, 3
    %vm5863 = vcmp.gt.s32.totalorder %v1598, 4
    %v5864 = vsel %vm5862, 1, 0
    %5865 = vset.pattern.permute.xlu0 0
    %5866 = vperm.xlu0 %5865, %v5864
    %v5867 = vpop.permute.xlu0 %5866
    %vm5868 = vcmp.eq.s32.totalorder %v5867, 1
    %v5870 = vrot.slane %v5346, 6
    %5871 = vrot.lane.b32.xlu0 %v5870, 32
    %v5872 = vpop.permute.xlu0 %5871
    %v5874 = vsel %vm5868, %v5872, 0.0
    %s5875 = scalar_lea.vmem [#allocation2], 6
    %5876 = vst.msk [vmem:[%s5875] sm:$0x3] %vm2634, %v5874
    %v5877 = vsel %vm5863, 1, 0
    %5878 = vset.pattern.permute.xlu0 0
    %5879 = vperm.xlu0 %5878, %v5877
    %v5880 = vpop.permute.xlu0 %5879
    %vm5881 = vcmp.eq.s32.totalorder %v5880, 1
    %v5882 = vsel %vm5881, %v5861, 0.0
    %5884 = vrot.lane.b32.xlu0 %v5882, 64
    %v5885 = vpop.permute.xlu0 %5884
    %s5887 = scalar_lea.vmem [#allocation2], 8
    %5888 = vst.msk [vmem:[%s5887] sm:$0x3] %vm2652, %v5885
    %v5889 = vsel %vm5868, %v5872, %v4814
    %v5891 = vrot.slane %v5340, 6
    %5892 = vrot.lane.b32.xlu0 %v5891, 96
    %v5893 = vpop.permute.xlu0 %5892
    %v5895 = vsel %vm5868, %v5893, %v4820
    %5896 = vrot.lane.b32.xlu0 %v4821, 96
    %v5897 = vpop.permute.xlu0 %5896
    %v5899 = vsel %vm5881, %v5861, %v5897
    %v5900 = vsel %vm5881, %v5855, %v5843
    %v5902 = vsel %vm1599, %v5889, 0
    %5904 = vmatprep.subr.mxu0 0.0
    %5905 = vmatpush1.msra.mxu0 0.0
    %5906 = vmatprep.subr.mxu0 0.0
    %5907 = vmatpush1.msra.mxu0 0.0
    %5908 = vmatprep.subr.mxu0 0.0
    %5909 = vmatpush1.msra.mxu0 0.0
    %5910 = vmatprep.subr.mxu0 0.0
    %5911 = vmatpush1.msra.mxu0 0.0
    %5912 = vmatprep.subr.mxu0 0.0
    %5913 = vmatpush1.msra.mxu0 0.0
    %5914 = vmatprep.subr.mxu0 0.0
    %5915 = vmatpush1.msra.mxu0 0.0
    %5916 = vmatprep.subr.mxu0 0.0
    %5917 = vmatpush1.msra.mxu0 0.0
    %5918 = vmatprep.subr.mxu0 0.0
    %5919 = vmatpush1.msra.mxu0 0.0
    %5920 = vmatprep.subr.mxu0 0.0
    %5921 = vmatpush1.msra.mxu0 0.0
    %5922 = vmatprep.subr.mxu0 0.0
    %5923 = vmatpush1.msra.mxu0 0.0
    %5924 = vmatprep.subr.mxu0 0.0
    %5925 = vmatpush1.msra.mxu0 0.0
    %5926 = vmatprep.subr.mxu0 0.0
    %5927 = vmatpush1.msra.mxu0 0.0
    %5928 = vmatprep.subr.mxu0 0.0
    %v5929 = vand.u32 %v1593, 4294901760
    %5930 = vmatpush1.msra.mxu0 %v5929
    %5931 = vmatprep.subr.mxu0 0.0
    %v5932 = vand.u32 %v1592, 4294901760
    %5933 = vmatpush1.msra.mxu0 %v5932
    %5934 = vmatprep.subr.mxu0 0.0
    %v5935 = vand.u32 %v1591, 4294901760
    %5936 = vmatpush1.msra.mxu0 %v5935
    %5937 = vmatprep.subr.mxu0 0.0
    %v5938 = vand.u32 %v1590, 4294901760
    %5939 = vmatpush1.msra.mxu0 %v5938
    %5940 = vmatprep.subr.mxu0 0.0
    %5941 = vmatpush2.msra.mxu0 0.0
    %5942 = vmatprep.subr.mxu0 0.0
    %5943 = vmatpush2.msra.mxu0 0.0
    %5944 = vmatprep.subr.mxu0 0.0
    %5945 = vmatpush2.msra.mxu0 0.0
    %5946 = vmatprep.subr.mxu0 0.0
    %5947 = vmatpush2.msra.mxu0 0.0
    %5948 = vmatprep.subr.mxu0 0.0
    %5949 = vmatpush2.msra.mxu0 0.0
    %5950 = vmatprep.subr.mxu0 0.0
    %5951 = vmatpush2.msra.mxu0 0.0
    %5952 = vmatprep.subr.mxu0 0.0
    %5953 = vmatpush2.msra.mxu0 0.0
    %5954 = vmatprep.subr.mxu0 0.0
    %5955 = vmatpush2.msra.mxu0 0.0
    %5956 = vmatprep.subr.mxu0 0.0
    %5957 = vmatpush2.msra.mxu0 0.0
    %5958 = vmatprep.subr.mxu0 0.0
    %5959 = vmatpush2.msra.mxu0 0.0
    %5960 = vmatprep.subr.mxu0 0.0
    %5961 = vmatpush2.msra.mxu0 0.0
    %5962 = vmatprep.subr.mxu0 0.0
    %5963 = vmatpush2.msra.mxu0 0.0
    %5964 = vmatprep.subr.mxu0 0.0
    %5965 = vmatpush2.msra.mxu0 0.0
    %5966 = vmatprep.subr.mxu0 0.0
    %5967 = vmatpush2.msra.mxu0 0.0
    %5968 = vmatprep.subr.mxu0 0.0
    %5969 = vmatpush2.msra.mxu0 0.0
    %5970 = vmatprep.subr.mxu0 0.0
    %5971 = vmatpush2.msra.mxu0 0.0
    %5972 = vmatprep.mubr.f32.mxu0 0.0
    %v5973 = vand.u32 %v5902, 4294901760
    %v5974 = vsub.f32 %v5902, %v5973
    %v5975 = vand.u32 %v5974, 4294901760
    %v5976 = vsub.f32 %v5974, %v5975
    %v5977 = vand.u32 %v5976, 4294901760
    %5978 = vmatmul.mubr.f32.gmra.mxu0 %v5977
    %v5979 = vpop.f32.mrf.mxu0
    %v5980 = vadd.f32 0.0, %v5979
    %v5981 = vpop.f32.mrf.mxu0
    %5982 = vdwg.mxu0
    %5983 = vmatprep.subr.mxu0 0.0
    %5984 = vmatpush1.msra.mxu0 0.0
    %5985 = vmatprep.subr.mxu0 0.0
    %5986 = vmatpush1.msra.mxu0 0.0
    %5987 = vmatprep.subr.mxu0 0.0
    %5988 = vmatpush1.msra.mxu0 0.0
    %5989 = vmatprep.subr.mxu0 0.0
    %5990 = vmatpush1.msra.mxu0 0.0
    %5991 = vmatprep.subr.mxu0 0.0
    %5992 = vmatpush1.msra.mxu0 0.0
    %5993 = vmatprep.subr.mxu0 0.0
    %5994 = vmatpush1.msra.mxu0 0.0
    %5995 = vmatprep.subr.mxu0 0.0
    %5996 = vmatpush1.msra.mxu0 0.0
    %5997 = vmatprep.subr.mxu0 0.0
    %5998 = vmatpush1.msra.mxu0 0.0
    %5999 = vmatprep.subr.mxu0 0.0
    %6000 = vmatpush1.msra.mxu0 0.0
    %6001 = vmatprep.subr.mxu0 0.0
    %6002 = vmatpush1.msra.mxu0 0.0
    %6003 = vmatprep.subr.mxu0 0.0
    %6004 = vmatpush1.msra.mxu0 0.0
    %6005 = vmatprep.subr.mxu0 0.0
    %6006 = vmatpush1.msra.mxu0 0.0
    %6007 = vmatprep.subr.mxu0 0.0
    %v6008 = vand.u32 %v1593, 4294901760
    %v6009 = vsub.f32 %v1593, %v6008
    %v6010 = vand.u32 %v6009, 4294901760
    %v6011 = vsub.f32 %v6009, %v6010
    %v6012 = vand.u32 %v6011, 4294901760
    %6013 = vmatpush1.msra.mxu0 %v6012
    %6014 = vmatprep.subr.mxu0 0.0
    %v6015 = vand.u32 %v1592, 4294901760
    %v6016 = vsub.f32 %v1592, %v6015
    %v6017 = vand.u32 %v6016, 4294901760
    %v6018 = vsub.f32 %v6016, %v6017
    %v6019 = vand.u32 %v6018, 4294901760
    %6020 = vmatpush1.msra.mxu0 %v6019
    %6021 = vmatprep.subr.mxu0 0.0
    %v6022 = vand.u32 %v1591, 4294901760
    %v6023 = vsub.f32 %v1591, %v6022
    %v6024 = vand.u32 %v6023, 4294901760
    %v6025 = vsub.f32 %v6023, %v6024
    %v6026 = vand.u32 %v6025, 4294901760
    %6027 = vmatpush1.msra.mxu0 %v6026
    %6028 = vmatprep.subr.mxu0 0.0
    %v6029 = vand.u32 %v1590, 4294901760
    %v6030 = vsub.f32 %v1590, %v6029
    %v6031 = vand.u32 %v6030, 4294901760
    %v6032 = vsub.f32 %v6030, %v6031
    %v6033 = vand.u32 %v6032, 4294901760
    %6034 = vmatpush1.msra.mxu0 %v6033
    %6035 = vmatprep.subr.mxu0 0.0
    %6036 = vmatpush2.msra.mxu0 0.0
    %6037 = vmatprep.subr.mxu0 0.0
    %6038 = vmatpush2.msra.mxu0 0.0
    %6039 = vmatprep.subr.mxu0 0.0
    %6040 = vmatpush2.msra.mxu0 0.0
    %6041 = vmatprep.subr.mxu0 0.0
    %6042 = vmatpush2.msra.mxu0 0.0
    %6043 = vmatprep.subr.mxu0 0.0
    %6044 = vmatpush2.msra.mxu0 0.0
    %6045 = vmatprep.subr.mxu0 0.0
    %6046 = vmatpush2.msra.mxu0 0.0
    %6047 = vmatprep.subr.mxu0 0.0
    %6048 = vmatpush2.msra.mxu0 0.0
    %6049 = vmatprep.subr.mxu0 0.0
    %6050 = vmatpush2.msra.mxu0 0.0
    %6051 = vmatprep.subr.mxu0 0.0
    %6052 = vmatpush2.msra.mxu0 0.0
    %6053 = vmatprep.subr.mxu0 0.0
    %6054 = vmatpush2.msra.mxu0 0.0
    %6055 = vmatprep.subr.mxu0 0.0
    %6056 = vmatpush2.msra.mxu0 0.0
    %6057 = vmatprep.subr.mxu0 0.0
    %6058 = vmatpush2.msra.mxu0 0.0
    %6059 = vmatprep.subr.mxu0 0.0
    %6060 = vmatpush2.msra.mxu0 0.0
    %6061 = vmatprep.subr.mxu0 0.0
    %6062 = vmatpush2.msra.mxu0 0.0
    %6063 = vmatprep.subr.mxu0 0.0
    %6064 = vmatpush2.msra.mxu0 0.0
    %6065 = vmatprep.subr.mxu0 0.0
    %6066 = vmatpush2.msra.mxu0 0.0
    %6067 = vmatprep.mubr.f32.mxu0 0.0
    %v6068 = vand.u32 %v5902, 4294901760
    %6069 = vmatmul.mubr.f32.gmra.mxu0 %v6068
    %v6070 = vpop.f32.mrf.mxu0
    %v6071 = vadd.f32 %v5980, %v6070
    %v6072 = vpop.f32.mrf.mxu0
    %6073 = vdwg.mxu0
    %6074 = vmatprep.subr.mxu0 0.0
    %6075 = vmatpush1.msra.mxu0 0.0
    %6076 = vmatprep.subr.mxu0 0.0
    %6077 = vmatpush1.msra.mxu0 0.0
    %6078 = vmatprep.subr.mxu0 0.0
    %6079 = vmatpush1.msra.mxu0 0.0
    %6080 = vmatprep.subr.mxu0 0.0
    %6081 = vmatpush1.msra.mxu0 0.0
    %6082 = vmatprep.subr.mxu0 0.0
    %6083 = vmatpush1.msra.mxu0 0.0
    %6084 = vmatprep.subr.mxu0 0.0
    %6085 = vmatpush1.msra.mxu0 0.0
    %6086 = vmatprep.subr.mxu0 0.0
    %6087 = vmatpush1.msra.mxu0 0.0
    %6088 = vmatprep.subr.mxu0 0.0
    %6089 = vmatpush1.msra.mxu0 0.0
    %6090 = vmatprep.subr.mxu0 0.0
    %6091 = vmatpush1.msra.mxu0 0.0
    %6092 = vmatprep.subr.mxu0 0.0
    %6093 = vmatpush1.msra.mxu0 0.0
    %6094 = vmatprep.subr.mxu0 0.0
    %6095 = vmatpush1.msra.mxu0 0.0
    %6096 = vmatprep.subr.mxu0 0.0
    %6097 = vmatpush1.msra.mxu0 0.0
    %6098 = vmatprep.subr.mxu0 0.0
    %v6099 = vand.u32 %v1593, 4294901760
    %v6100 = vsub.f32 %v1593, %v6099
    %6101 = vmatpush1.msra.mxu0 %v6100
    %6102 = vmatprep.subr.mxu0 0.0
    %v6103 = vand.u32 %v1592, 4294901760
    %v6104 = vsub.f32 %v1592, %v6103
    %6105 = vmatpush1.msra.mxu0 %v6104
    %6106 = vmatprep.subr.mxu0 0.0
    %v6107 = vand.u32 %v1591, 4294901760
    %v6108 = vsub.f32 %v1591, %v6107
    %6109 = vmatpush1.msra.mxu0 %v6108
    %6110 = vmatprep.subr.mxu0 0.0
    %v6111 = vand.u32 %v1590, 4294901760
    %v6112 = vsub.f32 %v1590, %v6111
    %6113 = vmatpush1.msra.mxu0 %v6112
    %6114 = vmatprep.subr.mxu0 0.0
    %6115 = vmatpush2.msra.mxu0 0.0
    %6116 = vmatprep.subr.mxu0 0.0
    %6117 = vmatpush2.msra.mxu0 0.0
    %6118 = vmatprep.subr.mxu0 0.0
    %6119 = vmatpush2.msra.mxu0 0.0
    %6120 = vmatprep.subr.mxu0 0.0
    %6121 = vmatpush2.msra.mxu0 0.0
    %6122 = vmatprep.subr.mxu0 0.0
    %6123 = vmatpush2.msra.mxu0 0.0
    %6124 = vmatprep.subr.mxu0 0.0
    %6125 = vmatpush2.msra.mxu0 0.0
    %6126 = vmatprep.subr.mxu0 0.0
    %6127 = vmatpush2.msra.mxu0 0.0
    %6128 = vmatprep.subr.mxu0 0.0
    %6129 = vmatpush2.msra.mxu0 0.0
    %6130 = vmatprep.subr.mxu0 0.0
    %6131 = vmatpush2.msra.mxu0 0.0
    %6132 = vmatprep.subr.mxu0 0.0
    %6133 = vmatpush2.msra.mxu0 0.0
    %6134 = vmatprep.subr.mxu0 0.0
    %6135 = vmatpush2.msra.mxu0 0.0
    %6136 = vmatprep.subr.mxu0 0.0
    %6137 = vmatpush2.msra.mxu0 0.0
    %6138 = vmatprep.subr.mxu0 0.0
    %6139 = vmatpush2.msra.mxu0 0.0
    %6140 = vmatprep.subr.mxu0 0.0
    %6141 = vmatpush2.msra.mxu0 0.0
    %6142 = vmatprep.subr.mxu0 0.0
    %6143 = vmatpush2.msra.mxu0 0.0
    %6144 = vmatprep.subr.mxu0 0.0
    %6145 = vmatpush2.msra.mxu0 0.0
    %6146 = vmatprep.mubr.f32.mxu0 0.0
    %v6147 = vand.u32 %v5902, 4294901760
    %v6148 = vsub.f32 %v5902, %v6147
    %6149 = vmatmul.mubr.f32.gmra.mxu0 %v6148
    %v6150 = vpop.f32.mrf.mxu0
    %v6151 = vadd.f32 %v6071, %v6150
    %v6152 = vpop.f32.mrf.mxu0
    %6153 = vdwg.mxu0
    %6154 = vmatprep.subr.mxu0 0.0
    %6155 = vmatpush1.msra.mxu0 0.0
    %6156 = vmatprep.subr.mxu0 0.0
    %6157 = vmatpush1.msra.mxu0 0.0
    %6158 = vmatprep.subr.mxu0 0.0
    %6159 = vmatpush1.msra.mxu0 0.0
    %6160 = vmatprep.subr.mxu0 0.0
    %6161 = vmatpush1.msra.mxu0 0.0
    %6162 = vmatprep.subr.mxu0 0.0
    %6163 = vmatpush1.msra.mxu0 0.0
    %6164 = vmatprep.subr.mxu0 0.0
    %6165 = vmatpush1.msra.mxu0 0.0
    %6166 = vmatprep.subr.mxu0 0.0
    %6167 = vmatpush1.msra.mxu0 0.0
    %6168 = vmatprep.subr.mxu0 0.0
    %6169 = vmatpush1.msra.mxu0 0.0
    %6170 = vmatprep.subr.mxu0 0.0
    %6171 = vmatpush1.msra.mxu0 0.0
    %6172 = vmatprep.subr.mxu0 0.0
    %6173 = vmatpush1.msra.mxu0 0.0
    %6174 = vmatprep.subr.mxu0 0.0
    %6175 = vmatpush1.msra.mxu0 0.0
    %6176 = vmatprep.subr.mxu0 0.0
    %6177 = vmatpush1.msra.mxu0 0.0
    %6178 = vmatprep.subr.mxu0 0.0
    %v6179 = vand.u32 %v1593, 4294901760
    %6180 = vmatpush1.msra.mxu0 %v6179
    %6181 = vmatprep.subr.mxu0 0.0
    %v6182 = vand.u32 %v1592, 4294901760
    %6183 = vmatpush1.msra.mxu0 %v6182
    %6184 = vmatprep.subr.mxu0 0.0
    %v6185 = vand.u32 %v1591, 4294901760
    %6186 = vmatpush1.msra.mxu0 %v6185
    %6187 = vmatprep.subr.mxu0 0.0
    %v6188 = vand.u32 %v1590, 4294901760
    %6189 = vmatpush1.msra.mxu0 %v6188
    %6190 = vmatprep.subr.mxu0 0.0
    %6191 = vmatpush2.msra.mxu0 0.0
    %6192 = vmatprep.subr.mxu0 0.0
    %6193 = vmatpush2.msra.mxu0 0.0
    %6194 = vmatprep.subr.mxu0 0.0
    %6195 = vmatpush2.msra.mxu0 0.0
    %6196 = vmatprep.subr.mxu0 0.0
    %6197 = vmatpush2.msra.mxu0 0.0
    %6198 = vmatprep.subr.mxu0 0.0
    %6199 = vmatpush2.msra.mxu0 0.0
    %6200 = vmatprep.subr.mxu0 0.0
    %6201 = vmatpush2.msra.mxu0 0.0
    %6202 = vmatprep.subr.mxu0 0.0
    %6203 = vmatpush2.msra.mxu0 0.0
    %6204 = vmatprep.subr.mxu0 0.0
    %6205 = vmatpush2.msra.mxu0 0.0
    %6206 = vmatprep.subr.mxu0 0.0
    %6207 = vmatpush2.msra.mxu0 0.0
    %6208 = vmatprep.subr.mxu0 0.0
    %6209 = vmatpush2.msra.mxu0 0.0
    %6210 = vmatprep.subr.mxu0 0.0
    %6211 = vmatpush2.msra.mxu0 0.0
    %6212 = vmatprep.subr.mxu0 0.0
    %6213 = vmatpush2.msra.mxu0 0.0
    %6214 = vmatprep.subr.mxu0 0.0
    %6215 = vmatpush2.msra.mxu0 0.0
    %6216 = vmatprep.subr.mxu0 0.0
    %6217 = vmatpush2.msra.mxu0 0.0
    %6218 = vmatprep.subr.mxu0 0.0
    %6219 = vmatpush2.msra.mxu0 0.0
    %6220 = vmatprep.subr.mxu0 0.0
    %6221 = vmatpush2.msra.mxu0 0.0
    %6222 = vmatprep.mubr.f32.mxu0 0.0
    %v6223 = vand.u32 %v5902, 4294901760
    %v6224 = vsub.f32 %v5902, %v6223
    %v6225 = vand.u32 %v6224, 4294901760
    %6226 = vmatmul.mubr.f32.gmra.mxu0 %v6225
    %v6227 = vpop.f32.mrf.mxu0
    %v6228 = vadd.f32 %v6151, %v6227
    %v6229 = vpop.f32.mrf.mxu0
    %6230 = vdwg.mxu0
    %6231 = vmatprep.subr.mxu0 0.0
    %6232 = vmatpush1.msra.mxu0 0.0
    %6233 = vmatprep.subr.mxu0 0.0
    %6234 = vmatpush1.msra.mxu0 0.0
    %6235 = vmatprep.subr.mxu0 0.0
    %6236 = vmatpush1.msra.mxu0 0.0
    %6237 = vmatprep.subr.mxu0 0.0
    %6238 = vmatpush1.msra.mxu0 0.0
    %6239 = vmatprep.subr.mxu0 0.0
    %6240 = vmatpush1.msra.mxu0 0.0
    %6241 = vmatprep.subr.mxu0 0.0
    %6242 = vmatpush1.msra.mxu0 0.0
    %6243 = vmatprep.subr.mxu0 0.0
    %6244 = vmatpush1.msra.mxu0 0.0
    %6245 = vmatprep.subr.mxu0 0.0
    %6246 = vmatpush1.msra.mxu0 0.0
    %6247 = vmatprep.subr.mxu0 0.0
    %6248 = vmatpush1.msra.mxu0 0.0
    %6249 = vmatprep.subr.mxu0 0.0
    %6250 = vmatpush1.msra.mxu0 0.0
    %6251 = vmatprep.subr.mxu0 0.0
    %6252 = vmatpush1.msra.mxu0 0.0
    %6253 = vmatprep.subr.mxu0 0.0
    %6254 = vmatpush1.msra.mxu0 0.0
    %6255 = vmatprep.subr.mxu0 0.0
    %v6256 = vand.u32 %v1593, 4294901760
    %v6257 = vsub.f32 %v1593, %v6256
    %v6258 = vand.u32 %v6257, 4294901760
    %6259 = vmatpush1.msra.mxu0 %v6258
    %6260 = vmatprep.subr.mxu0 0.0
    %v6261 = vand.u32 %v1592, 4294901760
    %v6262 = vsub.f32 %v1592, %v6261
    %v6263 = vand.u32 %v6262, 4294901760
    %6264 = vmatpush1.msra.mxu0 %v6263
    %6265 = vmatprep.subr.mxu0 0.0
    %v6266 = vand.u32 %v1591, 4294901760
    %v6267 = vsub.f32 %v1591, %v6266
    %v6268 = vand.u32 %v6267, 4294901760
    %6269 = vmatpush1.msra.mxu0 %v6268
    %6270 = vmatprep.subr.mxu0 0.0
    %v6271 = vand.u32 %v1590, 4294901760
    %v6272 = vsub.f32 %v1590, %v6271
    %v6273 = vand.u32 %v6272, 4294901760
    %6274 = vmatpush1.msra.mxu0 %v6273
    %6275 = vmatprep.subr.mxu0 0.0
    %6276 = vmatpush2.msra.mxu0 0.0
    %6277 = vmatprep.subr.mxu0 0.0
    %6278 = vmatpush2.msra.mxu0 0.0
    %6279 = vmatprep.subr.mxu0 0.0
    %6280 = vmatpush2.msra.mxu0 0.0
    %6281 = vmatprep.subr.mxu0 0.0
    %6282 = vmatpush2.msra.mxu0 0.0
    %6283 = vmatprep.subr.mxu0 0.0
    %6284 = vmatpush2.msra.mxu0 0.0
    %6285 = vmatprep.subr.mxu0 0.0
    %6286 = vmatpush2.msra.mxu0 0.0
    %6287 = vmatprep.subr.mxu0 0.0
    %6288 = vmatpush2.msra.mxu0 0.0
    %6289 = vmatprep.subr.mxu0 0.0
    %6290 = vmatpush2.msra.mxu0 0.0
    %6291 = vmatprep.subr.mxu0 0.0
    %6292 = vmatpush2.msra.mxu0 0.0
    %6293 = vmatprep.subr.mxu0 0.0
    %6294 = vmatpush2.msra.mxu0 0.0
    %6295 = vmatprep.subr.mxu0 0.0
    %6296 = vmatpush2.msra.mxu0 0.0
    %6297 = vmatprep.subr.mxu0 0.0
    %6298 = vmatpush2.msra.mxu0 0.0
    %6299 = vmatprep.subr.mxu0 0.0
    %6300 = vmatpush2.msra.mxu0 0.0
    %6301 = vmatprep.subr.mxu0 0.0
    %6302 = vmatpush2.msra.mxu0 0.0
    %6303 = vmatprep.subr.mxu0 0.0
    %6304 = vmatpush2.msra.mxu0 0.0
    %6305 = vmatprep.subr.mxu0 0.0
    %6306 = vmatpush2.msra.mxu0 0.0
    %6307 = vmatprep.mubr.f32.mxu0 0.0
    %v6308 = vand.u32 %v5902, 4294901760
    %6309 = vmatmul.mubr.f32.gmra.mxu0 %v6308
    %v6310 = vpop.f32.mrf.mxu0
    %v6311 = vadd.f32 %v6228, %v6310
    %v6312 = vpop.f32.mrf.mxu0
    %6313 = vdwg.mxu0
    %6314 = vmatprep.subr.mxu0 0.0
    %6315 = vmatpush1.msra.mxu0 0.0
    %6316 = vmatprep.subr.mxu0 0.0
    %6317 = vmatpush1.msra.mxu0 0.0
    %6318 = vmatprep.subr.mxu0 0.0
    %6319 = vmatpush1.msra.mxu0 0.0
    %6320 = vmatprep.subr.mxu0 0.0
    %6321 = vmatpush1.msra.mxu0 0.0
    %6322 = vmatprep.subr.mxu0 0.0
    %6323 = vmatpush1.msra.mxu0 0.0
    %6324 = vmatprep.subr.mxu0 0.0
    %6325 = vmatpush1.msra.mxu0 0.0
    %6326 = vmatprep.subr.mxu0 0.0
    %6327 = vmatpush1.msra.mxu0 0.0
    %6328 = vmatprep.subr.mxu0 0.0
    %6329 = vmatpush1.msra.mxu0 0.0
    %6330 = vmatprep.subr.mxu0 0.0
    %6331 = vmatpush1.msra.mxu0 0.0
    %6332 = vmatprep.subr.mxu0 0.0
    %6333 = vmatpush1.msra.mxu0 0.0
    %6334 = vmatprep.subr.mxu0 0.0
    %6335 = vmatpush1.msra.mxu0 0.0
    %6336 = vmatprep.subr.mxu0 0.0
    %6337 = vmatpush1.msra.mxu0 0.0
    %6338 = vmatprep.subr.mxu0 0.0
    %v6339 = vand.u32 %v1593, 4294901760
    %6340 = vmatpush1.msra.mxu0 %v6339
    %6341 = vmatprep.subr.mxu0 0.0
    %v6342 = vand.u32 %v1592, 4294901760
    %6343 = vmatpush1.msra.mxu0 %v6342
    %6344 = vmatprep.subr.mxu0 0.0
    %v6345 = vand.u32 %v1591, 4294901760
    %6346 = vmatpush1.msra.mxu0 %v6345
    %6347 = vmatprep.subr.mxu0 0.0
    %v6348 = vand.u32 %v1590, 4294901760
    %6349 = vmatpush1.msra.mxu0 %v6348
    %6350 = vmatprep.subr.mxu0 0.0
    %6351 = vmatpush2.msra.mxu0 0.0
    %6352 = vmatprep.subr.mxu0 0.0
    %6353 = vmatpush2.msra.mxu0 0.0
    %6354 = vmatprep.subr.mxu0 0.0
    %6355 = vmatpush2.msra.mxu0 0.0
    %6356 = vmatprep.subr.mxu0 0.0
    %6357 = vmatpush2.msra.mxu0 0.0
    %6358 = vmatprep.subr.mxu0 0.0
    %6359 = vmatpush2.msra.mxu0 0.0
    %6360 = vmatprep.subr.mxu0 0.0
    %6361 = vmatpush2.msra.mxu0 0.0
    %6362 = vmatprep.subr.mxu0 0.0
    %6363 = vmatpush2.msra.mxu0 0.0
    %6364 = vmatprep.subr.mxu0 0.0
    %6365 = vmatpush2.msra.mxu0 0.0
    %6366 = vmatprep.subr.mxu0 0.0
    %6367 = vmatpush2.msra.mxu0 0.0
    %6368 = vmatprep.subr.mxu0 0.0
    %6369 = vmatpush2.msra.mxu0 0.0
    %6370 = vmatprep.subr.mxu0 0.0
    %6371 = vmatpush2.msra.mxu0 0.0
    %6372 = vmatprep.subr.mxu0 0.0
    %6373 = vmatpush2.msra.mxu0 0.0
    %6374 = vmatprep.subr.mxu0 0.0
    %6375 = vmatpush2.msra.mxu0 0.0
    %6376 = vmatprep.subr.mxu0 0.0
    %6377 = vmatpush2.msra.mxu0 0.0
    %6378 = vmatprep.subr.mxu0 0.0
    %6379 = vmatpush2.msra.mxu0 0.0
    %6380 = vmatprep.subr.mxu0 0.0
    %6381 = vmatpush2.msra.mxu0 0.0
    %6382 = vmatprep.mubr.f32.mxu0 0.0
    %v6383 = vand.u32 %v5902, 4294901760
    %6384 = vmatmul.mubr.f32.gmra.mxu0 %v6383
    %v6385 = vpop.f32.mrf.mxu0
    %v6386 = vadd.f32 %v6311, %v6385
    %v6387 = vpop.f32.mrf.mxu0
    %6388 = vdwg.mxu0
    %v6389 = vadd.f32 %v1586, %v6386
    %v6390 = vmul.f32 %v6389, 0.5
    %v6391 = vtanh.pop %v6390
    %v6392 = vadd.f32 %v6391, 1.0
    %v6393 = vmul.f32 %v6392, 0.5
    %v6394 = vtanh.pop %v6389
    %6396 = vrot.lane.b32.xlu0 %v5895, 32
    %v6397 = vpop.permute.xlu0 %6396
    %v6399 = vmul.f32 %v6393, %v6397
    %6401 = vrot.lane.b32.xlu0 %v6394, 64
    %v6402 = vpop.permute.xlu0 %6401
    %v6404 = vmul.f32 %v6393, %v6402
    %6406 = vrot.lane.b32.xlu0 %v6404, 32
    %v6407 = vpop.permute.xlu0 %6406
    %v6409 = vadd.f32 %v6399, %v6407
    %v6410 = vtanh.pop %v6409
    %6412 = vrot.lane.b32.xlu0 %v6410, 64
    %v6413 = vpop.permute.xlu0 %6412
    %v6415 = vmul.f32 %v6393, %v6413
    %6417 = vrot.lane.b32.xlu0 %v5899, 32
    %v6418 = vpop.permute.xlu0 %6417
    %v6419 = vsel %vm1599, %v6418, 0
    %6421 = vmatprep.subr.mxu0 0.0
    %6422 = vmatpush1.msra.mxu0 0.0
    %6423 = vmatprep.subr.mxu0 0.0
    %6424 = vmatpush1.msra.mxu0 0.0
    %6425 = vmatprep.subr.mxu0 0.0
    %6426 = vmatpush1.msra.mxu0 0.0
    %6427 = vmatprep.subr.mxu0 0.0
    %6428 = vmatpush1.msra.mxu0 0.0
    %6429 = vmatprep.subr.mxu0 0.0
    %6430 = vmatpush1.msra.mxu0 0.0
    %6431 = vmatprep.subr.mxu0 0.0
    %6432 = vmatpush1.msra.mxu0 0.0
    %6433 = vmatprep.subr.mxu0 0.0
    %6434 = vmatpush1.msra.mxu0 0.0
    %6435 = vmatprep.subr.mxu0 0.0
    %6436 = vmatpush1.msra.mxu0 0.0
    %6437 = vmatprep.subr.mxu0 0.0
    %6438 = vmatpush1.msra.mxu0 0.0
    %6439 = vmatprep.subr.mxu0 0.0
    %6440 = vmatpush1.msra.mxu0 0.0
    %6441 = vmatprep.subr.mxu0 0.0
    %6442 = vmatpush1.msra.mxu0 0.0
    %6443 = vmatprep.subr.mxu0 0.0
    %6444 = vmatpush1.msra.mxu0 0.0
    %6445 = vmatprep.subr.mxu0 0.0
    %v6446 = vand.u32 %v1597, 4294901760
    %6447 = vmatpush1.msra.mxu0 %v6446
    %6448 = vmatprep.subr.mxu0 0.0
    %v6449 = vand.u32 %v1596, 4294901760
    %6450 = vmatpush1.msra.mxu0 %v6449
    %6451 = vmatprep.subr.mxu0 0.0
    %v6452 = vand.u32 %v1595, 4294901760
    %6453 = vmatpush1.msra.mxu0 %v6452
    %6454 = vmatprep.subr.mxu0 0.0
    %v6455 = vand.u32 %v1594, 4294901760
    %6456 = vmatpush1.msra.mxu0 %v6455
    %6457 = vmatprep.subr.mxu0 0.0
    %6458 = vmatpush2.msra.mxu0 0.0
    %6459 = vmatprep.subr.mxu0 0.0
    %6460 = vmatpush2.msra.mxu0 0.0
    %6461 = vmatprep.subr.mxu0 0.0
    %6462 = vmatpush2.msra.mxu0 0.0
    %6463 = vmatprep.subr.mxu0 0.0
    %6464 = vmatpush2.msra.mxu0 0.0
    %6465 = vmatprep.subr.mxu0 0.0
    %6466 = vmatpush2.msra.mxu0 0.0
    %6467 = vmatprep.subr.mxu0 0.0
    %6468 = vmatpush2.msra.mxu0 0.0
    %6469 = vmatprep.subr.mxu0 0.0
    %6470 = vmatpush2.msra.mxu0 0.0
    %6471 = vmatprep.subr.mxu0 0.0
    %6472 = vmatpush2.msra.mxu0 0.0
    %6473 = vmatprep.subr.mxu0 0.0
    %6474 = vmatpush2.msra.mxu0 0.0
    %6475 = vmatprep.subr.mxu0 0.0
    %6476 = vmatpush2.msra.mxu0 0.0
    %6477 = vmatprep.subr.mxu0 0.0
    %6478 = vmatpush2.msra.mxu0 0.0
    %6479 = vmatprep.subr.mxu0 0.0
    %6480 = vmatpush2.msra.mxu0 0.0
    %6481 = vmatprep.subr.mxu0 0.0
    %6482 = vmatpush2.msra.mxu0 0.0
    %6483 = vmatprep.subr.mxu0 0.0
    %6484 = vmatpush2.msra.mxu0 0.0
    %6485 = vmatprep.subr.mxu0 0.0
    %6486 = vmatpush2.msra.mxu0 0.0
    %6487 = vmatprep.subr.mxu0 0.0
    %6488 = vmatpush2.msra.mxu0 0.0
    %6489 = vmatprep.mubr.f32.mxu0 0.0
    %v6490 = vand.u32 %v6419, 4294901760
    %v6491 = vsub.f32 %v6419, %v6490
    %v6492 = vand.u32 %v6491, 4294901760
    %v6493 = vsub.f32 %v6491, %v6492
    %v6494 = vand.u32 %v6493, 4294901760
    %6495 = vmatmul.mubr.f32.gmra.mxu0 %v6494
    %v6496 = vpop.f32.mrf.mxu0
    %v6497 = vadd.f32 0.0, %v6496
    %v6498 = vpop.f32.mrf.mxu0
    %6499 = vdwg.mxu0
    %6500 = vmatprep.subr.mxu0 0.0
    %6501 = vmatpush1.msra.mxu0 0.0
    %6502 = vmatprep.subr.mxu0 0.0
    %6503 = vmatpush1.msra.mxu0 0.0
    %6504 = vmatprep.subr.mxu0 0.0
    %6505 = vmatpush1.msra.mxu0 0.0
    %6506 = vmatprep.subr.mxu0 0.0
    %6507 = vmatpush1.msra.mxu0 0.0
    %6508 = vmatprep.subr.mxu0 0.0
    %6509 = vmatpush1.msra.mxu0 0.0
    %6510 = vmatprep.subr.mxu0 0.0
    %6511 = vmatpush1.msra.mxu0 0.0
    %6512 = vmatprep.subr.mxu0 0.0
    %6513 = vmatpush1.msra.mxu0 0.0
    %6514 = vmatprep.subr.mxu0 0.0
    %6515 = vmatpush1.msra.mxu0 0.0
    %6516 = vmatprep.subr.mxu0 0.0
    %6517 = vmatpush1.msra.mxu0 0.0
    %6518 = vmatprep.subr.mxu0 0.0
    %6519 = vmatpush1.msra.mxu0 0.0
    %6520 = vmatprep.subr.mxu0 0.0
    %6521 = vmatpush1.msra.mxu0 0.0
    %6522 = vmatprep.subr.mxu0 0.0
    %6523 = vmatpush1.msra.mxu0 0.0
    %6524 = vmatprep.subr.mxu0 0.0
    %v6525 = vand.u32 %v1597, 4294901760
    %v6526 = vsub.f32 %v1597, %v6525
    %v6527 = vand.u32 %v6526, 4294901760
    %v6528 = vsub.f32 %v6526, %v6527
    %v6529 = vand.u32 %v6528, 4294901760
    %6530 = vmatpush1.msra.mxu0 %v6529
    %6531 = vmatprep.subr.mxu0 0.0
    %v6532 = vand.u32 %v1596, 4294901760
    %v6533 = vsub.f32 %v1596, %v6532
    %v6534 = vand.u32 %v6533, 4294901760
    %v6535 = vsub.f32 %v6533, %v6534
    %v6536 = vand.u32 %v6535, 4294901760
    %6537 = vmatpush1.msra.mxu0 %v6536
    %6538 = vmatprep.subr.mxu0 0.0
    %v6539 = vand.u32 %v1595, 4294901760
    %v6540 = vsub.f32 %v1595, %v6539
    %v6541 = vand.u32 %v6540, 4294901760
    %v6542 = vsub.f32 %v6540, %v6541
    %v6543 = vand.u32 %v6542, 4294901760
    %6544 = vmatpush1.msra.mxu0 %v6543
    %6545 = vmatprep.subr.mxu0 0.0
    %v6546 = vand.u32 %v1594, 4294901760
    %v6547 = vsub.f32 %v1594, %v6546
    %v6548 = vand.u32 %v6547, 4294901760
    %v6549 = vsub.f32 %v6547, %v6548
    %v6550 = vand.u32 %v6549, 4294901760
    %6551 = vmatpush1.msra.mxu0 %v6550
    %6552 = vmatprep.subr.mxu0 0.0
    %6553 = vmatpush2.msra.mxu0 0.0
    %6554 = vmatprep.subr.mxu0 0.0
    %6555 = vmatpush2.msra.mxu0 0.0
    %6556 = vmatprep.subr.mxu0 0.0
    %6557 = vmatpush2.msra.mxu0 0.0
    %6558 = vmatprep.subr.mxu0 0.0
    %6559 = vmatpush2.msra.mxu0 0.0
    %6560 = vmatprep.subr.mxu0 0.0
    %6561 = vmatpush2.msra.mxu0 0.0
    %6562 = vmatprep.subr.mxu0 0.0
    %6563 = vmatpush2.msra.mxu0 0.0
    %6564 = vmatprep.subr.mxu0 0.0
    %6565 = vmatpush2.msra.mxu0 0.0
    %6566 = vmatprep.subr.mxu0 0.0
    %6567 = vmatpush2.msra.mxu0 0.0
    %6568 = vmatprep.subr.mxu0 0.0
    %6569 = vmatpush2.msra.mxu0 0.0
    %6570 = vmatprep.subr.mxu0 0.0
    %6571 = vmatpush2.msra.mxu0 0.0
    %6572 = vmatprep.subr.mxu0 0.0
    %6573 = vmatpush2.msra.mxu0 0.0
    %6574 = vmatprep.subr.mxu0 0.0
    %6575 = vmatpush2.msra.mxu0 0.0
    %6576 = vmatprep.subr.mxu0 0.0
    %6577 = vmatpush2.msra.mxu0 0.0
    %6578 = vmatprep.subr.mxu0 0.0
    %6579 = vmatpush2.msra.mxu0 0.0
    %6580 = vmatprep.subr.mxu0 0.0
    %6581 = vmatpush2.msra.mxu0 0.0
    %6582 = vmatprep.subr.mxu0 0.0
    %6583 = vmatpush2.msra.mxu0 0.0
    %6584 = vmatprep.mubr.f32.mxu0 0.0
    %v6585 = vand.u32 %v6419, 4294901760
    %6586 = vmatmul.mubr.f32.gmra.mxu0 %v6585
    %v6587 = vpop.f32.mrf.mxu0
    %v6588 = vadd.f32 %v6497, %v6587
    %v6589 = vpop.f32.mrf.mxu0
    %6590 = vdwg.mxu0
    %6591 = vmatprep.subr.mxu0 0.0
    %6592 = vmatpush1.msra.mxu0 0.0
    %6593 = vmatprep.subr.mxu0 0.0
    %6594 = vmatpush1.msra.mxu0 0.0
    %6595 = vmatprep.subr.mxu0 0.0
    %6596 = vmatpush1.msra.mxu0 0.0
    %6597 = vmatprep.subr.mxu0 0.0
    %6598 = vmatpush1.msra.mxu0 0.0
    %6599 = vmatprep.subr.mxu0 0.0
    %6600 = vmatpush1.msra.mxu0 0.0
    %6601 = vmatprep.subr.mxu0 0.0
    %6602 = vmatpush1.msra.mxu0 0.0
    %6603 = vmatprep.subr.mxu0 0.0
    %6604 = vmatpush1.msra.mxu0 0.0
    %6605 = vmatprep.subr.mxu0 0.0
    %6606 = vmatpush1.msra.mxu0 0.0
    %6607 = vmatprep.subr.mxu0 0.0
    %6608 = vmatpush1.msra.mxu0 0.0
    %6609 = vmatprep.subr.mxu0 0.0
    %6610 = vmatpush1.msra.mxu0 0.0
    %6611 = vmatprep.subr.mxu0 0.0
    %6612 = vmatpush1.msra.mxu0 0.0
    %6613 = vmatprep.subr.mxu0 0.0
    %6614 = vmatpush1.msra.mxu0 0.0
    %6615 = vmatprep.subr.mxu0 0.0
    %v6616 = vand.u32 %v1597, 4294901760
    %v6617 = vsub.f32 %v1597, %v6616
    %6618 = vmatpush1.msra.mxu0 %v6617
    %6619 = vmatprep.subr.mxu0 0.0
    %v6620 = vand.u32 %v1596, 4294901760
    %v6621 = vsub.f32 %v1596, %v6620
    %6622 = vmatpush1.msra.mxu0 %v6621
    %6623 = vmatprep.subr.mxu0 0.0
    %v6624 = vand.u32 %v1595, 4294901760
    %v6625 = vsub.f32 %v1595, %v6624
    %6626 = vmatpush1.msra.mxu0 %v6625
    %6627 = vmatprep.subr.mxu0 0.0
    %v6628 = vand.u32 %v1594, 4294901760
    %v6629 = vsub.f32 %v1594, %v6628
    %6630 = vmatpush1.msra.mxu0 %v6629
    %6631 = vmatprep.subr.mxu0 0.0
    %6632 = vmatpush2.msra.mxu0 0.0
    %6633 = vmatprep.subr.mxu0 0.0
    %6634 = vmatpush2.msra.mxu0 0.0
    %6635 = vmatprep.subr.mxu0 0.0
    %6636 = vmatpush2.msra.mxu0 0.0
    %6637 = vmatprep.subr.mxu0 0.0
    %6638 = vmatpush2.msra.mxu0 0.0
    %6639 = vmatprep.subr.mxu0 0.0
    %6640 = vmatpush2.msra.mxu0 0.0
    %6641 = vmatprep.subr.mxu0 0.0
    %6642 = vmatpush2.msra.mxu0 0.0
    %6643 = vmatprep.subr.mxu0 0.0
    %6644 = vmatpush2.msra.mxu0 0.0
    %6645 = vmatprep.subr.mxu0 0.0
    %6646 = vmatpush2.msra.mxu0 0.0
    %6647 = vmatprep.subr.mxu0 0.0
    %6648 = vmatpush2.msra.mxu0 0.0
    %6649 = vmatprep.subr.mxu0 0.0
    %6650 = vmatpush2.msra.mxu0 0.0
    %6651 = vmatprep.subr.mxu0 0.0
    %6652 = vmatpush2.msra.mxu0 0.0
    %6653 = vmatprep.subr.mxu0 0.0
    %6654 = vmatpush2.msra.mxu0 0.0
    %6655 = vmatprep.subr.mxu0 0.0
    %6656 = vmatpush2.msra.mxu0 0.0
    %6657 = vmatprep.subr.mxu0 0.0
    %6658 = vmatpush2.msra.mxu0 0.0
    %6659 = vmatprep.subr.mxu0 0.0
    %6660 = vmatpush2.msra.mxu0 0.0
    %6661 = vmatprep.subr.mxu0 0.0
    %6662 = vmatpush2.msra.mxu0 0.0
    %6663 = vmatprep.mubr.f32.mxu0 0.0
    %v6664 = vand.u32 %v6419, 4294901760
    %v6665 = vsub.f32 %v6419, %v6664
    %6666 = vmatmul.mubr.f32.gmra.mxu0 %v6665
    %v6667 = vpop.f32.mrf.mxu0
    %v6668 = vadd.f32 %v6588, %v6667
    %v6669 = vpop.f32.mrf.mxu0
    %6670 = vdwg.mxu0
    %6671 = vmatprep.subr.mxu0 0.0
    %6672 = vmatpush1.msra.mxu0 0.0
    %6673 = vmatprep.subr.mxu0 0.0
    %6674 = vmatpush1.msra.mxu0 0.0
    %6675 = vmatprep.subr.mxu0 0.0
    %6676 = vmatpush1.msra.mxu0 0.0
    %6677 = vmatprep.subr.mxu0 0.0
    %6678 = vmatpush1.msra.mxu0 0.0
    %6679 = vmatprep.subr.mxu0 0.0
    %6680 = vmatpush1.msra.mxu0 0.0
    %6681 = vmatprep.subr.mxu0 0.0
    %6682 = vmatpush1.msra.mxu0 0.0
    %6683 = vmatprep.subr.mxu0 0.0
    %6684 = vmatpush1.msra.mxu0 0.0
    %6685 = vmatprep.subr.mxu0 0.0
    %6686 = vmatpush1.msra.mxu0 0.0
    %6687 = vmatprep.subr.mxu0 0.0
    %6688 = vmatpush1.msra.mxu0 0.0
    %6689 = vmatprep.subr.mxu0 0.0
    %6690 = vmatpush1.msra.mxu0 0.0
    %6691 = vmatprep.subr.mxu0 0.0
    %6692 = vmatpush1.msra.mxu0 0.0
    %6693 = vmatprep.subr.mxu0 0.0
    %6694 = vmatpush1.msra.mxu0 0.0
    %6695 = vmatprep.subr.mxu0 0.0
    %v6696 = vand.u32 %v1597, 4294901760
    %6697 = vmatpush1.msra.mxu0 %v6696
    %6698 = vmatprep.subr.mxu0 0.0
    %v6699 = vand.u32 %v1596, 4294901760
    %6700 = vmatpush1.msra.mxu0 %v6699
    %6701 = vmatprep.subr.mxu0 0.0
    %v6702 = vand.u32 %v1595, 4294901760
    %6703 = vmatpush1.msra.mxu0 %v6702
    %6704 = vmatprep.subr.mxu0 0.0
    %v6705 = vand.u32 %v1594, 4294901760
    %6706 = vmatpush1.msra.mxu0 %v6705
    %6707 = vmatprep.subr.mxu0 0.0
    %6708 = vmatpush2.msra.mxu0 0.0
    %6709 = vmatprep.subr.mxu0 0.0
    %6710 = vmatpush2.msra.mxu0 0.0
    %6711 = vmatprep.subr.mxu0 0.0
    %6712 = vmatpush2.msra.mxu0 0.0
    %6713 = vmatprep.subr.mxu0 0.0
    %6714 = vmatpush2.msra.mxu0 0.0
    %6715 = vmatprep.subr.mxu0 0.0
    %6716 = vmatpush2.msra.mxu0 0.0
    %6717 = vmatprep.subr.mxu0 0.0
    %6718 = vmatpush2.msra.mxu0 0.0
    %6719 = vmatprep.subr.mxu0 0.0
    %6720 = vmatpush2.msra.mxu0 0.0
    %6721 = vmatprep.subr.mxu0 0.0
    %6722 = vmatpush2.msra.mxu0 0.0
    %6723 = vmatprep.subr.mxu0 0.0
    %6724 = vmatpush2.msra.mxu0 0.0
    %6725 = vmatprep.subr.mxu0 0.0
    %6726 = vmatpush2.msra.mxu0 0.0
    %6727 = vmatprep.subr.mxu0 0.0
    %6728 = vmatpush2.msra.mxu0 0.0
    %6729 = vmatprep.subr.mxu0 0.0
    %6730 = vmatpush2.msra.mxu0 0.0
    %6731 = vmatprep.subr.mxu0 0.0
    %6732 = vmatpush2.msra.mxu0 0.0
    %6733 = vmatprep.subr.mxu0 0.0
    %6734 = vmatpush2.msra.mxu0 0.0
    %6735 = vmatprep.subr.mxu0 0.0
    %6736 = vmatpush2.msra.mxu0 0.0
    %6737 = vmatprep.subr.mxu0 0.0
    %6738 = vmatpush2.msra.mxu0 0.0
    %6739 = vmatprep.mubr.f32.mxu0 0.0
    %v6740 = vand.u32 %v6419, 4294901760
    %v6741 = vsub.f32 %v6419, %v6740
    %v6742 = vand.u32 %v6741, 4294901760
    %6743 = vmatmul.mubr.f32.gmra.mxu0 %v6742
    %v6744 = vpop.f32.mrf.mxu0
    %v6745 = vadd.f32 %v6668, %v6744
    %v6746 = vpop.f32.mrf.mxu0
    %6747 = vdwg.mxu0
    %6748 = vmatprep.subr.mxu0 0.0
    %6749 = vmatpush1.msra.mxu0 0.0
    %6750 = vmatprep.subr.mxu0 0.0
    %6751 = vmatpush1.msra.mxu0 0.0
    %6752 = vmatprep.subr.mxu0 0.0
    %6753 = vmatpush1.msra.mxu0 0.0
    %6754 = vmatprep.subr.mxu0 0.0
    %6755 = vmatpush1.msra.mxu0 0.0
    %6756 = vmatprep.subr.mxu0 0.0
    %6757 = vmatpush1.msra.mxu0 0.0
    %6758 = vmatprep.subr.mxu0 0.0
    %6759 = vmatpush1.msra.mxu0 0.0
    %6760 = vmatprep.subr.mxu0 0.0
    %6761 = vmatpush1.msra.mxu0 0.0
    %6762 = vmatprep.subr.mxu0 0.0
    %6763 = vmatpush1.msra.mxu0 0.0
    %6764 = vmatprep.subr.mxu0 0.0
    %6765 = vmatpush1.msra.mxu0 0.0
    %6766 = vmatprep.subr.mxu0 0.0
    %6767 = vmatpush1.msra.mxu0 0.0
    %6768 = vmatprep.subr.mxu0 0.0
    %6769 = vmatpush1.msra.mxu0 0.0
    %6770 = vmatprep.subr.mxu0 0.0
    %6771 = vmatpush1.msra.mxu0 0.0
    %6772 = vmatprep.subr.mxu0 0.0
    %v6773 = vand.u32 %v1597, 4294901760
    %v6774 = vsub.f32 %v1597, %v6773
    %v6775 = vand.u32 %v6774, 4294901760
    %6776 = vmatpush1.msra.mxu0 %v6775
    %6777 = vmatprep.subr.mxu0 0.0
    %v6778 = vand.u32 %v1596, 4294901760
    %v6779 = vsub.f32 %v1596, %v6778
    %v6780 = vand.u32 %v6779, 4294901760
    %6781 = vmatpush1.msra.mxu0 %v6780
    %6782 = vmatprep.subr.mxu0 0.0
    %v6783 = vand.u32 %v1595, 4294901760
    %v6784 = vsub.f32 %v1595, %v6783
    %v6785 = vand.u32 %v6784, 4294901760
    %6786 = vmatpush1.msra.mxu0 %v6785
    %6787 = vmatprep.subr.mxu0 0.0
    %v6788 = vand.u32 %v1594, 4294901760
    %v6789 = vsub.f32 %v1594, %v6788
    %v6790 = vand.u32 %v6789, 4294901760
    %6791 = vmatpush1.msra.mxu0 %v6790
    %6792 = vmatprep.subr.mxu0 0.0
    %6793 = vmatpush2.msra.mxu0 0.0
    %6794 = vmatprep.subr.mxu0 0.0
    %6795 = vmatpush2.msra.mxu0 0.0
    %6796 = vmatprep.subr.mxu0 0.0
    %6797 = vmatpush2.msra.mxu0 0.0
    %6798 = vmatprep.subr.mxu0 0.0
    %6799 = vmatpush2.msra.mxu0 0.0
    %6800 = vmatprep.subr.mxu0 0.0
    %6801 = vmatpush2.msra.mxu0 0.0
    %6802 = vmatprep.subr.mxu0 0.0
    %6803 = vmatpush2.msra.mxu0 0.0
    %6804 = vmatprep.subr.mxu0 0.0
    %6805 = vmatpush2.msra.mxu0 0.0
    %6806 = vmatprep.subr.mxu0 0.0
    %6807 = vmatpush2.msra.mxu0 0.0
    %6808 = vmatprep.subr.mxu0 0.0
    %6809 = vmatpush2.msra.mxu0 0.0
    %6810 = vmatprep.subr.mxu0 0.0
    %6811 = vmatpush2.msra.mxu0 0.0
    %6812 = vmatprep.subr.mxu0 0.0
    %6813 = vmatpush2.msra.mxu0 0.0
    %6814 = vmatprep.subr.mxu0 0.0
    %6815 = vmatpush2.msra.mxu0 0.0
    %6816 = vmatprep.subr.mxu0 0.0
    %6817 = vmatpush2.msra.mxu0 0.0
    %6818 = vmatprep.subr.mxu0 0.0
    %6819 = vmatpush2.msra.mxu0 0.0
    %6820 = vmatprep.subr.mxu0 0.0
    %6821 = vmatpush2.msra.mxu0 0.0
    %6822 = vmatprep.subr.mxu0 0.0
    %6823 = vmatpush2.msra.mxu0 0.0
    %6824 = vmatprep.mubr.f32.mxu0 0.0
    %v6825 = vand.u32 %v6419, 4294901760
    %6826 = vmatmul.mubr.f32.gmra.mxu0 %v6825
    %v6827 = vpop.f32.mrf.mxu0
    %v6828 = vadd.f32 %v6745, %v6827
    %v6829 = vpop.f32.mrf.mxu0
    %6830 = vdwg.mxu0
    %6831 = vmatprep.subr.mxu0 0.0
    %6832 = vmatpush1.msra.mxu0 0.0
    %6833 = vmatprep.subr.mxu0 0.0
    %6834 = vmatpush1.msra.mxu0 0.0
    %6835 = vmatprep.subr.mxu0 0.0
    %6836 = vmatpush1.msra.mxu0 0.0
    %6837 = vmatprep.subr.mxu0 0.0
    %6838 = vmatpush1.msra.mxu0 0.0
    %6839 = vmatprep.subr.mxu0 0.0
    %6840 = vmatpush1.msra.mxu0 0.0
    %6841 = vmatprep.subr.mxu0 0.0
    %6842 = vmatpush1.msra.mxu0 0.0
    %6843 = vmatprep.subr.mxu0 0.0
    %6844 = vmatpush1.msra.mxu0 0.0
    %6845 = vmatprep.subr.mxu0 0.0
    %6846 = vmatpush1.msra.mxu0 0.0
    %6847 = vmatprep.subr.mxu0 0.0
    %6848 = vmatpush1.msra.mxu0 0.0
    %6849 = vmatprep.subr.mxu0 0.0
    %6850 = vmatpush1.msra.mxu0 0.0
    %6851 = vmatprep.subr.mxu0 0.0
    %6852 = vmatpush1.msra.mxu0 0.0
    %6853 = vmatprep.subr.mxu0 0.0
    %6854 = vmatpush1.msra.mxu0 0.0
    %6855 = vmatprep.subr.mxu0 0.0
    %v6856 = vand.u32 %v1597, 4294901760
    %6857 = vmatpush1.msra.mxu0 %v6856
    %6858 = vmatprep.subr.mxu0 0.0
    %v6859 = vand.u32 %v1596, 4294901760
    %6860 = vmatpush1.msra.mxu0 %v6859
    %6861 = vmatprep.subr.mxu0 0.0
    %v6862 = vand.u32 %v1595, 4294901760
    %6863 = vmatpush1.msra.mxu0 %v6862
    %6864 = vmatprep.subr.mxu0 0.0
    %v6865 = vand.u32 %v1594, 4294901760
    %6866 = vmatpush1.msra.mxu0 %v6865
    %6867 = vmatprep.subr.mxu0 0.0
    %6868 = vmatpush2.msra.mxu0 0.0
    %6869 = vmatprep.subr.mxu0 0.0
    %6870 = vmatpush2.msra.mxu0 0.0
    %6871 = vmatprep.subr.mxu0 0.0
    %6872 = vmatpush2.msra.mxu0 0.0
    %6873 = vmatprep.subr.mxu0 0.0
    %6874 = vmatpush2.msra.mxu0 0.0
    %6875 = vmatprep.subr.mxu0 0.0
    %6876 = vmatpush2.msra.mxu0 0.0
    %6877 = vmatprep.subr.mxu0 0.0
    %6878 = vmatpush2.msra.mxu0 0.0
    %6879 = vmatprep.subr.mxu0 0.0
    %6880 = vmatpush2.msra.mxu0 0.0
    %6881 = vmatprep.subr.mxu0 0.0
    %6882 = vmatpush2.msra.mxu0 0.0
    %6883 = vmatprep.subr.mxu0 0.0
    %6884 = vmatpush2.msra.mxu0 0.0
    %6885 = vmatprep.subr.mxu0 0.0
    %6886 = vmatpush2.msra.mxu0 0.0
    %6887 = vmatprep.subr.mxu0 0.0
    %6888 = vmatpush2.msra.mxu0 0.0
    %6889 = vmatprep.subr.mxu0 0.0
    %6890 = vmatpush2.msra.mxu0 0.0
    %6891 = vmatprep.subr.mxu0 0.0
    %6892 = vmatpush2.msra.mxu0 0.0
    %6893 = vmatprep.subr.mxu0 0.0
    %6894 = vmatpush2.msra.mxu0 0.0
    %6895 = vmatprep.subr.mxu0 0.0
    %6896 = vmatpush2.msra.mxu0 0.0
    %6897 = vmatprep.subr.mxu0 0.0
    %6898 = vmatpush2.msra.mxu0 0.0
    %6899 = vmatprep.mubr.f32.mxu0 0.0
    %v6900 = vand.u32 %v6419, 4294901760
    %6901 = vmatmul.mubr.f32.gmra.mxu0 %v6900
    %v6902 = vpop.f32.mrf.mxu0
    %v6903 = vadd.f32 %v6828, %v6902
    %v6904 = vpop.f32.mrf.mxu0
    %6905 = vdwg.mxu0
    %v6907 = vrot.slane %v6903, 2
    %v6909 = vadd.f32 %v1581, %v6907
    %v6910 = vmul.f32 %v6909, 0.5
    %v6911 = vtanh.pop %v6910
    %v6912 = vadd.f32 %v6911, 1.0
    %v6913 = vmul.f32 %v6912, 0.5
    %v6914 = vtanh.pop %v6909
    %v6916 = vrot.slane %v5900, 2
    %v6918 = vmul.f32 %v6913, %v6916
    %6920 = vrot.lane.b32.xlu0 %v6914, 64
    %v6921 = vpop.permute.xlu0 %6920
    %v6923 = vmul.f32 %v6913, %v6921
    %6925 = vrot.lane.b32.xlu0 %v6923, 32
    %v6926 = vpop.permute.xlu0 %6925
    %v6928 = vadd.f32 %v6918, %v6926
    %v6929 = vtanh.pop %v6928
    %6931 = vrot.lane.b32.xlu0 %v6929, 64
    %v6932 = vpop.permute.xlu0 %6931
    %v6934 = vmul.f32 %v6913, %v6932
    %v6935 = vsel %vm5881, %v6415, 0.0
    %6937 = vrot.lane.b32.xlu0 %v6935, 32
    %v6938 = vpop.permute.xlu0 %6937
    %6940 = vst.msk [vmem:[%s5887] sm:$0x3] %vm2634, %v6938
    %v6942 = vrot.slane %v6934, 6
    %6943 = vrot.lane.b32.xlu0 %v6942, 32
    %v6944 = vpop.permute.xlu0 %6943
    %v6946 = vsel %vm5868, %v6944, 0.0
    %6948 = vrot.lane.b32.xlu0 %v6946, 32
    %v6949 = vpop.permute.xlu0 %6948
    %6951 = vst.msk [vmem:[%s5875] sm:$0x3] %vm2652, %v6949
    %6952 = vrot.lane.b32.xlu0 %v5889, 96
    %v6953 = vpop.permute.xlu0 %6952
    %v6955 = vsel %vm5881, %v6415, %v6953
    %v6956 = vsel %vm5881, %v6409, %v6397
    %v6958 = vsel %vm5868, %v6944, %v6418
    %v6960 = vrot.slane %v6928, 6
    %6961 = vrot.lane.b32.xlu0 %v6960, 96
    %v6962 = vpop.permute.xlu0 %6961
    %6964 = vrot.lane.b32.xlu0 %v5900, 96
    %v6965 = vpop.permute.xlu0 %6964
    %v6967 = vsel %vm5868, %v6962, %v6965
    %6969 = vrot.lane.b32.xlu0 %v6955, 32
    %v6970 = vpop.permute.xlu0 %6969
    %v6971 = vsel %vm1599, %v6970, 0
    %6973 = vmatprep.subr.mxu0 0.0
    %6974 = vmatpush1.msra.mxu0 0.0
    %6975 = vmatprep.subr.mxu0 0.0
    %6976 = vmatpush1.msra.mxu0 0.0
    %6977 = vmatprep.subr.mxu0 0.0
    %6978 = vmatpush1.msra.mxu0 0.0
    %6979 = vmatprep.subr.mxu0 0.0
    %6980 = vmatpush1.msra.mxu0 0.0
    %6981 = vmatprep.subr.mxu0 0.0
    %6982 = vmatpush1.msra.mxu0 0.0
    %6983 = vmatprep.subr.mxu0 0.0
    %6984 = vmatpush1.msra.mxu0 0.0
    %6985 = vmatprep.subr.mxu0 0.0
    %6986 = vmatpush1.msra.mxu0 0.0
    %6987 = vmatprep.subr.mxu0 0.0
    %6988 = vmatpush1.msra.mxu0 0.0
    %6989 = vmatprep.subr.mxu0 0.0
    %6990 = vmatpush1.msra.mxu0 0.0
    %6991 = vmatprep.subr.mxu0 0.0
    %6992 = vmatpush1.msra.mxu0 0.0
    %6993 = vmatprep.subr.mxu0 0.0
    %6994 = vmatpush1.msra.mxu0 0.0
    %6995 = vmatprep.subr.mxu0 0.0
    %6996 = vmatpush1.msra.mxu0 0.0
    %6997 = vmatprep.subr.mxu0 0.0
    %v6998 = vand.u32 %v1593, 4294901760
    %6999 = vmatpush1.msra.mxu0 %v6998
    %7000 = vmatprep.subr.mxu0 0.0
    %v7001 = vand.u32 %v1592, 4294901760
    %7002 = vmatpush1.msra.mxu0 %v7001
    %7003 = vmatprep.subr.mxu0 0.0
    %v7004 = vand.u32 %v1591, 4294901760
    %7005 = vmatpush1.msra.mxu0 %v7004
    %7006 = vmatprep.subr.mxu0 0.0
    %v7007 = vand.u32 %v1590, 4294901760
    %7008 = vmatpush1.msra.mxu0 %v7007
    %7009 = vmatprep.subr.mxu0 0.0
    %7010 = vmatpush2.msra.mxu0 0.0
    %7011 = vmatprep.subr.mxu0 0.0
    %7012 = vmatpush2.msra.mxu0 0.0
    %7013 = vmatprep.subr.mxu0 0.0
    %7014 = vmatpush2.msra.mxu0 0.0
    %7015 = vmatprep.subr.mxu0 0.0
    %7016 = vmatpush2.msra.mxu0 0.0
    %7017 = vmatprep.subr.mxu0 0.0
    %7018 = vmatpush2.msra.mxu0 0.0
    %7019 = vmatprep.subr.mxu0 0.0
    %7020 = vmatpush2.msra.mxu0 0.0
    %7021 = vmatprep.subr.mxu0 0.0
    %7022 = vmatpush2.msra.mxu0 0.0
    %7023 = vmatprep.subr.mxu0 0.0
    %7024 = vmatpush2.msra.mxu0 0.0
    %7025 = vmatprep.subr.mxu0 0.0
    %7026 = vmatpush2.msra.mxu0 0.0
    %7027 = vmatprep.subr.mxu0 0.0
    %7028 = vmatpush2.msra.mxu0 0.0
    %7029 = vmatprep.subr.mxu0 0.0
    %7030 = vmatpush2.msra.mxu0 0.0
    %7031 = vmatprep.subr.mxu0 0.0
    %7032 = vmatpush2.msra.mxu0 0.0
    %7033 = vmatprep.subr.mxu0 0.0
    %7034 = vmatpush2.msra.mxu0 0.0
    %7035 = vmatprep.subr.mxu0 0.0
    %7036 = vmatpush2.msra.mxu0 0.0
    %7037 = vmatprep.subr.mxu0 0.0
    %7038 = vmatpush2.msra.mxu0 0.0
    %7039 = vmatprep.subr.mxu0 0.0
    %7040 = vmatpush2.msra.mxu0 0.0
    %7041 = vmatprep.mubr.f32.mxu0 0.0
    %v7042 = vand.u32 %v6971, 4294901760
    %v7043 = vsub.f32 %v6971, %v7042
    %v7044 = vand.u32 %v7043, 4294901760
    %v7045 = vsub.f32 %v7043, %v7044
    %v7046 = vand.u32 %v7045, 4294901760
    %7047 = vmatmul.mubr.f32.gmra.mxu0 %v7046
    %v7048 = vpop.f32.mrf.mxu0
    %v7049 = vadd.f32 0.0, %v7048
    %v7050 = vpop.f32.mrf.mxu0
    %7051 = vdwg.mxu0
    %7052 = vmatprep.subr.mxu0 0.0
    %7053 = vmatpush1.msra.mxu0 0.0
    %7054 = vmatprep.subr.mxu0 0.0
    %7055 = vmatpush1.msra.mxu0 0.0
    %7056 = vmatprep.subr.mxu0 0.0
    %7057 = vmatpush1.msra.mxu0 0.0
    %7058 = vmatprep.subr.mxu0 0.0
    %7059 = vmatpush1.msra.mxu0 0.0
    %7060 = vmatprep.subr.mxu0 0.0
    %7061 = vmatpush1.msra.mxu0 0.0
    %7062 = vmatprep.subr.mxu0 0.0
    %7063 = vmatpush1.msra.mxu0 0.0
    %7064 = vmatprep.subr.mxu0 0.0
    %7065 = vmatpush1.msra.mxu0 0.0
    %7066 = vmatprep.subr.mxu0 0.0
    %7067 = vmatpush1.msra.mxu0 0.0
    %7068 = vmatprep.subr.mxu0 0.0
    %7069 = vmatpush1.msra.mxu0 0.0
    %7070 = vmatprep.subr.mxu0 0.0
    %7071 = vmatpush1.msra.mxu0 0.0
    %7072 = vmatprep.subr.mxu0 0.0
    %7073 = vmatpush1.msra.mxu0 0.0
    %7074 = vmatprep.subr.mxu0 0.0
    %7075 = vmatpush1.msra.mxu0 0.0
    %7076 = vmatprep.subr.mxu0 0.0
    %v7077 = vand.u32 %v1593, 4294901760
    %v7078 = vsub.f32 %v1593, %v7077
    %v7079 = vand.u32 %v7078, 4294901760
    %v7080 = vsub.f32 %v7078, %v7079
    %v7081 = vand.u32 %v7080, 4294901760
    %7082 = vmatpush1.msra.mxu0 %v7081
    %7083 = vmatprep.subr.mxu0 0.0
    %v7084 = vand.u32 %v1592, 4294901760
    %v7085 = vsub.f32 %v1592, %v7084
    %v7086 = vand.u32 %v7085, 4294901760
    %v7087 = vsub.f32 %v7085, %v7086
    %v7088 = vand.u32 %v7087, 4294901760
    %7089 = vmatpush1.msra.mxu0 %v7088
    %7090 = vmatprep.subr.mxu0 0.0
    %v7091 = vand.u32 %v1591, 4294901760
    %v7092 = vsub.f32 %v1591, %v7091
    %v7093 = vand.u32 %v7092, 4294901760
    %v7094 = vsub.f32 %v7092, %v7093
    %v7095 = vand.u32 %v7094, 4294901760
    %7096 = vmatpush1.msra.mxu0 %v7095
    %7097 = vmatprep.subr.mxu0 0.0
    %v7098 = vand.u32 %v1590, 4294901760
    %v7099 = vsub.f32 %v1590, %v7098
    %v7100 = vand.u32 %v7099, 4294901760
    %v7101 = vsub.f32 %v7099, %v7100
    %v7102 = vand.u32 %v7101, 4294901760
    %7103 = vmatpush1.msra.mxu0 %v7102
    %7104 = vmatprep.subr.mxu0 0.0
    %7105 = vmatpush2.msra.mxu0 0.0
    %7106 = vmatprep.subr.mxu0 0.0
    %7107 = vmatpush2.msra.mxu0 0.0
    %7108 = vmatprep.subr.mxu0 0.0
    %7109 = vmatpush2.msra.mxu0 0.0
    %7110 = vmatprep.subr.mxu0 0.0
    %7111 = vmatpush2.msra.mxu0 0.0
    %7112 = vmatprep.subr.mxu0 0.0
    %7113 = vmatpush2.msra.mxu0 0.0
    %7114 = vmatprep.subr.mxu0 0.0
    %7115 = vmatpush2.msra.mxu0 0.0
    %7116 = vmatprep.subr.mxu0 0.0
    %7117 = vmatpush2.msra.mxu0 0.0
    %7118 = vmatprep.subr.mxu0 0.0
    %7119 = vmatpush2.msra.mxu0 0.0
    %7120 = vmatprep.subr.mxu0 0.0
    %7121 = vmatpush2.msra.mxu0 0.0
    %7122 = vmatprep.subr.mxu0 0.0
    %7123 = vmatpush2.msra.mxu0 0.0
    %7124 = vmatprep.subr.mxu0 0.0
    %7125 = vmatpush2.msra.mxu0 0.0
    %7126 = vmatprep.subr.mxu0 0.0
    %7127 = vmatpush2.msra.mxu0 0.0
    %7128 = vmatprep.subr.mxu0 0.0
    %7129 = vmatpush2.msra.mxu0 0.0
    %7130 = vmatprep.subr.mxu0 0.0
    %7131 = vmatpush2.msra.mxu0 0.0
    %7132 = vmatprep.subr.mxu0 0.0
    %7133 = vmatpush2.msra.mxu0 0.0
    %7134 = vmatprep.subr.mxu0 0.0
    %7135 = vmatpush2.msra.mxu0 0.0
    %7136 = vmatprep.mubr.f32.mxu0 0.0
    %v7137 = vand.u32 %v6971, 4294901760
    %7138 = vmatmul.mubr.f32.gmra.mxu0 %v7137
    %v7139 = vpop.f32.mrf.mxu0
    %v7140 = vadd.f32 %v7049, %v7139
    %v7141 = vpop.f32.mrf.mxu0
    %7142 = vdwg.mxu0
    %7143 = vmatprep.subr.mxu0 0.0
    %7144 = vmatpush1.msra.mxu0 0.0
    %7145 = vmatprep.subr.mxu0 0.0
    %7146 = vmatpush1.msra.mxu0 0.0
    %7147 = vmatprep.subr.mxu0 0.0
    %7148 = vmatpush1.msra.mxu0 0.0
    %7149 = vmatprep.subr.mxu0 0.0
    %7150 = vmatpush1.msra.mxu0 0.0
    %7151 = vmatprep.subr.mxu0 0.0
    %7152 = vmatpush1.msra.mxu0 0.0
    %7153 = vmatprep.subr.mxu0 0.0
    %7154 = vmatpush1.msra.mxu0 0.0
    %7155 = vmatprep.subr.mxu0 0.0
    %7156 = vmatpush1.msra.mxu0 0.0
    %7157 = vmatprep.subr.mxu0 0.0
    %7158 = vmatpush1.msra.mxu0 0.0
    %7159 = vmatprep.subr.mxu0 0.0
    %7160 = vmatpush1.msra.mxu0 0.0
    %7161 = vmatprep.subr.mxu0 0.0
    %7162 = vmatpush1.msra.mxu0 0.0
    %7163 = vmatprep.subr.mxu0 0.0
    %7164 = vmatpush1.msra.mxu0 0.0
    %7165 = vmatprep.subr.mxu0 0.0
    %7166 = vmatpush1.msra.mxu0 0.0
    %7167 = vmatprep.subr.mxu0 0.0
    %v7168 = vand.u32 %v1593, 4294901760
    %v7169 = vsub.f32 %v1593, %v7168
    %7170 = vmatpush1.msra.mxu0 %v7169
    %7171 = vmatprep.subr.mxu0 0.0
    %v7172 = vand.u32 %v1592, 4294901760
    %v7173 = vsub.f32 %v1592, %v7172
    %7174 = vmatpush1.msra.mxu0 %v7173
    %7175 = vmatprep.subr.mxu0 0.0
    %v7176 = vand.u32 %v1591, 4294901760
    %v7177 = vsub.f32 %v1591, %v7176
    %7178 = vmatpush1.msra.mxu0 %v7177
    %7179 = vmatprep.subr.mxu0 0.0
    %v7180 = vand.u32 %v1590, 4294901760
    %v7181 = vsub.f32 %v1590, %v7180
    %7182 = vmatpush1.msra.mxu0 %v7181
    %7183 = vmatprep.subr.mxu0 0.0
    %7184 = vmatpush2.msra.mxu0 0.0
    %7185 = vmatprep.subr.mxu0 0.0
    %7186 = vmatpush2.msra.mxu0 0.0
    %7187 = vmatprep.subr.mxu0 0.0
    %7188 = vmatpush2.msra.mxu0 0.0
    %7189 = vmatprep.subr.mxu0 0.0
    %7190 = vmatpush2.msra.mxu0 0.0
    %7191 = vmatprep.subr.mxu0 0.0
    %7192 = vmatpush2.msra.mxu0 0.0
    %7193 = vmatprep.subr.mxu0 0.0
    %7194 = vmatpush2.msra.mxu0 0.0
    %7195 = vmatprep.subr.mxu0 0.0
    %7196 = vmatpush2.msra.mxu0 0.0
    %7197 = vmatprep.subr.mxu0 0.0
    %7198 = vmatpush2.msra.mxu0 0.0
    %7199 = vmatprep.subr.mxu0 0.0
    %7200 = vmatpush2.msra.mxu0 0.0
    %7201 = vmatprep.subr.mxu0 0.0
    %7202 = vmatpush2.msra.mxu0 0.0
    %7203 = vmatprep.subr.mxu0 0.0
    %7204 = vmatpush2.msra.mxu0 0.0
    %7205 = vmatprep.subr.mxu0 0.0
    %7206 = vmatpush2.msra.mxu0 0.0
    %7207 = vmatprep.subr.mxu0 0.0
    %7208 = vmatpush2.msra.mxu0 0.0
    %7209 = vmatprep.subr.mxu0 0.0
    %7210 = vmatpush2.msra.mxu0 0.0
    %7211 = vmatprep.subr.mxu0 0.0
    %7212 = vmatpush2.msra.mxu0 0.0
    %7213 = vmatprep.subr.mxu0 0.0
    %7214 = vmatpush2.msra.mxu0 0.0
    %7215 = vmatprep.mubr.f32.mxu0 0.0
    %v7216 = vand.u32 %v6971, 4294901760
    %v7217 = vsub.f32 %v6971, %v7216
    %7218 = vmatmul.mubr.f32.gmra.mxu0 %v7217
    %v7219 = vpop.f32.mrf.mxu0
    %v7220 = vadd.f32 %v7140, %v7219
    %v7221 = vpop.f32.mrf.mxu0
    %7222 = vdwg.mxu0
    %7223 = vmatprep.subr.mxu0 0.0
    %7224 = vmatpush1.msra.mxu0 0.0
    %7225 = vmatprep.subr.mxu0 0.0
    %7226 = vmatpush1.msra.mxu0 0.0
    %7227 = vmatprep.subr.mxu0 0.0
    %7228 = vmatpush1.msra.mxu0 0.0
    %7229 = vmatprep.subr.mxu0 0.0
    %7230 = vmatpush1.msra.mxu0 0.0
    %7231 = vmatprep.subr.mxu0 0.0
    %7232 = vmatpush1.msra.mxu0 0.0
    %7233 = vmatprep.subr.mxu0 0.0
    %7234 = vmatpush1.msra.mxu0 0.0
    %7235 = vmatprep.subr.mxu0 0.0
    %7236 = vmatpush1.msra.mxu0 0.0
    %7237 = vmatprep.subr.mxu0 0.0
    %7238 = vmatpush1.msra.mxu0 0.0
    %7239 = vmatprep.subr.mxu0 0.0
    %7240 = vmatpush1.msra.mxu0 0.0
    %7241 = vmatprep.subr.mxu0 0.0
    %7242 = vmatpush1.msra.mxu0 0.0
    %7243 = vmatprep.subr.mxu0 0.0
    %7244 = vmatpush1.msra.mxu0 0.0
    %7245 = vmatprep.subr.mxu0 0.0
    %7246 = vmatpush1.msra.mxu0 0.0
    %7247 = vmatprep.subr.mxu0 0.0
    %v7248 = vand.u32 %v1593, 4294901760
    %7249 = vmatpush1.msra.mxu0 %v7248
    %7250 = vmatprep.subr.mxu0 0.0
    %v7251 = vand.u32 %v1592, 4294901760
    %7252 = vmatpush1.msra.mxu0 %v7251
    %7253 = vmatprep.subr.mxu0 0.0
    %v7254 = vand.u32 %v1591, 4294901760
    %7255 = vmatpush1.msra.mxu0 %v7254
    %7256 = vmatprep.subr.mxu0 0.0
    %v7257 = vand.u32 %v1590, 4294901760
    %7258 = vmatpush1.msra.mxu0 %v7257
    %7259 = vmatprep.subr.mxu0 0.0
    %7260 = vmatpush2.msra.mxu0 0.0
    %7261 = vmatprep.subr.mxu0 0.0
    %7262 = vmatpush2.msra.mxu0 0.0
    %7263 = vmatprep.subr.mxu0 0.0
    %7264 = vmatpush2.msra.mxu0 0.0
    %7265 = vmatprep.subr.mxu0 0.0
    %7266 = vmatpush2.msra.mxu0 0.0
    %7267 = vmatprep.subr.mxu0 0.0
    %7268 = vmatpush2.msra.mxu0 0.0
    %7269 = vmatprep.subr.mxu0 0.0
    %7270 = vmatpush2.msra.mxu0 0.0
    %7271 = vmatprep.subr.mxu0 0.0
    %7272 = vmatpush2.msra.mxu0 0.0
    %7273 = vmatprep.subr.mxu0 0.0
    %7274 = vmatpush2.msra.mxu0 0.0
    %7275 = vmatprep.subr.mxu0 0.0
    %7276 = vmatpush2.msra.mxu0 0.0
    %7277 = vmatprep.subr.mxu0 0.0
    %7278 = vmatpush2.msra.mxu0 0.0
    %7279 = vmatprep.subr.mxu0 0.0
    %7280 = vmatpush2.msra.mxu0 0.0
    %7281 = vmatprep.subr.mxu0 0.0
    %7282 = vmatpush2.msra.mxu0 0.0
    %7283 = vmatprep.subr.mxu0 0.0
    %7284 = vmatpush2.msra.mxu0 0.0
    %7285 = vmatprep.subr.mxu0 0.0
    %7286 = vmatpush2.msra.mxu0 0.0
    %7287 = vmatprep.subr.mxu0 0.0
    %7288 = vmatpush2.msra.mxu0 0.0
    %7289 = vmatprep.subr.mxu0 0.0
    %7290 = vmatpush2.msra.mxu0 0.0
    %7291 = vmatprep.mubr.f32.mxu0 0.0
    %v7292 = vand.u32 %v6971, 4294901760
    %v7293 = vsub.f32 %v6971, %v7292
    %v7294 = vand.u32 %v7293, 4294901760
    %7295 = vmatmul.mubr.f32.gmra.mxu0 %v7294
    %v7296 = vpop.f32.mrf.mxu0
    %v7297 = vadd.f32 %v7220, %v7296
    %v7298 = vpop.f32.mrf.mxu0
    %7299 = vdwg.mxu0
    %7300 = vmatprep.subr.mxu0 0.0
    %7301 = vmatpush1.msra.mxu0 0.0
    %7302 = vmatprep.subr.mxu0 0.0
    %7303 = vmatpush1.msra.mxu0 0.0
    %7304 = vmatprep.subr.mxu0 0.0
    %7305 = vmatpush1.msra.mxu0 0.0
    %7306 = vmatprep.subr.mxu0 0.0
    %7307 = vmatpush1.msra.mxu0 0.0
    %7308 = vmatprep.subr.mxu0 0.0
    %7309 = vmatpush1.msra.mxu0 0.0
    %7310 = vmatprep.subr.mxu0 0.0
    %7311 = vmatpush1.msra.mxu0 0.0
    %7312 = vmatprep.subr.mxu0 0.0
    %7313 = vmatpush1.msra.mxu0 0.0
    %7314 = vmatprep.subr.mxu0 0.0
    %7315 = vmatpush1.msra.mxu0 0.0
    %7316 = vmatprep.subr.mxu0 0.0
    %7317 = vmatpush1.msra.mxu0 0.0
    %7318 = vmatprep.subr.mxu0 0.0
    %7319 = vmatpush1.msra.mxu0 0.0
    %7320 = vmatprep.subr.mxu0 0.0
    %7321 = vmatpush1.msra.mxu0 0.0
    %7322 = vmatprep.subr.mxu0 0.0
    %7323 = vmatpush1.msra.mxu0 0.0
    %7324 = vmatprep.subr.mxu0 0.0
    %v7325 = vand.u32 %v1593, 4294901760
    %v7326 = vsub.f32 %v1593, %v7325
    %v7327 = vand.u32 %v7326, 4294901760
    %7328 = vmatpush1.msra.mxu0 %v7327
    %7329 = vmatprep.subr.mxu0 0.0
    %v7330 = vand.u32 %v1592, 4294901760
    %v7331 = vsub.f32 %v1592, %v7330
    %v7332 = vand.u32 %v7331, 4294901760
    %7333 = vmatpush1.msra.mxu0 %v7332
    %7334 = vmatprep.subr.mxu0 0.0
    %v7335 = vand.u32 %v1591, 4294901760
    %v7336 = vsub.f32 %v1591, %v7335
    %v7337 = vand.u32 %v7336, 4294901760
    %7338 = vmatpush1.msra.mxu0 %v7337
    %7339 = vmatprep.subr.mxu0 0.0
    %v7340 = vand.u32 %v1590, 4294901760
    %v7341 = vsub.f32 %v1590, %v7340
    %v7342 = vand.u32 %v7341, 4294901760
    %7343 = vmatpush1.msra.mxu0 %v7342
    %7344 = vmatprep.subr.mxu0 0.0
    %7345 = vmatpush2.msra.mxu0 0.0
    %7346 = vmatprep.subr.mxu0 0.0
    %7347 = vmatpush2.msra.mxu0 0.0
    %7348 = vmatprep.subr.mxu0 0.0
    %7349 = vmatpush2.msra.mxu0 0.0
    %7350 = vmatprep.subr.mxu0 0.0
    %7351 = vmatpush2.msra.mxu0 0.0
    %7352 = vmatprep.subr.mxu0 0.0
    %7353 = vmatpush2.msra.mxu0 0.0
    %7354 = vmatprep.subr.mxu0 0.0
    %7355 = vmatpush2.msra.mxu0 0.0
    %7356 = vmatprep.subr.mxu0 0.0
    %7357 = vmatpush2.msra.mxu0 0.0
    %7358 = vmatprep.subr.mxu0 0.0
    %7359 = vmatpush2.msra.mxu0 0.0
    %7360 = vmatprep.subr.mxu0 0.0
    %7361 = vmatpush2.msra.mxu0 0.0
    %7362 = vmatprep.subr.mxu0 0.0
    %7363 = vmatpush2.msra.mxu0 0.0
    %7364 = vmatprep.subr.mxu0 0.0
    %7365 = vmatpush2.msra.mxu0 0.0
    %7366 = vmatprep.subr.mxu0 0.0
    %7367 = vmatpush2.msra.mxu0 0.0
    %7368 = vmatprep.subr.mxu0 0.0
    %7369 = vmatpush2.msra.mxu0 0.0
    %7370 = vmatprep.subr.mxu0 0.0
    %7371 = vmatpush2.msra.mxu0 0.0
    %7372 = vmatprep.subr.mxu0 0.0
    %7373 = vmatpush2.msra.mxu0 0.0
    %7374 = vmatprep.subr.mxu0 0.0
    %7375 = vmatpush2.msra.mxu0 0.0
    %7376 = vmatprep.mubr.f32.mxu0 0.0
    %v7377 = vand.u32 %v6971, 4294901760
    %7378 = vmatmul.mubr.f32.gmra.mxu0 %v7377
    %v7379 = vpop.f32.mrf.mxu0
    %v7380 = vadd.f32 %v7297, %v7379
    %v7381 = vpop.f32.mrf.mxu0
    %7382 = vdwg.mxu0
    %7383 = vmatprep.subr.mxu0 0.0
    %7384 = vmatpush1.msra.mxu0 0.0
    %7385 = vmatprep.subr.mxu0 0.0
    %7386 = vmatpush1.msra.mxu0 0.0
    %7387 = vmatprep.subr.mxu0 0.0
    %7388 = vmatpush1.msra.mxu0 0.0
    %7389 = vmatprep.subr.mxu0 0.0
    %7390 = vmatpush1.msra.mxu0 0.0
    %7391 = vmatprep.subr.mxu0 0.0
    %7392 = vmatpush1.msra.mxu0 0.0
    %7393 = vmatprep.subr.mxu0 0.0
    %7394 = vmatpush1.msra.mxu0 0.0
    %7395 = vmatprep.subr.mxu0 0.0
    %7396 = vmatpush1.msra.mxu0 0.0
    %7397 = vmatprep.subr.mxu0 0.0
    %7398 = vmatpush1.msra.mxu0 0.0
    %7399 = vmatprep.subr.mxu0 0.0
    %7400 = vmatpush1.msra.mxu0 0.0
    %7401 = vmatprep.subr.mxu0 0.0
    %7402 = vmatpush1.msra.mxu0 0.0
    %7403 = vmatprep.subr.mxu0 0.0
    %7404 = vmatpush1.msra.mxu0 0.0
    %7405 = vmatprep.subr.mxu0 0.0
    %7406 = vmatpush1.msra.mxu0 0.0
    %7407 = vmatprep.subr.mxu0 0.0
    %v7408 = vand.u32 %v1593, 4294901760
    %7409 = vmatpush1.msra.mxu0 %v7408
    %7410 = vmatprep.subr.mxu0 0.0
    %v7411 = vand.u32 %v1592, 4294901760
    %7412 = vmatpush1.msra.mxu0 %v7411
    %7413 = vmatprep.subr.mxu0 0.0
    %v7414 = vand.u32 %v1591, 4294901760
    %7415 = vmatpush1.msra.mxu0 %v7414
    %7416 = vmatprep.subr.mxu0 0.0
    %v7417 = vand.u32 %v1590, 4294901760
    %7418 = vmatpush1.msra.mxu0 %v7417
    %7419 = vmatprep.subr.mxu0 0.0
    %7420 = vmatpush2.msra.mxu0 0.0
    %7421 = vmatprep.subr.mxu0 0.0
    %7422 = vmatpush2.msra.mxu0 0.0
    %7423 = vmatprep.subr.mxu0 0.0
    %7424 = vmatpush2.msra.mxu0 0.0
    %7425 = vmatprep.subr.mxu0 0.0
    %7426 = vmatpush2.msra.mxu0 0.0
    %7427 = vmatprep.subr.mxu0 0.0
    %7428 = vmatpush2.msra.mxu0 0.0
    %7429 = vmatprep.subr.mxu0 0.0
    %7430 = vmatpush2.msra.mxu0 0.0
    %7431 = vmatprep.subr.mxu0 0.0
    %7432 = vmatpush2.msra.mxu0 0.0
    %7433 = vmatprep.subr.mxu0 0.0
    %7434 = vmatpush2.msra.mxu0 0.0
    %7435 = vmatprep.subr.mxu0 0.0
    %7436 = vmatpush2.msra.mxu0 0.0
    %7437 = vmatprep.subr.mxu0 0.0
    %7438 = vmatpush2.msra.mxu0 0.0
    %7439 = vmatprep.subr.mxu0 0.0
    %7440 = vmatpush2.msra.mxu0 0.0
    %7441 = vmatprep.subr.mxu0 0.0
    %7442 = vmatpush2.msra.mxu0 0.0
    %7443 = vmatprep.subr.mxu0 0.0
    %7444 = vmatpush2.msra.mxu0 0.0
    %7445 = vmatprep.subr.mxu0 0.0
    %7446 = vmatpush2.msra.mxu0 0.0
    %7447 = vmatprep.subr.mxu0 0.0
    %7448 = vmatpush2.msra.mxu0 0.0
    %7449 = vmatprep.subr.mxu0 0.0
    %7450 = vmatpush2.msra.mxu0 0.0
    %7451 = vmatprep.mubr.f32.mxu0 0.0
    %v7452 = vand.u32 %v6971, 4294901760
    %7453 = vmatmul.mubr.f32.gmra.mxu0 %v7452
    %v7454 = vpop.f32.mrf.mxu0
    %v7455 = vadd.f32 %v7380, %v7454
    %v7456 = vpop.f32.mrf.mxu0
    %7457 = vdwg.mxu0
    %v7459 = vrot.slane %v7455, 6
    %v7461 = vadd.f32 %v1586, %v7459
    %v7462 = vmul.f32 %v7461, 0.5
    %v7463 = vtanh.pop %v7462
    %v7464 = vadd.f32 %v7463, 1.0
    %v7465 = vmul.f32 %v7464, 0.5
    %v7466 = vtanh.pop %v7461
    %v7468 = vrot.slane %v6956, 6
    %v7470 = vmul.f32 %v7465, %v7468
    %7472 = vrot.lane.b32.xlu0 %v7466, 64
    %v7473 = vpop.permute.xlu0 %7472
    %v7475 = vmul.f32 %v7465, %v7473
    %7477 = vrot.lane.b32.xlu0 %v7475, 32
    %v7478 = vpop.permute.xlu0 %7477
    %v7480 = vadd.f32 %v7470, %v7478
    %v7481 = vtanh.pop %v7480
    %7483 = vrot.lane.b32.xlu0 %v7481, 64
    %v7484 = vpop.permute.xlu0 %7483
    %v7486 = vmul.f32 %v7465, %v7484
    %v7488 = vsel %vm1599, %v6958, 0
    %7490 = vmatprep.subr.mxu0 0.0
    %7491 = vmatpush1.msra.mxu0 0.0
    %7492 = vmatprep.subr.mxu0 0.0
    %7493 = vmatpush1.msra.mxu0 0.0
    %7494 = vmatprep.subr.mxu0 0.0
    %7495 = vmatpush1.msra.mxu0 0.0
    %7496 = vmatprep.subr.mxu0 0.0
    %7497 = vmatpush1.msra.mxu0 0.0
    %7498 = vmatprep.subr.mxu0 0.0
    %7499 = vmatpush1.msra.mxu0 0.0
    %7500 = vmatprep.subr.mxu0 0.0
    %7501 = vmatpush1.msra.mxu0 0.0
    %7502 = vmatprep.subr.mxu0 0.0
    %7503 = vmatpush1.msra.mxu0 0.0
    %7504 = vmatprep.subr.mxu0 0.0
    %7505 = vmatpush1.msra.mxu0 0.0
    %7506 = vmatprep.subr.mxu0 0.0
    %7507 = vmatpush1.msra.mxu0 0.0
    %7508 = vmatprep.subr.mxu0 0.0
    %7509 = vmatpush1.msra.mxu0 0.0
    %7510 = vmatprep.subr.mxu0 0.0
    %7511 = vmatpush1.msra.mxu0 0.0
    %7512 = vmatprep.subr.mxu0 0.0
    %7513 = vmatpush1.msra.mxu0 0.0
    %7514 = vmatprep.subr.mxu0 0.0
    %v7515 = vand.u32 %v1597, 4294901760
    %7516 = vmatpush1.msra.mxu0 %v7515
    %7517 = vmatprep.subr.mxu0 0.0
    %v7518 = vand.u32 %v1596, 4294901760
    %7519 = vmatpush1.msra.mxu0 %v7518
    %7520 = vmatprep.subr.mxu0 0.0
    %v7521 = vand.u32 %v1595, 4294901760
    %7522 = vmatpush1.msra.mxu0 %v7521
    %7523 = vmatprep.subr.mxu0 0.0
    %v7524 = vand.u32 %v1594, 4294901760
    %7525 = vmatpush1.msra.mxu0 %v7524
    %7526 = vmatprep.subr.mxu0 0.0
    %7527 = vmatpush2.msra.mxu0 0.0
    %7528 = vmatprep.subr.mxu0 0.0
    %7529 = vmatpush2.msra.mxu0 0.0
    %7530 = vmatprep.subr.mxu0 0.0
    %7531 = vmatpush2.msra.mxu0 0.0
    %7532 = vmatprep.subr.mxu0 0.0
    %7533 = vmatpush2.msra.mxu0 0.0
    %7534 = vmatprep.subr.mxu0 0.0
    %7535 = vmatpush2.msra.mxu0 0.0
    %7536 = vmatprep.subr.mxu0 0.0
    %7537 = vmatpush2.msra.mxu0 0.0
    %7538 = vmatprep.subr.mxu0 0.0
    %7539 = vmatpush2.msra.mxu0 0.0
    %7540 = vmatprep.subr.mxu0 0.0
    %7541 = vmatpush2.msra.mxu0 0.0
    %7542 = vmatprep.subr.mxu0 0.0
    %7543 = vmatpush2.msra.mxu0 0.0
    %7544 = vmatprep.subr.mxu0 0.0
    %7545 = vmatpush2.msra.mxu0 0.0
    %7546 = vmatprep.subr.mxu0 0.0
    %7547 = vmatpush2.msra.mxu0 0.0
    %7548 = vmatprep.subr.mxu0 0.0
    %7549 = vmatpush2.msra.mxu0 0.0
    %7550 = vmatprep.subr.mxu0 0.0
    %7551 = vmatpush2.msra.mxu0 0.0
    %7552 = vmatprep.subr.mxu0 0.0
    %7553 = vmatpush2.msra.mxu0 0.0
    %7554 = vmatprep.subr.mxu0 0.0
    %7555 = vmatpush2.msra.mxu0 0.0
    %7556 = vmatprep.subr.mxu0 0.0
    %7557 = vmatpush2.msra.mxu0 0.0
    %7558 = vmatprep.mubr.f32.mxu0 0.0
    %v7559 = vand.u32 %v7488, 4294901760
    %v7560 = vsub.f32 %v7488, %v7559
    %v7561 = vand.u32 %v7560, 4294901760
    %v7562 = vsub.f32 %v7560, %v7561
    %v7563 = vand.u32 %v7562, 4294901760
    %7564 = vmatmul.mubr.f32.gmra.mxu0 %v7563
    %v7565 = vpop.f32.mrf.mxu0
    %v7566 = vadd.f32 0.0, %v7565
    %v7567 = vpop.f32.mrf.mxu0
    %7568 = vdwg.mxu0
    %7569 = vmatprep.subr.mxu0 0.0
    %7570 = vmatpush1.msra.mxu0 0.0
    %7571 = vmatprep.subr.mxu0 0.0
    %7572 = vmatpush1.msra.mxu0 0.0
    %7573 = vmatprep.subr.mxu0 0.0
    %7574 = vmatpush1.msra.mxu0 0.0
    %7575 = vmatprep.subr.mxu0 0.0
    %7576 = vmatpush1.msra.mxu0 0.0
    %7577 = vmatprep.subr.mxu0 0.0
    %7578 = vmatpush1.msra.mxu0 0.0
    %7579 = vmatprep.subr.mxu0 0.0
    %7580 = vmatpush1.msra.mxu0 0.0
    %7581 = vmatprep.subr.mxu0 0.0
    %7582 = vmatpush1.msra.mxu0 0.0
    %7583 = vmatprep.subr.mxu0 0.0
    %7584 = vmatpush1.msra.mxu0 0.0
    %7585 = vmatprep.subr.mxu0 0.0
    %7586 = vmatpush1.msra.mxu0 0.0
    %7587 = vmatprep.subr.mxu0 0.0
    %7588 = vmatpush1.msra.mxu0 0.0
    %7589 = vmatprep.subr.mxu0 0.0
    %7590 = vmatpush1.msra.mxu0 0.0
    %7591 = vmatprep.subr.mxu0 0.0
    %7592 = vmatpush1.msra.mxu0 0.0
    %7593 = vmatprep.subr.mxu0 0.0
    %v7594 = vand.u32 %v1597, 4294901760
    %v7595 = vsub.f32 %v1597, %v7594
    %v7596 = vand.u32 %v7595, 4294901760
    %v7597 = vsub.f32 %v7595, %v7596
    %v7598 = vand.u32 %v7597, 4294901760
    %7599 = vmatpush1.msra.mxu0 %v7598
    %7600 = vmatprep.subr.mxu0 0.0
    %v7601 = vand.u32 %v1596, 4294901760
    %v7602 = vsub.f32 %v1596, %v7601
    %v7603 = vand.u32 %v7602, 4294901760
    %v7604 = vsub.f32 %v7602, %v7603
    %v7605 = vand.u32 %v7604, 4294901760
    %7606 = vmatpush1.msra.mxu0 %v7605
    %7607 = vmatprep.subr.mxu0 0.0
    %v7608 = vand.u32 %v1595, 4294901760
    %v7609 = vsub.f32 %v1595, %v7608
    %v7610 = vand.u32 %v7609, 4294901760
    %v7611 = vsub.f32 %v7609, %v7610
    %v7612 = vand.u32 %v7611, 4294901760
    %7613 = vmatpush1.msra.mxu0 %v7612
    %7614 = vmatprep.subr.mxu0 0.0
    %v7615 = vand.u32 %v1594, 4294901760
    %v7616 = vsub.f32 %v1594, %v7615
    %v7617 = vand.u32 %v7616, 4294901760
    %v7618 = vsub.f32 %v7616, %v7617
    %v7619 = vand.u32 %v7618, 4294901760
    %7620 = vmatpush1.msra.mxu0 %v7619
    %7621 = vmatprep.subr.mxu0 0.0
    %7622 = vmatpush2.msra.mxu0 0.0
    %7623 = vmatprep.subr.mxu0 0.0
    %7624 = vmatpush2.msra.mxu0 0.0
    %7625 = vmatprep.subr.mxu0 0.0
    %7626 = vmatpush2.msra.mxu0 0.0
    %7627 = vmatprep.subr.mxu0 0.0
    %7628 = vmatpush2.msra.mxu0 0.0
    %7629 = vmatprep.subr.mxu0 0.0
    %7630 = vmatpush2.msra.mxu0 0.0
    %7631 = vmatprep.subr.mxu0 0.0
    %7632 = vmatpush2.msra.mxu0 0.0
    %7633 = vmatprep.subr.mxu0 0.0
    %7634 = vmatpush2.msra.mxu0 0.0
    %7635 = vmatprep.subr.mxu0 0.0
    %7636 = vmatpush2.msra.mxu0 0.0
    %7637 = vmatprep.subr.mxu0 0.0
    %7638 = vmatpush2.msra.mxu0 0.0
    %7639 = vmatprep.subr.mxu0 0.0
    %7640 = vmatpush2.msra.mxu0 0.0
    %7641 = vmatprep.subr.mxu0 0.0
    %7642 = vmatpush2.msra.mxu0 0.0
    %7643 = vmatprep.subr.mxu0 0.0
    %7644 = vmatpush2.msra.mxu0 0.0
    %7645 = vmatprep.subr.mxu0 0.0
    %7646 = vmatpush2.msra.mxu0 0.0
    %7647 = vmatprep.subr.mxu0 0.0
    %7648 = vmatpush2.msra.mxu0 0.0
    %7649 = vmatprep.subr.mxu0 0.0
    %7650 = vmatpush2.msra.mxu0 0.0
    %7651 = vmatprep.subr.mxu0 0.0
    %7652 = vmatpush2.msra.mxu0 0.0
    %7653 = vmatprep.mubr.f32.mxu0 0.0
    %v7654 = vand.u32 %v7488, 4294901760
    %7655 = vmatmul.mubr.f32.gmra.mxu0 %v7654
    %v7656 = vpop.f32.mrf.mxu0
    %v7657 = vadd.f32 %v7566, %v7656
    %v7658 = vpop.f32.mrf.mxu0
    %7659 = vdwg.mxu0
    %7660 = vmatprep.subr.mxu0 0.0
    %7661 = vmatpush1.msra.mxu0 0.0
    %7662 = vmatprep.subr.mxu0 0.0
    %7663 = vmatpush1.msra.mxu0 0.0
    %7664 = vmatprep.subr.mxu0 0.0
    %7665 = vmatpush1.msra.mxu0 0.0
    %7666 = vmatprep.subr.mxu0 0.0
    %7667 = vmatpush1.msra.mxu0 0.0
    %7668 = vmatprep.subr.mxu0 0.0
    %7669 = vmatpush1.msra.mxu0 0.0
    %7670 = vmatprep.subr.mxu0 0.0
    %7671 = vmatpush1.msra.mxu0 0.0
    %7672 = vmatprep.subr.mxu0 0.0
    %7673 = vmatpush1.msra.mxu0 0.0
    %7674 = vmatprep.subr.mxu0 0.0
    %7675 = vmatpush1.msra.mxu0 0.0
    %7676 = vmatprep.subr.mxu0 0.0
    %7677 = vmatpush1.msra.mxu0 0.0
    %7678 = vmatprep.subr.mxu0 0.0
    %7679 = vmatpush1.msra.mxu0 0.0
    %7680 = vmatprep.subr.mxu0 0.0
    %7681 = vmatpush1.msra.mxu0 0.0
    %7682 = vmatprep.subr.mxu0 0.0
    %7683 = vmatpush1.msra.mxu0 0.0
    %7684 = vmatprep.subr.mxu0 0.0
    %v7685 = vand.u32 %v1597, 4294901760
    %v7686 = vsub.f32 %v1597, %v7685
    %7687 = vmatpush1.msra.mxu0 %v7686
    %7688 = vmatprep.subr.mxu0 0.0
    %v7689 = vand.u32 %v1596, 4294901760
    %v7690 = vsub.f32 %v1596, %v7689
    %7691 = vmatpush1.msra.mxu0 %v7690
    %7692 = vmatprep.subr.mxu0 0.0
    %v7693 = vand.u32 %v1595, 4294901760
    %v7694 = vsub.f32 %v1595, %v7693
    %7695 = vmatpush1.msra.mxu0 %v7694
    %7696 = vmatprep.subr.mxu0 0.0
    %v7697 = vand.u32 %v1594, 4294901760
    %v7698 = vsub.f32 %v1594, %v7697
    %7699 = vmatpush1.msra.mxu0 %v7698
    %7700 = vmatprep.subr.mxu0 0.0
    %7701 = vmatpush2.msra.mxu0 0.0
    %7702 = vmatprep.subr.mxu0 0.0
    %7703 = vmatpush2.msra.mxu0 0.0
    %7704 = vmatprep.subr.mxu0 0.0
    %7705 = vmatpush2.msra.mxu0 0.0
    %7706 = vmatprep.subr.mxu0 0.0
    %7707 = vmatpush2.msra.mxu0 0.0
    %7708 = vmatprep.subr.mxu0 0.0
    %7709 = vmatpush2.msra.mxu0 0.0
    %7710 = vmatprep.subr.mxu0 0.0
    %7711 = vmatpush2.msra.mxu0 0.0
    %7712 = vmatprep.subr.mxu0 0.0
    %7713 = vmatpush2.msra.mxu0 0.0
    %7714 = vmatprep.subr.mxu0 0.0
    %7715 = vmatpush2.msra.mxu0 0.0
    %7716 = vmatprep.subr.mxu0 0.0
    %7717 = vmatpush2.msra.mxu0 0.0
    %7718 = vmatprep.subr.mxu0 0.0
    %7719 = vmatpush2.msra.mxu0 0.0
    %7720 = vmatprep.subr.mxu0 0.0
    %7721 = vmatpush2.msra.mxu0 0.0
    %7722 = vmatprep.subr.mxu0 0.0
    %7723 = vmatpush2.msra.mxu0 0.0
    %7724 = vmatprep.subr.mxu0 0.0
    %7725 = vmatpush2.msra.mxu0 0.0
    %7726 = vmatprep.subr.mxu0 0.0
    %7727 = vmatpush2.msra.mxu0 0.0
    %7728 = vmatprep.subr.mxu0 0.0
    %7729 = vmatpush2.msra.mxu0 0.0
    %7730 = vmatprep.subr.mxu0 0.0
    %7731 = vmatpush2.msra.mxu0 0.0
    %7732 = vmatprep.mubr.f32.mxu0 0.0
    %v7733 = vand.u32 %v7488, 4294901760
    %v7734 = vsub.f32 %v7488, %v7733
    %7735 = vmatmul.mubr.f32.gmra.mxu0 %v7734
    %v7736 = vpop.f32.mrf.mxu0
    %v7737 = vadd.f32 %v7657, %v7736
    %v7738 = vpop.f32.mrf.mxu0
    %7739 = vdwg.mxu0
    %7740 = vmatprep.subr.mxu0 0.0
    %7741 = vmatpush1.msra.mxu0 0.0
    %7742 = vmatprep.subr.mxu0 0.0
    %7743 = vmatpush1.msra.mxu0 0.0
    %7744 = vmatprep.subr.mxu0 0.0
    %7745 = vmatpush1.msra.mxu0 0.0
    %7746 = vmatprep.subr.mxu0 0.0
    %7747 = vmatpush1.msra.mxu0 0.0
    %7748 = vmatprep.subr.mxu0 0.0
    %7749 = vmatpush1.msra.mxu0 0.0
    %7750 = vmatprep.subr.mxu0 0.0
    %7751 = vmatpush1.msra.mxu0 0.0
    %7752 = vmatprep.subr.mxu0 0.0
    %7753 = vmatpush1.msra.mxu0 0.0
    %7754 = vmatprep.subr.mxu0 0.0
    %7755 = vmatpush1.msra.mxu0 0.0
    %7756 = vmatprep.subr.mxu0 0.0
    %7757 = vmatpush1.msra.mxu0 0.0
    %7758 = vmatprep.subr.mxu0 0.0
    %7759 = vmatpush1.msra.mxu0 0.0
    %7760 = vmatprep.subr.mxu0 0.0
    %7761 = vmatpush1.msra.mxu0 0.0
    %7762 = vmatprep.subr.mxu0 0.0
    %7763 = vmatpush1.msra.mxu0 0.0
    %7764 = vmatprep.subr.mxu0 0.0
    %v7765 = vand.u32 %v1597, 4294901760
    %7766 = vmatpush1.msra.mxu0 %v7765
    %7767 = vmatprep.subr.mxu0 0.0
    %v7768 = vand.u32 %v1596, 4294901760
    %7769 = vmatpush1.msra.mxu0 %v7768
    %7770 = vmatprep.subr.mxu0 0.0
    %v7771 = vand.u32 %v1595, 4294901760
    %7772 = vmatpush1.msra.mxu0 %v7771
    %7773 = vmatprep.subr.mxu0 0.0
    %v7774 = vand.u32 %v1594, 4294901760
    %7775 = vmatpush1.msra.mxu0 %v7774
    %7776 = vmatprep.subr.mxu0 0.0
    %7777 = vmatpush2.msra.mxu0 0.0
    %7778 = vmatprep.subr.mxu0 0.0
    %7779 = vmatpush2.msra.mxu0 0.0
    %7780 = vmatprep.subr.mxu0 0.0
    %7781 = vmatpush2.msra.mxu0 0.0
    %7782 = vmatprep.subr.mxu0 0.0
    %7783 = vmatpush2.msra.mxu0 0.0
    %7784 = vmatprep.subr.mxu0 0.0
    %7785 = vmatpush2.msra.mxu0 0.0
    %7786 = vmatprep.subr.mxu0 0.0
    %7787 = vmatpush2.msra.mxu0 0.0
    %7788 = vmatprep.subr.mxu0 0.0
    %7789 = vmatpush2.msra.mxu0 0.0
    %7790 = vmatprep.subr.mxu0 0.0
    %7791 = vmatpush2.msra.mxu0 0.0
    %7792 = vmatprep.subr.mxu0 0.0
    %7793 = vmatpush2.msra.mxu0 0.0
    %7794 = vmatprep.subr.mxu0 0.0
    %7795 = vmatpush2.msra.mxu0 0.0
    %7796 = vmatprep.subr.mxu0 0.0
    %7797 = vmatpush2.msra.mxu0 0.0
    %7798 = vmatprep.subr.mxu0 0.0
    %7799 = vmatpush2.msra.mxu0 0.0
    %7800 = vmatprep.subr.mxu0 0.0
    %7801 = vmatpush2.msra.mxu0 0.0
    %7802 = vmatprep.subr.mxu0 0.0
    %7803 = vmatpush2.msra.mxu0 0.0
    %7804 = vmatprep.subr.mxu0 0.0
    %7805 = vmatpush2.msra.mxu0 0.0
    %7806 = vmatprep.subr.mxu0 0.0
    %7807 = vmatpush2.msra.mxu0 0.0
    %7808 = vmatprep.mubr.f32.mxu0 0.0
    %v7809 = vand.u32 %v7488, 4294901760
    %v7810 = vsub.f32 %v7488, %v7809
    %v7811 = vand.u32 %v7810, 4294901760
    %7812 = vmatmul.mubr.f32.gmra.mxu0 %v7811
    %v7813 = vpop.f32.mrf.mxu0
    %v7814 = vadd.f32 %v7737, %v7813
    %v7815 = vpop.f32.mrf.mxu0
    %7816 = vdwg.mxu0
    %7817 = vmatprep.subr.mxu0 0.0
    %7818 = vmatpush1.msra.mxu0 0.0
    %7819 = vmatprep.subr.mxu0 0.0
    %7820 = vmatpush1.msra.mxu0 0.0
    %7821 = vmatprep.subr.mxu0 0.0
    %7822 = vmatpush1.msra.mxu0 0.0
    %7823 = vmatprep.subr.mxu0 0.0
    %7824 = vmatpush1.msra.mxu0 0.0
    %7825 = vmatprep.subr.mxu0 0.0
    %7826 = vmatpush1.msra.mxu0 0.0
    %7827 = vmatprep.subr.mxu0 0.0
    %7828 = vmatpush1.msra.mxu0 0.0
    %7829 = vmatprep.subr.mxu0 0.0
    %7830 = vmatpush1.msra.mxu0 0.0
    %7831 = vmatprep.subr.mxu0 0.0
    %7832 = vmatpush1.msra.mxu0 0.0
    %7833 = vmatprep.subr.mxu0 0.0
    %7834 = vmatpush1.msra.mxu0 0.0
    %7835 = vmatprep.subr.mxu0 0.0
    %7836 = vmatpush1.msra.mxu0 0.0
    %7837 = vmatprep.subr.mxu0 0.0
    %7838 = vmatpush1.msra.mxu0 0.0
    %7839 = vmatprep.subr.mxu0 0.0
    %7840 = vmatpush1.msra.mxu0 0.0
    %7841 = vmatprep.subr.mxu0 0.0
    %v7842 = vand.u32 %v1597, 4294901760
    %v7843 = vsub.f32 %v1597, %v7842
    %v7844 = vand.u32 %v7843, 4294901760
    %7845 = vmatpush1.msra.mxu0 %v7844
    %7846 = vmatprep.subr.mxu0 0.0
    %v7847 = vand.u32 %v1596, 4294901760
    %v7848 = vsub.f32 %v1596, %v7847
    %v7849 = vand.u32 %v7848, 4294901760
    %7850 = vmatpush1.msra.mxu0 %v7849
    %7851 = vmatprep.subr.mxu0 0.0
    %v7852 = vand.u32 %v1595, 4294901760
    %v7853 = vsub.f32 %v1595, %v7852
    %v7854 = vand.u32 %v7853, 4294901760
    %7855 = vmatpush1.msra.mxu0 %v7854
    %7856 = vmatprep.subr.mxu0 0.0
    %v7857 = vand.u32 %v1594, 4294901760
    %v7858 = vsub.f32 %v1594, %v7857
    %v7859 = vand.u32 %v7858, 4294901760
    %7860 = vmatpush1.msra.mxu0 %v7859
    %7861 = vmatprep.subr.mxu0 0.0
    %7862 = vmatpush2.msra.mxu0 0.0
    %7863 = vmatprep.subr.mxu0 0.0
    %7864 = vmatpush2.msra.mxu0 0.0
    %7865 = vmatprep.subr.mxu0 0.0
    %7866 = vmatpush2.msra.mxu0 0.0
    %7867 = vmatprep.subr.mxu0 0.0
    %7868 = vmatpush2.msra.mxu0 0.0
    %7869 = vmatprep.subr.mxu0 0.0
    %7870 = vmatpush2.msra.mxu0 0.0
    %7871 = vmatprep.subr.mxu0 0.0
    %7872 = vmatpush2.msra.mxu0 0.0
    %7873 = vmatprep.subr.mxu0 0.0
    %7874 = vmatpush2.msra.mxu0 0.0
    %7875 = vmatprep.subr.mxu0 0.0
    %7876 = vmatpush2.msra.mxu0 0.0
    %7877 = vmatprep.subr.mxu0 0.0
    %7878 = vmatpush2.msra.mxu0 0.0
    %7879 = vmatprep.subr.mxu0 0.0
    %7880 = vmatpush2.msra.mxu0 0.0
    %7881 = vmatprep.subr.mxu0 0.0
    %7882 = vmatpush2.msra.mxu0 0.0
    %7883 = vmatprep.subr.mxu0 0.0
    %7884 = vmatpush2.msra.mxu0 0.0
    %7885 = vmatprep.subr.mxu0 0.0
    %7886 = vmatpush2.msra.mxu0 0.0
    %7887 = vmatprep.subr.mxu0 0.0
    %7888 = vmatpush2.msra.mxu0 0.0
    %7889 = vmatprep.subr.mxu0 0.0
    %7890 = vmatpush2.msra.mxu0 0.0
    %7891 = vmatprep.subr.mxu0 0.0
    %7892 = vmatpush2.msra.mxu0 0.0
    %7893 = vmatprep.mubr.f32.mxu0 0.0
    %v7894 = vand.u32 %v7488, 4294901760
    %7895 = vmatmul.mubr.f32.gmra.mxu0 %v7894
    %v7896 = vpop.f32.mrf.mxu0
    %v7897 = vadd.f32 %v7814, %v7896
    %v7898 = vpop.f32.mrf.mxu0
    %7899 = vdwg.mxu0
    %7900 = vmatprep.subr.mxu0 0.0
    %7901 = vmatpush1.msra.mxu0 0.0
    %7902 = vmatprep.subr.mxu0 0.0
    %7903 = vmatpush1.msra.mxu0 0.0
    %7904 = vmatprep.subr.mxu0 0.0
    %7905 = vmatpush1.msra.mxu0 0.0
    %7906 = vmatprep.subr.mxu0 0.0
    %7907 = vmatpush1.msra.mxu0 0.0
    %7908 = vmatprep.subr.mxu0 0.0
    %7909 = vmatpush1.msra.mxu0 0.0
    %7910 = vmatprep.subr.mxu0 0.0
    %7911 = vmatpush1.msra.mxu0 0.0
    %7912 = vmatprep.subr.mxu0 0.0
    %7913 = vmatpush1.msra.mxu0 0.0
    %7914 = vmatprep.subr.mxu0 0.0
    %7915 = vmatpush1.msra.mxu0 0.0
    %7916 = vmatprep.subr.mxu0 0.0
    %7917 = vmatpush1.msra.mxu0 0.0
    %7918 = vmatprep.subr.mxu0 0.0
    %7919 = vmatpush1.msra.mxu0 0.0
    %7920 = vmatprep.subr.mxu0 0.0
    %7921 = vmatpush1.msra.mxu0 0.0
    %7922 = vmatprep.subr.mxu0 0.0
    %7923 = vmatpush1.msra.mxu0 0.0
    %7924 = vmatprep.subr.mxu0 0.0
    %v7925 = vand.u32 %v1597, 4294901760
    %7926 = vmatpush1.msra.mxu0 %v7925
    %7927 = vmatprep.subr.mxu0 0.0
    %v7928 = vand.u32 %v1596, 4294901760
    %7929 = vmatpush1.msra.mxu0 %v7928
    %7930 = vmatprep.subr.mxu0 0.0
    %v7931 = vand.u32 %v1595, 4294901760
    %7932 = vmatpush1.msra.mxu0 %v7931
    %7933 = vmatprep.subr.mxu0 0.0
    %v7934 = vand.u32 %v1594, 4294901760
    %7935 = vmatpush1.msra.mxu0 %v7934
    %7936 = vmatprep.subr.mxu0 0.0
    %7937 = vmatpush2.msra.mxu0 0.0
    %7938 = vmatprep.subr.mxu0 0.0
    %7939 = vmatpush2.msra.mxu0 0.0
    %7940 = vmatprep.subr.mxu0 0.0
    %7941 = vmatpush2.msra.mxu0 0.0
    %7942 = vmatprep.subr.mxu0 0.0
    %7943 = vmatpush2.msra.mxu0 0.0
    %7944 = vmatprep.subr.mxu0 0.0
    %7945 = vmatpush2.msra.mxu0 0.0
    %7946 = vmatprep.subr.mxu0 0.0
    %7947 = vmatpush2.msra.mxu0 0.0
    %7948 = vmatprep.subr.mxu0 0.0
    %7949 = vmatpush2.msra.mxu0 0.0
    %7950 = vmatprep.subr.mxu0 0.0
    %7951 = vmatpush2.msra.mxu0 0.0
    %7952 = vmatprep.subr.mxu0 0.0
    %7953 = vmatpush2.msra.mxu0 0.0
    %7954 = vmatprep.subr.mxu0 0.0
    %7955 = vmatpush2.msra.mxu0 0.0
    %7956 = vmatprep.subr.mxu0 0.0
    %7957 = vmatpush2.msra.mxu0 0.0
    %7958 = vmatprep.subr.mxu0 0.0
    %7959 = vmatpush2.msra.mxu0 0.0
    %7960 = vmatprep.subr.mxu0 0.0
    %7961 = vmatpush2.msra.mxu0 0.0
    %7962 = vmatprep.subr.mxu0 0.0
    %7963 = vmatpush2.msra.mxu0 0.0
    %7964 = vmatprep.subr.mxu0 0.0
    %7965 = vmatpush2.msra.mxu0 0.0
    %7966 = vmatprep.subr.mxu0 0.0
    %7967 = vmatpush2.msra.mxu0 0.0
    %7968 = vmatprep.mubr.f32.mxu0 0.0
    %v7969 = vand.u32 %v7488, 4294901760
    %7970 = vmatmul.mubr.f32.gmra.mxu0 %v7969
    %v7971 = vpop.f32.mrf.mxu0
    %v7972 = vadd.f32 %v7897, %v7971
    %v7973 = vpop.f32.mrf.mxu0
    %7974 = vdwg.mxu0
    %v7976 = vrot.slane %v7972, 4
    %v7978 = vadd.f32 %v1581, %v7976
    %v7979 = vmul.f32 %v7978, 0.5
    %v7980 = vtanh.pop %v7979
    %v7981 = vadd.f32 %v7980, 1.0
    %v7982 = vmul.f32 %v7981, 0.5
    %v7983 = vtanh.pop %v7978
    %v7985 = vrot.slane %v6967, 4
    %7986 = vrot.lane.b32.xlu0 %v7985, 32
    %v7987 = vpop.permute.xlu0 %7986
    %v7989 = vmul.f32 %v7982, %v7987
    %7991 = vrot.lane.b32.xlu0 %v7983, 64
    %v7992 = vpop.permute.xlu0 %7991
    %v7994 = vmul.f32 %v7982, %v7992
    %7996 = vrot.lane.b32.xlu0 %v7994, 32
    %v7997 = vpop.permute.xlu0 %7996
    %v7999 = vadd.f32 %v7989, %v7997
    %v8000 = vtanh.pop %v7999
    %8002 = vrot.lane.b32.xlu0 %v8000, 64
    %v8003 = vpop.permute.xlu0 %8002
    %v8005 = vmul.f32 %v7982, %v8003
    %v8007 = vrot.slane %v7486, 2
    %8008 = vrot.lane.b32.xlu0 %v8007, 32
    %v8009 = vpop.permute.xlu0 %8008
    %v8011 = vsel %vm4801, %v8009, 0.0
    %8012 = vst.msk [vmem:[%s4812] sm:$0x3] %vm2634, %v8011
    %v8014 = vrot.slane %v8005, 4
    %8015 = vrot.lane.b32.xlu0 %v8014, 32
    %v8016 = vpop.permute.xlu0 %8015
    %v8018 = vsel %vm4788, %v8016, 0.0
    %8020 = vrot.lane.b32.xlu0 %v8018, 32
    %v8021 = vpop.permute.xlu0 %8020
    %8023 = vst.msk [vmem:[%s4795] sm:$0x3] %vm2652, %v8021
    %v8025 = vsel %vm4801, %v8009, %v6970
    %v8027 = vrot.slane %v7480, 2
    %8028 = vrot.lane.b32.xlu0 %v8027, 96
    %v8029 = vpop.permute.xlu0 %8028
    %8031 = vrot.lane.b32.xlu0 %v6956, 96
    %v8032 = vpop.permute.xlu0 %8031
    %v8034 = vsel %vm4801, %v8029, %v8032
    %v8035 = vsel %vm4788, %v8016, %v6958
    %v8037 = vrot.slane %v7999, 4
    %8038 = vrot.lane.b32.xlu0 %v8037, 96
    %v8039 = vpop.permute.xlu0 %8038
    %v8041 = vsel %vm4788, %v8039, %v6967
    %v8043 = vsel %vm1599, %v8025, 0
    %8045 = vmatprep.subr.mxu0 0.0
    %8046 = vmatpush1.msra.mxu0 0.0
    %8047 = vmatprep.subr.mxu0 0.0
    %8048 = vmatpush1.msra.mxu0 0.0
    %8049 = vmatprep.subr.mxu0 0.0
    %8050 = vmatpush1.msra.mxu0 0.0
    %8051 = vmatprep.subr.mxu0 0.0
    %8052 = vmatpush1.msra.mxu0 0.0
    %8053 = vmatprep.subr.mxu0 0.0
    %8054 = vmatpush1.msra.mxu0 0.0
    %8055 = vmatprep.subr.mxu0 0.0
    %8056 = vmatpush1.msra.mxu0 0.0
    %8057 = vmatprep.subr.mxu0 0.0
    %8058 = vmatpush1.msra.mxu0 0.0
    %8059 = vmatprep.subr.mxu0 0.0
    %8060 = vmatpush1.msra.mxu0 0.0
    %8061 = vmatprep.subr.mxu0 0.0
    %8062 = vmatpush1.msra.mxu0 0.0
    %8063 = vmatprep.subr.mxu0 0.0
    %8064 = vmatpush1.msra.mxu0 0.0
    %8065 = vmatprep.subr.mxu0 0.0
    %8066 = vmatpush1.msra.mxu0 0.0
    %8067 = vmatprep.subr.mxu0 0.0
    %8068 = vmatpush1.msra.mxu0 0.0
    %8069 = vmatprep.subr.mxu0 0.0
    %v8070 = vand.u32 %v1593, 4294901760
    %8071 = vmatpush1.msra.mxu0 %v8070
    %8072 = vmatprep.subr.mxu0 0.0
    %v8073 = vand.u32 %v1592, 4294901760
    %8074 = vmatpush1.msra.mxu0 %v8073
    %8075 = vmatprep.subr.mxu0 0.0
    %v8076 = vand.u32 %v1591, 4294901760
    %8077 = vmatpush1.msra.mxu0 %v8076
    %8078 = vmatprep.subr.mxu0 0.0
    %v8079 = vand.u32 %v1590, 4294901760
    %8080 = vmatpush1.msra.mxu0 %v8079
    %8081 = vmatprep.subr.mxu0 0.0
    %8082 = vmatpush2.msra.mxu0 0.0
    %8083 = vmatprep.subr.mxu0 0.0
    %8084 = vmatpush2.msra.mxu0 0.0
    %8085 = vmatprep.subr.mxu0 0.0
    %8086 = vmatpush2.msra.mxu0 0.0
    %8087 = vmatprep.subr.mxu0 0.0
    %8088 = vmatpush2.msra.mxu0 0.0
    %8089 = vmatprep.subr.mxu0 0.0
    %8090 = vmatpush2.msra.mxu0 0.0
    %8091 = vmatprep.subr.mxu0 0.0
    %8092 = vmatpush2.msra.mxu0 0.0
    %8093 = vmatprep.subr.mxu0 0.0
    %8094 = vmatpush2.msra.mxu0 0.0
    %8095 = vmatprep.subr.mxu0 0.0
    %8096 = vmatpush2.msra.mxu0 0.0
    %8097 = vmatprep.subr.mxu0 0.0
    %8098 = vmatpush2.msra.mxu0 0.0
    %8099 = vmatprep.subr.mxu0 0.0
    %8100 = vmatpush2.msra.mxu0 0.0
    %8101 = vmatprep.subr.mxu0 0.0
    %8102 = vmatpush2.msra.mxu0 0.0
    %8103 = vmatprep.subr.mxu0 0.0
    %8104 = vmatpush2.msra.mxu0 0.0
    %8105 = vmatprep.subr.mxu0 0.0
    %8106 = vmatpush2.msra.mxu0 0.0
    %8107 = vmatprep.subr.mxu0 0.0
    %8108 = vmatpush2.msra.mxu0 0.0
    %8109 = vmatprep.subr.mxu0 0.0
    %8110 = vmatpush2.msra.mxu0 0.0
    %8111 = vmatprep.subr.mxu0 0.0
    %8112 = vmatpush2.msra.mxu0 0.0
    %8113 = vmatprep.mubr.f32.mxu0 0.0
    %v8114 = vand.u32 %v8043, 4294901760
    %v8115 = vsub.f32 %v8043, %v8114
    %v8116 = vand.u32 %v8115, 4294901760
    %v8117 = vsub.f32 %v8115, %v8116
    %v8118 = vand.u32 %v8117, 4294901760
    %8119 = vmatmul.mubr.f32.gmra.mxu0 %v8118
    %v8120 = vpop.f32.mrf.mxu0
    %v8121 = vadd.f32 0.0, %v8120
    %v8122 = vpop.f32.mrf.mxu0
    %8123 = vdwg.mxu0
    %8124 = vmatprep.subr.mxu0 0.0
    %8125 = vmatpush1.msra.mxu0 0.0
    %8126 = vmatprep.subr.mxu0 0.0
    %8127 = vmatpush1.msra.mxu0 0.0
    %8128 = vmatprep.subr.mxu0 0.0
    %8129 = vmatpush1.msra.mxu0 0.0
    %8130 = vmatprep.subr.mxu0 0.0
    %8131 = vmatpush1.msra.mxu0 0.0
    %8132 = vmatprep.subr.mxu0 0.0
    %8133 = vmatpush1.msra.mxu0 0.0
    %8134 = vmatprep.subr.mxu0 0.0
    %8135 = vmatpush1.msra.mxu0 0.0
    %8136 = vmatprep.subr.mxu0 0.0
    %8137 = vmatpush1.msra.mxu0 0.0
    %8138 = vmatprep.subr.mxu0 0.0
    %8139 = vmatpush1.msra.mxu0 0.0
    %8140 = vmatprep.subr.mxu0 0.0
    %8141 = vmatpush1.msra.mxu0 0.0
    %8142 = vmatprep.subr.mxu0 0.0
    %8143 = vmatpush1.msra.mxu0 0.0
    %8144 = vmatprep.subr.mxu0 0.0
    %8145 = vmatpush1.msra.mxu0 0.0
    %8146 = vmatprep.subr.mxu0 0.0
    %8147 = vmatpush1.msra.mxu0 0.0
    %8148 = vmatprep.subr.mxu0 0.0
    %v8149 = vand.u32 %v1593, 4294901760
    %v8150 = vsub.f32 %v1593, %v8149
    %v8151 = vand.u32 %v8150, 4294901760
    %v8152 = vsub.f32 %v8150, %v8151
    %v8153 = vand.u32 %v8152, 4294901760
    %8154 = vmatpush1.msra.mxu0 %v8153
    %8155 = vmatprep.subr.mxu0 0.0
    %v8156 = vand.u32 %v1592, 4294901760
    %v8157 = vsub.f32 %v1592, %v8156
    %v8158 = vand.u32 %v8157, 4294901760
    %v8159 = vsub.f32 %v8157, %v8158
    %v8160 = vand.u32 %v8159, 4294901760
    %8161 = vmatpush1.msra.mxu0 %v8160
    %8162 = vmatprep.subr.mxu0 0.0
    %v8163 = vand.u32 %v1591, 4294901760
    %v8164 = vsub.f32 %v1591, %v8163
    %v8165 = vand.u32 %v8164, 4294901760
    %v8166 = vsub.f32 %v8164, %v8165
    %v8167 = vand.u32 %v8166, 4294901760
    %8168 = vmatpush1.msra.mxu0 %v8167
    %8169 = vmatprep.subr.mxu0 0.0
    %v8170 = vand.u32 %v1590, 4294901760
    %v8171 = vsub.f32 %v1590, %v8170
    %v8172 = vand.u32 %v8171, 4294901760
    %v8173 = vsub.f32 %v8171, %v8172
    %v8174 = vand.u32 %v8173, 4294901760
    %8175 = vmatpush1.msra.mxu0 %v8174
    %8176 = vmatprep.subr.mxu0 0.0
    %8177 = vmatpush2.msra.mxu0 0.0
    %8178 = vmatprep.subr.mxu0 0.0
    %8179 = vmatpush2.msra.mxu0 0.0
    %8180 = vmatprep.subr.mxu0 0.0
    %8181 = vmatpush2.msra.mxu0 0.0
    %8182 = vmatprep.subr.mxu0 0.0
    %8183 = vmatpush2.msra.mxu0 0.0
    %8184 = vmatprep.subr.mxu0 0.0
    %8185 = vmatpush2.msra.mxu0 0.0
    %8186 = vmatprep.subr.mxu0 0.0
    %8187 = vmatpush2.msra.mxu0 0.0
    %8188 = vmatprep.subr.mxu0 0.0
    %8189 = vmatpush2.msra.mxu0 0.0
    %8190 = vmatprep.subr.mxu0 0.0
    %8191 = vmatpush2.msra.mxu0 0.0
    %8192 = vmatprep.subr.mxu0 0.0
    %8193 = vmatpush2.msra.mxu0 0.0
    %8194 = vmatprep.subr.mxu0 0.0
    %8195 = vmatpush2.msra.mxu0 0.0
    %8196 = vmatprep.subr.mxu0 0.0
    %8197 = vmatpush2.msra.mxu0 0.0
    %8198 = vmatprep.subr.mxu0 0.0
    %8199 = vmatpush2.msra.mxu0 0.0
    %8200 = vmatprep.subr.mxu0 0.0
    %8201 = vmatpush2.msra.mxu0 0.0
    %8202 = vmatprep.subr.mxu0 0.0
    %8203 = vmatpush2.msra.mxu0 0.0
    %8204 = vmatprep.subr.mxu0 0.0
    %8205 = vmatpush2.msra.mxu0 0.0
    %8206 = vmatprep.subr.mxu0 0.0
    %8207 = vmatpush2.msra.mxu0 0.0
    %8208 = vmatprep.mubr.f32.mxu0 0.0
    %v8209 = vand.u32 %v8043, 4294901760
    %8210 = vmatmul.mubr.f32.gmra.mxu0 %v8209
    %v8211 = vpop.f32.mrf.mxu0
    %v8212 = vadd.f32 %v8121, %v8211
    %v8213 = vpop.f32.mrf.mxu0
    %8214 = vdwg.mxu0
    %8215 = vmatprep.subr.mxu0 0.0
    %8216 = vmatpush1.msra.mxu0 0.0
    %8217 = vmatprep.subr.mxu0 0.0
    %8218 = vmatpush1.msra.mxu0 0.0
    %8219 = vmatprep.subr.mxu0 0.0
    %8220 = vmatpush1.msra.mxu0 0.0
    %8221 = vmatprep.subr.mxu0 0.0
    %8222 = vmatpush1.msra.mxu0 0.0
    %8223 = vmatprep.subr.mxu0 0.0
    %8224 = vmatpush1.msra.mxu0 0.0
    %8225 = vmatprep.subr.mxu0 0.0
    %8226 = vmatpush1.msra.mxu0 0.0
    %8227 = vmatprep.subr.mxu0 0.0
    %8228 = vmatpush1.msra.mxu0 0.0
    %8229 = vmatprep.subr.mxu0 0.0
    %8230 = vmatpush1.msra.mxu0 0.0
    %8231 = vmatprep.subr.mxu0 0.0
    %8232 = vmatpush1.msra.mxu0 0.0
    %8233 = vmatprep.subr.mxu0 0.0
    %8234 = vmatpush1.msra.mxu0 0.0
    %8235 = vmatprep.subr.mxu0 0.0
    %8236 = vmatpush1.msra.mxu0 0.0
    %8237 = vmatprep.subr.mxu0 0.0
    %8238 = vmatpush1.msra.mxu0 0.0
    %8239 = vmatprep.subr.mxu0 0.0
    %v8240 = vand.u32 %v1593, 4294901760
    %v8241 = vsub.f32 %v1593, %v8240
    %8242 = vmatpush1.msra.mxu0 %v8241
    %8243 = vmatprep.subr.mxu0 0.0
    %v8244 = vand.u32 %v1592, 4294901760
    %v8245 = vsub.f32 %v1592, %v8244
    %8246 = vmatpush1.msra.mxu0 %v8245
    %8247 = vmatprep.subr.mxu0 0.0
    %v8248 = vand.u32 %v1591, 4294901760
    %v8249 = vsub.f32 %v1591, %v8248
    %8250 = vmatpush1.msra.mxu0 %v8249
    %8251 = vmatprep.subr.mxu0 0.0
    %v8252 = vand.u32 %v1590, 4294901760
    %v8253 = vsub.f32 %v1590, %v8252
    %8254 = vmatpush1.msra.mxu0 %v8253
    %8255 = vmatprep.subr.mxu0 0.0
    %8256 = vmatpush2.msra.mxu0 0.0
    %8257 = vmatprep.subr.mxu0 0.0
    %8258 = vmatpush2.msra.mxu0 0.0
    %8259 = vmatprep.subr.mxu0 0.0
    %8260 = vmatpush2.msra.mxu0 0.0
    %8261 = vmatprep.subr.mxu0 0.0
    %8262 = vmatpush2.msra.mxu0 0.0
    %8263 = vmatprep.subr.mxu0 0.0
    %8264 = vmatpush2.msra.mxu0 0.0
    %8265 = vmatprep.subr.mxu0 0.0
    %8266 = vmatpush2.msra.mxu0 0.0
    %8267 = vmatprep.subr.mxu0 0.0
    %8268 = vmatpush2.msra.mxu0 0.0
    %8269 = vmatprep.subr.mxu0 0.0
    %8270 = vmatpush2.msra.mxu0 0.0
    %8271 = vmatprep.subr.mxu0 0.0
    %8272 = vmatpush2.msra.mxu0 0.0
    %8273 = vmatprep.subr.mxu0 0.0
    %8274 = vmatpush2.msra.mxu0 0.0
    %8275 = vmatprep.subr.mxu0 0.0
    %8276 = vmatpush2.msra.mxu0 0.0
    %8277 = vmatprep.subr.mxu0 0.0
    %8278 = vmatpush2.msra.mxu0 0.0
    %8279 = vmatprep.subr.mxu0 0.0
    %8280 = vmatpush2.msra.mxu0 0.0
    %8281 = vmatprep.subr.mxu0 0.0
    %8282 = vmatpush2.msra.mxu0 0.0
    %8283 = vmatprep.subr.mxu0 0.0
    %8284 = vmatpush2.msra.mxu0 0.0
    %8285 = vmatprep.subr.mxu0 0.0
    %8286 = vmatpush2.msra.mxu0 0.0
    %8287 = vmatprep.mubr.f32.mxu0 0.0
    %v8288 = vand.u32 %v8043, 4294901760
    %v8289 = vsub.f32 %v8043, %v8288
    %8290 = vmatmul.mubr.f32.gmra.mxu0 %v8289
    %v8291 = vpop.f32.mrf.mxu0
    %v8292 = vadd.f32 %v8212, %v8291
    %v8293 = vpop.f32.mrf.mxu0
    %8294 = vdwg.mxu0
    %8295 = vmatprep.subr.mxu0 0.0
    %8296 = vmatpush1.msra.mxu0 0.0
    %8297 = vmatprep.subr.mxu0 0.0
    %8298 = vmatpush1.msra.mxu0 0.0
    %8299 = vmatprep.subr.mxu0 0.0
    %8300 = vmatpush1.msra.mxu0 0.0
    %8301 = vmatprep.subr.mxu0 0.0
    %8302 = vmatpush1.msra.mxu0 0.0
    %8303 = vmatprep.subr.mxu0 0.0
    %8304 = vmatpush1.msra.mxu0 0.0
    %8305 = vmatprep.subr.mxu0 0.0
    %8306 = vmatpush1.msra.mxu0 0.0
    %8307 = vmatprep.subr.mxu0 0.0
    %8308 = vmatpush1.msra.mxu0 0.0
    %8309 = vmatprep.subr.mxu0 0.0
    %8310 = vmatpush1.msra.mxu0 0.0
    %8311 = vmatprep.subr.mxu0 0.0
    %8312 = vmatpush1.msra.mxu0 0.0
    %8313 = vmatprep.subr.mxu0 0.0
    %8314 = vmatpush1.msra.mxu0 0.0
    %8315 = vmatprep.subr.mxu0 0.0
    %8316 = vmatpush1.msra.mxu0 0.0
    %8317 = vmatprep.subr.mxu0 0.0
    %8318 = vmatpush1.msra.mxu0 0.0
    %8319 = vmatprep.subr.mxu0 0.0
    %v8320 = vand.u32 %v1593, 4294901760
    %8321 = vmatpush1.msra.mxu0 %v8320
    %8322 = vmatprep.subr.mxu0 0.0
    %v8323 = vand.u32 %v1592, 4294901760
    %8324 = vmatpush1.msra.mxu0 %v8323
    %8325 = vmatprep.subr.mxu0 0.0
    %v8326 = vand.u32 %v1591, 4294901760
    %8327 = vmatpush1.msra.mxu0 %v8326
    %8328 = vmatprep.subr.mxu0 0.0
    %v8329 = vand.u32 %v1590, 4294901760
    %8330 = vmatpush1.msra.mxu0 %v8329
    %8331 = vmatprep.subr.mxu0 0.0
    %8332 = vmatpush2.msra.mxu0 0.0
    %8333 = vmatprep.subr.mxu0 0.0
    %8334 = vmatpush2.msra.mxu0 0.0
    %8335 = vmatprep.subr.mxu0 0.0
    %8336 = vmatpush2.msra.mxu0 0.0
    %8337 = vmatprep.subr.mxu0 0.0
    %8338 = vmatpush2.msra.mxu0 0.0
    %8339 = vmatprep.subr.mxu0 0.0
    %8340 = vmatpush2.msra.mxu0 0.0
    %8341 = vmatprep.subr.mxu0 0.0
    %8342 = vmatpush2.msra.mxu0 0.0
    %8343 = vmatprep.subr.mxu0 0.0
    %8344 = vmatpush2.msra.mxu0 0.0
    %8345 = vmatprep.subr.mxu0 0.0
    %8346 = vmatpush2.msra.mxu0 0.0
    %8347 = vmatprep.subr.mxu0 0.0
    %8348 = vmatpush2.msra.mxu0 0.0
    %8349 = vmatprep.subr.mxu0 0.0
    %8350 = vmatpush2.msra.mxu0 0.0
    %8351 = vmatprep.subr.mxu0 0.0
    %8352 = vmatpush2.msra.mxu0 0.0
    %8353 = vmatprep.subr.mxu0 0.0
    %8354 = vmatpush2.msra.mxu0 0.0
    %8355 = vmatprep.subr.mxu0 0.0
    %8356 = vmatpush2.msra.mxu0 0.0
    %8357 = vmatprep.subr.mxu0 0.0
    %8358 = vmatpush2.msra.mxu0 0.0
    %8359 = vmatprep.subr.mxu0 0.0
    %8360 = vmatpush2.msra.mxu0 0.0
    %8361 = vmatprep.subr.mxu0 0.0
    %8362 = vmatpush2.msra.mxu0 0.0
    %8363 = vmatprep.mubr.f32.mxu0 0.0
    %v8364 = vand.u32 %v8043, 4294901760
    %v8365 = vsub.f32 %v8043, %v8364
    %v8366 = vand.u32 %v8365, 4294901760
    %8367 = vmatmul.mubr.f32.gmra.mxu0 %v8366
    %v8368 = vpop.f32.mrf.mxu0
    %v8369 = vadd.f32 %v8292, %v8368
    %v8370 = vpop.f32.mrf.mxu0
    %8371 = vdwg.mxu0
    %8372 = vmatprep.subr.mxu0 0.0
    %8373 = vmatpush1.msra.mxu0 0.0
    %8374 = vmatprep.subr.mxu0 0.0
    %8375 = vmatpush1.msra.mxu0 0.0
    %8376 = vmatprep.subr.mxu0 0.0
    %8377 = vmatpush1.msra.mxu0 0.0
    %8378 = vmatprep.subr.mxu0 0.0
    %8379 = vmatpush1.msra.mxu0 0.0
    %8380 = vmatprep.subr.mxu0 0.0
    %8381 = vmatpush1.msra.mxu0 0.0
    %8382 = vmatprep.subr.mxu0 0.0
    %8383 = vmatpush1.msra.mxu0 0.0
    %8384 = vmatprep.subr.mxu0 0.0
    %8385 = vmatpush1.msra.mxu0 0.0
    %8386 = vmatprep.subr.mxu0 0.0
    %8387 = vmatpush1.msra.mxu0 0.0
    %8388 = vmatprep.subr.mxu0 0.0
    %8389 = vmatpush1.msra.mxu0 0.0
    %8390 = vmatprep.subr.mxu0 0.0
    %8391 = vmatpush1.msra.mxu0 0.0
    %8392 = vmatprep.subr.mxu0 0.0
    %8393 = vmatpush1.msra.mxu0 0.0
    %8394 = vmatprep.subr.mxu0 0.0
    %8395 = vmatpush1.msra.mxu0 0.0
    %8396 = vmatprep.subr.mxu0 0.0
    %v8397 = vand.u32 %v1593, 4294901760
    %v8398 = vsub.f32 %v1593, %v8397
    %v8399 = vand.u32 %v8398, 4294901760
    %8400 = vmatpush1.msra.mxu0 %v8399
    %8401 = vmatprep.subr.mxu0 0.0
    %v8402 = vand.u32 %v1592, 4294901760
    %v8403 = vsub.f32 %v1592, %v8402
    %v8404 = vand.u32 %v8403, 4294901760
    %8405 = vmatpush1.msra.mxu0 %v8404
    %8406 = vmatprep.subr.mxu0 0.0
    %v8407 = vand.u32 %v1591, 4294901760
    %v8408 = vsub.f32 %v1591, %v8407
    %v8409 = vand.u32 %v8408, 4294901760
    %8410 = vmatpush1.msra.mxu0 %v8409
    %8411 = vmatprep.subr.mxu0 0.0
    %v8412 = vand.u32 %v1590, 4294901760
    %v8413 = vsub.f32 %v1590, %v8412
    %v8414 = vand.u32 %v8413, 4294901760
    %8415 = vmatpush1.msra.mxu0 %v8414
    %8416 = vmatprep.subr.mxu0 0.0
    %8417 = vmatpush2.msra.mxu0 0.0
    %8418 = vmatprep.subr.mxu0 0.0
    %8419 = vmatpush2.msra.mxu0 0.0
    %8420 = vmatprep.subr.mxu0 0.0
    %8421 = vmatpush2.msra.mxu0 0.0
    %8422 = vmatprep.subr.mxu0 0.0
    %8423 = vmatpush2.msra.mxu0 0.0
    %8424 = vmatprep.subr.mxu0 0.0
    %8425 = vmatpush2.msra.mxu0 0.0
    %8426 = vmatprep.subr.mxu0 0.0
    %8427 = vmatpush2.msra.mxu0 0.0
    %8428 = vmatprep.subr.mxu0 0.0
    %8429 = vmatpush2.msra.mxu0 0.0
    %8430 = vmatprep.subr.mxu0 0.0
    %8431 = vmatpush2.msra.mxu0 0.0
    %8432 = vmatprep.subr.mxu0 0.0
    %8433 = vmatpush2.msra.mxu0 0.0
    %8434 = vmatprep.subr.mxu0 0.0
    %8435 = vmatpush2.msra.mxu0 0.0
    %8436 = vmatprep.subr.mxu0 0.0
    %8437 = vmatpush2.msra.mxu0 0.0
    %8438 = vmatprep.subr.mxu0 0.0
    %8439 = vmatpush2.msra.mxu0 0.0
    %8440 = vmatprep.subr.mxu0 0.0
    %8441 = vmatpush2.msra.mxu0 0.0
    %8442 = vmatprep.subr.mxu0 0.0
    %8443 = vmatpush2.msra.mxu0 0.0
    %8444 = vmatprep.subr.mxu0 0.0
    %8445 = vmatpush2.msra.mxu0 0.0
    %8446 = vmatprep.subr.mxu0 0.0
    %8447 = vmatpush2.msra.mxu0 0.0
    %8448 = vmatprep.mubr.f32.mxu0 0.0
    %v8449 = vand.u32 %v8043, 4294901760
    %8450 = vmatmul.mubr.f32.gmra.mxu0 %v8449
    %v8451 = vpop.f32.mrf.mxu0
    %v8452 = vadd.f32 %v8369, %v8451
    %v8453 = vpop.f32.mrf.mxu0
    %8454 = vdwg.mxu0
    %8455 = vmatprep.subr.mxu0 0.0
    %8456 = vmatpush1.msra.mxu0 0.0
    %8457 = vmatprep.subr.mxu0 0.0
    %8458 = vmatpush1.msra.mxu0 0.0
    %8459 = vmatprep.subr.mxu0 0.0
    %8460 = vmatpush1.msra.mxu0 0.0
    %8461 = vmatprep.subr.mxu0 0.0
    %8462 = vmatpush1.msra.mxu0 0.0
    %8463 = vmatprep.subr.mxu0 0.0
    %8464 = vmatpush1.msra.mxu0 0.0
    %8465 = vmatprep.subr.mxu0 0.0
    %8466 = vmatpush1.msra.mxu0 0.0
    %8467 = vmatprep.subr.mxu0 0.0
    %8468 = vmatpush1.msra.mxu0 0.0
    %8469 = vmatprep.subr.mxu0 0.0
    %8470 = vmatpush1.msra.mxu0 0.0
    %8471 = vmatprep.subr.mxu0 0.0
    %8472 = vmatpush1.msra.mxu0 0.0
    %8473 = vmatprep.subr.mxu0 0.0
    %8474 = vmatpush1.msra.mxu0 0.0
    %8475 = vmatprep.subr.mxu0 0.0
    %8476 = vmatpush1.msra.mxu0 0.0
    %8477 = vmatprep.subr.mxu0 0.0
    %8478 = vmatpush1.msra.mxu0 0.0
    %8479 = vmatprep.subr.mxu0 0.0
    %v8480 = vand.u32 %v1593, 4294901760
    %8481 = vmatpush1.msra.mxu0 %v8480
    %8482 = vmatprep.subr.mxu0 0.0
    %v8483 = vand.u32 %v1592, 4294901760
    %8484 = vmatpush1.msra.mxu0 %v8483
    %8485 = vmatprep.subr.mxu0 0.0
    %v8486 = vand.u32 %v1591, 4294901760
    %8487 = vmatpush1.msra.mxu0 %v8486
    %8488 = vmatprep.subr.mxu0 0.0
    %v8489 = vand.u32 %v1590, 4294901760
    %8490 = vmatpush1.msra.mxu0 %v8489
    %8491 = vmatprep.subr.mxu0 0.0
    %8492 = vmatpush2.msra.mxu0 0.0
    %8493 = vmatprep.subr.mxu0 0.0
    %8494 = vmatpush2.msra.mxu0 0.0
    %8495 = vmatprep.subr.mxu0 0.0
    %8496 = vmatpush2.msra.mxu0 0.0
    %8497 = vmatprep.subr.mxu0 0.0
    %8498 = vmatpush2.msra.mxu0 0.0
    %8499 = vmatprep.subr.mxu0 0.0
    %8500 = vmatpush2.msra.mxu0 0.0
    %8501 = vmatprep.subr.mxu0 0.0
    %8502 = vmatpush2.msra.mxu0 0.0
    %8503 = vmatprep.subr.mxu0 0.0
    %8504 = vmatpush2.msra.mxu0 0.0
    %8505 = vmatprep.subr.mxu0 0.0
    %8506 = vmatpush2.msra.mxu0 0.0
    %8507 = vmatprep.subr.mxu0 0.0
    %8508 = vmatpush2.msra.mxu0 0.0
    %8509 = vmatprep.subr.mxu0 0.0
    %8510 = vmatpush2.msra.mxu0 0.0
    %8511 = vmatprep.subr.mxu0 0.0
    %8512 = vmatpush2.msra.mxu0 0.0
    %8513 = vmatprep.subr.mxu0 0.0
    %8514 = vmatpush2.msra.mxu0 0.0
    %8515 = vmatprep.subr.mxu0 0.0
    %8516 = vmatpush2.msra.mxu0 0.0
    %8517 = vmatprep.subr.mxu0 0.0
    %8518 = vmatpush2.msra.mxu0 0.0
    %8519 = vmatprep.subr.mxu0 0.0
    %8520 = vmatpush2.msra.mxu0 0.0
    %8521 = vmatprep.subr.mxu0 0.0
    %8522 = vmatpush2.msra.mxu0 0.0
    %8523 = vmatprep.mubr.f32.mxu0 0.0
    %v8524 = vand.u32 %v8043, 4294901760
    %8525 = vmatmul.mubr.f32.gmra.mxu0 %v8524
    %v8526 = vpop.f32.mrf.mxu0
    %v8527 = vadd.f32 %v8452, %v8526
    %v8528 = vpop.f32.mrf.mxu0
    %8529 = vdwg.mxu0
    %v8531 = vrot.slane %v8527, 4
    %v8533 = vadd.f32 %v1586, %v8531
    %v8534 = vmul.f32 %v8533, 0.5
    %v8535 = vtanh.pop %v8534
    %v8536 = vadd.f32 %v8535, 1.0
    %v8537 = vmul.f32 %v8536, 0.5
    %v8538 = vtanh.pop %v8533
    %v8540 = vrot.slane %v8034, 4
    %8541 = vrot.lane.b32.xlu0 %v8540, 32
    %v8542 = vpop.permute.xlu0 %8541
    %v8544 = vmul.f32 %v8537, %v8542
    %8546 = vrot.lane.b32.xlu0 %v8538, 64
    %v8547 = vpop.permute.xlu0 %8546
    %v8549 = vmul.f32 %v8537, %v8547
    %8551 = vrot.lane.b32.xlu0 %v8549, 32
    %v8552 = vpop.permute.xlu0 %8551
    %v8554 = vadd.f32 %v8544, %v8552
    %v8555 = vtanh.pop %v8554
    %8557 = vrot.lane.b32.xlu0 %v8555, 64
    %v8558 = vpop.permute.xlu0 %8557
    %v8560 = vmul.f32 %v8537, %v8558
    %v8562 = vsel %vm1599, %v8035, 0
    %8564 = vmatprep.subr.mxu0 0.0
    %8565 = vmatpush1.msra.mxu0 0.0
    %8566 = vmatprep.subr.mxu0 0.0
    %8567 = vmatpush1.msra.mxu0 0.0
    %8568 = vmatprep.subr.mxu0 0.0
    %8569 = vmatpush1.msra.mxu0 0.0
    %8570 = vmatprep.subr.mxu0 0.0
    %8571 = vmatpush1.msra.mxu0 0.0
    %8572 = vmatprep.subr.mxu0 0.0
    %8573 = vmatpush1.msra.mxu0 0.0
    %8574 = vmatprep.subr.mxu0 0.0
    %8575 = vmatpush1.msra.mxu0 0.0
    %8576 = vmatprep.subr.mxu0 0.0
    %8577 = vmatpush1.msra.mxu0 0.0
    %8578 = vmatprep.subr.mxu0 0.0
    %8579 = vmatpush1.msra.mxu0 0.0
    %8580 = vmatprep.subr.mxu0 0.0
    %8581 = vmatpush1.msra.mxu0 0.0
    %8582 = vmatprep.subr.mxu0 0.0
    %8583 = vmatpush1.msra.mxu0 0.0
    %8584 = vmatprep.subr.mxu0 0.0
    %8585 = vmatpush1.msra.mxu0 0.0
    %8586 = vmatprep.subr.mxu0 0.0
    %8587 = vmatpush1.msra.mxu0 0.0
    %8588 = vmatprep.subr.mxu0 0.0
    %v8589 = vand.u32 %v1597, 4294901760
    %8590 = vmatpush1.msra.mxu0 %v8589
    %8591 = vmatprep.subr.mxu0 0.0
    %v8592 = vand.u32 %v1596, 4294901760
    %8593 = vmatpush1.msra.mxu0 %v8592
    %8594 = vmatprep.subr.mxu0 0.0
    %v8595 = vand.u32 %v1595, 4294901760
    %8596 = vmatpush1.msra.mxu0 %v8595
    %8597 = vmatprep.subr.mxu0 0.0
    %v8598 = vand.u32 %v1594, 4294901760
    %8599 = vmatpush1.msra.mxu0 %v8598
    %8600 = vmatprep.subr.mxu0 0.0
    %8601 = vmatpush2.msra.mxu0 0.0
    %8602 = vmatprep.subr.mxu0 0.0
    %8603 = vmatpush2.msra.mxu0 0.0
    %8604 = vmatprep.subr.mxu0 0.0
    %8605 = vmatpush2.msra.mxu0 0.0
    %8606 = vmatprep.subr.mxu0 0.0
    %8607 = vmatpush2.msra.mxu0 0.0
    %8608 = vmatprep.subr.mxu0 0.0
    %8609 = vmatpush2.msra.mxu0 0.0
    %8610 = vmatprep.subr.mxu0 0.0
    %8611 = vmatpush2.msra.mxu0 0.0
    %8612 = vmatprep.subr.mxu0 0.0
    %8613 = vmatpush2.msra.mxu0 0.0
    %8614 = vmatprep.subr.mxu0 0.0
    %8615 = vmatpush2.msra.mxu0 0.0
    %8616 = vmatprep.subr.mxu0 0.0
    %8617 = vmatpush2.msra.mxu0 0.0
    %8618 = vmatprep.subr.mxu0 0.0
    %8619 = vmatpush2.msra.mxu0 0.0
    %8620 = vmatprep.subr.mxu0 0.0
    %8621 = vmatpush2.msra.mxu0 0.0
    %8622 = vmatprep.subr.mxu0 0.0
    %8623 = vmatpush2.msra.mxu0 0.0
    %8624 = vmatprep.subr.mxu0 0.0
    %8625 = vmatpush2.msra.mxu0 0.0
    %8626 = vmatprep.subr.mxu0 0.0
    %8627 = vmatpush2.msra.mxu0 0.0
    %8628 = vmatprep.subr.mxu0 0.0
    %8629 = vmatpush2.msra.mxu0 0.0
    %8630 = vmatprep.subr.mxu0 0.0
    %8631 = vmatpush2.msra.mxu0 0.0
    %8632 = vmatprep.mubr.f32.mxu0 0.0
    %v8633 = vand.u32 %v8562, 4294901760
    %v8634 = vsub.f32 %v8562, %v8633
    %v8635 = vand.u32 %v8634, 4294901760
    %v8636 = vsub.f32 %v8634, %v8635
    %v8637 = vand.u32 %v8636, 4294901760
    %8638 = vmatmul.mubr.f32.gmra.mxu0 %v8637
    %v8639 = vpop.f32.mrf.mxu0
    %v8640 = vadd.f32 0.0, %v8639
    %v8641 = vpop.f32.mrf.mxu0
    %8642 = vdwg.mxu0
    %8643 = vmatprep.subr.mxu0 0.0
    %8644 = vmatpush1.msra.mxu0 0.0
    %8645 = vmatprep.subr.mxu0 0.0
    %8646 = vmatpush1.msra.mxu0 0.0
    %8647 = vmatprep.subr.mxu0 0.0
    %8648 = vmatpush1.msra.mxu0 0.0
    %8649 = vmatprep.subr.mxu0 0.0
    %8650 = vmatpush1.msra.mxu0 0.0
    %8651 = vmatprep.subr.mxu0 0.0
    %8652 = vmatpush1.msra.mxu0 0.0
    %8653 = vmatprep.subr.mxu0 0.0
    %8654 = vmatpush1.msra.mxu0 0.0
    %8655 = vmatprep.subr.mxu0 0.0
    %8656 = vmatpush1.msra.mxu0 0.0
    %8657 = vmatprep.subr.mxu0 0.0
    %8658 = vmatpush1.msra.mxu0 0.0
    %8659 = vmatprep.subr.mxu0 0.0
    %8660 = vmatpush1.msra.mxu0 0.0
    %8661 = vmatprep.subr.mxu0 0.0
    %8662 = vmatpush1.msra.mxu0 0.0
    %8663 = vmatprep.subr.mxu0 0.0
    %8664 = vmatpush1.msra.mxu0 0.0
    %8665 = vmatprep.subr.mxu0 0.0
    %8666 = vmatpush1.msra.mxu0 0.0
    %8667 = vmatprep.subr.mxu0 0.0
    %v8668 = vand.u32 %v1597, 4294901760
    %v8669 = vsub.f32 %v1597, %v8668
    %v8670 = vand.u32 %v8669, 4294901760
    %v8671 = vsub.f32 %v8669, %v8670
    %v8672 = vand.u32 %v8671, 4294901760
    %8673 = vmatpush1.msra.mxu0 %v8672
    %8674 = vmatprep.subr.mxu0 0.0
    %v8675 = vand.u32 %v1596, 4294901760
    %v8676 = vsub.f32 %v1596, %v8675
    %v8677 = vand.u32 %v8676, 4294901760
    %v8678 = vsub.f32 %v8676, %v8677
    %v8679 = vand.u32 %v8678, 4294901760
    %8680 = vmatpush1.msra.mxu0 %v8679
    %8681 = vmatprep.subr.mxu0 0.0
    %v8682 = vand.u32 %v1595, 4294901760
    %v8683 = vsub.f32 %v1595, %v8682
    %v8684 = vand.u32 %v8683, 4294901760
    %v8685 = vsub.f32 %v8683, %v8684
    %v8686 = vand.u32 %v8685, 4294901760
    %8687 = vmatpush1.msra.mxu0 %v8686
    %8688 = vmatprep.subr.mxu0 0.0
    %v8689 = vand.u32 %v1594, 4294901760
    %v8690 = vsub.f32 %v1594, %v8689
    %v8691 = vand.u32 %v8690, 4294901760
    %v8692 = vsub.f32 %v8690, %v8691
    %v8693 = vand.u32 %v8692, 4294901760
    %8694 = vmatpush1.msra.mxu0 %v8693
    %8695 = vmatprep.subr.mxu0 0.0
    %8696 = vmatpush2.msra.mxu0 0.0
    %8697 = vmatprep.subr.mxu0 0.0
    %8698 = vmatpush2.msra.mxu0 0.0
    %8699 = vmatprep.subr.mxu0 0.0
    %8700 = vmatpush2.msra.mxu0 0.0
    %8701 = vmatprep.subr.mxu0 0.0
    %8702 = vmatpush2.msra.mxu0 0.0
    %8703 = vmatprep.subr.mxu0 0.0
    %8704 = vmatpush2.msra.mxu0 0.0
    %8705 = vmatprep.subr.mxu0 0.0
    %8706 = vmatpush2.msra.mxu0 0.0
    %8707 = vmatprep.subr.mxu0 0.0
    %8708 = vmatpush2.msra.mxu0 0.0
    %8709 = vmatprep.subr.mxu0 0.0
    %8710 = vmatpush2.msra.mxu0 0.0
    %8711 = vmatprep.subr.mxu0 0.0
    %8712 = vmatpush2.msra.mxu0 0.0
    %8713 = vmatprep.subr.mxu0 0.0
    %8714 = vmatpush2.msra.mxu0 0.0
    %8715 = vmatprep.subr.mxu0 0.0
    %8716 = vmatpush2.msra.mxu0 0.0
    %8717 = vmatprep.subr.mxu0 0.0
    %8718 = vmatpush2.msra.mxu0 0.0
    %8719 = vmatprep.subr.mxu0 0.0
    %8720 = vmatpush2.msra.mxu0 0.0
    %8721 = vmatprep.subr.mxu0 0.0
    %8722 = vmatpush2.msra.mxu0 0.0
    %8723 = vmatprep.subr.mxu0 0.0
    %8724 = vmatpush2.msra.mxu0 0.0
    %8725 = vmatprep.subr.mxu0 0.0
    %8726 = vmatpush2.msra.mxu0 0.0
    %8727 = vmatprep.mubr.f32.mxu0 0.0
    %v8728 = vand.u32 %v8562, 4294901760
    %8729 = vmatmul.mubr.f32.gmra.mxu0 %v8728
    %v8730 = vpop.f32.mrf.mxu0
    %v8731 = vadd.f32 %v8640, %v8730
    %v8732 = vpop.f32.mrf.mxu0
    %8733 = vdwg.mxu0
    %8734 = vmatprep.subr.mxu0 0.0
    %8735 = vmatpush1.msra.mxu0 0.0
    %8736 = vmatprep.subr.mxu0 0.0
    %8737 = vmatpush1.msra.mxu0 0.0
    %8738 = vmatprep.subr.mxu0 0.0
    %8739 = vmatpush1.msra.mxu0 0.0
    %8740 = vmatprep.subr.mxu0 0.0
    %8741 = vmatpush1.msra.mxu0 0.0
    %8742 = vmatprep.subr.mxu0 0.0
    %8743 = vmatpush1.msra.mxu0 0.0
    %8744 = vmatprep.subr.mxu0 0.0
    %8745 = vmatpush1.msra.mxu0 0.0
    %8746 = vmatprep.subr.mxu0 0.0
    %8747 = vmatpush1.msra.mxu0 0.0
    %8748 = vmatprep.subr.mxu0 0.0
    %8749 = vmatpush1.msra.mxu0 0.0
    %8750 = vmatprep.subr.mxu0 0.0
    %8751 = vmatpush1.msra.mxu0 0.0
    %8752 = vmatprep.subr.mxu0 0.0
    %8753 = vmatpush1.msra.mxu0 0.0
    %8754 = vmatprep.subr.mxu0 0.0
    %8755 = vmatpush1.msra.mxu0 0.0
    %8756 = vmatprep.subr.mxu0 0.0
    %8757 = vmatpush1.msra.mxu0 0.0
    %8758 = vmatprep.subr.mxu0 0.0
    %v8759 = vand.u32 %v1597, 4294901760
    %v8760 = vsub.f32 %v1597, %v8759
    %8761 = vmatpush1.msra.mxu0 %v8760
    %8762 = vmatprep.subr.mxu0 0.0
    %v8763 = vand.u32 %v1596, 4294901760
    %v8764 = vsub.f32 %v1596, %v8763
    %8765 = vmatpush1.msra.mxu0 %v8764
    %8766 = vmatprep.subr.mxu0 0.0
    %v8767 = vand.u32 %v1595, 4294901760
    %v8768 = vsub.f32 %v1595, %v8767
    %8769 = vmatpush1.msra.mxu0 %v8768
    %8770 = vmatprep.subr.mxu0 0.0
    %v8771 = vand.u32 %v1594, 4294901760
    %v8772 = vsub.f32 %v1594, %v8771
    %8773 = vmatpush1.msra.mxu0 %v8772
    %8774 = vmatprep.subr.mxu0 0.0
    %8775 = vmatpush2.msra.mxu0 0.0
    %8776 = vmatprep.subr.mxu0 0.0
    %8777 = vmatpush2.msra.mxu0 0.0
    %8778 = vmatprep.subr.mxu0 0.0
    %8779 = vmatpush2.msra.mxu0 0.0
    %8780 = vmatprep.subr.mxu0 0.0
    %8781 = vmatpush2.msra.mxu0 0.0
    %8782 = vmatprep.subr.mxu0 0.0
    %8783 = vmatpush2.msra.mxu0 0.0
    %8784 = vmatprep.subr.mxu0 0.0
    %8785 = vmatpush2.msra.mxu0 0.0
    %8786 = vmatprep.subr.mxu0 0.0
    %8787 = vmatpush2.msra.mxu0 0.0
    %8788 = vmatprep.subr.mxu0 0.0
    %8789 = vmatpush2.msra.mxu0 0.0
    %8790 = vmatprep.subr.mxu0 0.0
    %8791 = vmatpush2.msra.mxu0 0.0
    %8792 = vmatprep.subr.mxu0 0.0
    %8793 = vmatpush2.msra.mxu0 0.0
    %8794 = vmatprep.subr.mxu0 0.0
    %8795 = vmatpush2.msra.mxu0 0.0
    %8796 = vmatprep.subr.mxu0 0.0
    %8797 = vmatpush2.msra.mxu0 0.0
    %8798 = vmatprep.subr.mxu0 0.0
    %8799 = vmatpush2.msra.mxu0 0.0
    %8800 = vmatprep.subr.mxu0 0.0
    %8801 = vmatpush2.msra.mxu0 0.0
    %8802 = vmatprep.subr.mxu0 0.0
    %8803 = vmatpush2.msra.mxu0 0.0
    %8804 = vmatprep.subr.mxu0 0.0
    %8805 = vmatpush2.msra.mxu0 0.0
    %8806 = vmatprep.mubr.f32.mxu0 0.0
    %v8807 = vand.u32 %v8562, 4294901760
    %v8808 = vsub.f32 %v8562, %v8807
    %8809 = vmatmul.mubr.f32.gmra.mxu0 %v8808
    %v8810 = vpop.f32.mrf.mxu0
    %v8811 = vadd.f32 %v8731, %v8810
    %v8812 = vpop.f32.mrf.mxu0
    %8813 = vdwg.mxu0
    %8814 = vmatprep.subr.mxu0 0.0
    %8815 = vmatpush1.msra.mxu0 0.0
    %8816 = vmatprep.subr.mxu0 0.0
    %8817 = vmatpush1.msra.mxu0 0.0
    %8818 = vmatprep.subr.mxu0 0.0
    %8819 = vmatpush1.msra.mxu0 0.0
    %8820 = vmatprep.subr.mxu0 0.0
    %8821 = vmatpush1.msra.mxu0 0.0
    %8822 = vmatprep.subr.mxu0 0.0
    %8823 = vmatpush1.msra.mxu0 0.0
    %8824 = vmatprep.subr.mxu0 0.0
    %8825 = vmatpush1.msra.mxu0 0.0
    %8826 = vmatprep.subr.mxu0 0.0
    %8827 = vmatpush1.msra.mxu0 0.0
    %8828 = vmatprep.subr.mxu0 0.0
    %8829 = vmatpush1.msra.mxu0 0.0
    %8830 = vmatprep.subr.mxu0 0.0
    %8831 = vmatpush1.msra.mxu0 0.0
    %8832 = vmatprep.subr.mxu0 0.0
    %8833 = vmatpush1.msra.mxu0 0.0
    %8834 = vmatprep.subr.mxu0 0.0
    %8835 = vmatpush1.msra.mxu0 0.0
    %8836 = vmatprep.subr.mxu0 0.0
    %8837 = vmatpush1.msra.mxu0 0.0
    %8838 = vmatprep.subr.mxu0 0.0
    %v8839 = vand.u32 %v1597, 4294901760
    %8840 = vmatpush1.msra.mxu0 %v8839
    %8841 = vmatprep.subr.mxu0 0.0
    %v8842 = vand.u32 %v1596, 4294901760
    %8843 = vmatpush1.msra.mxu0 %v8842
    %8844 = vmatprep.subr.mxu0 0.0
    %v8845 = vand.u32 %v1595, 4294901760
    %8846 = vmatpush1.msra.mxu0 %v8845
    %8847 = vmatprep.subr.mxu0 0.0
    %v8848 = vand.u32 %v1594, 4294901760
    %8849 = vmatpush1.msra.mxu0 %v8848
    %8850 = vmatprep.subr.mxu0 0.0
    %8851 = vmatpush2.msra.mxu0 0.0
    %8852 = vmatprep.subr.mxu0 0.0
    %8853 = vmatpush2.msra.mxu0 0.0
    %8854 = vmatprep.subr.mxu0 0.0
    %8855 = vmatpush2.msra.mxu0 0.0
    %8856 = vmatprep.subr.mxu0 0.0
    %8857 = vmatpush2.msra.mxu0 0.0
    %8858 = vmatprep.subr.mxu0 0.0
    %8859 = vmatpush2.msra.mxu0 0.0
    %8860 = vmatprep.subr.mxu0 0.0
    %8861 = vmatpush2.msra.mxu0 0.0
    %8862 = vmatprep.subr.mxu0 0.0
    %8863 = vmatpush2.msra.mxu0 0.0
    %8864 = vmatprep.subr.mxu0 0.0
    %8865 = vmatpush2.msra.mxu0 0.0
    %8866 = vmatprep.subr.mxu0 0.0
    %8867 = vmatpush2.msra.mxu0 0.0
    %8868 = vmatprep.subr.mxu0 0.0
    %8869 = vmatpush2.msra.mxu0 0.0
    %8870 = vmatprep.subr.mxu0 0.0
    %8871 = vmatpush2.msra.mxu0 0.0
    %8872 = vmatprep.subr.mxu0 0.0
    %8873 = vmatpush2.msra.mxu0 0.0
    %8874 = vmatprep.subr.mxu0 0.0
    %8875 = vmatpush2.msra.mxu0 0.0
    %8876 = vmatprep.subr.mxu0 0.0
    %8877 = vmatpush2.msra.mxu0 0.0
    %8878 = vmatprep.subr.mxu0 0.0
    %8879 = vmatpush2.msra.mxu0 0.0
    %8880 = vmatprep.subr.mxu0 0.0
    %8881 = vmatpush2.msra.mxu0 0.0
    %8882 = vmatprep.mubr.f32.mxu0 0.0
    %v8883 = vand.u32 %v8562, 4294901760
    %v8884 = vsub.f32 %v8562, %v8883
    %v8885 = vand.u32 %v8884, 4294901760
    %8886 = vmatmul.mubr.f32.gmra.mxu0 %v8885
    %v8887 = vpop.f32.mrf.mxu0
    %v8888 = vadd.f32 %v8811, %v8887
    %v8889 = vpop.f32.mrf.mxu0
    %8890 = vdwg.mxu0
    %8891 = vmatprep.subr.mxu0 0.0
    %8892 = vmatpush1.msra.mxu0 0.0
    %8893 = vmatprep.subr.mxu0 0.0
    %8894 = vmatpush1.msra.mxu0 0.0
    %8895 = vmatprep.subr.mxu0 0.0
    %8896 = vmatpush1.msra.mxu0 0.0
    %8897 = vmatprep.subr.mxu0 0.0
    %8898 = vmatpush1.msra.mxu0 0.0
    %8899 = vmatprep.subr.mxu0 0.0
    %8900 = vmatpush1.msra.mxu0 0.0
    %8901 = vmatprep.subr.mxu0 0.0
    %8902 = vmatpush1.msra.mxu0 0.0
    %8903 = vmatprep.subr.mxu0 0.0
    %8904 = vmatpush1.msra.mxu0 0.0
    %8905 = vmatprep.subr.mxu0 0.0
    %8906 = vmatpush1.msra.mxu0 0.0
    %8907 = vmatprep.subr.mxu0 0.0
    %8908 = vmatpush1.msra.mxu0 0.0
    %8909 = vmatprep.subr.mxu0 0.0
    %8910 = vmatpush1.msra.mxu0 0.0
    %8911 = vmatprep.subr.mxu0 0.0
    %8912 = vmatpush1.msra.mxu0 0.0
    %8913 = vmatprep.subr.mxu0 0.0
    %8914 = vmatpush1.msra.mxu0 0.0
    %8915 = vmatprep.subr.mxu0 0.0
    %v8916 = vand.u32 %v1597, 4294901760
    %v8917 = vsub.f32 %v1597, %v8916
    %v8918 = vand.u32 %v8917, 4294901760
    %8919 = vmatpush1.msra.mxu0 %v8918
    %8920 = vmatprep.subr.mxu0 0.0
    %v8921 = vand.u32 %v1596, 4294901760
    %v8922 = vsub.f32 %v1596, %v8921
    %v8923 = vand.u32 %v8922, 4294901760
    %8924 = vmatpush1.msra.mxu0 %v8923
    %8925 = vmatprep.subr.mxu0 0.0
    %v8926 = vand.u32 %v1595, 4294901760
    %v8927 = vsub.f32 %v1595, %v8926
    %v8928 = vand.u32 %v8927, 4294901760
    %8929 = vmatpush1.msra.mxu0 %v8928
    %8930 = vmatprep.subr.mxu0 0.0
    %v8931 = vand.u32 %v1594, 4294901760
    %v8932 = vsub.f32 %v1594, %v8931
    %v8933 = vand.u32 %v8932, 4294901760
    %8934 = vmatpush1.msra.mxu0 %v8933
    %8935 = vmatprep.subr.mxu0 0.0
    %8936 = vmatpush2.msra.mxu0 0.0
    %8937 = vmatprep.subr.mxu0 0.0
    %8938 = vmatpush2.msra.mxu0 0.0
    %8939 = vmatprep.subr.mxu0 0.0
    %8940 = vmatpush2.msra.mxu0 0.0
    %8941 = vmatprep.subr.mxu0 0.0
    %8942 = vmatpush2.msra.mxu0 0.0
    %8943 = vmatprep.subr.mxu0 0.0
    %8944 = vmatpush2.msra.mxu0 0.0
    %8945 = vmatprep.subr.mxu0 0.0
    %8946 = vmatpush2.msra.mxu0 0.0
    %8947 = vmatprep.subr.mxu0 0.0
    %8948 = vmatpush2.msra.mxu0 0.0
    %8949 = vmatprep.subr.mxu0 0.0
    %8950 = vmatpush2.msra.mxu0 0.0
    %8951 = vmatprep.subr.mxu0 0.0
    %8952 = vmatpush2.msra.mxu0 0.0
    %8953 = vmatprep.subr.mxu0 0.0
    %8954 = vmatpush2.msra.mxu0 0.0
    %8955 = vmatprep.subr.mxu0 0.0
    %8956 = vmatpush2.msra.mxu0 0.0
    %8957 = vmatprep.subr.mxu0 0.0
    %8958 = vmatpush2.msra.mxu0 0.0
    %8959 = vmatprep.subr.mxu0 0.0
    %8960 = vmatpush2.msra.mxu0 0.0
    %8961 = vmatprep.subr.mxu0 0.0
    %8962 = vmatpush2.msra.mxu0 0.0
    %8963 = vmatprep.subr.mxu0 0.0
    %8964 = vmatpush2.msra.mxu0 0.0
    %8965 = vmatprep.subr.mxu0 0.0
    %8966 = vmatpush2.msra.mxu0 0.0
    %8967 = vmatprep.mubr.f32.mxu0 0.0
    %v8968 = vand.u32 %v8562, 4294901760
    %8969 = vmatmul.mubr.f32.gmra.mxu0 %v8968
    %v8970 = vpop.f32.mrf.mxu0
    %v8971 = vadd.f32 %v8888, %v8970
    %v8972 = vpop.f32.mrf.mxu0
    %8973 = vdwg.mxu0
    %8974 = vmatprep.subr.mxu0 0.0
    %8975 = vmatpush1.msra.mxu0 0.0
    %8976 = vmatprep.subr.mxu0 0.0
    %8977 = vmatpush1.msra.mxu0 0.0
    %8978 = vmatprep.subr.mxu0 0.0
    %8979 = vmatpush1.msra.mxu0 0.0
    %8980 = vmatprep.subr.mxu0 0.0
    %8981 = vmatpush1.msra.mxu0 0.0
    %8982 = vmatprep.subr.mxu0 0.0
    %8983 = vmatpush1.msra.mxu0 0.0
    %8984 = vmatprep.subr.mxu0 0.0
    %8985 = vmatpush1.msra.mxu0 0.0
    %8986 = vmatprep.subr.mxu0 0.0
    %8987 = vmatpush1.msra.mxu0 0.0
    %8988 = vmatprep.subr.mxu0 0.0
    %8989 = vmatpush1.msra.mxu0 0.0
    %8990 = vmatprep.subr.mxu0 0.0
    %8991 = vmatpush1.msra.mxu0 0.0
    %8992 = vmatprep.subr.mxu0 0.0
    %8993 = vmatpush1.msra.mxu0 0.0
    %8994 = vmatprep.subr.mxu0 0.0
    %8995 = vmatpush1.msra.mxu0 0.0
    %8996 = vmatprep.subr.mxu0 0.0
    %8997 = vmatpush1.msra.mxu0 0.0
    %8998 = vmatprep.subr.mxu0 0.0
    %v8999 = vand.u32 %v1597, 4294901760
    %9000 = vmatpush1.msra.mxu0 %v8999
    %9001 = vmatprep.subr.mxu0 0.0
    %v9002 = vand.u32 %v1596, 4294901760
    %9003 = vmatpush1.msra.mxu0 %v9002
    %9004 = vmatprep.subr.mxu0 0.0
    %v9005 = vand.u32 %v1595, 4294901760
    %9006 = vmatpush1.msra.mxu0 %v9005
    %9007 = vmatprep.subr.mxu0 0.0
    %v9008 = vand.u32 %v1594, 4294901760
    %9009 = vmatpush1.msra.mxu0 %v9008
    %9010 = vmatprep.subr.mxu0 0.0
    %9011 = vmatpush2.msra.mxu0 0.0
    %9012 = vmatprep.subr.mxu0 0.0
    %9013 = vmatpush2.msra.mxu0 0.0
    %9014 = vmatprep.subr.mxu0 0.0
    %9015 = vmatpush2.msra.mxu0 0.0
    %9016 = vmatprep.subr.mxu0 0.0
    %9017 = vmatpush2.msra.mxu0 0.0
    %9018 = vmatprep.subr.mxu0 0.0
    %9019 = vmatpush2.msra.mxu0 0.0
    %9020 = vmatprep.subr.mxu0 0.0
    %9021 = vmatpush2.msra.mxu0 0.0
    %9022 = vmatprep.subr.mxu0 0.0
    %9023 = vmatpush2.msra.mxu0 0.0
    %9024 = vmatprep.subr.mxu0 0.0
    %9025 = vmatpush2.msra.mxu0 0.0
    %9026 = vmatprep.subr.mxu0 0.0
    %9027 = vmatpush2.msra.mxu0 0.0
    %9028 = vmatprep.subr.mxu0 0.0
    %9029 = vmatpush2.msra.mxu0 0.0
    %9030 = vmatprep.subr.mxu0 0.0
    %9031 = vmatpush2.msra.mxu0 0.0
    %9032 = vmatprep.subr.mxu0 0.0
    %9033 = vmatpush2.msra.mxu0 0.0
    %9034 = vmatprep.subr.mxu0 0.0
    %9035 = vmatpush2.msra.mxu0 0.0
    %9036 = vmatprep.subr.mxu0 0.0
    %9037 = vmatpush2.msra.mxu0 0.0
    %9038 = vmatprep.subr.mxu0 0.0
    %9039 = vmatpush2.msra.mxu0 0.0
    %9040 = vmatprep.subr.mxu0 0.0
    %9041 = vmatpush2.msra.mxu0 0.0
    %9042 = vmatprep.mubr.f32.mxu0 0.0
    %v9043 = vand.u32 %v8562, 4294901760
    %9044 = vmatmul.mubr.f32.gmra.mxu0 %v9043
    %v9045 = vpop.f32.mrf.mxu0
    %v9046 = vadd.f32 %v8971, %v9045
    %v9047 = vpop.f32.mrf.mxu0
    %9048 = vdwg.mxu0
    %v9050 = vrot.slane %v9046, 6
    %v9052 = vadd.f32 %v1581, %v9050
    %v9053 = vmul.f32 %v9052, 0.5
    %v9054 = vtanh.pop %v9053
    %v9055 = vadd.f32 %v9054, 1.0
    %v9056 = vmul.f32 %v9055, 0.5
    %v9057 = vtanh.pop %v9052
    %v9059 = vrot.slane %v8041, 6
    %9060 = vrot.lane.b32.xlu0 %v9059, 32
    %v9061 = vpop.permute.xlu0 %9060
    %v9063 = vmul.f32 %v9056, %v9061
    %9065 = vrot.lane.b32.xlu0 %v9057, 64
    %v9066 = vpop.permute.xlu0 %9065
    %v9068 = vmul.f32 %v9056, %v9066
    %9070 = vrot.lane.b32.xlu0 %v9068, 32
    %v9071 = vpop.permute.xlu0 %9070
    %v9073 = vadd.f32 %v9063, %v9071
    %v9074 = vtanh.pop %v9073
    %9076 = vrot.lane.b32.xlu0 %v9074, 64
    %v9077 = vpop.permute.xlu0 %9076
    %v9079 = vmul.f32 %v9056, %v9077
    %v9081 = vrot.slane %v8560, 4
    %9082 = vrot.lane.b32.xlu0 %v9081, 32
    %v9083 = vpop.permute.xlu0 %9082
    %v9085 = vsel %vm3714, %v9083, 0.0
    %9086 = vst.msk [vmem:[%s3725] sm:$0x3] %vm2634, %v9085
    %v9088 = vrot.slane %v9079, 2
    %9089 = vrot.lane.b32.xlu0 %v9088, 32
    %v9090 = vpop.permute.xlu0 %9089
    %v9092 = vsel %vm3701, %v9090, 0.0
    %9094 = vrot.lane.b32.xlu0 %v9092, 32
    %v9095 = vpop.permute.xlu0 %9094
    %9097 = vst.msk [vmem:[%s3708] sm:$0x3] %vm2652, %v9095
    %v9098 = vsel %vm3714, %v9083, %v8025
    %v9100 = vrot.slane %v8554, 4
    %9101 = vrot.lane.b32.xlu0 %v9100, 96
    %v9102 = vpop.permute.xlu0 %9101
    %v9104 = vsel %vm3714, %v9102, %v8034
    %v9105 = vsel %vm3701, %v9090, %v8035
    %v9107 = vrot.slane %v9073, 2
    %9108 = vrot.lane.b32.xlu0 %v9107, 96
    %v9109 = vpop.permute.xlu0 %9108
    %v9111 = vsel %vm3701, %v9109, %v8041
    %v9113 = vsel %vm1599, %v9098, 0
    %9115 = vmatprep.subr.mxu0 0.0
    %9116 = vmatpush1.msra.mxu0 0.0
    %9117 = vmatprep.subr.mxu0 0.0
    %9118 = vmatpush1.msra.mxu0 0.0
    %9119 = vmatprep.subr.mxu0 0.0
    %9120 = vmatpush1.msra.mxu0 0.0
    %9121 = vmatprep.subr.mxu0 0.0
    %9122 = vmatpush1.msra.mxu0 0.0
    %9123 = vmatprep.subr.mxu0 0.0
    %9124 = vmatpush1.msra.mxu0 0.0
    %9125 = vmatprep.subr.mxu0 0.0
    %9126 = vmatpush1.msra.mxu0 0.0
    %9127 = vmatprep.subr.mxu0 0.0
    %9128 = vmatpush1.msra.mxu0 0.0
    %9129 = vmatprep.subr.mxu0 0.0
    %9130 = vmatpush1.msra.mxu0 0.0
    %9131 = vmatprep.subr.mxu0 0.0
    %9132 = vmatpush1.msra.mxu0 0.0
    %9133 = vmatprep.subr.mxu0 0.0
    %9134 = vmatpush1.msra.mxu0 0.0
    %9135 = vmatprep.subr.mxu0 0.0
    %9136 = vmatpush1.msra.mxu0 0.0
    %9137 = vmatprep.subr.mxu0 0.0
    %9138 = vmatpush1.msra.mxu0 0.0
    %9139 = vmatprep.subr.mxu0 0.0
    %v9140 = vand.u32 %v1593, 4294901760
    %9141 = vmatpush1.msra.mxu0 %v9140
    %9142 = vmatprep.subr.mxu0 0.0
    %v9143 = vand.u32 %v1592, 4294901760
    %9144 = vmatpush1.msra.mxu0 %v9143
    %9145 = vmatprep.subr.mxu0 0.0
    %v9146 = vand.u32 %v1591, 4294901760
    %9147 = vmatpush1.msra.mxu0 %v9146
    %9148 = vmatprep.subr.mxu0 0.0
    %v9149 = vand.u32 %v1590, 4294901760
    %9150 = vmatpush1.msra.mxu0 %v9149
    %9151 = vmatprep.subr.mxu0 0.0
    %9152 = vmatpush2.msra.mxu0 0.0
    %9153 = vmatprep.subr.mxu0 0.0
    %9154 = vmatpush2.msra.mxu0 0.0
    %9155 = vmatprep.subr.mxu0 0.0
    %9156 = vmatpush2.msra.mxu0 0.0
    %9157 = vmatprep.subr.mxu0 0.0
    %9158 = vmatpush2.msra.mxu0 0.0
    %9159 = vmatprep.subr.mxu0 0.0
    %9160 = vmatpush2.msra.mxu0 0.0
    %9161 = vmatprep.subr.mxu0 0.0
    %9162 = vmatpush2.msra.mxu0 0.0
    %9163 = vmatprep.subr.mxu0 0.0
    %9164 = vmatpush2.msra.mxu0 0.0
    %9165 = vmatprep.subr.mxu0 0.0
    %9166 = vmatpush2.msra.mxu0 0.0
    %9167 = vmatprep.subr.mxu0 0.0
    %9168 = vmatpush2.msra.mxu0 0.0
    %9169 = vmatprep.subr.mxu0 0.0
    %9170 = vmatpush2.msra.mxu0 0.0
    %9171 = vmatprep.subr.mxu0 0.0
    %9172 = vmatpush2.msra.mxu0 0.0
    %9173 = vmatprep.subr.mxu0 0.0
    %9174 = vmatpush2.msra.mxu0 0.0
    %9175 = vmatprep.subr.mxu0 0.0
    %9176 = vmatpush2.msra.mxu0 0.0
    %9177 = vmatprep.subr.mxu0 0.0
    %9178 = vmatpush2.msra.mxu0 0.0
    %9179 = vmatprep.subr.mxu0 0.0
    %9180 = vmatpush2.msra.mxu0 0.0
    %9181 = vmatprep.subr.mxu0 0.0
    %9182 = vmatpush2.msra.mxu0 0.0
    %9183 = vmatprep.mubr.f32.mxu0 0.0
    %v9184 = vand.u32 %v9113, 4294901760
    %v9185 = vsub.f32 %v9113, %v9184
    %v9186 = vand.u32 %v9185, 4294901760
    %v9187 = vsub.f32 %v9185, %v9186
    %v9188 = vand.u32 %v9187, 4294901760
    %9189 = vmatmul.mubr.f32.gmra.mxu0 %v9188
    %v9190 = vpop.f32.mrf.mxu0
    %v9191 = vadd.f32 0.0, %v9190
    %v9192 = vpop.f32.mrf.mxu0
    %9193 = vdwg.mxu0
    %9194 = vmatprep.subr.mxu0 0.0
    %9195 = vmatpush1.msra.mxu0 0.0
    %9196 = vmatprep.subr.mxu0 0.0
    %9197 = vmatpush1.msra.mxu0 0.0
    %9198 = vmatprep.subr.mxu0 0.0
    %9199 = vmatpush1.msra.mxu0 0.0
    %9200 = vmatprep.subr.mxu0 0.0
    %9201 = vmatpush1.msra.mxu0 0.0
    %9202 = vmatprep.subr.mxu0 0.0
    %9203 = vmatpush1.msra.mxu0 0.0
    %9204 = vmatprep.subr.mxu0 0.0
    %9205 = vmatpush1.msra.mxu0 0.0
    %9206 = vmatprep.subr.mxu0 0.0
    %9207 = vmatpush1.msra.mxu0 0.0
    %9208 = vmatprep.subr.mxu0 0.0
    %9209 = vmatpush1.msra.mxu0 0.0
    %9210 = vmatprep.subr.mxu0 0.0
    %9211 = vmatpush1.msra.mxu0 0.0
    %9212 = vmatprep.subr.mxu0 0.0
    %9213 = vmatpush1.msra.mxu0 0.0
    %9214 = vmatprep.subr.mxu0 0.0
    %9215 = vmatpush1.msra.mxu0 0.0
    %9216 = vmatprep.subr.mxu0 0.0
    %9217 = vmatpush1.msra.mxu0 0.0
    %9218 = vmatprep.subr.mxu0 0.0
    %v9219 = vand.u32 %v1593, 4294901760
    %v9220 = vsub.f32 %v1593, %v9219
    %v9221 = vand.u32 %v9220, 4294901760
    %v9222 = vsub.f32 %v9220, %v9221
    %v9223 = vand.u32 %v9222, 4294901760
    %9224 = vmatpush1.msra.mxu0 %v9223
    %9225 = vmatprep.subr.mxu0 0.0
    %v9226 = vand.u32 %v1592, 4294901760
    %v9227 = vsub.f32 %v1592, %v9226
    %v9228 = vand.u32 %v9227, 4294901760
    %v9229 = vsub.f32 %v9227, %v9228
    %v9230 = vand.u32 %v9229, 4294901760
    %9231 = vmatpush1.msra.mxu0 %v9230
    %9232 = vmatprep.subr.mxu0 0.0
    %v9233 = vand.u32 %v1591, 4294901760
    %v9234 = vsub.f32 %v1591, %v9233
    %v9235 = vand.u32 %v9234, 4294901760
    %v9236 = vsub.f32 %v9234, %v9235
    %v9237 = vand.u32 %v9236, 4294901760
    %9238 = vmatpush1.msra.mxu0 %v9237
    %9239 = vmatprep.subr.mxu0 0.0
    %v9240 = vand.u32 %v1590, 4294901760
    %v9241 = vsub.f32 %v1590, %v9240
    %v9242 = vand.u32 %v9241, 4294901760
    %v9243 = vsub.f32 %v9241, %v9242
    %v9244 = vand.u32 %v9243, 4294901760
    %9245 = vmatpush1.msra.mxu0 %v9244
    %9246 = vmatprep.subr.mxu0 0.0
    %9247 = vmatpush2.msra.mxu0 0.0
    %9248 = vmatprep.subr.mxu0 0.0
    %9249 = vmatpush2.msra.mxu0 0.0
    %9250 = vmatprep.subr.mxu0 0.0
    %9251 = vmatpush2.msra.mxu0 0.0
    %9252 = vmatprep.subr.mxu0 0.0
    %9253 = vmatpush2.msra.mxu0 0.0
    %9254 = vmatprep.subr.mxu0 0.0
    %9255 = vmatpush2.msra.mxu0 0.0
    %9256 = vmatprep.subr.mxu0 0.0
    %9257 = vmatpush2.msra.mxu0 0.0
    %9258 = vmatprep.subr.mxu0 0.0
    %9259 = vmatpush2.msra.mxu0 0.0
    %9260 = vmatprep.subr.mxu0 0.0
    %9261 = vmatpush2.msra.mxu0 0.0
    %9262 = vmatprep.subr.mxu0 0.0
    %9263 = vmatpush2.msra.mxu0 0.0
    %9264 = vmatprep.subr.mxu0 0.0
    %9265 = vmatpush2.msra.mxu0 0.0
    %9266 = vmatprep.subr.mxu0 0.0
    %9267 = vmatpush2.msra.mxu0 0.0
    %9268 = vmatprep.subr.mxu0 0.0
    %9269 = vmatpush2.msra.mxu0 0.0
    %9270 = vmatprep.subr.mxu0 0.0
    %9271 = vmatpush2.msra.mxu0 0.0
    %9272 = vmatprep.subr.mxu0 0.0
    %9273 = vmatpush2.msra.mxu0 0.0
    %9274 = vmatprep.subr.mxu0 0.0
    %9275 = vmatpush2.msra.mxu0 0.0
    %9276 = vmatprep.subr.mxu0 0.0
    %9277 = vmatpush2.msra.mxu0 0.0
    %9278 = vmatprep.mubr.f32.mxu0 0.0
    %v9279 = vand.u32 %v9113, 4294901760
    %9280 = vmatmul.mubr.f32.gmra.mxu0 %v9279
    %v9281 = vpop.f32.mrf.mxu0
    %v9282 = vadd.f32 %v9191, %v9281
    %v9283 = vpop.f32.mrf.mxu0
    %9284 = vdwg.mxu0
    %9285 = vmatprep.subr.mxu0 0.0
    %9286 = vmatpush1.msra.mxu0 0.0
    %9287 = vmatprep.subr.mxu0 0.0
    %9288 = vmatpush1.msra.mxu0 0.0
    %9289 = vmatprep.subr.mxu0 0.0
    %9290 = vmatpush1.msra.mxu0 0.0
    %9291 = vmatprep.subr.mxu0 0.0
    %9292 = vmatpush1.msra.mxu0 0.0
    %9293 = vmatprep.subr.mxu0 0.0
    %9294 = vmatpush1.msra.mxu0 0.0
    %9295 = vmatprep.subr.mxu0 0.0
    %9296 = vmatpush1.msra.mxu0 0.0
    %9297 = vmatprep.subr.mxu0 0.0
    %9298 = vmatpush1.msra.mxu0 0.0
    %9299 = vmatprep.subr.mxu0 0.0
    %9300 = vmatpush1.msra.mxu0 0.0
    %9301 = vmatprep.subr.mxu0 0.0
    %9302 = vmatpush1.msra.mxu0 0.0
    %9303 = vmatprep.subr.mxu0 0.0
    %9304 = vmatpush1.msra.mxu0 0.0
    %9305 = vmatprep.subr.mxu0 0.0
    %9306 = vmatpush1.msra.mxu0 0.0
    %9307 = vmatprep.subr.mxu0 0.0
    %9308 = vmatpush1.msra.mxu0 0.0
    %9309 = vmatprep.subr.mxu0 0.0
    %v9310 = vand.u32 %v1593, 4294901760
    %v9311 = vsub.f32 %v1593, %v9310
    %9312 = vmatpush1.msra.mxu0 %v9311
    %9313 = vmatprep.subr.mxu0 0.0
    %v9314 = vand.u32 %v1592, 4294901760
    %v9315 = vsub.f32 %v1592, %v9314
    %9316 = vmatpush1.msra.mxu0 %v9315
    %9317 = vmatprep.subr.mxu0 0.0
    %v9318 = vand.u32 %v1591, 4294901760
    %v9319 = vsub.f32 %v1591, %v9318
    %9320 = vmatpush1.msra.mxu0 %v9319
    %9321 = vmatprep.subr.mxu0 0.0
    %v9322 = vand.u32 %v1590, 4294901760
    %v9323 = vsub.f32 %v1590, %v9322
    %9324 = vmatpush1.msra.mxu0 %v9323
    %9325 = vmatprep.subr.mxu0 0.0
    %9326 = vmatpush2.msra.mxu0 0.0
    %9327 = vmatprep.subr.mxu0 0.0
    %9328 = vmatpush2.msra.mxu0 0.0
    %9329 = vmatprep.subr.mxu0 0.0
    %9330 = vmatpush2.msra.mxu0 0.0
    %9331 = vmatprep.subr.mxu0 0.0
    %9332 = vmatpush2.msra.mxu0 0.0
    %9333 = vmatprep.subr.mxu0 0.0
    %9334 = vmatpush2.msra.mxu0 0.0
    %9335 = vmatprep.subr.mxu0 0.0
    %9336 = vmatpush2.msra.mxu0 0.0
    %9337 = vmatprep.subr.mxu0 0.0
    %9338 = vmatpush2.msra.mxu0 0.0
    %9339 = vmatprep.subr.mxu0 0.0
    %9340 = vmatpush2.msra.mxu0 0.0
    %9341 = vmatprep.subr.mxu0 0.0
    %9342 = vmatpush2.msra.mxu0 0.0
    %9343 = vmatprep.subr.mxu0 0.0
    %9344 = vmatpush2.msra.mxu0 0.0
    %9345 = vmatprep.subr.mxu0 0.0
    %9346 = vmatpush2.msra.mxu0 0.0
    %9347 = vmatprep.subr.mxu0 0.0
    %9348 = vmatpush2.msra.mxu0 0.0
    %9349 = vmatprep.subr.mxu0 0.0
    %9350 = vmatpush2.msra.mxu0 0.0
    %9351 = vmatprep.subr.mxu0 0.0
    %9352 = vmatpush2.msra.mxu0 0.0
    %9353 = vmatprep.subr.mxu0 0.0
    %9354 = vmatpush2.msra.mxu0 0.0
    %9355 = vmatprep.subr.mxu0 0.0
    %9356 = vmatpush2.msra.mxu0 0.0
    %9357 = vmatprep.mubr.f32.mxu0 0.0
    %v9358 = vand.u32 %v9113, 4294901760
    %v9359 = vsub.f32 %v9113, %v9358
    %9360 = vmatmul.mubr.f32.gmra.mxu0 %v9359
    %v9361 = vpop.f32.mrf.mxu0
    %v9362 = vadd.f32 %v9282, %v9361
    %v9363 = vpop.f32.mrf.mxu0
    %9364 = vdwg.mxu0
    %9365 = vmatprep.subr.mxu0 0.0
    %9366 = vmatpush1.msra.mxu0 0.0
    %9367 = vmatprep.subr.mxu0 0.0
    %9368 = vmatpush1.msra.mxu0 0.0
    %9369 = vmatprep.subr.mxu0 0.0
    %9370 = vmatpush1.msra.mxu0 0.0
    %9371 = vmatprep.subr.mxu0 0.0
    %9372 = vmatpush1.msra.mxu0 0.0
    %9373 = vmatprep.subr.mxu0 0.0
    %9374 = vmatpush1.msra.mxu0 0.0
    %9375 = vmatprep.subr.mxu0 0.0
    %9376 = vmatpush1.msra.mxu0 0.0
    %9377 = vmatprep.subr.mxu0 0.0
    %9378 = vmatpush1.msra.mxu0 0.0
    %9379 = vmatprep.subr.mxu0 0.0
    %9380 = vmatpush1.msra.mxu0 0.0
    %9381 = vmatprep.subr.mxu0 0.0
    %9382 = vmatpush1.msra.mxu0 0.0
    %9383 = vmatprep.subr.mxu0 0.0
    %9384 = vmatpush1.msra.mxu0 0.0
    %9385 = vmatprep.subr.mxu0 0.0
    %9386 = vmatpush1.msra.mxu0 0.0
    %9387 = vmatprep.subr.mxu0 0.0
    %9388 = vmatpush1.msra.mxu0 0.0
    %9389 = vmatprep.subr.mxu0 0.0
    %v9390 = vand.u32 %v1593, 4294901760
    %9391 = vmatpush1.msra.mxu0 %v9390
    %9392 = vmatprep.subr.mxu0 0.0
    %v9393 = vand.u32 %v1592, 4294901760
    %9394 = vmatpush1.msra.mxu0 %v9393
    %9395 = vmatprep.subr.mxu0 0.0
    %v9396 = vand.u32 %v1591, 4294901760
    %9397 = vmatpush1.msra.mxu0 %v9396
    %9398 = vmatprep.subr.mxu0 0.0
    %v9399 = vand.u32 %v1590, 4294901760
    %9400 = vmatpush1.msra.mxu0 %v9399
    %9401 = vmatprep.subr.mxu0 0.0
    %9402 = vmatpush2.msra.mxu0 0.0
    %9403 = vmatprep.subr.mxu0 0.0
    %9404 = vmatpush2.msra.mxu0 0.0
    %9405 = vmatprep.subr.mxu0 0.0
    %9406 = vmatpush2.msra.mxu0 0.0
    %9407 = vmatprep.subr.mxu0 0.0
    %9408 = vmatpush2.msra.mxu0 0.0
    %9409 = vmatprep.subr.mxu0 0.0
    %9410 = vmatpush2.msra.mxu0 0.0
    %9411 = vmatprep.subr.mxu0 0.0
    %9412 = vmatpush2.msra.mxu0 0.0
    %9413 = vmatprep.subr.mxu0 0.0
    %9414 = vmatpush2.msra.mxu0 0.0
    %9415 = vmatprep.subr.mxu0 0.0
    %9416 = vmatpush2.msra.mxu0 0.0
    %9417 = vmatprep.subr.mxu0 0.0
    %9418 = vmatpush2.msra.mxu0 0.0
    %9419 = vmatprep.subr.mxu0 0.0
    %9420 = vmatpush2.msra.mxu0 0.0
    %9421 = vmatprep.subr.mxu0 0.0
    %9422 = vmatpush2.msra.mxu0 0.0
    %9423 = vmatprep.subr.mxu0 0.0
    %9424 = vmatpush2.msra.mxu0 0.0
    %9425 = vmatprep.subr.mxu0 0.0
    %9426 = vmatpush2.msra.mxu0 0.0
    %9427 = vmatprep.subr.mxu0 0.0
    %9428 = vmatpush2.msra.mxu0 0.0
    %9429 = vmatprep.subr.mxu0 0.0
    %9430 = vmatpush2.msra.mxu0 0.0
    %9431 = vmatprep.subr.mxu0 0.0
    %9432 = vmatpush2.msra.mxu0 0.0
    %9433 = vmatprep.mubr.f32.mxu0 0.0
    %v9434 = vand.u32 %v9113, 4294901760
    %v9435 = vsub.f32 %v9113, %v9434
    %v9436 = vand.u32 %v9435, 4294901760
    %9437 = vmatmul.mubr.f32.gmra.mxu0 %v9436
    %v9438 = vpop.f32.mrf.mxu0
    %v9439 = vadd.f32 %v9362, %v9438
    %v9440 = vpop.f32.mrf.mxu0
    %9441 = vdwg.mxu0
    %9442 = vmatprep.subr.mxu0 0.0
    %9443 = vmatpush1.msra.mxu0 0.0
    %9444 = vmatprep.subr.mxu0 0.0
    %9445 = vmatpush1.msra.mxu0 0.0
    %9446 = vmatprep.subr.mxu0 0.0
    %9447 = vmatpush1.msra.mxu0 0.0
    %9448 = vmatprep.subr.mxu0 0.0
    %9449 = vmatpush1.msra.mxu0 0.0
    %9450 = vmatprep.subr.mxu0 0.0
    %9451 = vmatpush1.msra.mxu0 0.0
    %9452 = vmatprep.subr.mxu0 0.0
    %9453 = vmatpush1.msra.mxu0 0.0
    %9454 = vmatprep.subr.mxu0 0.0
    %9455 = vmatpush1.msra.mxu0 0.0
    %9456 = vmatprep.subr.mxu0 0.0
    %9457 = vmatpush1.msra.mxu0 0.0
    %9458 = vmatprep.subr.mxu0 0.0
    %9459 = vmatpush1.msra.mxu0 0.0
    %9460 = vmatprep.subr.mxu0 0.0
    %9461 = vmatpush1.msra.mxu0 0.0
    %9462 = vmatprep.subr.mxu0 0.0
    %9463 = vmatpush1.msra.mxu0 0.0
    %9464 = vmatprep.subr.mxu0 0.0
    %9465 = vmatpush1.msra.mxu0 0.0
    %9466 = vmatprep.subr.mxu0 0.0
    %v9467 = vand.u32 %v1593, 4294901760
    %v9468 = vsub.f32 %v1593, %v9467
    %v9469 = vand.u32 %v9468, 4294901760
    %9470 = vmatpush1.msra.mxu0 %v9469
    %9471 = vmatprep.subr.mxu0 0.0
    %v9472 = vand.u32 %v1592, 4294901760
    %v9473 = vsub.f32 %v1592, %v9472
    %v9474 = vand.u32 %v9473, 4294901760
    %9475 = vmatpush1.msra.mxu0 %v9474
    %9476 = vmatprep.subr.mxu0 0.0
    %v9477 = vand.u32 %v1591, 4294901760
    %v9478 = vsub.f32 %v1591, %v9477
    %v9479 = vand.u32 %v9478, 4294901760
    %9480 = vmatpush1.msra.mxu0 %v9479
    %9481 = vmatprep.subr.mxu0 0.0
    %v9482 = vand.u32 %v1590, 4294901760
    %v9483 = vsub.f32 %v1590, %v9482
    %v9484 = vand.u32 %v9483, 4294901760
    %9485 = vmatpush1.msra.mxu0 %v9484
    %9486 = vmatprep.subr.mxu0 0.0
    %9487 = vmatpush2.msra.mxu0 0.0
    %9488 = vmatprep.subr.mxu0 0.0
    %9489 = vmatpush2.msra.mxu0 0.0
    %9490 = vmatprep.subr.mxu0 0.0
    %9491 = vmatpush2.msra.mxu0 0.0
    %9492 = vmatprep.subr.mxu0 0.0
    %9493 = vmatpush2.msra.mxu0 0.0
    %9494 = vmatprep.subr.mxu0 0.0
    %9495 = vmatpush2.msra.mxu0 0.0
    %9496 = vmatprep.subr.mxu0 0.0
    %9497 = vmatpush2.msra.mxu0 0.0
    %9498 = vmatprep.subr.mxu0 0.0
    %9499 = vmatpush2.msra.mxu0 0.0
    %9500 = vmatprep.subr.mxu0 0.0
    %9501 = vmatpush2.msra.mxu0 0.0
    %9502 = vmatprep.subr.mxu0 0.0
    %9503 = vmatpush2.msra.mxu0 0.0
    %9504 = vmatprep.subr.mxu0 0.0
    %9505 = vmatpush2.msra.mxu0 0.0
    %9506 = vmatprep.subr.mxu0 0.0
    %9507 = vmatpush2.msra.mxu0 0.0
    %9508 = vmatprep.subr.mxu0 0.0
    %9509 = vmatpush2.msra.mxu0 0.0
    %9510 = vmatprep.subr.mxu0 0.0
    %9511 = vmatpush2.msra.mxu0 0.0
    %9512 = vmatprep.subr.mxu0 0.0
    %9513 = vmatpush2.msra.mxu0 0.0
    %9514 = vmatprep.subr.mxu0 0.0
    %9515 = vmatpush2.msra.mxu0 0.0
    %9516 = vmatprep.subr.mxu0 0.0
    %9517 = vmatpush2.msra.mxu0 0.0
    %9518 = vmatprep.mubr.f32.mxu0 0.0
    %v9519 = vand.u32 %v9113, 4294901760
    %9520 = vmatmul.mubr.f32.gmra.mxu0 %v9519
    %v9521 = vpop.f32.mrf.mxu0
    %v9522 = vadd.f32 %v9439, %v9521
    %v9523 = vpop.f32.mrf.mxu0
    %9524 = vdwg.mxu0
    %9525 = vmatprep.subr.mxu0 0.0
    %9526 = vmatpush1.msra.mxu0 0.0
    %9527 = vmatprep.subr.mxu0 0.0
    %9528 = vmatpush1.msra.mxu0 0.0
    %9529 = vmatprep.subr.mxu0 0.0
    %9530 = vmatpush1.msra.mxu0 0.0
    %9531 = vmatprep.subr.mxu0 0.0
    %9532 = vmatpush1.msra.mxu0 0.0
    %9533 = vmatprep.subr.mxu0 0.0
    %9534 = vmatpush1.msra.mxu0 0.0
    %9535 = vmatprep.subr.mxu0 0.0
    %9536 = vmatpush1.msra.mxu0 0.0
    %9537 = vmatprep.subr.mxu0 0.0
    %9538 = vmatpush1.msra.mxu0 0.0
    %9539 = vmatprep.subr.mxu0 0.0
    %9540 = vmatpush1.msra.mxu0 0.0
    %9541 = vmatprep.subr.mxu0 0.0
    %9542 = vmatpush1.msra.mxu0 0.0
    %9543 = vmatprep.subr.mxu0 0.0
    %9544 = vmatpush1.msra.mxu0 0.0
    %9545 = vmatprep.subr.mxu0 0.0
    %9546 = vmatpush1.msra.mxu0 0.0
    %9547 = vmatprep.subr.mxu0 0.0
    %9548 = vmatpush1.msra.mxu0 0.0
    %9549 = vmatprep.subr.mxu0 0.0
    %v9550 = vand.u32 %v1593, 4294901760
    %9551 = vmatpush1.msra.mxu0 %v9550
    %9552 = vmatprep.subr.mxu0 0.0
    %v9553 = vand.u32 %v1592, 4294901760
    %9554 = vmatpush1.msra.mxu0 %v9553
    %9555 = vmatprep.subr.mxu0 0.0
    %v9556 = vand.u32 %v1591, 4294901760
    %9557 = vmatpush1.msra.mxu0 %v9556
    %9558 = vmatprep.subr.mxu0 0.0
    %v9559 = vand.u32 %v1590, 4294901760
    %9560 = vmatpush1.msra.mxu0 %v9559
    %9561 = vmatprep.subr.mxu0 0.0
    %9562 = vmatpush2.msra.mxu0 0.0
    %9563 = vmatprep.subr.mxu0 0.0
    %9564 = vmatpush2.msra.mxu0 0.0
    %9565 = vmatprep.subr.mxu0 0.0
    %9566 = vmatpush2.msra.mxu0 0.0
    %9567 = vmatprep.subr.mxu0 0.0
    %9568 = vmatpush2.msra.mxu0 0.0
    %9569 = vmatprep.subr.mxu0 0.0
    %9570 = vmatpush2.msra.mxu0 0.0
    %9571 = vmatprep.subr.mxu0 0.0
    %9572 = vmatpush2.msra.mxu0 0.0
    %9573 = vmatprep.subr.mxu0 0.0
    %9574 = vmatpush2.msra.mxu0 0.0
    %9575 = vmatprep.subr.mxu0 0.0
    %9576 = vmatpush2.msra.mxu0 0.0
    %9577 = vmatprep.subr.mxu0 0.0
    %9578 = vmatpush2.msra.mxu0 0.0
    %9579 = vmatprep.subr.mxu0 0.0
    %9580 = vmatpush2.msra.mxu0 0.0
    %9581 = vmatprep.subr.mxu0 0.0
    %9582 = vmatpush2.msra.mxu0 0.0
    %9583 = vmatprep.subr.mxu0 0.0
    %9584 = vmatpush2.msra.mxu0 0.0
    %9585 = vmatprep.subr.mxu0 0.0
    %9586 = vmatpush2.msra.mxu0 0.0
    %9587 = vmatprep.subr.mxu0 0.0
    %9588 = vmatpush2.msra.mxu0 0.0
    %9589 = vmatprep.subr.mxu0 0.0
    %9590 = vmatpush2.msra.mxu0 0.0
    %9591 = vmatprep.subr.mxu0 0.0
    %9592 = vmatpush2.msra.mxu0 0.0
    %9593 = vmatprep.mubr.f32.mxu0 0.0
    %v9594 = vand.u32 %v9113, 4294901760
    %9595 = vmatmul.mubr.f32.gmra.mxu0 %v9594
    %v9596 = vpop.f32.mrf.mxu0
    %v9597 = vadd.f32 %v9522, %v9596
    %v9598 = vpop.f32.mrf.mxu0
    %9599 = vdwg.mxu0
    %v9601 = vrot.slane %v9597, 2
    %v9603 = vadd.f32 %v1586, %v9601
    %v9604 = vmul.f32 %v9603, 0.5
    %v9605 = vtanh.pop %v9604
    %v9606 = vadd.f32 %v9605, 1.0
    %v9607 = vmul.f32 %v9606, 0.5
    %v9608 = vtanh.pop %v9603
    %v9610 = vrot.slane %v9104, 2
    %9611 = vrot.lane.b32.xlu0 %v9610, 32
    %v9612 = vpop.permute.xlu0 %9611
    %v9614 = vmul.f32 %v9607, %v9612
    %9616 = vrot.lane.b32.xlu0 %v9608, 64
    %v9617 = vpop.permute.xlu0 %9616
    %v9619 = vmul.f32 %v9607, %v9617
    %9621 = vrot.lane.b32.xlu0 %v9619, 32
    %v9622 = vpop.permute.xlu0 %9621
    %v9624 = vadd.f32 %v9614, %v9622
    %v9625 = vtanh.pop %v9624
    %9627 = vrot.lane.b32.xlu0 %v9625, 64
    %v9628 = vpop.permute.xlu0 %9627
    %v9630 = vmul.f32 %v9607, %v9628
    %v9632 = vsel %vm1599, %v9105, 0
    %9634 = vmatprep.subr.mxu0 0.0
    %9635 = vmatpush1.msra.mxu0 0.0
    %9636 = vmatprep.subr.mxu0 0.0
    %9637 = vmatpush1.msra.mxu0 0.0
    %9638 = vmatprep.subr.mxu0 0.0
    %9639 = vmatpush1.msra.mxu0 0.0
    %9640 = vmatprep.subr.mxu0 0.0
    %9641 = vmatpush1.msra.mxu0 0.0
    %9642 = vmatprep.subr.mxu0 0.0
    %9643 = vmatpush1.msra.mxu0 0.0
    %9644 = vmatprep.subr.mxu0 0.0
    %9645 = vmatpush1.msra.mxu0 0.0
    %9646 = vmatprep.subr.mxu0 0.0
    %9647 = vmatpush1.msra.mxu0 0.0
    %9648 = vmatprep.subr.mxu0 0.0
    %9649 = vmatpush1.msra.mxu0 0.0
    %9650 = vmatprep.subr.mxu0 0.0
    %9651 = vmatpush1.msra.mxu0 0.0
    %9652 = vmatprep.subr.mxu0 0.0
    %9653 = vmatpush1.msra.mxu0 0.0
    %9654 = vmatprep.subr.mxu0 0.0
    %9655 = vmatpush1.msra.mxu0 0.0
    %9656 = vmatprep.subr.mxu0 0.0
    %9657 = vmatpush1.msra.mxu0 0.0
    %9658 = vmatprep.subr.mxu0 0.0
    %v9659 = vand.u32 %v1597, 4294901760
    %9660 = vmatpush1.msra.mxu0 %v9659
    %9661 = vmatprep.subr.mxu0 0.0
    %v9662 = vand.u32 %v1596, 4294901760
    %9663 = vmatpush1.msra.mxu0 %v9662
    %9664 = vmatprep.subr.mxu0 0.0
    %v9665 = vand.u32 %v1595, 4294901760
    %9666 = vmatpush1.msra.mxu0 %v9665
    %9667 = vmatprep.subr.mxu0 0.0
    %v9668 = vand.u32 %v1594, 4294901760
    %9669 = vmatpush1.msra.mxu0 %v9668
    %9670 = vmatprep.subr.mxu0 0.0
    %9671 = vmatpush2.msra.mxu0 0.0
    %9672 = vmatprep.subr.mxu0 0.0
    %9673 = vmatpush2.msra.mxu0 0.0
    %9674 = vmatprep.subr.mxu0 0.0
    %9675 = vmatpush2.msra.mxu0 0.0
    %9676 = vmatprep.subr.mxu0 0.0
    %9677 = vmatpush2.msra.mxu0 0.0
    %9678 = vmatprep.subr.mxu0 0.0
    %9679 = vmatpush2.msra.mxu0 0.0
    %9680 = vmatprep.subr.mxu0 0.0
    %9681 = vmatpush2.msra.mxu0 0.0
    %9682 = vmatprep.subr.mxu0 0.0
    %9683 = vmatpush2.msra.mxu0 0.0
    %9684 = vmatprep.subr.mxu0 0.0
    %9685 = vmatpush2.msra.mxu0 0.0
    %9686 = vmatprep.subr.mxu0 0.0
    %9687 = vmatpush2.msra.mxu0 0.0
    %9688 = vmatprep.subr.mxu0 0.0
    %9689 = vmatpush2.msra.mxu0 0.0
    %9690 = vmatprep.subr.mxu0 0.0
    %9691 = vmatpush2.msra.mxu0 0.0
    %9692 = vmatprep.subr.mxu0 0.0
    %9693 = vmatpush2.msra.mxu0 0.0
    %9694 = vmatprep.subr.mxu0 0.0
    %9695 = vmatpush2.msra.mxu0 0.0
    %9696 = vmatprep.subr.mxu0 0.0
    %9697 = vmatpush2.msra.mxu0 0.0
    %9698 = vmatprep.subr.mxu0 0.0
    %9699 = vmatpush2.msra.mxu0 0.0
    %9700 = vmatprep.subr.mxu0 0.0
    %9701 = vmatpush2.msra.mxu0 0.0
    %9702 = vmatprep.mubr.f32.mxu0 0.0
    %v9703 = vand.u32 %v9632, 4294901760
    %v9704 = vsub.f32 %v9632, %v9703
    %v9705 = vand.u32 %v9704, 4294901760
    %v9706 = vsub.f32 %v9704, %v9705
    %v9707 = vand.u32 %v9706, 4294901760
    %9708 = vmatmul.mubr.f32.gmra.mxu0 %v9707
    %v9709 = vpop.f32.mrf.mxu0
    %v9710 = vadd.f32 0.0, %v9709
    %v9711 = vpop.f32.mrf.mxu0
    %9712 = vdwg.mxu0
    %9713 = vmatprep.subr.mxu0 0.0
    %9714 = vmatpush1.msra.mxu0 0.0
    %9715 = vmatprep.subr.mxu0 0.0
    %9716 = vmatpush1.msra.mxu0 0.0
    %9717 = vmatprep.subr.mxu0 0.0
    %9718 = vmatpush1.msra.mxu0 0.0
    %9719 = vmatprep.subr.mxu0 0.0
    %9720 = vmatpush1.msra.mxu0 0.0
    %9721 = vmatprep.subr.mxu0 0.0
    %9722 = vmatpush1.msra.mxu0 0.0
    %9723 = vmatprep.subr.mxu0 0.0
    %9724 = vmatpush1.msra.mxu0 0.0
    %9725 = vmatprep.subr.mxu0 0.0
    %9726 = vmatpush1.msra.mxu0 0.0
    %9727 = vmatprep.subr.mxu0 0.0
    %9728 = vmatpush1.msra.mxu0 0.0
    %9729 = vmatprep.subr.mxu0 0.0
    %9730 = vmatpush1.msra.mxu0 0.0
    %9731 = vmatprep.subr.mxu0 0.0
    %9732 = vmatpush1.msra.mxu0 0.0
    %9733 = vmatprep.subr.mxu0 0.0
    %9734 = vmatpush1.msra.mxu0 0.0
    %9735 = vmatprep.subr.mxu0 0.0
    %9736 = vmatpush1.msra.mxu0 0.0
    %9737 = vmatprep.subr.mxu0 0.0
    %v9738 = vand.u32 %v1597, 4294901760
    %v9739 = vsub.f32 %v1597, %v9738
    %v9740 = vand.u32 %v9739, 4294901760
    %v9741 = vsub.f32 %v9739, %v9740
    %v9742 = vand.u32 %v9741, 4294901760
    %9743 = vmatpush1.msra.mxu0 %v9742
    %9744 = vmatprep.subr.mxu0 0.0
    %v9745 = vand.u32 %v1596, 4294901760
    %v9746 = vsub.f32 %v1596, %v9745
    %v9747 = vand.u32 %v9746, 4294901760
    %v9748 = vsub.f32 %v9746, %v9747
    %v9749 = vand.u32 %v9748, 4294901760
    %9750 = vmatpush1.msra.mxu0 %v9749
    %9751 = vmatprep.subr.mxu0 0.0
    %v9752 = vand.u32 %v1595, 4294901760
    %v9753 = vsub.f32 %v1595, %v9752
    %v9754 = vand.u32 %v9753, 4294901760
    %v9755 = vsub.f32 %v9753, %v9754
    %v9756 = vand.u32 %v9755, 4294901760
    %9757 = vmatpush1.msra.mxu0 %v9756
    %9758 = vmatprep.subr.mxu0 0.0
    %v9759 = vand.u32 %v1594, 4294901760
    %v9760 = vsub.f32 %v1594, %v9759
    %v9761 = vand.u32 %v9760, 4294901760
    %v9762 = vsub.f32 %v9760, %v9761
    %v9763 = vand.u32 %v9762, 4294901760
    %9764 = vmatpush1.msra.mxu0 %v9763
    %9765 = vmatprep.subr.mxu0 0.0
    %9766 = vmatpush2.msra.mxu0 0.0
    %9767 = vmatprep.subr.mxu0 0.0
    %9768 = vmatpush2.msra.mxu0 0.0
    %9769 = vmatprep.subr.mxu0 0.0
    %9770 = vmatpush2.msra.mxu0 0.0
    %9771 = vmatprep.subr.mxu0 0.0
    %9772 = vmatpush2.msra.mxu0 0.0
    %9773 = vmatprep.subr.mxu0 0.0
    %9774 = vmatpush2.msra.mxu0 0.0
    %9775 = vmatprep.subr.mxu0 0.0
    %9776 = vmatpush2.msra.mxu0 0.0
    %9777 = vmatprep.subr.mxu0 0.0
    %9778 = vmatpush2.msra.mxu0 0.0
    %9779 = vmatprep.subr.mxu0 0.0
    %9780 = vmatpush2.msra.mxu0 0.0
    %9781 = vmatprep.subr.mxu0 0.0
    %9782 = vmatpush2.msra.mxu0 0.0
    %9783 = vmatprep.subr.mxu0 0.0
    %9784 = vmatpush2.msra.mxu0 0.0
    %9785 = vmatprep.subr.mxu0 0.0
    %9786 = vmatpush2.msra.mxu0 0.0
    %9787 = vmatprep.subr.mxu0 0.0
    %9788 = vmatpush2.msra.mxu0 0.0
    %9789 = vmatprep.subr.mxu0 0.0
    %9790 = vmatpush2.msra.mxu0 0.0
    %9791 = vmatprep.subr.mxu0 0.0
    %9792 = vmatpush2.msra.mxu0 0.0
    %9793 = vmatprep.subr.mxu0 0.0
    %9794 = vmatpush2.msra.mxu0 0.0
    %9795 = vmatprep.subr.mxu0 0.0
    %9796 = vmatpush2.msra.mxu0 0.0
    %9797 = vmatprep.mubr.f32.mxu0 0.0
    %v9798 = vand.u32 %v9632, 4294901760
    %9799 = vmatmul.mubr.f32.gmra.mxu0 %v9798
    %v9800 = vpop.f32.mrf.mxu0
    %v9801 = vadd.f32 %v9710, %v9800
    %v9802 = vpop.f32.mrf.mxu0
    %9803 = vdwg.mxu0
    %9804 = vmatprep.subr.mxu0 0.0
    %9805 = vmatpush1.msra.mxu0 0.0
    %9806 = vmatprep.subr.mxu0 0.0
    %9807 = vmatpush1.msra.mxu0 0.0
    %9808 = vmatprep.subr.mxu0 0.0
    %9809 = vmatpush1.msra.mxu0 0.0
    %9810 = vmatprep.subr.mxu0 0.0
    %9811 = vmatpush1.msra.mxu0 0.0
    %9812 = vmatprep.subr.mxu0 0.0
    %9813 = vmatpush1.msra.mxu0 0.0
    %9814 = vmatprep.subr.mxu0 0.0
    %9815 = vmatpush1.msra.mxu0 0.0
    %9816 = vmatprep.subr.mxu0 0.0
    %9817 = vmatpush1.msra.mxu0 0.0
    %9818 = vmatprep.subr.mxu0 0.0
    %9819 = vmatpush1.msra.mxu0 0.0
    %9820 = vmatprep.subr.mxu0 0.0
    %9821 = vmatpush1.msra.mxu0 0.0
    %9822 = vmatprep.subr.mxu0 0.0
    %9823 = vmatpush1.msra.mxu0 0.0
    %9824 = vmatprep.subr.mxu0 0.0
    %9825 = vmatpush1.msra.mxu0 0.0
    %9826 = vmatprep.subr.mxu0 0.0
    %9827 = vmatpush1.msra.mxu0 0.0
    %9828 = vmatprep.subr.mxu0 0.0
    %v9829 = vand.u32 %v1597, 4294901760
    %v9830 = vsub.f32 %v1597, %v9829
    %9831 = vmatpush1.msra.mxu0 %v9830
    %9832 = vmatprep.subr.mxu0 0.0
    %v9833 = vand.u32 %v1596, 4294901760
    %v9834 = vsub.f32 %v1596, %v9833
    %9835 = vmatpush1.msra.mxu0 %v9834
    %9836 = vmatprep.subr.mxu0 0.0
    %v9837 = vand.u32 %v1595, 4294901760
    %v9838 = vsub.f32 %v1595, %v9837
    %9839 = vmatpush1.msra.mxu0 %v9838
    %9840 = vmatprep.subr.mxu0 0.0
    %v9841 = vand.u32 %v1594, 4294901760
    %v9842 = vsub.f32 %v1594, %v9841
    %9843 = vmatpush1.msra.mxu0 %v9842
    %9844 = vmatprep.subr.mxu0 0.0
    %9845 = vmatpush2.msra.mxu0 0.0
    %9846 = vmatprep.subr.mxu0 0.0
    %9847 = vmatpush2.msra.mxu0 0.0
    %9848 = vmatprep.subr.mxu0 0.0
    %9849 = vmatpush2.msra.mxu0 0.0
    %9850 = vmatprep.subr.mxu0 0.0
    %9851 = vmatpush2.msra.mxu0 0.0
    %9852 = vmatprep.subr.mxu0 0.0
    %9853 = vmatpush2.msra.mxu0 0.0
    %9854 = vmatprep.subr.mxu0 0.0
    %9855 = vmatpush2.msra.mxu0 0.0
    %9856 = vmatprep.subr.mxu0 0.0
    %9857 = vmatpush2.msra.mxu0 0.0
    %9858 = vmatprep.subr.mxu0 0.0
    %9859 = vmatpush2.msra.mxu0 0.0
    %9860 = vmatprep.subr.mxu0 0.0
    %9861 = vmatpush2.msra.mxu0 0.0
    %9862 = vmatprep.subr.mxu0 0.0
    %9863 = vmatpush2.msra.mxu0 0.0
    %9864 = vmatprep.subr.mxu0 0.0
    %9865 = vmatpush2.msra.mxu0 0.0
    %9866 = vmatprep.subr.mxu0 0.0
    %9867 = vmatpush2.msra.mxu0 0.0
    %9868 = vmatprep.subr.mxu0 0.0
    %9869 = vmatpush2.msra.mxu0 0.0
    %9870 = vmatprep.subr.mxu0 0.0
    %9871 = vmatpush2.msra.mxu0 0.0
    %9872 = vmatprep.subr.mxu0 0.0
    %9873 = vmatpush2.msra.mxu0 0.0
    %9874 = vmatprep.subr.mxu0 0.0
    %9875 = vmatpush2.msra.mxu0 0.0
    %9876 = vmatprep.mubr.f32.mxu0 0.0
    %v9877 = vand.u32 %v9632, 4294901760
    %v9878 = vsub.f32 %v9632, %v9877
    %9879 = vmatmul.mubr.f32.gmra.mxu0 %v9878
    %v9880 = vpop.f32.mrf.mxu0
    %v9881 = vadd.f32 %v9801, %v9880
    %v9882 = vpop.f32.mrf.mxu0
    %9883 = vdwg.mxu0
    %9884 = vmatprep.subr.mxu0 0.0
    %9885 = vmatpush1.msra.mxu0 0.0
    %9886 = vmatprep.subr.mxu0 0.0
    %9887 = vmatpush1.msra.mxu0 0.0
    %9888 = vmatprep.subr.mxu0 0.0
    %9889 = vmatpush1.msra.mxu0 0.0
    %9890 = vmatprep.subr.mxu0 0.0
    %9891 = vmatpush1.msra.mxu0 0.0
    %9892 = vmatprep.subr.mxu0 0.0
    %9893 = vmatpush1.msra.mxu0 0.0
    %9894 = vmatprep.subr.mxu0 0.0
    %9895 = vmatpush1.msra.mxu0 0.0
    %9896 = vmatprep.subr.mxu0 0.0
    %9897 = vmatpush1.msra.mxu0 0.0
    %9898 = vmatprep.subr.mxu0 0.0
    %9899 = vmatpush1.msra.mxu0 0.0
    %9900 = vmatprep.subr.mxu0 0.0
    %9901 = vmatpush1.msra.mxu0 0.0
    %9902 = vmatprep.subr.mxu0 0.0
    %9903 = vmatpush1.msra.mxu0 0.0
    %9904 = vmatprep.subr.mxu0 0.0
    %9905 = vmatpush1.msra.mxu0 0.0
    %9906 = vmatprep.subr.mxu0 0.0
    %9907 = vmatpush1.msra.mxu0 0.0
    %9908 = vmatprep.subr.mxu0 0.0
    %v9909 = vand.u32 %v1597, 4294901760
    %9910 = vmatpush1.msra.mxu0 %v9909
    %9911 = vmatprep.subr.mxu0 0.0
    %v9912 = vand.u32 %v1596, 4294901760
    %9913 = vmatpush1.msra.mxu0 %v9912
    %9914 = vmatprep.subr.mxu0 0.0
    %v9915 = vand.u32 %v1595, 4294901760
    %9916 = vmatpush1.msra.mxu0 %v9915
    %9917 = vmatprep.subr.mxu0 0.0
    %v9918 = vand.u32 %v1594, 4294901760
    %9919 = vmatpush1.msra.mxu0 %v9918
    %9920 = vmatprep.subr.mxu0 0.0
    %9921 = vmatpush2.msra.mxu0 0.0
    %9922 = vmatprep.subr.mxu0 0.0
    %9923 = vmatpush2.msra.mxu0 0.0
    %9924 = vmatprep.subr.mxu0 0.0
    %9925 = vmatpush2.msra.mxu0 0.0
    %9926 = vmatprep.subr.mxu0 0.0
    %9927 = vmatpush2.msra.mxu0 0.0
    %9928 = vmatprep.subr.mxu0 0.0
    %9929 = vmatpush2.msra.mxu0 0.0
    %9930 = vmatprep.subr.mxu0 0.0
    %9931 = vmatpush2.msra.mxu0 0.0
    %9932 = vmatprep.subr.mxu0 0.0
    %9933 = vmatpush2.msra.mxu0 0.0
    %9934 = vmatprep.subr.mxu0 0.0
    %9935 = vmatpush2.msra.mxu0 0.0
    %9936 = vmatprep.subr.mxu0 0.0
    %9937 = vmatpush2.msra.mxu0 0.0
    %9938 = vmatprep.subr.mxu0 0.0
    %9939 = vmatpush2.msra.mxu0 0.0
    %9940 = vmatprep.subr.mxu0 0.0
    %9941 = vmatpush2.msra.mxu0 0.0
    %9942 = vmatprep.subr.mxu0 0.0
    %9943 = vmatpush2.msra.mxu0 0.0
    %9944 = vmatprep.subr.mxu0 0.0
    %9945 = vmatpush2.msra.mxu0 0.0
    %9946 = vmatprep.subr.mxu0 0.0
    %9947 = vmatpush2.msra.mxu0 0.0
    %9948 = vmatprep.subr.mxu0 0.0
    %9949 = vmatpush2.msra.mxu0 0.0
    %9950 = vmatprep.subr.mxu0 0.0
    %9951 = vmatpush2.msra.mxu0 0.0
    %9952 = vmatprep.mubr.f32.mxu0 0.0
    %v9953 = vand.u32 %v9632, 4294901760
    %v9954 = vsub.f32 %v9632, %v9953
    %v9955 = vand.u32 %v9954, 4294901760
    %9956 = vmatmul.mubr.f32.gmra.mxu0 %v9955
    %v9957 = vpop.f32.mrf.mxu0
    %v9958 = vadd.f32 %v9881, %v9957
    %v9959 = vpop.f32.mrf.mxu0
    %9960 = vdwg.mxu0
    %9961 = vmatprep.subr.mxu0 0.0
    %9962 = vmatpush1.msra.mxu0 0.0
    %9963 = vmatprep.subr.mxu0 0.0
    %9964 = vmatpush1.msra.mxu0 0.0
    %9965 = vmatprep.subr.mxu0 0.0
    %9966 = vmatpush1.msra.mxu0 0.0
    %9967 = vmatprep.subr.mxu0 0.0
    %9968 = vmatpush1.msra.mxu0 0.0
    %9969 = vmatprep.subr.mxu0 0.0
    %9970 = vmatpush1.msra.mxu0 0.0
    %9971 = vmatprep.subr.mxu0 0.0
    %9972 = vmatpush1.msra.mxu0 0.0
    %9973 = vmatprep.subr.mxu0 0.0
    %9974 = vmatpush1.msra.mxu0 0.0
    %9975 = vmatprep.subr.mxu0 0.0
    %9976 = vmatpush1.msra.mxu0 0.0
    %9977 = vmatprep.subr.mxu0 0.0
    %9978 = vmatpush1.msra.mxu0 0.0
    %9979 = vmatprep.subr.mxu0 0.0
    %9980 = vmatpush1.msra.mxu0 0.0
    %9981 = vmatprep.subr.mxu0 0.0
    %9982 = vmatpush1.msra.mxu0 0.0
    %9983 = vmatprep.subr.mxu0 0.0
    %9984 = vmatpush1.msra.mxu0 0.0
    %9985 = vmatprep.subr.mxu0 0.0
    %v9986 = vand.u32 %v1597, 4294901760
    %v9987 = vsub.f32 %v1597, %v9986
    %v9988 = vand.u32 %v9987, 4294901760
    %9989 = vmatpush1.msra.mxu0 %v9988
    %9990 = vmatprep.subr.mxu0 0.0
    %v9991 = vand.u32 %v1596, 4294901760
    %v9992 = vsub.f32 %v1596, %v9991
    %v9993 = vand.u32 %v9992, 4294901760
    %9994 = vmatpush1.msra.mxu0 %v9993
    %9995 = vmatprep.subr.mxu0 0.0
    %v9996 = vand.u32 %v1595, 4294901760
    %v9997 = vsub.f32 %v1595, %v9996
    %v9998 = vand.u32 %v9997, 4294901760
    %9999 = vmatpush1.msra.mxu0 %v9998
    %10000 = vmatprep.subr.mxu0 0.0
    %v10001 = vand.u32 %v1594, 4294901760
    %v10002 = vsub.f32 %v1594, %v10001
    %v10003 = vand.u32 %v10002, 4294901760
    %10004 = vmatpush1.msra.mxu0 %v10003
    %10005 = vmatprep.subr.mxu0 0.0
    %10006 = vmatpush2.msra.mxu0 0.0
    %10007 = vmatprep.subr.mxu0 0.0
    %10008 = vmatpush2.msra.mxu0 0.0
    %10009 = vmatprep.subr.mxu0 0.0
    %10010 = vmatpush2.msra.mxu0 0.0
    %10011 = vmatprep.subr.mxu0 0.0
    %10012 = vmatpush2.msra.mxu0 0.0
    %10013 = vmatprep.subr.mxu0 0.0
    %10014 = vmatpush2.msra.mxu0 0.0
    %10015 = vmatprep.subr.mxu0 0.0
    %10016 = vmatpush2.msra.mxu0 0.0
    %10017 = vmatprep.subr.mxu0 0.0
    %10018 = vmatpush2.msra.mxu0 0.0
    %10019 = vmatprep.subr.mxu0 0.0
    %10020 = vmatpush2.msra.mxu0 0.0
    %10021 = vmatprep.subr.mxu0 0.0
    %10022 = vmatpush2.msra.mxu0 0.0
    %10023 = vmatprep.subr.mxu0 0.0
    %10024 = vmatpush2.msra.mxu0 0.0
    %10025 = vmatprep.subr.mxu0 0.0
    %10026 = vmatpush2.msra.mxu0 0.0
    %10027 = vmatprep.subr.mxu0 0.0
    %10028 = vmatpush2.msra.mxu0 0.0
    %10029 = vmatprep.subr.mxu0 0.0
    %10030 = vmatpush2.msra.mxu0 0.0
    %10031 = vmatprep.subr.mxu0 0.0
    %10032 = vmatpush2.msra.mxu0 0.0
    %10033 = vmatprep.subr.mxu0 0.0
    %10034 = vmatpush2.msra.mxu0 0.0
    %10035 = vmatprep.subr.mxu0 0.0
    %10036 = vmatpush2.msra.mxu0 0.0
    %10037 = vmatprep.mubr.f32.mxu0 0.0
    %v10038 = vand.u32 %v9632, 4294901760
    %10039 = vmatmul.mubr.f32.gmra.mxu0 %v10038
    %v10040 = vpop.f32.mrf.mxu0
    %v10041 = vadd.f32 %v9958, %v10040
    %v10042 = vpop.f32.mrf.mxu0
    %10043 = vdwg.mxu0
    %10044 = vmatprep.subr.mxu0 0.0
    %10045 = vmatpush1.msra.mxu0 0.0
    %10046 = vmatprep.subr.mxu0 0.0
    %10047 = vmatpush1.msra.mxu0 0.0
    %10048 = vmatprep.subr.mxu0 0.0
    %10049 = vmatpush1.msra.mxu0 0.0
    %10050 = vmatprep.subr.mxu0 0.0
    %10051 = vmatpush1.msra.mxu0 0.0
    %10052 = vmatprep.subr.mxu0 0.0
    %10053 = vmatpush1.msra.mxu0 0.0
    %10054 = vmatprep.subr.mxu0 0.0
    %10055 = vmatpush1.msra.mxu0 0.0
    %10056 = vmatprep.subr.mxu0 0.0
    %10057 = vmatpush1.msra.mxu0 0.0
    %10058 = vmatprep.subr.mxu0 0.0
    %10059 = vmatpush1.msra.mxu0 0.0
    %10060 = vmatprep.subr.mxu0 0.0
    %10061 = vmatpush1.msra.mxu0 0.0
    %10062 = vmatprep.subr.mxu0 0.0
    %10063 = vmatpush1.msra.mxu0 0.0
    %10064 = vmatprep.subr.mxu0 0.0
    %10065 = vmatpush1.msra.mxu0 0.0
    %10066 = vmatprep.subr.mxu0 0.0
    %10067 = vmatpush1.msra.mxu0 0.0
    %10068 = vmatprep.subr.mxu0 0.0
    %v10069 = vand.u32 %v1597, 4294901760
    %10070 = vmatpush1.msra.mxu0 %v10069
    %10071 = vmatprep.subr.mxu0 0.0
    %v10072 = vand.u32 %v1596, 4294901760
    %10073 = vmatpush1.msra.mxu0 %v10072
    %10074 = vmatprep.subr.mxu0 0.0
    %v10075 = vand.u32 %v1595, 4294901760
    %10076 = vmatpush1.msra.mxu0 %v10075
    %10077 = vmatprep.subr.mxu0 0.0
    %v10078 = vand.u32 %v1594, 4294901760
    %10079 = vmatpush1.msra.mxu0 %v10078
    %10080 = vmatprep.subr.mxu0 0.0
    %10081 = vmatpush2.msra.mxu0 0.0
    %10082 = vmatprep.subr.mxu0 0.0
    %10083 = vmatpush2.msra.mxu0 0.0
    %10084 = vmatprep.subr.mxu0 0.0
    %10085 = vmatpush2.msra.mxu0 0.0
    %10086 = vmatprep.subr.mxu0 0.0
    %10087 = vmatpush2.msra.mxu0 0.0
    %10088 = vmatprep.subr.mxu0 0.0
    %10089 = vmatpush2.msra.mxu0 0.0
    %10090 = vmatprep.subr.mxu0 0.0
    %10091 = vmatpush2.msra.mxu0 0.0
    %10092 = vmatprep.subr.mxu0 0.0
    %10093 = vmatpush2.msra.mxu0 0.0
    %10094 = vmatprep.subr.mxu0 0.0
    %10095 = vmatpush2.msra.mxu0 0.0
    %10096 = vmatprep.subr.mxu0 0.0
    %10097 = vmatpush2.msra.mxu0 0.0
    %10098 = vmatprep.subr.mxu0 0.0
    %10099 = vmatpush2.msra.mxu0 0.0
    %10100 = vmatprep.subr.mxu0 0.0
    %10101 = vmatpush2.msra.mxu0 0.0
    %10102 = vmatprep.subr.mxu0 0.0
    %10103 = vmatpush2.msra.mxu0 0.0
    %10104 = vmatprep.subr.mxu0 0.0
    %10105 = vmatpush2.msra.mxu0 0.0
    %10106 = vmatprep.subr.mxu0 0.0
    %10107 = vmatpush2.msra.mxu0 0.0
    %10108 = vmatprep.subr.mxu0 0.0
    %10109 = vmatpush2.msra.mxu0 0.0
    %10110 = vmatprep.subr.mxu0 0.0
    %10111 = vmatpush2.msra.mxu0 0.0
    %10112 = vmatprep.mubr.f32.mxu0 0.0
    %v10113 = vand.u32 %v9632, 4294901760
    %10114 = vmatmul.mubr.f32.gmra.mxu0 %v10113
    %v10115 = vpop.f32.mrf.mxu0
    %v10116 = vadd.f32 %v10041, %v10115
    %v10117 = vpop.f32.mrf.mxu0
    %10118 = vdwg.mxu0
    %v10119 = vadd.f32 %v1581, %v10116
    %v10120 = vmul.f32 %v10119, 0.5
    %v10121 = vtanh.pop %v10120
    %v10122 = vadd.f32 %v10121, 1.0
    %v10123 = vmul.f32 %v10122, 0.5
    %v10124 = vtanh.pop %v10119
    %10126 = vrot.lane.b32.xlu0 %v9111, 32
    %v10127 = vpop.permute.xlu0 %10126
    %v10129 = vmul.f32 %v10123, %v10127
    %10131 = vrot.lane.b32.xlu0 %v10124, 64
    %v10132 = vpop.permute.xlu0 %10131
    %v10134 = vmul.f32 %v10123, %v10132
    %10136 = vrot.lane.b32.xlu0 %v10134, 32
    %v10137 = vpop.permute.xlu0 %10136
    %v10139 = vadd.f32 %v10129, %v10137
    %v10140 = vtanh.pop %v10139
    %10142 = vrot.lane.b32.xlu0 %v10140, 64
    %v10143 = vpop.permute.xlu0 %10142
    %v10145 = vmul.f32 %v10123, %v10143
    %v10147 = vrot.slane %v9630, 6
    %10148 = vrot.lane.b32.xlu0 %v10147, 32
    %v10149 = vpop.permute.xlu0 %10148
    %v10151 = vsel %vm2640, %v10149, 0.0
    %10152 = vst.msk [vmem:[%s2651] sm:$0x3] %vm2634, %v10151
    %v10153 = vsel %vm2628, %v10145, 0.0
    %10155 = vrot.lane.b32.xlu0 %v10153, 64
    %v10156 = vpop.permute.xlu0 %10155
    %10158 = vst.msk [vmem:[#allocation2] sm:$0x3] %vm2652, %v10156
    %v10159 = vsel %vm2640, %v10149, %v9098
    %v10161 = vrot.slane %v9624, 6
    %10162 = vrot.lane.b32.xlu0 %v10161, 96
    %v10163 = vpop.permute.xlu0 %10162
    %v10165 = vsel %vm2640, %v10163, %v9104
    %10166 = vrot.lane.b32.xlu0 %v9105, 96
    %v10167 = vpop.permute.xlu0 %10166
    %v10169 = vsel %vm2628, %v10145, %v10167
    %v10170 = vsel %vm2628, %v10139, %v10127
    %10171 = vst.msk [vmem:[#allocation4] sm:$0x3] %vm2634, %v10159
    %10173 = vrot.lane.b32.xlu0 %v10169, 64
    %v10174 = vpop.permute.xlu0 %10173
    %10176 = vst.msk [vmem:[#allocation4] sm:$0x3] %vm2652, %v10174
    %10177 = vst.msk [vmem:[#allocation6] sm:$0x3] %vm2634, %v10165
    %10178 = vst.msk [vmem:[#allocation6] sm:$0x3] %vm2652, %v10170
    // Predicated region
    $region30: #{encoder_rnn_forward.1} parent=1 // pred_check
      _
    $region31: #{encoder_rnn_forward.1} parent=1 // pred_check_branch
      %10180 = sbr.rel (0) target = $region33
    $region32: #{encoder_rnn_forward.1} parent=1 // pred_region
      %s10182 = ssub.s32 256, 256
      %10183 = vsyncadd [#allocation3], %s10182
      %s10184 = sshll.u32 [#allocation2], 4
      %s10185 = int_to_ptr.vmem [resolvable:$true] %s10184
      %10190 = dma.vmem_to_hbm [thread:$0]  %s10185, 256, %s7, [#allocation3], 32, 32, 2
    $region33: #{encoder_rnn_forward.1} parent=1 // pred_fallthru
      _
    // Predicated region
    $region34: #{encoder_rnn_forward.1} parent=1 // pred_check
      _
    $region35: #{encoder_rnn_forward.1} parent=1 // pred_check_branch
      %10192 = sbr.rel (0) target = $region37
    $region36: #{encoder_rnn_forward.1} parent=1 // pred_region
      %s10194 = ssub.s32 32, 32
      %10195 = vsyncadd [#allocation5], %s10194
      %s10197 = sshll.u32 [#allocation4], 4
      %s10198 = int_to_ptr.vmem [resolvable:$true] %s10197
      %10200 = dma.vmem_to_hbm [thread:$0]  %s10198, 32, %s8, [#allocation5]
    $region37: #{encoder_rnn_forward.1} parent=1 // pred_fallthru
      _
    // Predicated region
    $region38: #{encoder_rnn_forward.1} parent=1 // pred_check
      _
    $region39: #{encoder_rnn_forward.1} parent=1 // pred_check_branch
      %10202 = sbr.rel (0) target = $region41
    $region40: #{encoder_rnn_forward.1} parent=1 // pred_region
      %s10204 = ssub.s32 32, 32
      %10205 = vsyncadd [#allocation5], %s10204
      %s10207 = sshll.u32 [#allocation6], 4
      %s10208 = int_to_ptr.vmem [resolvable:$true] %s10207
      %10210 = dma.vmem_to_hbm [thread:$0]  %s10208, 32, %s9, [#allocation5]
    $region41: #{encoder_rnn_forward.1} parent=1 // pred_fallthru
      _
    // Predicated region
    $region42: #{encoder_rnn_forward.1} parent=1 // pred_check
      _
    $region43: #{encoder_rnn_forward.1} parent=1 // pred_check_branch
      %10212 = sbr.rel (0) target = $region45
    $region44: #{encoder_rnn_forward.1} parent=1 // pred_region
      %10213 = dma.done [#allocation3], 256
    $region45: #{encoder_rnn_forward.1} parent=1 // pred_fallthru
      _
    // Predicated region
    $region46: #{encoder_rnn_forward.1} parent=1 // pred_check
      _
    $region47: #{encoder_rnn_forward.1} parent=1 // pred_check_branch
      %10215 = sbr.rel (0) target = $region49
    $region48: #{encoder_rnn_forward.1} parent=1 // pred_region
      %10216 = dma.done [#allocation5], 32
    $region49: #{encoder_rnn_forward.1} parent=1 // pred_fallthru
      _
    // Predicated region
    $region50: #{encoder_rnn_forward.1} parent=1 // pred_check
      _
    $region51: #{encoder_rnn_forward.1} parent=1 // pred_check_branch
      %10218 = sbr.rel (0) target = $region53
    $region52: #{encoder_rnn_forward.1} parent=1 // pred_region
      %10219 = dma.done [#allocation5], 32
    $region53: #{encoder_rnn_forward.1} parent=1 // pred_fallthru
      _
    %10220 = vsyncpa [#allocation3], 1
    %10221 = vsyncpa [#allocation5], 1

</llo_original>
